<compile_context>
chip_gen: v7x
topology: tpu7x:2x2x1
jax: 0.10.0
libtpu: 0.0.40
codegen_flags: <defaults>
</compile_context>

<pallas_src>
import jax
import jax.numpy as jnp
from jax.experimental import pallas as pl
from jax.experimental.pallas import tpu as pltpu

_VMEM_LIMIT = 32 * 1024 * 1024  # scoped-VMEM budget; fits v5e/v6e/v7x


# ----------------------------- tile helpers --------------------------------

def _pick_divisor(n, cap, quantum):
    """Largest divisor of n that is <= cap and (a multiple of quantum or == n)."""
    cap = max(1, min(cap, n))
    for t in range(cap, 0, -1):
        if n % t == 0 and (t == n or t % quantum == 0):
            return t
    return n


def _conv_batch_tile(batch):
    # <=4 images per step (keeps the fused kernel's VMEM peak ~10 MiB) and
    # prefer >=2 grid steps so v7x's two TensorCores both get work.
    return _pick_divisor(batch, min(4, max(1, batch // 2)), 1)


def _fc_row_tile(batch):
    cap = batch if batch < 16 else min(256, batch // 2)
    return _pick_divisor(batch, cap, 8)   # block rows: multiple of 8 or full


# ------------- fused conv1 + conv2 + 2x2 max-pool kernel --------------------

def _conv_fused_kernel(p1_ref, w1_ref, b1_ref, w2_ref, b2_ref, o_ref,
                       h1_s, pat_s, h2_s):
    # p1_ref: [TB*832, 9]  bf16  (conv1 im2col, output width zero-padded 26->32)
    # w1_ref: [9, 32]      bf16    b1_ref: [1, 32] f32
    # w2_ref: [288, 64]    bf16    b2_ref: [1, 64] f32
    # o_ref:  [TB, 12, 12, 64] bf16
    # h1_s:   [TB, 26, 32, 32] f32   conv1 output (NHWC, width-padded), never in HBM
    # pat_s:  [TB*576, 288]   bf16   conv2 im2col patches, built once
    # h2_s:   [TB, 24, 24, 64] f32   conv2 pre-pool output, written once (no RMW)
    tb = o_ref.shape[0]

    # ---- conv1 + bias + ReLU: one MXU matmul, M = TB*832, K = 9, N = 32 ----
    y = jnp.dot(p1_ref[...], w1_ref[...], preferred_element_type=jnp.float32)
    y = jnp.maximum(y + b1_ref[...], 0.0)              # [TB*832, 32] f32
    h1_s[...] = y.reshape(tb, 26, 32, 32)              # sublane regroup (groups of 32)

    # ---- conv2 im2col in VMEM: 9 shifted taps -> one bf16 patch matrix ----
    for k in range(9):
        kh, kw = divmod(k, 3)
        tap = h1_s[:, kh:kh + 24, kw:kw + 24, :]       # [TB, 24, 24, 32] f32
        pat_s[:, k * 32:(k + 1) * 32] = (
            tap.reshape(tb * 576, 32).astype(jnp.bfloat16))

    # ---- conv2: ONE K=288 MXU matmul, f32 accumulation, written once ----
    h2 = jnp.dot(pat_s[...], w2_ref[...], preferred_element_type=jnp.float32)
    h2_s[...] = h2.reshape(tb, 24, 24, 64)

    # ---- 2x2 max-pool (stride 2), then bias + ReLU (both commute with max) ----
    mw = jnp.maximum(h2_s[:, :, pl.ds(0, 12, 2), :],
                     h2_s[:, :, pl.ds(1, 12, 2), :])   # [TB, 24, 12, 64]
    mwr = mw.reshape(tb, 12, 2, 12, 64)                # leading-dim split only
    pooled = jnp.maximum(mwr[:, :, 0], mwr[:, :, 1])   # [TB, 12, 12, 64]
    # TODO(synk): dropout1 (p=0.25) is eval-mode identity here.
    o_ref[...] = jnp.maximum(pooled + b2_ref[...], 0.0).astype(o_ref.dtype)


def conv_block(p1_flat, w1, b1, w2, b2, batch):
    TB = _conv_batch_tile(batch)
    return pl.pallas_call(
        _conv_fused_kernel,
        out_shape=jax.ShapeDtypeStruct((batch, 12, 12, 64), jnp.bfloat16),
        grid=(batch // TB,),
        in_specs=[pl.BlockSpec((TB * 832, 9), lambda i: (i, 0)),
                  pl.BlockSpec((9, 32), lambda i: (0, 0)),
                  pl.BlockSpec((1, 32), lambda i: (0, 0)),
                  pl.BlockSpec((288, 64), lambda i: (0, 0)),
                  pl.BlockSpec((1, 64), lambda i: (0, 0))],
        out_specs=pl.BlockSpec((TB, 12, 12, 64), lambda i: (i, 0, 0, 0)),
        scratch_shapes=[pltpu.VMEM((TB, 26, 32, 32), jnp.float32),
                        pltpu.VMEM((TB * 576, 288), jnp.bfloat16),
                        pltpu.VMEM((TB, 24, 24, 64), jnp.float32)],
        compiler_params=pltpu.CompilerParams(
            dimension_semantics=("parallel",),
            vmem_limit_bytes=_VMEM_LIMIT),
    )(p1_flat, w1, b1, w2, b2)


# -------------- fused fc1 + ReLU + fc2 + log_softmax kernel -----------------

def _fc_head_kernel(x_ref, w1_ref, b1_ref, w2_ref, b2_ref, o_ref):
    # x: [TM, 9216] bf16; w1: [9216,128] bf16; w2: [128,128] bf16 (classes padded 10->128)
    h = jnp.dot(x_ref[...], w1_ref[...], preferred_element_type=jnp.float32)
    h = jnp.maximum(h + b1_ref[...], 0.0)                      # fc1 + ReLU (f32)
    # TODO(synk): dropout2 (p=0.5) is eval-mode identity here.
    z = jnp.dot(h.astype(jnp.bfloat16), w2_ref[...],
                preferred_element_type=jnp.float32) + b2_ref[...]
    m = jnp.max(z, axis=-1, keepdims=True)
    lse = jnp.log(jnp.sum(jnp.exp(z - m), axis=-1, keepdims=True)) + m
    o_ref[...] = z - lse    # log_softmax in f32 (padded lanes carry -1e30 bias)


def fc_head(x, w1, b1, w2, b2):
    B = x.shape[0]
    TM = _fc_row_tile(B)
    return pl.pallas_call(
        _fc_head_kernel,
        out_shape=jax.ShapeDtypeStruct((B, 128), jnp.float32),
        grid=(B // TM,),
        in_specs=[pl.BlockSpec((TM, 9216), lambda i: (i, 0)),
                  pl.BlockSpec((9216, 128), lambda i: (0, 0)),
                  pl.BlockSpec((1, 128), lambda i: (0, 0)),
                  pl.BlockSpec((128, 128), lambda i: (0, 0)),
                  pl.BlockSpec((1, 128), lambda i: (0, 0))],
        out_specs=pl.BlockSpec((TM, 128), lambda i: (i, 0)),
        compiler_params=pltpu.CompilerParams(
            dimension_semantics=("parallel",),
            vmem_limit_bytes=_VMEM_LIMIT),
    )(x, w1, b1, w2, b2)


# ----------------------------- JAX glue ------------------------------------

def _conv1_im2col(x):
    """[B,28,28] -> [B*832, 9] bf16: 3x3 valid patches, output width padded 26->32.

    This ~15 KB/image gather is the only conv intermediate XLA materializes;
    conv1's matmul, conv2 and the pool all live in one fused Pallas kernel."""
    B = x.shape[0]
    cols = [x[:, kh:kh + 26, kw:kw + 26] for kh in range(3) for kw in range(3)]
    p = jnp.stack(cols, axis=-1)                               # [B, 26, 26, 9]
    p = jnp.pad(p, ((0, 0), (0, 0), (0, 6), (0, 0)))           # width 26 -> 32 (zeros)
    return p.astype(jnp.bfloat16).reshape(B * 26 * 32, 9)


def init_params(key):
    """Deterministic PyTorch-shaped parameters (uniform +-1/sqrt(fan_in))."""
    ks = jax.random.split(key, 8)

    def u(k, shape, fan_in):
        bound = 1.0 / float(fan_in) ** 0.5
        return jax.random.uniform(k, shape, jnp.float32, -bound, bound)

    return {
        "conv1_w": u(ks[0], (32, 1, 3, 3), 9),       # nn.Conv2d(1, 32, 3, 1)
        "conv1_b": u(ks[1], (32,), 9),
        "conv2_w": u(ks[2], (64, 32, 3, 3), 288),    # nn.Conv2d(32, 64, 3, 1)
        "conv2_b": u(ks[3], (64,), 288),
        "fc1_w":   u(ks[4], (128, 9216), 9216),      # nn.Linear(9216, 128)
        "fc1_b":   u(ks[5], (128,), 9216),
        "fc2_w":   u(ks[6], (10, 128), 128),         # nn.Linear(128, 10)
        "fc2_b":   u(ks[7], (10,), 128),
    }


def prepare_params(params):
    """One-time weight packing (outside the jitted forward): transposes, the
    NHWC-flatten row permutation for fc1, class-dim padding for fc2, bf16 casts."""
    w1 = jnp.transpose(params["conv1_w"], (2, 3, 1, 0)).reshape(9, 32)
    w2 = jnp.transpose(params["conv2_w"], (2, 3, 1, 0)).reshape(288, 64)
    # fc1 consumed torch's NCHW flatten order (c,h,w); permute its input rows to
    # the NHWC (h,w,c) order produced by the fused conv kernel.
    fw1 = params["fc1_w"].reshape(128, 64, 12, 12)
    fw1 = jnp.transpose(fw1, (2, 3, 1, 0)).reshape(12 * 12 * 64, 128)
    # fc2: pad 10 -> 128 classes (zero weights, -1e30 bias) for lane-dense work;
    # real log-probs are columns [:10].  Softmax math stays in f32.
    fw2 = jnp.zeros((128, 128), jnp.float32).at[:, :10].set(params["fc2_w"].T)
    fb2 = jnp.full((1, 128), -1e30, jnp.float32).at[0, :10].set(params["fc2_b"])
    return {
        "w1": w1.astype(jnp.bfloat16),
        "b1": params["conv1_b"].reshape(1, 32).astype(jnp.float32),
        "w2": w2.astype(jnp.bfloat16),
        "b2": params["conv2_b"].reshape(1, 64).astype(jnp.float32),
        "fc1_w": fw1.astype(jnp.bfloat16),
        "fc1_b": params["fc1_b"].reshape(1, 128).astype(jnp.float32),
        "fc2_w": fw2.astype(jnp.bfloat16),
        "fc2_b": fb2,
    }


def basic_net_forward(prep, x_nchw):
    B = x_nchw.shape[0]
    x = x_nchw.reshape(B, 28, 28)                              # C == 1
    p1 = _conv1_im2col(x)                                      # [B*832, 9] bf16
    pooled = conv_block(p1, prep["w1"], prep["b1"],
                        prep["w2"], prep["b2"], B)             # [B,12,12,64] bf16
    flat = pooled.reshape(B, 12 * 12 * 64)                     # NHWC flatten (matches fc1_w perm)
    logp = fc_head(flat, prep["fc1_w"], prep["fc1_b"],
                   prep["fc2_w"], prep["fc2_b"])               # [B, 128]
    return logp[:, :10]                                        # drop padded classes


# ----------------------------- main -----------------------------------------

if __name__ == "__main__":
    key = jax.random.PRNGKey(0)
    pkey, xkey = jax.random.split(key)
    params = init_params(pkey)
    prep = prepare_params(params)                 # one-time packing, outside jit
    # MNIST-shaped input (28x28 required so the flatten hits fc1's 9216).
    x = jax.random.normal(xkey, (2, 1, 28, 28), jnp.float32)

    fwd = jax.jit(basic_net_forward)
    out = jax.block_until_ready(fwd(prep, x))

    assert out.shape == (2, 10), out.shape
    row_sums = jnp.sum(jnp.exp(out), axis=1)      # log_softmax rows sum to 1
    assert bool(jnp.all(jnp.isfinite(out)))
    assert bool(jnp.all(jnp.abs(row_sums - 1.0) < 1e-3))
    print("KERNEL_OK")
</pallas_src>

<mosaic_0001>
module attributes {stable_mosaic.version = 11 : i64} {
  func.func @_conv_fused_kernel(%arg0: i32, %arg1: memref<832x9xbf16, #tpu.memory_space<vmem>>, %arg2: memref<9x32xbf16, #tpu.memory_space<vmem>>, %arg3: memref<1x32xf32, #tpu.memory_space<vmem>>, %arg4: memref<288x64xbf16, #tpu.memory_space<vmem>>, %arg5: memref<1x64xf32, #tpu.memory_space<vmem>>, %arg6: memref<1x12x12x64xbf16, #tpu.memory_space<vmem>>, %arg7: memref<1x26x32x32xf32, #tpu.memory_space<vmem>>, %arg8: memref<576x288xbf16, #tpu.memory_space<vmem>>, %arg9: memref<1x24x24x64xf32, #tpu.memory_space<vmem>>) attributes {dimension_semantics = [#tpu.dimension_semantics<parallel>], iteration_bounds = array<i64: 2>, scalar_prefetch = 0 : i64, scratch_operands = 3 : i64, tpu.core_type = #tpu.core_type<tc>, window_params = [{transform_indices = @transform_0, window_bounds = array<i64: 832, 9>}, {pipeline_mode = #tpu.pipeline_mode<synchronous>, transform_indices = @transform_1, window_bounds = array<i64: 9, 32>}, {pipeline_mode = #tpu.pipeline_mode<synchronous>, transform_indices = @transform_2, window_bounds = array<i64: 1, 32>}, {pipeline_mode = #tpu.pipeline_mode<synchronous>, transform_indices = @transform_3, window_bounds = array<i64: 288, 64>}, {pipeline_mode = #tpu.pipeline_mode<synchronous>, transform_indices = @transform_4, window_bounds = array<i64: 1, 64>}, {transform_indices = @transform_5, window_bounds = array<i64: 1, 12, 12, 64>}]} {
    %c0 = arith.constant 0 : index
    %c0_0 = arith.constant 0 : index
    %0 = vector.load %arg1[%c0, %c0_0] : memref<832x9xbf16, #tpu.memory_space<vmem>>, vector<832x9xbf16>
    %c0_1 = arith.constant 0 : index
    %c0_2 = arith.constant 0 : index
    %1 = vector.load %arg2[%c0_1, %c0_2] : memref<9x32xbf16, #tpu.memory_space<vmem>>, vector<9x32xbf16>
    %cst = arith.constant dense<0.000000e+00> : vector<832x32xf32>
    %2 = tpu.matmul %0, %1, %cst {dimension_numbers = #tpu.dot_dimension_numbers<[1], [0], [0], [1], [0, 0, 1, 1], [], []>} : vector<832x9xbf16>, vector<9x32xbf16>, vector<832x32xf32> -> vector<832x32xf32>
    %c0_3 = arith.constant 0 : index
    %c0_4 = arith.constant 0 : index
    %3 = vector.load %arg3[%c0_3, %c0_4] : memref<1x32xf32, #tpu.memory_space<vmem>>, vector<1x32xf32>
    %4 = vector.broadcast %3 : vector<1x32xf32> to vector<832x32xf32>
    %5 = arith.addf %2, %4 : vector<832x32xf32>
    %cst_5 = arith.constant 0.000000e+00 : f32
    %6 = vector.broadcast %cst_5 : f32 to vector<832x32xf32>
    %7 = arith.maximumf %5, %6 : vector<832x32xf32>
    %8 = vector.shape_cast %7 : vector<832x32xf32> to vector<1x26x32x32xf32>
    %c0_6 = arith.constant 0 : index
    %c0_7 = arith.constant 0 : index
    %c0_8 = arith.constant 0 : index
    %c0_9 = arith.constant 0 : index
    %9 = vector.load %arg7[%c0_6, %c0_7, %c0_8, %c0_9] : memref<1x26x32x32xf32, #tpu.memory_space<vmem>>, vector<1x26x32x32xf32>
    tpu.vector_store %arg7[%c0_6, %c0_7, %c0_8, %c0_9], %8 {strides = array<i32>} : memref<1x26x32x32xf32, #tpu.memory_space<vmem>>, vector<1x26x32x32xf32>,
    %c0_10 = arith.constant 0 : index
    %c0_11 = arith.constant 0 : index
    %c0_12 = arith.constant 0 : index
    %c0_13 = arith.constant 0 : index
    %10 = vector.load %arg7[%c0_10, %c0_11, %c0_12, %c0_13] : memref<1x26x32x32xf32, #tpu.memory_space<vmem>>, vector<1x24x24x32xf32>
    %11 = vector.shape_cast %10 : vector<1x24x24x32xf32> to vector<576x32xf32>
    %12 = arith.truncf %11 : vector<576x32xf32> to vector<576x32xbf16>
    %c0_14 = arith.constant 0 : index
    %c0_15 = arith.constant 0 : index
    %13 = vector.load %arg8[%c0_14, %c0_15] : memref<576x288xbf16, #tpu.memory_space<vmem>>, vector<576x32xbf16>
    tpu.vector_store %arg8[%c0_14, %c0_15], %12 {strides = array<i32>} : memref<576x288xbf16, #tpu.memory_space<vmem>>, vector<576x32xbf16>,
    %c0_16 = arith.constant 0 : index
    %c0_17 = arith.constant 0 : index
    %c1 = arith.constant 1 : index
    %c0_18 = arith.constant 0 : index
    %14 = vector.load %arg7[%c0_16, %c0_17, %c1, %c0_18] : memref<1x26x32x32xf32, #tpu.memory_space<vmem>>, vector<1x24x24x32xf32>
    %15 = vector.shape_cast %14 : vector<1x24x24x32xf32> to vector<576x32xf32>
    %16 = arith.truncf %15 : vector<576x32xf32> to vector<576x32xbf16>
    %c0_19 = arith.constant 0 : index
    %c32 = arith.constant 32 : index
    %17 = vector.load %arg8[%c0_19, %c32] : memref<576x288xbf16, #tpu.memory_space<vmem>>, vector<576x32xbf16>
    tpu.vector_store %arg8[%c0_19, %c32], %16 {strides = array<i32>} : memref<576x288xbf16, #tpu.memory_space<vmem>>, vector<576x32xbf16>,
    %c0_20 = arith.constant 0 : index
    %c0_21 = arith.constant 0 : index
    %c2 = arith.constant 2 : index
    %c0_22 = arith.constant 0 : index
    %18 = vector.load %arg7[%c0_20, %c0_21, %c2, %c0_22] : memref<1x26x32x32xf32, #tpu.memory_space<vmem>>, vector<1x24x24x32xf32>
    %19 = vector.shape_cast %18 : vector<1x24x24x32xf32> to vector<576x32xf32>
    %20 = arith.truncf %19 : vector<576x32xf32> to vector<576x32xbf16>
    %c0_23 = arith.constant 0 : index
    %c64 = arith.constant 64 : index
    %21 = vector.load %arg8[%c0_23, %c64] : memref<576x288xbf16, #tpu.memory_space<vmem>>, vector<576x32xbf16>
    tpu.vector_store %arg8[%c0_23, %c64], %20 {strides = array<i32>} : memref<576x288xbf16, #tpu.memory_space<vmem>>, vector<576x32xbf16>,
    %c0_24 = arith.constant 0 : index
    %c1_25 = arith.constant 1 : index
    %c0_26 = arith.constant 0 : index
    %c0_27 = arith.constant 0 : index
    %22 = vector.load %arg7[%c0_24, %c1_25, %c0_26, %c0_27] : memref<1x26x32x32xf32, #tpu.memory_space<vmem>>, vector<1x24x24x32xf32>
    %23 = vector.shape_cast %22 : vector<1x24x24x32xf32> to vector<576x32xf32>
    %24 = arith.truncf %23 : vector<576x32xf32> to vector<576x32xbf16>
    %c0_28 = arith.constant 0 : index
    %c96 = arith.constant 96 : index
    %25 = vector.load %arg8[%c0_28, %c96] : memref<576x288xbf16, #tpu.memory_space<vmem>>, vector<576x32xbf16>
    tpu.vector_store %arg8[%c0_28, %c96], %24 {strides = array<i32>} : memref<576x288xbf16, #tpu.memory_space<vmem>>, vector<576x32xbf16>,
    %c0_29 = arith.constant 0 : index
    %c1_30 = arith.constant 1 : index
    %c1_31 = arith.constant 1 : index
    %c0_32 = arith.constant 0 : index
    %26 = vector.load %arg7[%c0_29, %c1_30, %c1_31, %c0_32] : memref<1x26x32x32xf32, #tpu.memory_space<vmem>>, vector<1x24x24x32xf32>
    %27 = vector.shape_cast %26 : vector<1x24x24x32xf32> to vector<576x32xf32>
    %28 = arith.truncf %27 : vector<576x32xf32> to vector<576x32xbf16>
    %c0_33 = arith.constant 0 : index
    %c128 = arith.constant 128 : index
    %29 = vector.load %arg8[%c0_33, %c128] : memref<576x288xbf16, #tpu.memory_space<vmem>>, vector<576x32xbf16>
    tpu.vector_store %arg8[%c0_33, %c128], %28 {strides = array<i32>} : memref<576x288xbf16, #tpu.memory_space<vmem>>, vector<576x32xbf16>,
    %c0_34 = arith.constant 0 : index
    %c1_35 = arith.constant 1 : index
    %c2_36 = arith.constant 2 : index
    %c0_37 = arith.constant 0 : index
    %30 = vector.load %arg7[%c0_34, %c1_35, %c2_36, %c0_37] : memref<1x26x32x32xf32, #tpu.memory_space<vmem>>, vector<1x24x24x32xf32>
    %31 = vector.shape_cast %30 : vector<1x24x24x32xf32> to vector<576x32xf32>
    %32 = arith.truncf %31 : vector<576x32xf32> to vector<576x32xbf16>
    %c0_38 = arith.constant 0 : index
    %c160 = arith.constant 160 : index
    %33 = vector.load %arg8[%c0_38, %c160] : memref<576x288xbf16, #tpu.memory_space<vmem>>, vector<576x32xbf16>
    tpu.vector_store %arg8[%c0_38, %c160], %32 {strides = array<i32>} : memref<576x288xbf16, #tpu.memory_space<vmem>>, vector<576x32xbf16>,
    %c0_39 = arith.constant 0 : index
    %c2_40 = arith.constant 2 : index
    %c0_41 = arith.constant 0 : index
    %c0_42 = arith.constant 0 : index
    %34 = vector.load %arg7[%c0_39, %c2_40, %c0_41, %c0_42] : memref<1x26x32x32xf32, #tpu.memory_space<vmem>>, vector<1x24x24x32xf32>
    %35 = vector.shape_cast %34 : vector<1x24x24x32xf32> to vector<576x32xf32>
    %36 = arith.truncf %35 : vector<576x32xf32> to vector<576x32xbf16>
    %c0_43 = arith.constant 0 : index
    %c192 = arith.constant 192 : index
    %37 = vector.load %arg8[%c0_43, %c192] : memref<576x288xbf16, #tpu.memory_space<vmem>>, vector<576x32xbf16>
    tpu.vector_store %arg8[%c0_43, %c192], %36 {strides = array<i32>} : memref<576x288xbf16, #tpu.memory_space<vmem>>, vector<576x32xbf16>,
    %c0_44 = arith.constant 0 : index
    %c2_45 = arith.constant 2 : index
    %c1_46 = arith.constant 1 : index
    %c0_47 = arith.constant 0 : index
    %38 = vector.load %arg7[%c0_44, %c2_45, %c1_46, %c0_47] : memref<1x26x32x32xf32, #tpu.memory_space<vmem>>, vector<1x24x24x32xf32>
    %39 = vector.shape_cast %38 : vector<1x24x24x32xf32> to vector<576x32xf32>
    %40 = arith.truncf %39 : vector<576x32xf32> to vector<576x32xbf16>
    %c0_48 = arith.constant 0 : index
    %c224 = arith.constant 224 : index
    %41 = vector.load %arg8[%c0_48, %c224] : memref<576x288xbf16, #tpu.memory_space<vmem>>, vector<576x32xbf16>
    tpu.vector_store %arg8[%c0_48, %c224], %40 {strides = array<i32>} : memref<576x288xbf16, #tpu.memory_space<vmem>>, vector<576x32xbf16>,
    %c0_49 = arith.constant 0 : index
    %c2_50 = arith.constant 2 : index
    %c2_51 = arith.constant 2 : index
    %c0_52 = arith.constant 0 : index
    %42 = vector.load %arg7[%c0_49, %c2_50, %c2_51, %c0_52] : memref<1x26x32x32xf32, #tpu.memory_space<vmem>>, vector<1x24x24x32xf32>
    %43 = vector.shape_cast %42 : vector<1x24x24x32xf32> to vector<576x32xf32>
    %44 = arith.truncf %43 : vector<576x32xf32> to vector<576x32xbf16>
    %c0_53 = arith.constant 0 : index
    %c256 = arith.constant 256 : index
    %45 = vector.load %arg8[%c0_53, %c256] : memref<576x288xbf16, #tpu.memory_space<vmem>>, vector<576x32xbf16>
    tpu.vector_store %arg8[%c0_53, %c256], %44 {strides = array<i32>} : memref<576x288xbf16, #tpu.memory_space<vmem>>, vector<576x32xbf16>,
    %c0_54 = arith.constant 0 : index
    %c0_55 = arith.constant 0 : index
    %46 = vector.load %arg8[%c0_54, %c0_55] : memref<576x288xbf16, #tpu.memory_space<vmem>>, vector<576x288xbf16>
    %c0_56 = arith.constant 0 : index
    %c0_57 = arith.constant 0 : index
    %47 = vector.load %arg4[%c0_56, %c0_57] : memref<288x64xbf16, #tpu.memory_space<vmem>>, vector<288x64xbf16>
    %cst_58 = arith.constant dense<0.000000e+00> : vector<576x64xf32>
    %48 = tpu.matmul %46, %47, %cst_58 {dimension_numbers = #tpu.dot_dimension_numbers<[1], [0], [0], [1], [0, 0, 1, 1], [], []>} : vector<576x288xbf16>, vector<288x64xbf16>, vector<576x64xf32> -> vector<576x64xf32>
    %49 = vector.shape_cast %48 : vector<576x64xf32> to vector<1x24x24x64xf32>
    %c0_59 = arith.constant 0 : index
    %c0_60 = arith.constant 0 : index
    %c0_61 = arith.constant 0 : index
    %c0_62 = arith.constant 0 : index
    %50 = vector.load %arg9[%c0_59, %c0_60, %c0_61, %c0_62] : memref<1x24x24x64xf32, #tpu.memory_space<vmem>>, vector<1x24x24x64xf32>
    tpu.vector_store %arg9[%c0_59, %c0_60, %c0_61, %c0_62], %49 {strides = array<i32>} : memref<1x24x24x64xf32, #tpu.memory_space<vmem>>, vector<1x24x24x64xf32>,
    %c0_63 = arith.constant 0 : index
    %c0_64 = arith.constant 0 : index
    %c0_65 = arith.constant 0 : index
    %c0_66 = arith.constant 0 : index
    %51 = tpu.strided_load %arg9[%c0_63, %c0_64, %c0_65, %c0_66] {strides = array<i32: 1, 1, 2, 1>} : memref<1x24x24x64xf32, #tpu.memory_space<vmem>>, vector<1x24x12x64xf32>
    %c0_67 = arith.constant 0 : index
    %c0_68 = arith.constant 0 : index
    %c1_69 = arith.constant 1 : index
    %c0_70 = arith.constant 0 : index
    %52 = tpu.strided_load %arg9[%c0_67, %c0_68, %c1_69, %c0_70] {strides = array<i32: 1, 1, 2, 1>} : memref<1x24x24x64xf32, #tpu.memory_space<vmem>>, vector<1x24x12x64xf32>
    %53 = arith.maximumf %51, %52 : vector<1x24x12x64xf32>
    %54 = vector.shape_cast %53 : vector<1x24x12x64xf32> to vector<1x12x2x12x64xf32>
    %55 = vector.extract_strided_slice %54 {offsets = [0, 0, 0, 0, 0], sizes = [1, 12, 1, 12, 64], strides = [1, 1, 1, 1, 1]} : vector<1x12x2x12x64xf32> to vector<1x12x1x12x64xf32>
    %56 = vector.shape_cast %55 : vector<1x12x1x12x64xf32> to vector<1x12x12x64xf32>
    %57 = vector.extract_strided_slice %54 {offsets = [0, 0, 1, 0, 0], sizes = [1, 12, 1, 12, 64], strides = [1, 1, 1, 1, 1]} : vector<1x12x2x12x64xf32> to vector<1x12x1x12x64xf32>
    %58 = vector.shape_cast %57 : vector<1x12x1x12x64xf32> to vector<1x12x12x64xf32>
    %59 = arith.maximumf %56, %58 : vector<1x12x12x64xf32>
    %c0_71 = arith.constant 0 : index
    %c0_72 = arith.constant 0 : index
    %60 = vector.load %arg5[%c0_71, %c0_72] : memref<1x64xf32, #tpu.memory_space<vmem>>, vector<1x64xf32>
    %61 = vector.shape_cast %60 : vector<1x64xf32> to vector<1x1x1x64xf32>
    %62 = vector.broadcast %61 : vector<1x1x1x64xf32> to vector<1x12x12x64xf32>
    %63 = arith.addf %59, %62 : vector<1x12x12x64xf32>
    %cst_73 = arith.constant 0.000000e+00 : f32
    %64 = vector.broadcast %cst_73 : f32 to vector<1x12x12x64xf32>
    %65 = arith.maximumf %63, %64 : vector<1x12x12x64xf32>
    %66 = arith.truncf %65 : vector<1x12x12x64xf32> to vector<1x12x12x64xbf16>
    %c0_74 = arith.constant 0 : index
    %c0_75 = arith.constant 0 : index
    %c0_76 = arith.constant 0 : index
    %c0_77 = arith.constant 0 : index
    %67 = vector.load %arg6[%c0_74, %c0_75, %c0_76, %c0_77] : memref<1x12x12x64xbf16, #tpu.memory_space<vmem>>, vector<1x12x12x64xbf16>
    tpu.vector_store %arg6[%c0_74, %c0_75, %c0_76, %c0_77], %66 {strides = array<i32>} : memref<1x12x12x64xbf16, #tpu.memory_space<vmem>>, vector<1x12x12x64xbf16>,
    return
  }
  func.func @transform_0(%arg0: i32) -> (i32, i32) {
    %c0_i32 = arith.constant 0 : i32
    %c0_i32_0 = arith.constant 0 : i32
    return %arg0, %c0_i32 : i32, i32
  }
  func.func @transform_1(%arg0: i32) -> (i32, i32) {
    %c0_i32 = arith.constant 0 : i32
    %c0_i32_0 = arith.constant 0 : i32
    %c0_i32_1 = arith.constant 0 : i32
    return %c0_i32, %c0_i32_0 : i32, i32
  }
  func.func @transform_2(%arg0: i32) -> (i32, i32) {
    %c0_i32 = arith.constant 0 : i32
    %c0_i32_0 = arith.constant 0 : i32
    %c0_i32_1 = arith.constant 0 : i32
    return %c0_i32, %c0_i32_0 : i32, i32
  }
  func.func @transform_3(%arg0: i32) -> (i32, i32) {
    %c0_i32 = arith.constant 0 : i32
    %c0_i32_0 = arith.constant 0 : i32
    %c0_i32_1 = arith.constant 0 : i32
    return %c0_i32, %c0_i32_0 : i32, i32
  }
  func.func @transform_4(%arg0: i32) -> (i32, i32) {
    %c0_i32 = arith.constant 0 : i32
    %c0_i32_0 = arith.constant 0 : i32
    %c0_i32_1 = arith.constant 0 : i32
    return %c0_i32, %c0_i32_0 : i32, i32
  }
  func.func @transform_5(%arg0: i32) -> (i32, i32, i32, i32) {
    %c0_i32 = arith.constant 0 : i32
    %c0_i32_0 = arith.constant 0 : i32
    %c0_i32_1 = arith.constant 0 : i32
    %c0_i32_2 = arith.constant 0 : i32
    return %arg0, %c0_i32, %c0_i32_0, %c0_i32_1 : i32, i32, i32, i32
  }
}

module attributes {stable_mosaic.version = 11 : i64} {
  func.func @_fc_head_kernel(%arg0: i32, %arg1: memref<2x9216xbf16, #tpu.memory_space<vmem>>, %arg2: memref<9216x128xbf16, #tpu.memory_space<vmem>>, %arg3: memref<1x128xf32, #tpu.memory_space<vmem>>, %arg4: memref<128x128xbf16, #tpu.memory_space<vmem>>, %arg5: memref<1x128xf32, #tpu.memory_space<vmem>>, %arg6: memref<2x128xf32, #tpu.memory_space<vmem>>) attributes {dimension_semantics = [#tpu.dimension_semantics<parallel>], iteration_bounds = array<i64: 1>, scalar_prefetch = 0 : i64, scratch_operands = 0 : i64, tpu.core_type = #tpu.core_type<tc>, window_params = [{transform_indices = @transform_0, window_bounds = array<i64: 2, 9216>}, {pipeline_mode = #tpu.pipeline_mode<synchronous>, transform_indices = @transform_1, window_bounds = array<i64: 9216, 128>}, {pipeline_mode = #tpu.pipeline_mode<synchronous>, transform_indices = @transform_2, window_bounds = array<i64: 1, 128>}, {pipeline_mode = #tpu.pipeline_mode<synchronous>, transform_indices = @transform_3, window_bounds = array<i64: 128, 128>}, {pipeline_mode = #tpu.pipeline_mode<synchronous>, transform_indices = @transform_4, window_bounds = array<i64: 1, 128>}, {transform_indices = @transform_5, window_bounds = array<i64: 2, 128>}]} {
    %c0 = arith.constant 0 : index
    %c0_0 = arith.constant 0 : index
    %0 = vector.load %arg1[%c0, %c0_0] : memref<2x9216xbf16, #tpu.memory_space<vmem>>, vector<2x9216xbf16>
    %c0_1 = arith.constant 0 : index
    %c0_2 = arith.constant 0 : index
    %1 = vector.load %arg2[%c0_1, %c0_2] : memref<9216x128xbf16, #tpu.memory_space<vmem>>, vector<9216x128xbf16>
    %cst = arith.constant dense<0.000000e+00> : vector<2x128xf32>
    %2 = tpu.matmul %0, %1, %cst {dimension_numbers = #tpu.dot_dimension_numbers<[1], [0], [0], [1], [0, 0, 1, 1], [], []>} : vector<2x9216xbf16>, vector<9216x128xbf16>, vector<2x128xf32> -> vector<2x128xf32>
    %c0_3 = arith.constant 0 : index
    %c0_4 = arith.constant 0 : index
    %3 = vector.load %arg3[%c0_3, %c0_4] : memref<1x128xf32, #tpu.memory_space<vmem>>, vector<1x128xf32>
    %4 = vector.broadcast %3 : vector<1x128xf32> to vector<2x128xf32>
    %5 = arith.addf %2, %4 : vector<2x128xf32>
    %cst_5 = arith.constant 0.000000e+00 : f32
    %6 = vector.broadcast %cst_5 : f32 to vector<2x128xf32>
    %7 = arith.maximumf %5, %6 : vector<2x128xf32>
    %8 = arith.truncf %7 : vector<2x128xf32> to vector<2x128xbf16>
    %c0_6 = arith.constant 0 : index
    %c0_7 = arith.constant 0 : index
    %9 = vector.load %arg4[%c0_6, %c0_7] : memref<128x128xbf16, #tpu.memory_space<vmem>>, vector<128x128xbf16>
    %cst_8 = arith.constant dense<0.000000e+00> : vector<2x128xf32>
    %10 = tpu.matmul %8, %9, %cst_8 {dimension_numbers = #tpu.dot_dimension_numbers<[1], [0], [0], [1], [0, 0, 1, 1], [], []>} : vector<2x128xbf16>, vector<128x128xbf16>, vector<2x128xf32> -> vector<2x128xf32>
    %c0_9 = arith.constant 0 : index
    %c0_10 = arith.constant 0 : index
    %11 = vector.load %arg5[%c0_9, %c0_10] : memref<1x128xf32, #tpu.memory_space<vmem>>, vector<1x128xf32>
    %12 = vector.broadcast %11 : vector<1x128xf32> to vector<2x128xf32>
    %13 = arith.addf %10, %12 : vector<2x128xf32>
    %cst_11 = arith.constant dense<0xFF800000> : vector<2xf32>
    %14 = vector.multi_reduction <maximumf>, %13, %cst_11 [1] : vector<2x128xf32> to vector<2xf32>
    %15 = vector.shape_cast %14 : vector<2xf32> to vector<2x1xf32>
    %16 = vector.broadcast %15 : vector<2x1xf32> to vector<2x128xf32>
    %17 = arith.subf %13, %16 : vector<2x128xf32>
    %18 = math.exp %17 : vector<2x128xf32>
    %cst_12 = arith.constant dense<0.000000e+00> : vector<2xf32>
    %19 = vector.multi_reduction <add>, %18, %cst_12 [1] : vector<2x128xf32> to vector<2xf32>
    %20 = vector.shape_cast %19 : vector<2xf32> to vector<2x1xf32>
    %21 = math.log %20 : vector<2x1xf32>
    %22 = arith.addf %21, %15 : vector<2x1xf32>
    %23 = vector.broadcast %22 : vector<2x1xf32> to vector<2x128xf32>
    %24 = arith.subf %13, %23 : vector<2x128xf32>
    %c0_13 = arith.constant 0 : index
    %c0_14 = arith.constant 0 : index
    %25 = vector.load %arg6[%c0_13, %c0_14] : memref<2x128xf32, #tpu.memory_space<vmem>>, vector<2x128xf32>
    tpu.vector_store %arg6[%c0_13, %c0_14], %24 {strides = array<i32>} : memref<2x128xf32, #tpu.memory_space<vmem>>, vector<2x128xf32>,
    return
  }
  func.func @transform_0(%arg0: i32) -> (i32, i32) {
    %c0_i32 = arith.constant 0 : i32
    %c0_i32_0 = arith.constant 0 : i32
    return %arg0, %c0_i32 : i32, i32
  }
  func.func @transform_1(%arg0: i32) -> (i32, i32) {
    %c0_i32 = arith.constant 0 : i32
    %c0_i32_0 = arith.constant 0 : i32
    %c0_i32_1 = arith.constant 0 : i32
    return %c0_i32, %c0_i32_0 : i32, i32
  }
  func.func @transform_2(%arg0: i32) -> (i32, i32) {
    %c0_i32 = arith.constant 0 : i32
    %c0_i32_0 = arith.constant 0 : i32
    %c0_i32_1 = arith.constant 0 : i32
    return %c0_i32, %c0_i32_0 : i32, i32
  }
  func.func @transform_3(%arg0: i32) -> (i32, i32) {
    %c0_i32 = arith.constant 0 : i32
    %c0_i32_0 = arith.constant 0 : i32
    %c0_i32_1 = arith.constant 0 : i32
    return %c0_i32, %c0_i32_0 : i32, i32
  }
  func.func @transform_4(%arg0: i32) -> (i32, i32) {
    %c0_i32 = arith.constant 0 : i32
    %c0_i32_0 = arith.constant 0 : i32
    %c0_i32_1 = arith.constant 0 : i32
    return %c0_i32, %c0_i32_0 : i32, i32
  }
  func.func @transform_5(%arg0: i32) -> (i32, i32) {
    %c0_i32 = arith.constant 0 : i32
    %c0_i32_0 = arith.constant 0 : i32
    return %arg0, %c0_i32 : i32, i32
  }
}

</mosaic_0001>

<llo_original>
// kernel: basic_net_forward.2
$region0: #{basic_net_forward.2}
  #allocation0 [shape = 'u32[]', space=smem, size = 0x4, offset = 0x4, fixed_abs, tag = 'smem constant byte address 0x4 - core index']
  #allocation1 [shape = 'u32[144,128]{1,0:T(1,128)}', space=vmem, size = 0x12000, scoped, tag = 'internal scratch']
  #allocation2 [shape = 'f32[1,26,32,32]{3,2,1,0:T(8,128)}', space=vmem, size = 0x68000, scoped, tag = 'scratch operand']
  #allocation3 [shape = 'bf16[576,288]{1,0:T(16,128)(2,1)}', space=vmem, size = 0x6c000, scoped, tag = 'scratch operand']
  #allocation4 [shape = 'f32[1,24,24,64]{3,2,1,0:T(8,128)}', space=vmem, size = 0x48000, scoped, tag = 'scratch operand']
  %s0 = inlined_call_operand.vmem [shape: bf16[1664,9], index: 0, kind: input, shape index: {}]
  %s1 = inlined_call_operand.hbm [shape: bf16[9,32], index: 1, kind: input, shape index: {}]
  %s2 = inlined_call_operand.hbm [shape: f32[1,32], index: 2, kind: input, shape index: {}]
  %s3 = inlined_call_operand.vmem [shape: bf16[288,64], index: 3, kind: input, shape index: {}]
  %s4 = inlined_call_operand.hbm [shape: f32[1,64], index: 4, kind: input, shape index: {}]
  %s5 = inlined_call_operand.vmem [shape: bf16[2,12,12,64], index: 5, kind: output, shape index: {}]
  %s6 = sld [smem:[#allocation0]]
  $region65: #{basic_net_forward.2} parent=0
    _
  %s8 = ssub.s32 1, %s6
  %s9 = scalar_select 0, %s8, %s6
  $region1: #{basic_net_forward.2} parent=0
    #allocation5 [shape = 'u8[4096]{0}', space=vmem, size = 0x1000, scoped, tag = 'input window, operand 1, single buffered']
    #allocation6 [shape = 's32[2]{0}', space=sflag, size = 0x8, scoped, tag = 'scoped memory for basic_net_forward.2']
    #allocation7 [shape = 'u8[512]{0}', space=vmem, size = 0x400, scoped, tag = 'input window, operand 2, single buffered']
    #allocation8 [shape = 's32[1]{0}', space=sflag, size = 0x4, scoped, tag = 'scoped memory for basic_net_forward.2']
    #allocation9 [shape = 'u8[512]{0}', space=vmem, size = 0x400, scoped, tag = 'input window, operand 4, single buffered']
    %10 = vsyncpa [#allocation6], 0
    %11 = vsyncpa [#allocation8], 0
    loop: start=0, step=1, limit=4
    $region2: #{basic_net_forward.2} parent=1 // loop_pre_header
      _
    $region3: #{basic_net_forward.2} parent=1 // loop_header
      %s13 = sphi 0, %s17
      %p14 = scmp.ge.s32.totalorder %s13, 4
      %s23 = sphi 0, %s25
      %s26 = sphi 0, %s23
      %s27 = sphi 0, %s26
      %s43 = sphi 0, %s27
      %s47 = sphi 0, %s47
      %s49 = sphi 0, %s47
      %s50 = sphi 0, %s49
      %s64 = sphi 0, %s50
      %s68 = sphi 0, %s68
      %s70 = sphi 0, %s68
      %s71 = sphi 0, %s70
      %s85 = sphi 0, %s71
      %s89 = sphi 0, %s89
      %s91 = sphi 0, %s89
      %s92 = sphi 0, %s91
      %s106 = sphi 0, %s92
      %s110 = sphi 0, %s110
      %s112 = sphi 0, %s110
      %s113 = sphi 0, %s112
      %s127 = sphi 0, %s113
      %s133 = sphi 0, %s135
      %s136 = sphi 0, %s133
      %s137 = sphi 0, %s136
      %s153 = sphi 0, %s137
    $region4: #{basic_net_forward.2} parent=1 // loop_header_branch
      %16 = sbr.rel (%p14) target = $region8
    $region5: #{basic_net_forward.2} parent=1 // loop_body
      %s18 = ssub.s32 %s13, 1
      %s19 = ssub.s32 %s13, 2
      %s20 = sadd.s32 %s13, 1
      %s21 = ssub.s32 %s13, %s20
      %p22 = scmp.eq.s32.totalorder %s21, 0
      %s24 = sadd.s32 %s23, 1
      %s25 = scalar_select %p22, %s23, %s24
      %p28 = pneg %p22
      %p29 = scmp.eq.s32.totalorder %s13, 1
      %p30 = por %p28, %p29
      %p31 = scmp.ne.s32.totalorder %s23, %s26
      %p32 = scmp.eq.s32.totalorder %s13, 0
      %p33 = por %p31, %p32
      %p34 = scmp.ne.s32.totalorder %s23, %s26
      %p35 = scmp.eq.s32.totalorder %s18, 1
      %p36 = por %p34, %p35
      %p37 = scmp.ne.s32.totalorder %s26, %s27
      %p38 = scmp.eq.s32.totalorder %s18, 0
      %p39 = por %p37, %p38
      %p40 = scmp.ne.s32.totalorder %s26, %s27
      %p41 = scmp.eq.s32.totalorder %s19, 1
      %p42 = por %p40, %p41
      %p44 = scmp.ne.s32.totalorder %s27, %s43
      %p45 = scmp.eq.s32.totalorder %s19, 0
      %p46 = por %p44, %p45
      %s48 = sadd.s32 %s47, 1
      %p51 = scmp.eq.s32.totalorder %s13, 1
      %p52 = scmp.ne.s32.totalorder %s47, %s49
      %p53 = scmp.eq.s32.totalorder %s13, 0
      %p54 = por %p52, %p53
      %p55 = scmp.ne.s32.totalorder %s47, %s49
      %p56 = scmp.eq.s32.totalorder %s18, 1
      %p57 = por %p55, %p56
      %p58 = scmp.ne.s32.totalorder %s49, %s50
      %p59 = scmp.eq.s32.totalorder %s18, 0
      %p60 = por %p58, %p59
      %p61 = scmp.ne.s32.totalorder %s49, %s50
      %p62 = scmp.eq.s32.totalorder %s19, 1
      %p63 = por %p61, %p62
      %p65 = scmp.ne.s32.totalorder %s50, %s64
      %p66 = scmp.eq.s32.totalorder %s19, 0
      %p67 = por %p65, %p66
      %s69 = sadd.s32 %s68, 1
      %p72 = scmp.eq.s32.totalorder %s13, 1
      %p73 = scmp.ne.s32.totalorder %s68, %s70
      %p74 = scmp.eq.s32.totalorder %s13, 0
      %p75 = por %p73, %p74
      %p76 = scmp.ne.s32.totalorder %s68, %s70
      %p77 = scmp.eq.s32.totalorder %s18, 1
      %p78 = por %p76, %p77
      %p79 = scmp.ne.s32.totalorder %s70, %s71
      %p80 = scmp.eq.s32.totalorder %s18, 0
      %p81 = por %p79, %p80
      %p82 = scmp.ne.s32.totalorder %s70, %s71
      %p83 = scmp.eq.s32.totalorder %s19, 1
      %p84 = por %p82, %p83
      %p86 = scmp.ne.s32.totalorder %s71, %s85
      %p87 = scmp.eq.s32.totalorder %s19, 0
      %p88 = por %p86, %p87
      %s90 = sadd.s32 %s89, 1
      %p93 = scmp.eq.s32.totalorder %s13, 1
      %p94 = scmp.ne.s32.totalorder %s89, %s91
      %p95 = scmp.eq.s32.totalorder %s13, 0
      %p96 = por %p94, %p95
      %p97 = scmp.ne.s32.totalorder %s89, %s91
      %p98 = scmp.eq.s32.totalorder %s18, 1
      %p99 = por %p97, %p98
      %p100 = scmp.ne.s32.totalorder %s91, %s92
      %p101 = scmp.eq.s32.totalorder %s18, 0
      %p102 = por %p100, %p101
      %p103 = scmp.ne.s32.totalorder %s91, %s92
      %p104 = scmp.eq.s32.totalorder %s19, 1
      %p105 = por %p103, %p104
      %p107 = scmp.ne.s32.totalorder %s92, %s106
      %p108 = scmp.eq.s32.totalorder %s19, 0
      %p109 = por %p107, %p108
      %s111 = sadd.s32 %s110, 1
      %p114 = scmp.eq.s32.totalorder %s13, 1
      %p115 = scmp.ne.s32.totalorder %s110, %s112
      %p116 = scmp.eq.s32.totalorder %s13, 0
      %p117 = por %p115, %p116
      %p118 = scmp.ne.s32.totalorder %s110, %s112
      %p119 = scmp.eq.s32.totalorder %s18, 1
      %p120 = por %p118, %p119
      %p121 = scmp.ne.s32.totalorder %s112, %s113
      %p122 = scmp.eq.s32.totalorder %s18, 0
      %p123 = por %p121, %p122
      %p124 = scmp.ne.s32.totalorder %s112, %s113
      %p125 = scmp.eq.s32.totalorder %s19, 1
      %p126 = por %p124, %p125
      %p128 = scmp.ne.s32.totalorder %s113, %s127
      %p129 = scmp.eq.s32.totalorder %s19, 0
      %p130 = por %p128, %p129
      %s131 = ssub.s32 %s13, %s20
      %p132 = scmp.eq.s32.totalorder %s131, 0
      %s134 = sadd.s32 %s133, 1
      %s135 = scalar_select %p132, %s133, %s134
      %p138 = pneg %p132
      %p139 = scmp.eq.s32.totalorder %s13, 1
      %p140 = por %p138, %p139
      %p141 = scmp.ne.s32.totalorder %s133, %s136
      %p142 = scmp.eq.s32.totalorder %s13, 0
      %p143 = por %p141, %p142
      %p144 = scmp.ne.s32.totalorder %s133, %s136
      %p145 = scmp.eq.s32.totalorder %s18, 1
      %p146 = por %p144, %p145
      %p147 = scmp.ne.s32.totalorder %s136, %s137
      %p148 = scmp.eq.s32.totalorder %s18, 0
      %p149 = por %p147, %p148
      %p150 = scmp.ne.s32.totalorder %s136, %s137
      %p151 = scmp.eq.s32.totalorder %s19, 1
      %p152 = por %p150, %p151
      %p154 = scmp.ne.s32.totalorder %s137, %s153
      %p155 = scmp.eq.s32.totalorder %s19, 0
      %p156 = por %p154, %p155
      %p157 = scmp.le.s32.totalorder 1, %s13
      %p158 = scmp.lt.s32.totalorder %s13, 3
      %p159 = pnand %p157, %p158
      %p160 = pneg %p159
      // Predicated region
      $region9: #{basic_net_forward.2} parent=5 // pred_check
        _
      $region10: #{basic_net_forward.2} parent=5 // pred_check_branch
        %162 = sbr.rel (%p159) target = $region12
      $region11: #{basic_net_forward.2} parent=5 // pred_region
        %s163 = ssub.s32 %s13, 1
        // Predicated region
        $region13: #{basic_net_forward.2} parent=11 // pred_check
          %p164 = pneg %p60
        $region14: #{basic_net_forward.2} parent=11 // pred_check_branch
          %166 = sbr.rel (%p164) target = $region16
        $region15: #{basic_net_forward.2} parent=11 // pred_region
          %s168 = ssub.s32 128, 128
          %169 = vsyncadd [#allocation6], %s168
          %s170 = sshll.u32 [#allocation5], 4
          %s171 = int_to_ptr.vmem [resolvable:$true] %s170
          %176 = dma.hbm_to_vmem [thread:$0]  %s1, 128, %s171, [#allocation6], 64, 64, 4
        $region16: #{basic_net_forward.2} parent=11 // pred_fallthru
          _
        // Predicated region
        $region17: #{basic_net_forward.2} parent=11 // pred_check
          %p177 = pneg %p81
        $region18: #{basic_net_forward.2} parent=11 // pred_check_branch
          %179 = sbr.rel (%p177) target = $region20
        $region19: #{basic_net_forward.2} parent=11 // pred_region
          %s181 = ssub.s32 16, 16
          %182 = vsyncadd [#allocation8], %s181
          %s184 = sshll.u32 [#allocation7], 4
          %s185 = int_to_ptr.vmem [resolvable:$true] %s184
          %187 = dma.hbm_to_vmem [thread:$0]  %s2, 16, %s185, [#allocation8]
        $region20: #{basic_net_forward.2} parent=11 // pred_fallthru
          _
        // Predicated region
        $region21: #{basic_net_forward.2} parent=11 // pred_check
          %p188 = pneg %p102
        $region22: #{basic_net_forward.2} parent=11 // pred_check_branch
          %190 = sbr.rel (%p188) target = $region24
        $region23: #{basic_net_forward.2} parent=11 // pred_region
          _
        $region24: #{basic_net_forward.2} parent=11 // pred_fallthru
          _
        // Predicated region
        $region25: #{basic_net_forward.2} parent=11 // pred_check
          %p191 = pneg %p123
        $region26: #{basic_net_forward.2} parent=11 // pred_check_branch
          %193 = sbr.rel (%p191) target = $region28
        $region27: #{basic_net_forward.2} parent=11 // pred_region
          %s195 = ssub.s32 16, 16
          %196 = vsyncadd [#allocation8], %s195
          %s198 = sshll.u32 [#allocation9], 4
          %s199 = int_to_ptr.vmem [resolvable:$true] %s198
          %201 = dma.hbm_to_vmem [thread:$0]  %s4, 16, %s199, [#allocation8]
        $region28: #{basic_net_forward.2} parent=11 // pred_fallthru
          _
      $region12: #{basic_net_forward.2} parent=5 // pred_fallthru
        _
      %p202 = scmp.lt.s32.totalorder %s13, 2
      // Predicated region
      $region29: #{basic_net_forward.2} parent=5 // pred_check
        %p203 = pneg %p202
      $region30: #{basic_net_forward.2} parent=5 // pred_check_branch
        %205 = sbr.rel (%p203) target = $region32
      $region31: #{basic_net_forward.2} parent=5 // pred_region
        // Predicated region
        $region33: #{basic_net_forward.2} parent=31 // pred_check
          %p206 = pneg %p33
        $region34: #{basic_net_forward.2} parent=31 // pred_check_branch
          %208 = sbr.rel (%p206) target = $region36
        $region35: #{basic_net_forward.2} parent=31 // pred_region
          %s209 = smul.u32 104, %s13
          %p210 = scmp.lt.s32.totalorder %s209, 207
          %s211 = scalar_select %p210, %s209, 207
          %s212 = smul.addr %s211, 4
          %s213 = scalar_lea.vmem %s0, %s212
          %s214 = smul.u32 104, %s13
        $region36: #{basic_net_forward.2} parent=31 // pred_fallthru
          _
      $region32: #{basic_net_forward.2} parent=5 // pred_fallthru
        _
      %p215 = scmp.le.s32.totalorder 1, %s13
      %p216 = scmp.lt.s32.totalorder %s13, 3
      %p217 = pnand %p215, %p216
      %p218 = pneg %p217
      // Predicated region
      $region37: #{basic_net_forward.2} parent=5 // pred_check
        _
      $region38: #{basic_net_forward.2} parent=5 // pred_check_branch
        %220 = sbr.rel (%p217) target = $region40
      $region39: #{basic_net_forward.2} parent=5 // pred_region
        %s221 = ssub.s32 %s13, 1
        // Predicated region
        $region41: #{basic_net_forward.2} parent=39 // pred_check
          %p222 = pneg %p60
        $region42: #{basic_net_forward.2} parent=39 // pred_check_branch
          %224 = sbr.rel (%p222) target = $region44
        $region43: #{basic_net_forward.2} parent=39 // pred_region
          %225 = dma.done [#allocation6], 128
        $region44: #{basic_net_forward.2} parent=39 // pred_fallthru
          _
        // Predicated region
        $region45: #{basic_net_forward.2} parent=39 // pred_check
          %p226 = pneg %p81
        $region46: #{basic_net_forward.2} parent=39 // pred_check_branch
          %228 = sbr.rel (%p226) target = $region48
        $region47: #{basic_net_forward.2} parent=39 // pred_region
          %229 = dma.done [#allocation8], 16
        $region48: #{basic_net_forward.2} parent=39 // pred_fallthru
          _
        // Predicated region
        $region49: #{basic_net_forward.2} parent=39 // pred_check
          %p230 = pneg %p123
        $region50: #{basic_net_forward.2} parent=39 // pred_check_branch
          %232 = sbr.rel (%p230) target = $region52
        $region51: #{basic_net_forward.2} parent=39 // pred_region
          %233 = dma.done [#allocation8], 16
        $region52: #{basic_net_forward.2} parent=39 // pred_fallthru
          _
        %s234 = smul.u32 104, %s18
        %p235 = scmp.lt.s32.totalorder %s234, 207
        %s236 = scalar_select %p235, %s234, 207
        %s237 = smul.addr %s236, 4
        %s238 = scalar_lea.vmem %s0, %s237
        %p239 = pneg %p39
        %p240 = pneg %p36
        %p241 = pneg %p60
        %p242 = pneg %p57
        %p243 = pneg %p81
        %p244 = pneg %p78
        %p245 = pneg %p102
        %p246 = pneg %p99
        %p247 = pneg %p123
        %p248 = pneg %p120
        %p249 = pneg %p149
        %p250 = pneg %p146
        %p251 = scmp.lt.s32.totalorder %s18, 1
        %s252 = scalar_select %p251, %s18, 1
        %s253 = smul.addr %s252, 24
        %s254 = smul.addr %s253, 4
        %s255 = scalar_lea.vmem %s5, %s254
        %s256 = smul.u32 104, %s18
        %p257 = scmp.lt.s32.totalorder %s256, 207
        %s258 = scalar_select %p257, %s256, 207
        %s259 = smul.addr %s258, 4
        %s260 = scalar_lea.vmem %s0, %s259
        %s261 = smul.u32 104, %s18
        %p262 = scmp.lt.s32.totalorder %s18, 1
        %s263 = scalar_select %p262, %s18, 1
        %s264 = smul.addr %s263, 24
        %s265 = smul.addr %s264, 4
        %s266 = scalar_lea.vmem %s5, %s265
        %v268 = vld [vmem:[%s260] sm:$0xf]
        %v269 = vld [vmem:[%s260 + $0x4] sm:$0xf]
        %v270 = vld [vmem:[%s260 + $0x8] sm:$0xf]
        %v271 = vld [vmem:[%s260 + $0xc] sm:$0xf]
        %v272 = vld [vmem:[%s260 + $0x10] sm:$0xf]
        %v273 = vld [vmem:[%s260 + $0x14] sm:$0xf]
        %v274 = vld [vmem:[%s260 + $0x18] sm:$0xf]
        %v275 = vld [vmem:[%s260 + $0x1c] sm:$0xf]
        %v276 = vld [vmem:[%s260 + $0x20] sm:$0xf]
        %v277 = vld [vmem:[%s260 + $0x24] sm:$0xf]
        %v278 = vld [vmem:[%s260 + $0x28] sm:$0xf]
        %v279 = vld [vmem:[%s260 + $0x2c] sm:$0xf]
        %v280 = vld [vmem:[%s260 + $0x30] sm:$0xf]
        %v281 = vld [vmem:[%s260 + $0x34] sm:$0xf]
        %v282 = vld [vmem:[%s260 + $0x38] sm:$0xf]
        %v283 = vld [vmem:[%s260 + $0x3c] sm:$0xf]
        %v284 = vld [vmem:[%s260 + $0x40] sm:$0xf]
        %v285 = vld [vmem:[%s260 + $0x44] sm:$0xf]
        %v286 = vld [vmem:[%s260 + $0x48] sm:$0xf]
        %v287 = vld [vmem:[%s260 + $0x4c] sm:$0xf]
        %v288 = vld [vmem:[%s260 + $0x50] sm:$0xf]
        %v289 = vld [vmem:[%s260 + $0x54] sm:$0xf]
        %v290 = vld [vmem:[%s260 + $0x58] sm:$0xf]
        %v291 = vld [vmem:[%s260 + $0x5c] sm:$0xf]
        %v292 = vld [vmem:[%s260 + $0x60] sm:$0xf]
        %v293 = vld [vmem:[%s260 + $0x64] sm:$0xf]
        %v294 = vld [vmem:[%s260 + $0x68] sm:$0xf]
        %v295 = vld [vmem:[%s260 + $0x6c] sm:$0xf]
        %v296 = vld [vmem:[%s260 + $0x70] sm:$0xf]
        %v297 = vld [vmem:[%s260 + $0x74] sm:$0xf]
        %v298 = vld [vmem:[%s260 + $0x78] sm:$0xf]
        %v299 = vld [vmem:[%s260 + $0x7c] sm:$0xf]
        %v300 = vld [vmem:[%s260 + $0x80] sm:$0xf]
        %v301 = vld [vmem:[%s260 + $0x84] sm:$0xf]
        %v302 = vld [vmem:[%s260 + $0x88] sm:$0xf]
        %v303 = vld [vmem:[%s260 + $0x8c] sm:$0xf]
        %v304 = vld [vmem:[%s260 + $0x90] sm:$0xf]
        %v305 = vld [vmem:[%s260 + $0x94] sm:$0xf]
        %v306 = vld [vmem:[%s260 + $0x98] sm:$0xf]
        %v307 = vld [vmem:[%s260 + $0x9c] sm:$0xf]
        %v308 = vld [vmem:[%s260 + $0xa0] sm:$0xf]
        %v309 = vld [vmem:[%s260 + $0xa4] sm:$0xf]
        %v310 = vld [vmem:[%s260 + $0xa8] sm:$0xf]
        %v311 = vld [vmem:[%s260 + $0xac] sm:$0xf]
        %v312 = vld [vmem:[%s260 + $0xb0] sm:$0xf]
        %v313 = vld [vmem:[%s260 + $0xb4] sm:$0xf]
        %v314 = vld [vmem:[%s260 + $0xb8] sm:$0xf]
        %v315 = vld [vmem:[%s260 + $0xbc] sm:$0xf]
        %v316 = vld [vmem:[%s260 + $0xc0] sm:$0xf]
        %v317 = vld [vmem:[%s260 + $0xc4] sm:$0xf]
        %v318 = vld [vmem:[%s260 + $0xc8] sm:$0xf]
        %v319 = vld [vmem:[%s260 + $0xcc] sm:$0xf]
        %v320 = vld [vmem:[%s260 + $0xd0] sm:$0xf]
        %v321 = vld [vmem:[%s260 + $0xd4] sm:$0xf]
        %v322 = vld [vmem:[%s260 + $0xd8] sm:$0xf]
        %v323 = vld [vmem:[%s260 + $0xdc] sm:$0xf]
        %v324 = vld [vmem:[%s260 + $0xe0] sm:$0xf]
        %v325 = vld [vmem:[%s260 + $0xe4] sm:$0xf]
        %v326 = vld [vmem:[%s260 + $0xe8] sm:$0xf]
        %v327 = vld [vmem:[%s260 + $0xec] sm:$0xf]
        %v328 = vld [vmem:[%s260 + $0xf0] sm:$0xf]
        %v329 = vld [vmem:[%s260 + $0xf4] sm:$0xf]
        %v330 = vld [vmem:[%s260 + $0xf8] sm:$0xf]
        %v331 = vld [vmem:[%s260 + $0xfc] sm:$0xf]
        %v332 = vld [vmem:[%s260 + $0x100] sm:$0xf]
        %v333 = vld [vmem:[%s260 + $0x104] sm:$0xf]
        %v334 = vld [vmem:[%s260 + $0x108] sm:$0xf]
        %v335 = vld [vmem:[%s260 + $0x10c] sm:$0xf]
        %v336 = vld [vmem:[%s260 + $0x110] sm:$0xf]
        %v337 = vld [vmem:[%s260 + $0x114] sm:$0xf]
        %v338 = vld [vmem:[%s260 + $0x118] sm:$0xf]
        %v339 = vld [vmem:[%s260 + $0x11c] sm:$0xf]
        %v340 = vld [vmem:[%s260 + $0x120] sm:$0xf]
        %v341 = vld [vmem:[%s260 + $0x124] sm:$0xf]
        %v342 = vld [vmem:[%s260 + $0x128] sm:$0xf]
        %v343 = vld [vmem:[%s260 + $0x12c] sm:$0xf]
        %v344 = vld [vmem:[%s260 + $0x130] sm:$0xf]
        %v345 = vld [vmem:[%s260 + $0x134] sm:$0xf]
        %v346 = vld [vmem:[%s260 + $0x138] sm:$0xf]
        %v347 = vld [vmem:[%s260 + $0x13c] sm:$0xf]
        %v348 = vld [vmem:[%s260 + $0x140] sm:$0xf]
        %v349 = vld [vmem:[%s260 + $0x144] sm:$0xf]
        %v350 = vld [vmem:[%s260 + $0x148] sm:$0xf]
        %v351 = vld [vmem:[%s260 + $0x14c] sm:$0xf]
        %v352 = vld [vmem:[%s260 + $0x150] sm:$0xf]
        %v353 = vld [vmem:[%s260 + $0x154] sm:$0xf]
        %v354 = vld [vmem:[%s260 + $0x158] sm:$0xf]
        %v355 = vld [vmem:[%s260 + $0x15c] sm:$0xf]
        %v356 = vld [vmem:[%s260 + $0x160] sm:$0xf]
        %v357 = vld [vmem:[%s260 + $0x164] sm:$0xf]
        %v358 = vld [vmem:[%s260 + $0x168] sm:$0xf]
        %v359 = vld [vmem:[%s260 + $0x16c] sm:$0xf]
        %v360 = vld [vmem:[%s260 + $0x170] sm:$0xf]
        %v361 = vld [vmem:[%s260 + $0x174] sm:$0xf]
        %v362 = vld [vmem:[%s260 + $0x178] sm:$0xf]
        %v363 = vld [vmem:[%s260 + $0x17c] sm:$0xf]
        %v364 = vld [vmem:[%s260 + $0x180] sm:$0xf]
        %v365 = vld [vmem:[%s260 + $0x184] sm:$0xf]
        %v366 = vld [vmem:[%s260 + $0x188] sm:$0xf]
        %v367 = vld [vmem:[%s260 + $0x18c] sm:$0xf]
        %v368 = vld [vmem:[%s260 + $0x190] sm:$0xf]
        %v369 = vld [vmem:[%s260 + $0x194] sm:$0xf]
        %v370 = vld [vmem:[%s260 + $0x198] sm:$0xf]
        %v371 = vld [vmem:[%s260 + $0x19c] sm:$0xf]
        %v372 = vld [vmem:[#allocation5] sm:$0xf]
        %v373 = vld [vmem:[#allocation5 + $0x4] sm:$0x1]
        %v374 = vld [vmem:[#allocation7] sm:$0x1]
        %v376 = vlaneseq
        %v377 = vshrl.u32 %v376, 7
        %v378 = vsub.s32 0, %v377
        %v379 = vrot.slane %v374, %v378
        %v485 = vunpack.c.l.b16 %v268
        %v486 = vunpack.c.l.b16 %v269
        %v487 = vunpack.c.l.b16 %v270
        %v488 = vunpack.c.l.b16 %v271
        %v489 = vunpack.c.l.b16 %v272
        %v490 = vunpack.c.l.b16 %v273
        %v491 = vunpack.c.l.b16 %v274
        %v492 = vunpack.c.l.b16 %v275
        %v493 = vunpack.c.l.b16 %v276
        %v494 = vunpack.c.l.b16 %v277
        %v495 = vunpack.c.l.b16 %v278
        %v496 = vunpack.c.l.b16 %v279
        %v497 = vunpack.c.l.b16 %v280
        %v498 = vunpack.c.l.b16 %v281
        %v499 = vunpack.c.l.b16 %v282
        %v500 = vunpack.c.l.b16 %v283
        %v501 = vunpack.c.l.b16 %v284
        %v502 = vunpack.c.l.b16 %v285
        %v503 = vunpack.c.l.b16 %v286
        %v504 = vunpack.c.l.b16 %v287
        %v505 = vunpack.c.l.b16 %v288
        %v506 = vunpack.c.l.b16 %v289
        %v507 = vunpack.c.l.b16 %v290
        %v508 = vunpack.c.l.b16 %v291
        %v509 = vunpack.c.l.b16 %v292
        %v510 = vunpack.c.l.b16 %v293
        %v511 = vunpack.c.l.b16 %v294
        %v512 = vunpack.c.l.b16 %v295
        %v513 = vunpack.c.l.b16 %v296
        %v514 = vunpack.c.l.b16 %v297
        %v515 = vunpack.c.l.b16 %v298
        %v516 = vunpack.c.l.b16 %v299
        %v517 = vunpack.c.l.b16 %v300
        %v518 = vunpack.c.l.b16 %v301
        %v519 = vunpack.c.l.b16 %v302
        %v520 = vunpack.c.l.b16 %v303
        %v521 = vunpack.c.l.b16 %v304
        %v522 = vunpack.c.l.b16 %v305
        %v523 = vunpack.c.l.b16 %v306
        %v524 = vunpack.c.l.b16 %v307
        %v525 = vunpack.c.l.b16 %v308
        %v526 = vunpack.c.l.b16 %v309
        %v527 = vunpack.c.l.b16 %v310
        %v528 = vunpack.c.l.b16 %v311
        %v529 = vunpack.c.l.b16 %v312
        %v530 = vunpack.c.l.b16 %v313
        %v531 = vunpack.c.l.b16 %v314
        %v532 = vunpack.c.l.b16 %v315
        %v533 = vunpack.c.l.b16 %v316
        %v534 = vunpack.c.l.b16 %v317
        %v535 = vunpack.c.l.b16 %v318
        %v536 = vunpack.c.l.b16 %v319
        %v537 = vunpack.c.l.b16 %v320
        %v538 = vunpack.c.l.b16 %v321
        %v539 = vunpack.c.l.b16 %v322
        %v540 = vunpack.c.l.b16 %v323
        %v541 = vunpack.c.l.b16 %v324
        %v542 = vunpack.c.l.b16 %v325
        %v543 = vunpack.c.l.b16 %v326
        %v544 = vunpack.c.l.b16 %v327
        %v545 = vunpack.c.l.b16 %v328
        %v546 = vunpack.c.l.b16 %v329
        %v547 = vunpack.c.l.b16 %v330
        %v548 = vunpack.c.l.b16 %v331
        %v549 = vunpack.c.l.b16 %v332
        %v550 = vunpack.c.l.b16 %v333
        %v551 = vunpack.c.l.b16 %v334
        %v552 = vunpack.c.l.b16 %v335
        %v553 = vunpack.c.l.b16 %v336
        %v554 = vunpack.c.l.b16 %v337
        %v555 = vunpack.c.l.b16 %v338
        %v556 = vunpack.c.l.b16 %v339
        %v557 = vunpack.c.l.b16 %v340
        %v558 = vunpack.c.l.b16 %v341
        %v559 = vunpack.c.l.b16 %v342
        %v560 = vunpack.c.l.b16 %v343
        %v561 = vunpack.c.l.b16 %v344
        %v562 = vunpack.c.l.b16 %v345
        %v563 = vunpack.c.l.b16 %v346
        %v564 = vunpack.c.l.b16 %v347
        %v565 = vunpack.c.l.b16 %v348
        %v566 = vunpack.c.l.b16 %v349
        %v567 = vunpack.c.l.b16 %v350
        %v568 = vunpack.c.l.b16 %v351
        %v569 = vunpack.c.l.b16 %v352
        %v570 = vunpack.c.l.b16 %v353
        %v571 = vunpack.c.l.b16 %v354
        %v572 = vunpack.c.l.b16 %v355
        %v573 = vunpack.c.l.b16 %v356
        %v574 = vunpack.c.l.b16 %v357
        %v575 = vunpack.c.l.b16 %v358
        %v576 = vunpack.c.l.b16 %v359
        %v577 = vunpack.c.l.b16 %v360
        %v578 = vunpack.c.l.b16 %v361
        %v579 = vunpack.c.l.b16 %v362
        %v580 = vunpack.c.l.b16 %v363
        %v581 = vunpack.c.l.b16 %v364
        %v582 = vunpack.c.l.b16 %v365
        %v583 = vunpack.c.l.b16 %v366
        %v584 = vunpack.c.l.b16 %v367
        %v585 = vunpack.c.l.b16 %v368
        %v586 = vunpack.c.l.b16 %v369
        %v587 = vunpack.c.l.b16 %v370
        %v588 = vunpack.c.l.b16 %v371
        %v589 = vpack.c.b16 %v486, %v485
        %v590 = vpack.c.b16 %v488, %v487
        %v591 = vpack.c.b16 %v490, %v489
        %v592 = vpack.c.b16 %v492, %v491
        %v593 = vpack.c.b16 %v494, %v493
        %v594 = vpack.c.b16 %v496, %v495
        %v595 = vpack.c.b16 %v498, %v497
        %v596 = vpack.c.b16 %v500, %v499
        %v597 = vpack.c.b16 %v502, %v501
        %v598 = vpack.c.b16 %v504, %v503
        %v599 = vpack.c.b16 %v506, %v505
        %v600 = vpack.c.b16 %v508, %v507
        %v601 = vpack.c.b16 %v510, %v509
        %v602 = vpack.c.b16 %v512, %v511
        %v603 = vpack.c.b16 %v514, %v513
        %v604 = vpack.c.b16 %v516, %v515
        %v605 = vpack.c.b16 %v518, %v517
        %v606 = vpack.c.b16 %v520, %v519
        %v607 = vpack.c.b16 %v522, %v521
        %v608 = vpack.c.b16 %v524, %v523
        %v609 = vpack.c.b16 %v526, %v525
        %v610 = vpack.c.b16 %v528, %v527
        %v611 = vpack.c.b16 %v530, %v529
        %v612 = vpack.c.b16 %v532, %v531
        %v613 = vpack.c.b16 %v534, %v533
        %v614 = vpack.c.b16 %v536, %v535
        %v615 = vpack.c.b16 %v538, %v537
        %v616 = vpack.c.b16 %v540, %v539
        %v617 = vpack.c.b16 %v542, %v541
        %v618 = vpack.c.b16 %v544, %v543
        %v619 = vpack.c.b16 %v546, %v545
        %v620 = vpack.c.b16 %v548, %v547
        %v621 = vpack.c.b16 %v550, %v549
        %v622 = vpack.c.b16 %v552, %v551
        %v623 = vpack.c.b16 %v554, %v553
        %v624 = vpack.c.b16 %v556, %v555
        %v625 = vpack.c.b16 %v558, %v557
        %v626 = vpack.c.b16 %v560, %v559
        %v627 = vpack.c.b16 %v562, %v561
        %v628 = vpack.c.b16 %v564, %v563
        %v629 = vpack.c.b16 %v566, %v565
        %v630 = vpack.c.b16 %v568, %v567
        %v631 = vpack.c.b16 %v570, %v569
        %v632 = vpack.c.b16 %v572, %v571
        %v633 = vpack.c.b16 %v574, %v573
        %v634 = vpack.c.b16 %v576, %v575
        %v635 = vpack.c.b16 %v578, %v577
        %v636 = vpack.c.b16 %v580, %v579
        %v637 = vpack.c.b16 %v582, %v581
        %v638 = vpack.c.b16 %v584, %v583
        %v639 = vpack.c.b16 %v586, %v585
        %v640 = vpack.c.b16 %v588, %v587
        %v643 = vunpack.c.l.b16 %v372
        %v644 = vunpack.c.l.b16 %v373
        %v645 = vpack.c.b16 %v644, %v643
        %vm646 = vcmask 72704
        %v648 = vsel %vm646, %v589, 0
        %v651 = vsel %vm646, %v590, 0
        %v654 = vsel %vm646, %v591, 0
        %v657 = vsel %vm646, %v592, 0
        %v660 = vsel %vm646, %v593, 0
        %v663 = vsel %vm646, %v594, 0
        %v666 = vsel %vm646, %v595, 0
        %v669 = vsel %vm646, %v596, 0
        %v672 = vsel %vm646, %v597, 0
        %v675 = vsel %vm646, %v598, 0
        %v678 = vsel %vm646, %v599, 0
        %v681 = vsel %vm646, %v600, 0
        %v684 = vsel %vm646, %v601, 0
        %v687 = vsel %vm646, %v602, 0
        %v690 = vsel %vm646, %v603, 0
        %v693 = vsel %vm646, %v604, 0
        %v696 = vsel %vm646, %v605, 0
        %v699 = vsel %vm646, %v606, 0
        %v702 = vsel %vm646, %v607, 0
        %v705 = vsel %vm646, %v608, 0
        %v708 = vsel %vm646, %v609, 0
        %v711 = vsel %vm646, %v610, 0
        %v714 = vsel %vm646, %v611, 0
        %v717 = vsel %vm646, %v612, 0
        %v720 = vsel %vm646, %v613, 0
        %v723 = vsel %vm646, %v614, 0
        %v726 = vsel %vm646, %v615, 0
        %v729 = vsel %vm646, %v616, 0
        %v732 = vsel %vm646, %v617, 0
        %v735 = vsel %vm646, %v618, 0
        %v738 = vsel %vm646, %v619, 0
        %v741 = vsel %vm646, %v620, 0
        %v744 = vsel %vm646, %v621, 0
        %v747 = vsel %vm646, %v622, 0
        %v750 = vsel %vm646, %v623, 0
        %v753 = vsel %vm646, %v624, 0
        %v756 = vsel %vm646, %v625, 0
        %v759 = vsel %vm646, %v626, 0
        %v762 = vsel %vm646, %v627, 0
        %v765 = vsel %vm646, %v628, 0
        %v768 = vsel %vm646, %v629, 0
        %v771 = vsel %vm646, %v630, 0
        %v774 = vsel %vm646, %v631, 0
        %v777 = vsel %vm646, %v632, 0
        %v780 = vsel %vm646, %v633, 0
        %v783 = vsel %vm646, %v634, 0
        %v786 = vsel %vm646, %v635, 0
        %v789 = vsel %vm646, %v636, 0
        %v792 = vsel %vm646, %v637, 0
        %v795 = vsel %vm646, %v638, 0
        %v798 = vsel %vm646, %v639, 0
        %v801 = vsel %vm646, %v640, 0
        %vm803 = vcmask 1043456
        %vm804 = vcmask 1044480
        %v805 = vsel %vm803, 4294967295, 65535
        %v806 = vsel %vm804, %v805, 0
        %v808 = vand.u32 %v645, %v806
        %810 = vmatprep.subr.bf16.mxu0 0
        %811 = vmatpush1.bf16.msra.mxu0 %v808
        %812 = vmatprep.subr.bf16.mxu0 0
        %813 = vmatpush1.bf16.msra.mxu0 0
        %814 = vmatprep.subr.bf16.mxu0 0
        %815 = vmatpush1.bf16.msra.mxu0 0
        %816 = vmatprep.subr.bf16.mxu0 0
        %817 = vmatpush1.bf16.msra.mxu0 0
        %818 = vmatprep.subr.bf16.mxu0 0
        %819 = vmatpush1.bf16.msra.mxu0 0
        %820 = vmatprep.subr.bf16.mxu0 0
        %821 = vmatpush1.bf16.msra.mxu0 0
        %822 = vmatprep.subr.bf16.mxu0 0
        %823 = vmatpush1.bf16.msra.mxu0 0
        %824 = vmatprep.subr.bf16.mxu0 0
        %825 = vmatpush1.bf16.msra.mxu0 0
        %826 = vmatprep.subr.bf16.mxu0 0
        %827 = vmatpush1.bf16.msra.mxu0 0
        %828 = vmatprep.subr.bf16.mxu0 0
        %829 = vmatpush1.bf16.msra.mxu0 0
        %830 = vmatprep.subr.bf16.mxu0 0
        %831 = vmatpush1.bf16.msra.mxu0 0
        %832 = vmatprep.subr.bf16.mxu0 0
        %833 = vmatpush1.bf16.msra.mxu0 0
        %834 = vmatprep.subr.bf16.mxu0 0
        %835 = vmatpush1.bf16.msra.mxu0 0
        %836 = vmatprep.subr.bf16.mxu0 0
        %837 = vmatpush1.bf16.msra.mxu0 0
        %838 = vmatprep.subr.bf16.mxu0 0
        %839 = vmatpush1.bf16.msra.mxu0 0
        %840 = vmatprep.subr.bf16.mxu0 0
        %841 = vmatpush1.bf16.msra.mxu0 0
        %842 = vmatprep.mubr.bf16.mxu0 0
        %843 = vmatmul.mubr.bf16.gmra.mrb[0].mxu0 %v648
        %v844 = vpop.f32.mrb[0].mxu0
        %v845 = vadd.f32 %v379, %v844
        %v846 = vpop.f32.mrb[0].mxu0
        %v847 = vpop.f32.mrb[0].mxu0
        %v848 = vadd.f32 %v379, %v847
        %v849 = vpop.f32.mrb[0].mxu0
        %850 = vmatprep.mubr.bf16.mxu0 0
        %851 = vmatmul.mubr.bf16.gmra.mrb[0].mxu0 %v651
        %v852 = vpop.f32.mrb[0].mxu0
        %v853 = vadd.f32 %v379, %v852
        %v854 = vpop.f32.mrb[0].mxu0
        %v855 = vpop.f32.mrb[0].mxu0
        %v856 = vadd.f32 %v379, %v855
        %v857 = vpop.f32.mrb[0].mxu0
        %858 = vmatprep.mubr.bf16.mxu0 0
        %859 = vmatmul.mubr.bf16.gmra.mrb[0].mxu0 %v654
        %v860 = vpop.f32.mrb[0].mxu0
        %v861 = vadd.f32 %v379, %v860
        %v862 = vpop.f32.mrb[0].mxu0
        %v863 = vpop.f32.mrb[0].mxu0
        %v864 = vadd.f32 %v379, %v863
        %v865 = vpop.f32.mrb[0].mxu0
        %866 = vmatprep.mubr.bf16.mxu0 0
        %867 = vmatmul.mubr.bf16.gmra.mrb[0].mxu0 %v657
        %v868 = vpop.f32.mrb[0].mxu0
        %v869 = vadd.f32 %v379, %v868
        %v870 = vpop.f32.mrb[0].mxu0
        %v871 = vpop.f32.mrb[0].mxu0
        %v872 = vadd.f32 %v379, %v871
        %v873 = vpop.f32.mrb[0].mxu0
        %874 = vmatprep.mubr.bf16.mxu0 0
        %875 = vmatmul.mubr.bf16.gmra.mrb[0].mxu0 %v660
        %v876 = vpop.f32.mrb[0].mxu0
        %v877 = vadd.f32 %v379, %v876
        %v878 = vpop.f32.mrb[0].mxu0
        %v879 = vpop.f32.mrb[0].mxu0
        %v880 = vadd.f32 %v379, %v879
        %v881 = vpop.f32.mrb[0].mxu0
        %882 = vmatprep.mubr.bf16.mxu0 0
        %883 = vmatmul.mubr.bf16.gmra.mrb[0].mxu0 %v663
        %v884 = vpop.f32.mrb[0].mxu0
        %v885 = vadd.f32 %v379, %v884
        %v886 = vpop.f32.mrb[0].mxu0
        %v887 = vpop.f32.mrb[0].mxu0
        %v888 = vadd.f32 %v379, %v887
        %v889 = vpop.f32.mrb[0].mxu0
        %890 = vmatprep.mubr.bf16.mxu0 0
        %891 = vmatmul.mubr.bf16.gmra.mrb[0].mxu0 %v666
        %v892 = vpop.f32.mrb[0].mxu0
        %v893 = vadd.f32 %v379, %v892
        %v894 = vpop.f32.mrb[0].mxu0
        %v895 = vpop.f32.mrb[0].mxu0
        %v896 = vadd.f32 %v379, %v895
        %v897 = vpop.f32.mrb[0].mxu0
        %898 = vmatprep.mubr.bf16.mxu0 0
        %899 = vmatmul.mubr.bf16.gmra.mrb[0].mxu0 %v669
        %v900 = vpop.f32.mrb[0].mxu0
        %v901 = vadd.f32 %v379, %v900
        %v902 = vpop.f32.mrb[0].mxu0
        %v903 = vpop.f32.mrb[0].mxu0
        %v904 = vadd.f32 %v379, %v903
        %v905 = vpop.f32.mrb[0].mxu0
        %906 = vmatprep.mubr.bf16.mxu0 0
        %907 = vmatmul.mubr.bf16.gmra.mrb[0].mxu0 %v672
        %v908 = vpop.f32.mrb[0].mxu0
        %v909 = vadd.f32 %v379, %v908
        %v910 = vpop.f32.mrb[0].mxu0
        %v911 = vpop.f32.mrb[0].mxu0
        %v912 = vadd.f32 %v379, %v911
        %v913 = vpop.f32.mrb[0].mxu0
        %914 = vmatprep.mubr.bf16.mxu0 0
        %915 = vmatmul.mubr.bf16.gmra.mrb[0].mxu0 %v675
        %v916 = vpop.f32.mrb[0].mxu0
        %v917 = vadd.f32 %v379, %v916
        %v918 = vpop.f32.mrb[0].mxu0
        %v919 = vpop.f32.mrb[0].mxu0
        %v920 = vadd.f32 %v379, %v919
        %v921 = vpop.f32.mrb[0].mxu0
        %922 = vmatprep.mubr.bf16.mxu0 0
        %923 = vmatmul.mubr.bf16.gmra.mrb[0].mxu0 %v678
        %v924 = vpop.f32.mrb[0].mxu0
        %v925 = vadd.f32 %v379, %v924
        %v926 = vpop.f32.mrb[0].mxu0
        %v927 = vpop.f32.mrb[0].mxu0
        %v928 = vadd.f32 %v379, %v927
        %v929 = vpop.f32.mrb[0].mxu0
        %930 = vmatprep.mubr.bf16.mxu0 0
        %931 = vmatmul.mubr.bf16.gmra.mrb[0].mxu0 %v681
        %v932 = vpop.f32.mrb[0].mxu0
        %v933 = vadd.f32 %v379, %v932
        %v934 = vpop.f32.mrb[0].mxu0
        %v935 = vpop.f32.mrb[0].mxu0
        %v936 = vadd.f32 %v379, %v935
        %v937 = vpop.f32.mrb[0].mxu0
        %938 = vmatprep.mubr.bf16.mxu0 0
        %939 = vmatmul.mubr.bf16.gmra.mrb[0].mxu0 %v684
        %v940 = vpop.f32.mrb[0].mxu0
        %v941 = vadd.f32 %v379, %v940
        %v942 = vpop.f32.mrb[0].mxu0
        %v943 = vpop.f32.mrb[0].mxu0
        %v944 = vadd.f32 %v379, %v943
        %v945 = vpop.f32.mrb[0].mxu0
        %946 = vmatprep.mubr.bf16.mxu0 0
        %947 = vmatmul.mubr.bf16.gmra.mrb[0].mxu0 %v687
        %v948 = vpop.f32.mrb[0].mxu0
        %v949 = vadd.f32 %v379, %v948
        %v950 = vpop.f32.mrb[0].mxu0
        %v951 = vpop.f32.mrb[0].mxu0
        %v952 = vadd.f32 %v379, %v951
        %v953 = vpop.f32.mrb[0].mxu0
        %954 = vmatprep.mubr.bf16.mxu0 0
        %955 = vmatmul.mubr.bf16.gmra.mrb[0].mxu0 %v690
        %v956 = vpop.f32.mrb[0].mxu0
        %v957 = vadd.f32 %v379, %v956
        %v958 = vpop.f32.mrb[0].mxu0
        %v959 = vpop.f32.mrb[0].mxu0
        %v960 = vadd.f32 %v379, %v959
        %v961 = vpop.f32.mrb[0].mxu0
        %962 = vmatprep.mubr.bf16.mxu0 0
        %963 = vmatmul.mubr.bf16.gmra.mrb[0].mxu0 %v693
        %v964 = vpop.f32.mrb[0].mxu0
        %v965 = vadd.f32 %v379, %v964
        %v966 = vpop.f32.mrb[0].mxu0
        %v967 = vpop.f32.mrb[0].mxu0
        %v968 = vadd.f32 %v379, %v967
        %v969 = vpop.f32.mrb[0].mxu0
        %970 = vmatprep.mubr.bf16.mxu0 0
        %971 = vmatmul.mubr.bf16.gmra.mrb[0].mxu0 %v696
        %v972 = vpop.f32.mrb[0].mxu0
        %v973 = vadd.f32 %v379, %v972
        %v974 = vpop.f32.mrb[0].mxu0
        %v975 = vpop.f32.mrb[0].mxu0
        %v976 = vadd.f32 %v379, %v975
        %v977 = vpop.f32.mrb[0].mxu0
        %978 = vmatprep.mubr.bf16.mxu0 0
        %979 = vmatmul.mubr.bf16.gmra.mrb[0].mxu0 %v699
        %v980 = vpop.f32.mrb[0].mxu0
        %v981 = vadd.f32 %v379, %v980
        %v982 = vpop.f32.mrb[0].mxu0
        %v983 = vpop.f32.mrb[0].mxu0
        %v984 = vadd.f32 %v379, %v983
        %v985 = vpop.f32.mrb[0].mxu0
        %986 = vmatprep.mubr.bf16.mxu0 0
        %987 = vmatmul.mubr.bf16.gmra.mrb[0].mxu0 %v702
        %v988 = vpop.f32.mrb[0].mxu0
        %v989 = vadd.f32 %v379, %v988
        %v990 = vpop.f32.mrb[0].mxu0
        %v991 = vpop.f32.mrb[0].mxu0
        %v992 = vadd.f32 %v379, %v991
        %v993 = vpop.f32.mrb[0].mxu0
        %994 = vmatprep.mubr.bf16.mxu0 0
        %995 = vmatmul.mubr.bf16.gmra.mrb[0].mxu0 %v705
        %v996 = vpop.f32.mrb[0].mxu0
        %v997 = vadd.f32 %v379, %v996
        %v998 = vpop.f32.mrb[0].mxu0
        %v999 = vpop.f32.mrb[0].mxu0
        %v1000 = vadd.f32 %v379, %v999
        %v1001 = vpop.f32.mrb[0].mxu0
        %1002 = vmatprep.mubr.bf16.mxu0 0
        %1003 = vmatmul.mubr.bf16.gmra.mrb[0].mxu0 %v708
        %v1004 = vpop.f32.mrb[0].mxu0
        %v1005 = vadd.f32 %v379, %v1004
        %v1006 = vpop.f32.mrb[0].mxu0
        %v1007 = vpop.f32.mrb[0].mxu0
        %v1008 = vadd.f32 %v379, %v1007
        %v1009 = vpop.f32.mrb[0].mxu0
        %1010 = vmatprep.mubr.bf16.mxu0 0
        %1011 = vmatmul.mubr.bf16.gmra.mrb[0].mxu0 %v711
        %v1012 = vpop.f32.mrb[0].mxu0
        %v1013 = vadd.f32 %v379, %v1012
        %v1014 = vpop.f32.mrb[0].mxu0
        %v1015 = vpop.f32.mrb[0].mxu0
        %v1016 = vadd.f32 %v379, %v1015
        %v1017 = vpop.f32.mrb[0].mxu0
        %1018 = vmatprep.mubr.bf16.mxu0 0
        %1019 = vmatmul.mubr.bf16.gmra.mrb[0].mxu0 %v714
        %v1020 = vpop.f32.mrb[0].mxu0
        %v1021 = vadd.f32 %v379, %v1020
        %v1022 = vpop.f32.mrb[0].mxu0
        %v1023 = vpop.f32.mrb[0].mxu0
        %v1024 = vadd.f32 %v379, %v1023
        %v1025 = vpop.f32.mrb[0].mxu0
        %1026 = vmatprep.mubr.bf16.mxu0 0
        %1027 = vmatmul.mubr.bf16.gmra.mrb[0].mxu0 %v717
        %v1028 = vpop.f32.mrb[0].mxu0
        %v1029 = vadd.f32 %v379, %v1028
        %v1030 = vpop.f32.mrb[0].mxu0
        %v1031 = vpop.f32.mrb[0].mxu0
        %v1032 = vadd.f32 %v379, %v1031
        %v1033 = vpop.f32.mrb[0].mxu0
        %1034 = vmatprep.mubr.bf16.mxu0 0
        %1035 = vmatmul.mubr.bf16.gmra.mrb[0].mxu0 %v720
        %v1036 = vpop.f32.mrb[0].mxu0
        %v1037 = vadd.f32 %v379, %v1036
        %v1038 = vpop.f32.mrb[0].mxu0
        %v1039 = vpop.f32.mrb[0].mxu0
        %v1040 = vadd.f32 %v379, %v1039
        %v1041 = vpop.f32.mrb[0].mxu0
        %1042 = vmatprep.mubr.bf16.mxu0 0
        %1043 = vmatmul.mubr.bf16.gmra.mrb[0].mxu0 %v723
        %v1044 = vpop.f32.mrb[0].mxu0
        %v1045 = vadd.f32 %v379, %v1044
        %v1046 = vpop.f32.mrb[0].mxu0
        %v1047 = vpop.f32.mrb[0].mxu0
        %v1048 = vadd.f32 %v379, %v1047
        %v1049 = vpop.f32.mrb[0].mxu0
        %1050 = vmatprep.mubr.bf16.mxu0 0
        %1051 = vmatmul.mubr.bf16.gmra.mrb[0].mxu0 %v726
        %v1052 = vpop.f32.mrb[0].mxu0
        %v1053 = vadd.f32 %v379, %v1052
        %v1054 = vpop.f32.mrb[0].mxu0
        %v1055 = vpop.f32.mrb[0].mxu0
        %v1056 = vadd.f32 %v379, %v1055
        %v1057 = vpop.f32.mrb[0].mxu0
        %1058 = vmatprep.mubr.bf16.mxu0 0
        %1059 = vmatmul.mubr.bf16.gmra.mrb[0].mxu0 %v729
        %v1060 = vpop.f32.mrb[0].mxu0
        %v1061 = vadd.f32 %v379, %v1060
        %v1062 = vpop.f32.mrb[0].mxu0
        %v1063 = vpop.f32.mrb[0].mxu0
        %v1064 = vadd.f32 %v379, %v1063
        %v1065 = vpop.f32.mrb[0].mxu0
        %1066 = vmatprep.mubr.bf16.mxu0 0
        %1067 = vmatmul.mubr.bf16.gmra.mrb[0].mxu0 %v732
        %v1068 = vpop.f32.mrb[0].mxu0
        %v1069 = vadd.f32 %v379, %v1068
        %v1070 = vpop.f32.mrb[0].mxu0
        %v1071 = vpop.f32.mrb[0].mxu0
        %v1072 = vadd.f32 %v379, %v1071
        %v1073 = vpop.f32.mrb[0].mxu0
        %1074 = vmatprep.mubr.bf16.mxu0 0
        %1075 = vmatmul.mubr.bf16.gmra.mrb[0].mxu0 %v735
        %v1076 = vpop.f32.mrb[0].mxu0
        %v1077 = vadd.f32 %v379, %v1076
        %v1078 = vpop.f32.mrb[0].mxu0
        %v1079 = vpop.f32.mrb[0].mxu0
        %v1080 = vadd.f32 %v379, %v1079
        %v1081 = vpop.f32.mrb[0].mxu0
        %1082 = vmatprep.mubr.bf16.mxu0 0
        %1083 = vmatmul.mubr.bf16.gmra.mrb[0].mxu0 %v738
        %v1084 = vpop.f32.mrb[0].mxu0
        %v1085 = vadd.f32 %v379, %v1084
        %v1086 = vpop.f32.mrb[0].mxu0
        %v1087 = vpop.f32.mrb[0].mxu0
        %v1088 = vadd.f32 %v379, %v1087
        %v1089 = vpop.f32.mrb[0].mxu0
        %1090 = vmatprep.mubr.bf16.mxu0 0
        %1091 = vmatmul.mubr.bf16.gmra.mrb[0].mxu0 %v741
        %v1092 = vpop.f32.mrb[0].mxu0
        %v1093 = vadd.f32 %v379, %v1092
        %v1094 = vpop.f32.mrb[0].mxu0
        %v1095 = vpop.f32.mrb[0].mxu0
        %v1096 = vadd.f32 %v379, %v1095
        %v1097 = vpop.f32.mrb[0].mxu0
        %1098 = vmatprep.mubr.bf16.mxu0 0
        %1099 = vmatmul.mubr.bf16.gmra.mrb[0].mxu0 %v744
        %v1100 = vpop.f32.mrb[0].mxu0
        %v1101 = vadd.f32 %v379, %v1100
        %v1102 = vpop.f32.mrb[0].mxu0
        %v1103 = vpop.f32.mrb[0].mxu0
        %v1104 = vadd.f32 %v379, %v1103
        %v1105 = vpop.f32.mrb[0].mxu0
        %1106 = vmatprep.mubr.bf16.mxu0 0
        %1107 = vmatmul.mubr.bf16.gmra.mrb[0].mxu0 %v747
        %v1108 = vpop.f32.mrb[0].mxu0
        %v1109 = vadd.f32 %v379, %v1108
        %v1110 = vpop.f32.mrb[0].mxu0
        %v1111 = vpop.f32.mrb[0].mxu0
        %v1112 = vadd.f32 %v379, %v1111
        %v1113 = vpop.f32.mrb[0].mxu0
        %1114 = vmatprep.mubr.bf16.mxu0 0
        %1115 = vmatmul.mubr.bf16.gmra.mrb[0].mxu0 %v750
        %v1116 = vpop.f32.mrb[0].mxu0
        %v1117 = vadd.f32 %v379, %v1116
        %v1118 = vpop.f32.mrb[0].mxu0
        %v1119 = vpop.f32.mrb[0].mxu0
        %v1120 = vadd.f32 %v379, %v1119
        %v1121 = vpop.f32.mrb[0].mxu0
        %1122 = vmatprep.mubr.bf16.mxu0 0
        %1123 = vmatmul.mubr.bf16.gmra.mrb[0].mxu0 %v753
        %v1124 = vpop.f32.mrb[0].mxu0
        %v1125 = vadd.f32 %v379, %v1124
        %v1126 = vpop.f32.mrb[0].mxu0
        %v1127 = vpop.f32.mrb[0].mxu0
        %v1128 = vadd.f32 %v379, %v1127
        %v1129 = vpop.f32.mrb[0].mxu0
        %1130 = vmatprep.mubr.bf16.mxu0 0
        %1131 = vmatmul.mubr.bf16.gmra.mrb[0].mxu0 %v756
        %v1132 = vpop.f32.mrb[0].mxu0
        %v1133 = vadd.f32 %v379, %v1132
        %v1134 = vpop.f32.mrb[0].mxu0
        %v1135 = vpop.f32.mrb[0].mxu0
        %v1136 = vadd.f32 %v379, %v1135
        %v1137 = vpop.f32.mrb[0].mxu0
        %1138 = vmatprep.mubr.bf16.mxu0 0
        %1139 = vmatmul.mubr.bf16.gmra.mrb[0].mxu0 %v759
        %v1140 = vpop.f32.mrb[0].mxu0
        %v1141 = vadd.f32 %v379, %v1140
        %v1142 = vpop.f32.mrb[0].mxu0
        %v1143 = vpop.f32.mrb[0].mxu0
        %v1144 = vadd.f32 %v379, %v1143
        %v1145 = vpop.f32.mrb[0].mxu0
        %1146 = vmatprep.mubr.bf16.mxu0 0
        %1147 = vmatmul.mubr.bf16.gmra.mrb[0].mxu0 %v762
        %v1148 = vpop.f32.mrb[0].mxu0
        %v1149 = vadd.f32 %v379, %v1148
        %v1150 = vpop.f32.mrb[0].mxu0
        %v1151 = vpop.f32.mrb[0].mxu0
        %v1152 = vadd.f32 %v379, %v1151
        %v1153 = vpop.f32.mrb[0].mxu0
        %1154 = vmatprep.mubr.bf16.mxu0 0
        %1155 = vmatmul.mubr.bf16.gmra.mrb[0].mxu0 %v765
        %v1156 = vpop.f32.mrb[0].mxu0
        %v1157 = vadd.f32 %v379, %v1156
        %v1158 = vpop.f32.mrb[0].mxu0
        %v1159 = vpop.f32.mrb[0].mxu0
        %v1160 = vadd.f32 %v379, %v1159
        %v1161 = vpop.f32.mrb[0].mxu0
        %1162 = vmatprep.mubr.bf16.mxu0 0
        %1163 = vmatmul.mubr.bf16.gmra.mrb[0].mxu0 %v768
        %v1164 = vpop.f32.mrb[0].mxu0
        %v1165 = vadd.f32 %v379, %v1164
        %v1166 = vpop.f32.mrb[0].mxu0
        %v1167 = vpop.f32.mrb[0].mxu0
        %v1168 = vadd.f32 %v379, %v1167
        %v1169 = vpop.f32.mrb[0].mxu0
        %1170 = vmatprep.mubr.bf16.mxu0 0
        %1171 = vmatmul.mubr.bf16.gmra.mrb[0].mxu0 %v771
        %v1172 = vpop.f32.mrb[0].mxu0
        %v1173 = vadd.f32 %v379, %v1172
        %v1174 = vpop.f32.mrb[0].mxu0
        %v1175 = vpop.f32.mrb[0].mxu0
        %v1176 = vadd.f32 %v379, %v1175
        %v1177 = vpop.f32.mrb[0].mxu0
        %1178 = vmatprep.mubr.bf16.mxu0 0
        %1179 = vmatmul.mubr.bf16.gmra.mrb[0].mxu0 %v774
        %v1180 = vpop.f32.mrb[0].mxu0
        %v1181 = vadd.f32 %v379, %v1180
        %v1182 = vpop.f32.mrb[0].mxu0
        %v1183 = vpop.f32.mrb[0].mxu0
        %v1184 = vadd.f32 %v379, %v1183
        %v1185 = vpop.f32.mrb[0].mxu0
        %1186 = vmatprep.mubr.bf16.mxu0 0
        %1187 = vmatmul.mubr.bf16.gmra.mrb[0].mxu0 %v777
        %v1188 = vpop.f32.mrb[0].mxu0
        %v1189 = vadd.f32 %v379, %v1188
        %v1190 = vpop.f32.mrb[0].mxu0
        %v1191 = vpop.f32.mrb[0].mxu0
        %v1192 = vadd.f32 %v379, %v1191
        %v1193 = vpop.f32.mrb[0].mxu0
        %1194 = vmatprep.mubr.bf16.mxu0 0
        %1195 = vmatmul.mubr.bf16.gmra.mrb[0].mxu0 %v780
        %v1196 = vpop.f32.mrb[0].mxu0
        %v1197 = vadd.f32 %v379, %v1196
        %v1198 = vpop.f32.mrb[0].mxu0
        %v1199 = vpop.f32.mrb[0].mxu0
        %v1200 = vadd.f32 %v379, %v1199
        %v1201 = vpop.f32.mrb[0].mxu0
        %1202 = vmatprep.mubr.bf16.mxu0 0
        %1203 = vmatmul.mubr.bf16.gmra.mrb[0].mxu0 %v783
        %v1204 = vpop.f32.mrb[0].mxu0
        %v1205 = vadd.f32 %v379, %v1204
        %v1206 = vpop.f32.mrb[0].mxu0
        %v1207 = vpop.f32.mrb[0].mxu0
        %v1208 = vadd.f32 %v379, %v1207
        %v1209 = vpop.f32.mrb[0].mxu0
        %1210 = vmatprep.mubr.bf16.mxu0 0
        %1211 = vmatmul.mubr.bf16.gmra.mrb[0].mxu0 %v786
        %v1212 = vpop.f32.mrb[0].mxu0
        %v1213 = vadd.f32 %v379, %v1212
        %v1214 = vpop.f32.mrb[0].mxu0
        %v1215 = vpop.f32.mrb[0].mxu0
        %v1216 = vadd.f32 %v379, %v1215
        %v1217 = vpop.f32.mrb[0].mxu0
        %1218 = vmatprep.mubr.bf16.mxu0 0
        %1219 = vmatmul.mubr.bf16.gmra.mrb[0].mxu0 %v789
        %v1220 = vpop.f32.mrb[0].mxu0
        %v1221 = vadd.f32 %v379, %v1220
        %v1222 = vpop.f32.mrb[0].mxu0
        %v1223 = vpop.f32.mrb[0].mxu0
        %v1224 = vadd.f32 %v379, %v1223
        %v1225 = vpop.f32.mrb[0].mxu0
        %1226 = vmatprep.mubr.bf16.mxu0 0
        %1227 = vmatmul.mubr.bf16.gmra.mrb[0].mxu0 %v792
        %v1228 = vpop.f32.mrb[0].mxu0
        %v1229 = vadd.f32 %v379, %v1228
        %v1230 = vpop.f32.mrb[0].mxu0
        %v1231 = vpop.f32.mrb[0].mxu0
        %v1232 = vadd.f32 %v379, %v1231
        %v1233 = vpop.f32.mrb[0].mxu0
        %1234 = vmatprep.mubr.bf16.mxu0 0
        %1235 = vmatmul.mubr.bf16.gmra.mrb[0].mxu0 %v795
        %v1236 = vpop.f32.mrb[0].mxu0
        %v1237 = vadd.f32 %v379, %v1236
        %v1238 = vpop.f32.mrb[0].mxu0
        %v1239 = vpop.f32.mrb[0].mxu0
        %v1240 = vadd.f32 %v379, %v1239
        %v1241 = vpop.f32.mrb[0].mxu0
        %1242 = vmatprep.mubr.bf16.mxu0 0
        %1243 = vmatmul.mubr.bf16.gmra.mrb[0].mxu0 %v798
        %v1244 = vpop.f32.mrb[0].mxu0
        %v1245 = vadd.f32 %v379, %v1244
        %v1246 = vpop.f32.mrb[0].mxu0
        %v1247 = vpop.f32.mrb[0].mxu0
        %v1248 = vadd.f32 %v379, %v1247
        %v1249 = vpop.f32.mrb[0].mxu0
        %1250 = vmatprep.mubr.bf16.mxu0 0
        %1251 = vmatmul.mubr.bf16.gmra.mrb[0].mxu0 %v801
        %v1252 = vpop.f32.mrb[0].mxu0
        %v1253 = vadd.f32 %v379, %v1252
        %v1254 = vpop.f32.mrb[0].mxu0
        %v1255 = vpop.f32.mrb[0].mxu0
        %v1256 = vadd.f32 %v379, %v1255
        %v1257 = vpop.f32.mrb[0].mxu0
        %1258 = vdwg.mxu0
        %v1259 = vmax.f32 %v845, 0.0
        %v1260 = vmax.f32 %v848, 0.0
        %v1261 = vmax.f32 %v853, 0.0
        %v1262 = vmax.f32 %v856, 0.0
        %v1263 = vmax.f32 %v861, 0.0
        %v1264 = vmax.f32 %v864, 0.0
        %v1265 = vmax.f32 %v869, 0.0
        %v1266 = vmax.f32 %v872, 0.0
        %v1267 = vmax.f32 %v877, 0.0
        %v1268 = vmax.f32 %v880, 0.0
        %v1269 = vmax.f32 %v885, 0.0
        %v1270 = vmax.f32 %v888, 0.0
        %v1271 = vmax.f32 %v893, 0.0
        %v1272 = vmax.f32 %v896, 0.0
        %v1273 = vmax.f32 %v901, 0.0
        %v1274 = vmax.f32 %v904, 0.0
        %v1275 = vmax.f32 %v909, 0.0
        %v1276 = vmax.f32 %v912, 0.0
        %v1277 = vmax.f32 %v917, 0.0
        %v1278 = vmax.f32 %v920, 0.0
        %v1279 = vmax.f32 %v925, 0.0
        %v1280 = vmax.f32 %v928, 0.0
        %v1281 = vmax.f32 %v933, 0.0
        %v1282 = vmax.f32 %v936, 0.0
        %v1283 = vmax.f32 %v941, 0.0
        %v1284 = vmax.f32 %v944, 0.0
        %v1285 = vmax.f32 %v949, 0.0
        %v1286 = vmax.f32 %v952, 0.0
        %v1287 = vmax.f32 %v957, 0.0
        %v1288 = vmax.f32 %v960, 0.0
        %v1289 = vmax.f32 %v965, 0.0
        %v1290 = vmax.f32 %v968, 0.0
        %v1291 = vmax.f32 %v973, 0.0
        %v1292 = vmax.f32 %v976, 0.0
        %v1293 = vmax.f32 %v981, 0.0
        %v1294 = vmax.f32 %v984, 0.0
        %v1295 = vmax.f32 %v989, 0.0
        %v1296 = vmax.f32 %v992, 0.0
        %v1297 = vmax.f32 %v997, 0.0
        %v1298 = vmax.f32 %v1000, 0.0
        %v1299 = vmax.f32 %v1005, 0.0
        %v1300 = vmax.f32 %v1008, 0.0
        %v1301 = vmax.f32 %v1013, 0.0
        %v1302 = vmax.f32 %v1016, 0.0
        %v1303 = vmax.f32 %v1021, 0.0
        %v1304 = vmax.f32 %v1024, 0.0
        %v1305 = vmax.f32 %v1029, 0.0
        %v1306 = vmax.f32 %v1032, 0.0
        %v1307 = vmax.f32 %v1037, 0.0
        %v1308 = vmax.f32 %v1040, 0.0
        %v1309 = vmax.f32 %v1045, 0.0
        %v1310 = vmax.f32 %v1048, 0.0
        %v1311 = vmax.f32 %v1053, 0.0
        %v1312 = vmax.f32 %v1056, 0.0
        %v1313 = vmax.f32 %v1061, 0.0
        %v1314 = vmax.f32 %v1064, 0.0
        %v1315 = vmax.f32 %v1069, 0.0
        %v1316 = vmax.f32 %v1072, 0.0
        %v1317 = vmax.f32 %v1077, 0.0
        %v1318 = vmax.f32 %v1080, 0.0
        %v1319 = vmax.f32 %v1085, 0.0
        %v1320 = vmax.f32 %v1088, 0.0
        %v1321 = vmax.f32 %v1093, 0.0
        %v1322 = vmax.f32 %v1096, 0.0
        %v1323 = vmax.f32 %v1101, 0.0
        %v1324 = vmax.f32 %v1104, 0.0
        %v1325 = vmax.f32 %v1109, 0.0
        %v1326 = vmax.f32 %v1112, 0.0
        %v1327 = vmax.f32 %v1117, 0.0
        %v1328 = vmax.f32 %v1120, 0.0
        %v1329 = vmax.f32 %v1125, 0.0
        %v1330 = vmax.f32 %v1128, 0.0
        %v1331 = vmax.f32 %v1133, 0.0
        %v1332 = vmax.f32 %v1136, 0.0
        %v1333 = vmax.f32 %v1141, 0.0
        %v1334 = vmax.f32 %v1144, 0.0
        %v1335 = vmax.f32 %v1149, 0.0
        %v1336 = vmax.f32 %v1152, 0.0
        %v1337 = vmax.f32 %v1157, 0.0
        %v1338 = vmax.f32 %v1160, 0.0
        %v1339 = vmax.f32 %v1165, 0.0
        %v1340 = vmax.f32 %v1168, 0.0
        %v1341 = vmax.f32 %v1173, 0.0
        %v1342 = vmax.f32 %v1176, 0.0
        %v1343 = vmax.f32 %v1181, 0.0
        %v1344 = vmax.f32 %v1184, 0.0
        %v1345 = vmax.f32 %v1189, 0.0
        %v1346 = vmax.f32 %v1192, 0.0
        %v1347 = vmax.f32 %v1197, 0.0
        %v1348 = vmax.f32 %v1200, 0.0
        %v1349 = vmax.f32 %v1205, 0.0
        %v1350 = vmax.f32 %v1208, 0.0
        %v1351 = vmax.f32 %v1213, 0.0
        %v1352 = vmax.f32 %v1216, 0.0
        %v1353 = vmax.f32 %v1221, 0.0
        %v1354 = vmax.f32 %v1224, 0.0
        %v1355 = vmax.f32 %v1229, 0.0
        %v1356 = vmax.f32 %v1232, 0.0
        %v1357 = vmax.f32 %v1237, 0.0
        %v1358 = vmax.f32 %v1240, 0.0
        %v1359 = vmax.f32 %v1245, 0.0
        %v1360 = vmax.f32 %v1248, 0.0
        %v1361 = vmax.f32 %v1253, 0.0
        %v1362 = vmax.f32 %v1256, 0.0
        %vm1363 = vcmask 261120
        %1364 = vst.msk [vmem:[#allocation2] sm:$0xff] %vm1363, %v1259
        %1365 = vst.msk [vmem:[#allocation2 + $0x8] sm:$0xff] %vm1363, %v1260
        %1366 = vst.msk [vmem:[#allocation2 + $0x10] sm:$0xff] %vm1363, %v1261
        %1367 = vst.msk [vmem:[#allocation2 + $0x18] sm:$0xff] %vm1363, %v1262
        %1368 = vst.msk [vmem:[#allocation2 + $0x20] sm:$0xff] %vm1363, %v1263
        %1369 = vst.msk [vmem:[#allocation2 + $0x28] sm:$0xff] %vm1363, %v1264
        %1370 = vst.msk [vmem:[#allocation2 + $0x30] sm:$0xff] %vm1363, %v1265
        %1371 = vst.msk [vmem:[#allocation2 + $0x38] sm:$0xff] %vm1363, %v1266
        %1372 = vst.msk [vmem:[#allocation2 + $0x40] sm:$0xff] %vm1363, %v1267
        %1373 = vst.msk [vmem:[#allocation2 + $0x48] sm:$0xff] %vm1363, %v1268
        %1374 = vst.msk [vmem:[#allocation2 + $0x50] sm:$0xff] %vm1363, %v1269
        %1375 = vst.msk [vmem:[#allocation2 + $0x58] sm:$0xff] %vm1363, %v1270
        %1376 = vst.msk [vmem:[#allocation2 + $0x60] sm:$0xff] %vm1363, %v1271
        %1377 = vst.msk [vmem:[#allocation2 + $0x68] sm:$0xff] %vm1363, %v1272
        %1378 = vst.msk [vmem:[#allocation2 + $0x70] sm:$0xff] %vm1363, %v1273
        %1379 = vst.msk [vmem:[#allocation2 + $0x78] sm:$0xff] %vm1363, %v1274
        %1380 = vst.msk [vmem:[#allocation2 + $0x80] sm:$0xff] %vm1363, %v1275
        %1381 = vst.msk [vmem:[#allocation2 + $0x88] sm:$0xff] %vm1363, %v1276
        %1382 = vst.msk [vmem:[#allocation2 + $0x90] sm:$0xff] %vm1363, %v1277
        %1383 = vst.msk [vmem:[#allocation2 + $0x98] sm:$0xff] %vm1363, %v1278
        %1384 = vst.msk [vmem:[#allocation2 + $0xa0] sm:$0xff] %vm1363, %v1279
        %1385 = vst.msk [vmem:[#allocation2 + $0xa8] sm:$0xff] %vm1363, %v1280
        %1386 = vst.msk [vmem:[#allocation2 + $0xb0] sm:$0xff] %vm1363, %v1281
        %1387 = vst.msk [vmem:[#allocation2 + $0xb8] sm:$0xff] %vm1363, %v1282
        %1388 = vst.msk [vmem:[#allocation2 + $0xc0] sm:$0xff] %vm1363, %v1283
        %1389 = vst.msk [vmem:[#allocation2 + $0xc8] sm:$0xff] %vm1363, %v1284
        %1390 = vst.msk [vmem:[#allocation2 + $0xd0] sm:$0xff] %vm1363, %v1285
        %1391 = vst.msk [vmem:[#allocation2 + $0xd8] sm:$0xff] %vm1363, %v1286
        %1392 = vst.msk [vmem:[#allocation2 + $0xe0] sm:$0xff] %vm1363, %v1287
        %1393 = vst.msk [vmem:[#allocation2 + $0xe8] sm:$0xff] %vm1363, %v1288
        %1394 = vst.msk [vmem:[#allocation2 + $0xf0] sm:$0xff] %vm1363, %v1289
        %1395 = vst.msk [vmem:[#allocation2 + $0xf8] sm:$0xff] %vm1363, %v1290
        %1396 = vst.msk [vmem:[#allocation2 + $0x100] sm:$0xff] %vm1363, %v1291
        %1397 = vst.msk [vmem:[#allocation2 + $0x108] sm:$0xff] %vm1363, %v1292
        %1398 = vst.msk [vmem:[#allocation2 + $0x110] sm:$0xff] %vm1363, %v1293
        %1399 = vst.msk [vmem:[#allocation2 + $0x118] sm:$0xff] %vm1363, %v1294
        %1400 = vst.msk [vmem:[#allocation2 + $0x120] sm:$0xff] %vm1363, %v1295
        %1401 = vst.msk [vmem:[#allocation2 + $0x128] sm:$0xff] %vm1363, %v1296
        %1402 = vst.msk [vmem:[#allocation2 + $0x130] sm:$0xff] %vm1363, %v1297
        %1403 = vst.msk [vmem:[#allocation2 + $0x138] sm:$0xff] %vm1363, %v1298
        %1404 = vst.msk [vmem:[#allocation2 + $0x140] sm:$0xff] %vm1363, %v1299
        %1405 = vst.msk [vmem:[#allocation2 + $0x148] sm:$0xff] %vm1363, %v1300
        %1406 = vst.msk [vmem:[#allocation2 + $0x150] sm:$0xff] %vm1363, %v1301
        %1407 = vst.msk [vmem:[#allocation2 + $0x158] sm:$0xff] %vm1363, %v1302
        %1408 = vst.msk [vmem:[#allocation2 + $0x160] sm:$0xff] %vm1363, %v1303
        %1409 = vst.msk [vmem:[#allocation2 + $0x168] sm:$0xff] %vm1363, %v1304
        %1410 = vst.msk [vmem:[#allocation2 + $0x170] sm:$0xff] %vm1363, %v1305
        %1411 = vst.msk [vmem:[#allocation2 + $0x178] sm:$0xff] %vm1363, %v1306
        %1412 = vst.msk [vmem:[#allocation2 + $0x180] sm:$0xff] %vm1363, %v1307
        %1413 = vst.msk [vmem:[#allocation2 + $0x188] sm:$0xff] %vm1363, %v1308
        %1414 = vst.msk [vmem:[#allocation2 + $0x190] sm:$0xff] %vm1363, %v1309
        %1415 = vst.msk [vmem:[#allocation2 + $0x198] sm:$0xff] %vm1363, %v1310
        %1416 = vst.msk [vmem:[#allocation2 + $0x1a0] sm:$0xff] %vm1363, %v1311
        %1417 = vst.msk [vmem:[#allocation2 + $0x1a8] sm:$0xff] %vm1363, %v1312
        %1418 = vst.msk [vmem:[#allocation2 + $0x1b0] sm:$0xff] %vm1363, %v1313
        %1419 = vst.msk [vmem:[#allocation2 + $0x1b8] sm:$0xff] %vm1363, %v1314
        %1420 = vst.msk [vmem:[#allocation2 + $0x1c0] sm:$0xff] %vm1363, %v1315
        %1421 = vst.msk [vmem:[#allocation2 + $0x1c8] sm:$0xff] %vm1363, %v1316
        %1422 = vst.msk [vmem:[#allocation2 + $0x1d0] sm:$0xff] %vm1363, %v1317
        %1423 = vst.msk [vmem:[#allocation2 + $0x1d8] sm:$0xff] %vm1363, %v1318
        %1424 = vst.msk [vmem:[#allocation2 + $0x1e0] sm:$0xff] %vm1363, %v1319
        %1425 = vst.msk [vmem:[#allocation2 + $0x1e8] sm:$0xff] %vm1363, %v1320
        %1426 = vst.msk [vmem:[#allocation2 + $0x1f0] sm:$0xff] %vm1363, %v1321
        %1427 = vst.msk [vmem:[#allocation2 + $0x1f8] sm:$0xff] %vm1363, %v1322
        %1428 = vst.msk [vmem:[#allocation2 + $0x200] sm:$0xff] %vm1363, %v1323
        %1429 = vst.msk [vmem:[#allocation2 + $0x208] sm:$0xff] %vm1363, %v1324
        %1430 = vst.msk [vmem:[#allocation2 + $0x210] sm:$0xff] %vm1363, %v1325
        %1431 = vst.msk [vmem:[#allocation2 + $0x218] sm:$0xff] %vm1363, %v1326
        %1432 = vst.msk [vmem:[#allocation2 + $0x220] sm:$0xff] %vm1363, %v1327
        %1433 = vst.msk [vmem:[#allocation2 + $0x228] sm:$0xff] %vm1363, %v1328
        %1434 = vst.msk [vmem:[#allocation2 + $0x230] sm:$0xff] %vm1363, %v1329
        %1435 = vst.msk [vmem:[#allocation2 + $0x238] sm:$0xff] %vm1363, %v1330
        %1436 = vst.msk [vmem:[#allocation2 + $0x240] sm:$0xff] %vm1363, %v1331
        %1437 = vst.msk [vmem:[#allocation2 + $0x248] sm:$0xff] %vm1363, %v1332
        %1438 = vst.msk [vmem:[#allocation2 + $0x250] sm:$0xff] %vm1363, %v1333
        %1439 = vst.msk [vmem:[#allocation2 + $0x258] sm:$0xff] %vm1363, %v1334
        %1440 = vst.msk [vmem:[#allocation2 + $0x260] sm:$0xff] %vm1363, %v1335
        %1441 = vst.msk [vmem:[#allocation2 + $0x268] sm:$0xff] %vm1363, %v1336
        %1442 = vst.msk [vmem:[#allocation2 + $0x270] sm:$0xff] %vm1363, %v1337
        %1443 = vst.msk [vmem:[#allocation2 + $0x278] sm:$0xff] %vm1363, %v1338
        %1444 = vst.msk [vmem:[#allocation2 + $0x280] sm:$0xff] %vm1363, %v1339
        %1445 = vst.msk [vmem:[#allocation2 + $0x288] sm:$0xff] %vm1363, %v1340
        %1446 = vst.msk [vmem:[#allocation2 + $0x290] sm:$0xff] %vm1363, %v1341
        %1447 = vst.msk [vmem:[#allocation2 + $0x298] sm:$0xff] %vm1363, %v1342
        %1448 = vst.msk [vmem:[#allocation2 + $0x2a0] sm:$0xff] %vm1363, %v1343
        %1449 = vst.msk [vmem:[#allocation2 + $0x2a8] sm:$0xff] %vm1363, %v1344
        %1450 = vst.msk [vmem:[#allocation2 + $0x2b0] sm:$0xff] %vm1363, %v1345
        %1451 = vst.msk [vmem:[#allocation2 + $0x2b8] sm:$0xff] %vm1363, %v1346
        %1452 = vst.msk [vmem:[#allocation2 + $0x2c0] sm:$0xff] %vm1363, %v1347
        %1453 = vst.msk [vmem:[#allocation2 + $0x2c8] sm:$0xff] %vm1363, %v1348
        %1454 = vst.msk [vmem:[#allocation2 + $0x2d0] sm:$0xff] %vm1363, %v1349
        %1455 = vst.msk [vmem:[#allocation2 + $0x2d8] sm:$0xff] %vm1363, %v1350
        %1456 = vst.msk [vmem:[#allocation2 + $0x2e0] sm:$0xff] %vm1363, %v1351
        %1457 = vst.msk [vmem:[#allocation2 + $0x2e8] sm:$0xff] %vm1363, %v1352
        %1458 = vst.msk [vmem:[#allocation2 + $0x2f0] sm:$0xff] %vm1363, %v1353
        %1459 = vst.msk [vmem:[#allocation2 + $0x2f8] sm:$0xff] %vm1363, %v1354
        %1460 = vst.msk [vmem:[#allocation2 + $0x300] sm:$0xff] %vm1363, %v1355
        %1461 = vst.msk [vmem:[#allocation2 + $0x308] sm:$0xff] %vm1363, %v1356
        %1462 = vst.msk [vmem:[#allocation2 + $0x310] sm:$0xff] %vm1363, %v1357
        %1463 = vst.msk [vmem:[#allocation2 + $0x318] sm:$0xff] %vm1363, %v1358
        %1464 = vst.msk [vmem:[#allocation2 + $0x320] sm:$0xff] %vm1363, %v1359
        %1465 = vst.msk [vmem:[#allocation2 + $0x328] sm:$0xff] %vm1363, %v1360
        %1466 = vst.msk [vmem:[#allocation2 + $0x330] sm:$0xff] %vm1363, %v1361
        %1467 = vst.msk [vmem:[#allocation2 + $0x338] sm:$0xff] %vm1363, %v1362
        %v1468 = vld [vmem:[#allocation2] sm:$0xff]
        %v1469 = vld [vmem:[#allocation2 + $0x8] sm:$0xff]
        %v1470 = vld [vmem:[#allocation2 + $0x10] sm:$0xff]
        %v1471 = vld [vmem:[#allocation2 + $0x20] sm:$0xff]
        %v1472 = vld [vmem:[#allocation2 + $0x28] sm:$0xff]
        %v1473 = vld [vmem:[#allocation2 + $0x30] sm:$0xff]
        %v1474 = vld [vmem:[#allocation2 + $0x40] sm:$0xff]
        %v1475 = vld [vmem:[#allocation2 + $0x48] sm:$0xff]
        %v1476 = vld [vmem:[#allocation2 + $0x50] sm:$0xff]
        %v1477 = vld [vmem:[#allocation2 + $0x60] sm:$0xff]
        %v1478 = vld [vmem:[#allocation2 + $0x68] sm:$0xff]
        %v1479 = vld [vmem:[#allocation2 + $0x70] sm:$0xff]
        %v1480 = vld [vmem:[#allocation2 + $0x80] sm:$0xff]
        %v1481 = vld [vmem:[#allocation2 + $0x88] sm:$0xff]
        %v1482 = vld [vmem:[#allocation2 + $0x90] sm:$0xff]
        %v1483 = vld [vmem:[#allocation2 + $0xa0] sm:$0xff]
        %v1484 = vld [vmem:[#allocation2 + $0xa8] sm:$0xff]
        %v1485 = vld [vmem:[#allocation2 + $0xb0] sm:$0xff]
        %v1486 = vld [vmem:[#allocation2 + $0xc0] sm:$0xff]
        %v1487 = vld [vmem:[#allocation2 + $0xc8] sm:$0xff]
        %v1488 = vld [vmem:[#allocation2 + $0xd0] sm:$0xff]
        %v1489 = vld [vmem:[#allocation2 + $0xe0] sm:$0xff]
        %v1490 = vld [vmem:[#allocation2 + $0xe8] sm:$0xff]
        %v1491 = vld [vmem:[#allocation2 + $0xf0] sm:$0xff]
        %v1492 = vld [vmem:[#allocation2 + $0x100] sm:$0xff]
        %v1493 = vld [vmem:[#allocation2 + $0x108] sm:$0xff]
        %v1494 = vld [vmem:[#allocation2 + $0x110] sm:$0xff]
        %v1495 = vld [vmem:[#allocation2 + $0x120] sm:$0xff]
        %v1496 = vld [vmem:[#allocation2 + $0x128] sm:$0xff]
        %v1497 = vld [vmem:[#allocation2 + $0x130] sm:$0xff]
        %v1498 = vld [vmem:[#allocation2 + $0x140] sm:$0xff]
        %v1499 = vld [vmem:[#allocation2 + $0x148] sm:$0xff]
        %v1500 = vld [vmem:[#allocation2 + $0x150] sm:$0xff]
        %v1501 = vld [vmem:[#allocation2 + $0x160] sm:$0xff]
        %v1502 = vld [vmem:[#allocation2 + $0x168] sm:$0xff]
        %v1503 = vld [vmem:[#allocation2 + $0x170] sm:$0xff]
        %v1504 = vld [vmem:[#allocation2 + $0x180] sm:$0xff]
        %v1505 = vld [vmem:[#allocation2 + $0x188] sm:$0xff]
        %v1506 = vld [vmem:[#allocation2 + $0x190] sm:$0xff]
        %v1507 = vld [vmem:[#allocation2 + $0x1a0] sm:$0xff]
        %v1508 = vld [vmem:[#allocation2 + $0x1a8] sm:$0xff]
        %v1509 = vld [vmem:[#allocation2 + $0x1b0] sm:$0xff]
        %v1510 = vld [vmem:[#allocation2 + $0x1c0] sm:$0xff]
        %v1511 = vld [vmem:[#allocation2 + $0x1c8] sm:$0xff]
        %v1512 = vld [vmem:[#allocation2 + $0x1d0] sm:$0xff]
        %v1513 = vld [vmem:[#allocation2 + $0x1e0] sm:$0xff]
        %v1514 = vld [vmem:[#allocation2 + $0x1e8] sm:$0xff]
        %v1515 = vld [vmem:[#allocation2 + $0x1f0] sm:$0xff]
        %v1516 = vld [vmem:[#allocation2 + $0x200] sm:$0xff]
        %v1517 = vld [vmem:[#allocation2 + $0x208] sm:$0xff]
        %v1518 = vld [vmem:[#allocation2 + $0x210] sm:$0xff]
        %v1519 = vld [vmem:[#allocation2 + $0x220] sm:$0xff]
        %v1520 = vld [vmem:[#allocation2 + $0x228] sm:$0xff]
        %v1521 = vld [vmem:[#allocation2 + $0x230] sm:$0xff]
        %v1522 = vld [vmem:[#allocation2 + $0x240] sm:$0xff]
        %v1523 = vld [vmem:[#allocation2 + $0x248] sm:$0xff]
        %v1524 = vld [vmem:[#allocation2 + $0x250] sm:$0xff]
        %v1525 = vld [vmem:[#allocation2 + $0x260] sm:$0xff]
        %v1526 = vld [vmem:[#allocation2 + $0x268] sm:$0xff]
        %v1527 = vld [vmem:[#allocation2 + $0x270] sm:$0xff]
        %v1528 = vld [vmem:[#allocation2 + $0x280] sm:$0xff]
        %v1529 = vld [vmem:[#allocation2 + $0x288] sm:$0xff]
        %v1530 = vld [vmem:[#allocation2 + $0x290] sm:$0xff]
        %v1531 = vld [vmem:[#allocation2 + $0x2a0] sm:$0xff]
        %v1532 = vld [vmem:[#allocation2 + $0x2a8] sm:$0xff]
        %v1533 = vld [vmem:[#allocation2 + $0x2b0] sm:$0xff]
        %v1534 = vld [vmem:[#allocation2 + $0x2c0] sm:$0xff]
        %v1535 = vld [vmem:[#allocation2 + $0x2c8] sm:$0xff]
        %v1536 = vld [vmem:[#allocation2 + $0x2d0] sm:$0xff]
        %v1537 = vld [vmem:[#allocation2 + $0x2e0] sm:$0xff]
        %v1538 = vld [vmem:[#allocation2 + $0x2e8] sm:$0xff]
        %v1539 = vld [vmem:[#allocation2 + $0x2f0] sm:$0xff]
        %v1540 = vpack.c.bf16 %v1469, %v1468
        %v1541 = vpack.c.bf16 %v1471, %v1470
        %v1542 = vpack.c.bf16 %v1473, %v1472
        %v1543 = vpack.c.bf16 %v1475, %v1474
        %v1544 = vpack.c.bf16 %v1477, %v1476
        %v1545 = vpack.c.bf16 %v1479, %v1478
        %v1546 = vpack.c.bf16 %v1481, %v1480
        %v1547 = vpack.c.bf16 %v1483, %v1482
        %v1548 = vpack.c.bf16 %v1485, %v1484
        %v1549 = vpack.c.bf16 %v1487, %v1486
        %v1550 = vpack.c.bf16 %v1489, %v1488
        %v1551 = vpack.c.bf16 %v1491, %v1490
        %v1552 = vpack.c.bf16 %v1493, %v1492
        %v1553 = vpack.c.bf16 %v1495, %v1494
        %v1554 = vpack.c.bf16 %v1497, %v1496
        %v1555 = vpack.c.bf16 %v1499, %v1498
        %v1556 = vpack.c.bf16 %v1501, %v1500
        %v1557 = vpack.c.bf16 %v1503, %v1502
        %v1558 = vpack.c.bf16 %v1505, %v1504
        %v1559 = vpack.c.bf16 %v1507, %v1506
        %v1560 = vpack.c.bf16 %v1509, %v1508
        %v1561 = vpack.c.bf16 %v1511, %v1510
        %v1562 = vpack.c.bf16 %v1513, %v1512
        %v1563 = vpack.c.bf16 %v1515, %v1514
        %v1564 = vpack.c.bf16 %v1517, %v1516
        %v1565 = vpack.c.bf16 %v1519, %v1518
        %v1566 = vpack.c.bf16 %v1521, %v1520
        %v1567 = vpack.c.bf16 %v1523, %v1522
        %v1568 = vpack.c.bf16 %v1525, %v1524
        %v1569 = vpack.c.bf16 %v1527, %v1526
        %v1570 = vpack.c.bf16 %v1529, %v1528
        %v1571 = vpack.c.bf16 %v1531, %v1530
        %v1572 = vpack.c.bf16 %v1533, %v1532
        %v1573 = vpack.c.bf16 %v1535, %v1534
        %v1574 = vpack.c.bf16 %v1537, %v1536
        %v1575 = vpack.c.bf16 %v1539, %v1538
        %1576 = vst.msk [vmem:[#allocation3] sm:$0xff] %vm1363, %v1540
        %1577 = vst.msk [vmem:[#allocation3 + $0x18] sm:$0xff] %vm1363, %v1541
        %1578 = vst.msk [vmem:[#allocation3 + $0x30] sm:$0xff] %vm1363, %v1542
        %1579 = vst.msk [vmem:[#allocation3 + $0x48] sm:$0xff] %vm1363, %v1543
        %1580 = vst.msk [vmem:[#allocation3 + $0x60] sm:$0xff] %vm1363, %v1544
        %1581 = vst.msk [vmem:[#allocation3 + $0x78] sm:$0xff] %vm1363, %v1545
        %1582 = vst.msk [vmem:[#allocation3 + $0x90] sm:$0xff] %vm1363, %v1546
        %1583 = vst.msk [vmem:[#allocation3 + $0xa8] sm:$0xff] %vm1363, %v1547
        %1584 = vst.msk [vmem:[#allocation3 + $0xc0] sm:$0xff] %vm1363, %v1548
        %1585 = vst.msk [vmem:[#allocation3 + $0xd8] sm:$0xff] %vm1363, %v1549
        %1586 = vst.msk [vmem:[#allocation3 + $0xf0] sm:$0xff] %vm1363, %v1550
        %1587 = vst.msk [vmem:[#allocation3 + $0x108] sm:$0xff] %vm1363, %v1551
        %1588 = vst.msk [vmem:[#allocation3 + $0x120] sm:$0xff] %vm1363, %v1552
        %1589 = vst.msk [vmem:[#allocation3 + $0x138] sm:$0xff] %vm1363, %v1553
        %1590 = vst.msk [vmem:[#allocation3 + $0x150] sm:$0xff] %vm1363, %v1554
        %1591 = vst.msk [vmem:[#allocation3 + $0x168] sm:$0xff] %vm1363, %v1555
        %1592 = vst.msk [vmem:[#allocation3 + $0x180] sm:$0xff] %vm1363, %v1556
        %1593 = vst.msk [vmem:[#allocation3 + $0x198] sm:$0xff] %vm1363, %v1557
        %1594 = vst.msk [vmem:[#allocation3 + $0x1b0] sm:$0xff] %vm1363, %v1558
        %1595 = vst.msk [vmem:[#allocation3 + $0x1c8] sm:$0xff] %vm1363, %v1559
        %1596 = vst.msk [vmem:[#allocation3 + $0x1e0] sm:$0xff] %vm1363, %v1560
        %1597 = vst.msk [vmem:[#allocation3 + $0x1f8] sm:$0xff] %vm1363, %v1561
        %1598 = vst.msk [vmem:[#allocation3 + $0x210] sm:$0xff] %vm1363, %v1562
        %1599 = vst.msk [vmem:[#allocation3 + $0x228] sm:$0xff] %vm1363, %v1563
        %1600 = vst.msk [vmem:[#allocation3 + $0x240] sm:$0xff] %vm1363, %v1564
        %1601 = vst.msk [vmem:[#allocation3 + $0x258] sm:$0xff] %vm1363, %v1565
        %1602 = vst.msk [vmem:[#allocation3 + $0x270] sm:$0xff] %vm1363, %v1566
        %1603 = vst.msk [vmem:[#allocation3 + $0x288] sm:$0xff] %vm1363, %v1567
        %1604 = vst.msk [vmem:[#allocation3 + $0x2a0] sm:$0xff] %vm1363, %v1568
        %1605 = vst.msk [vmem:[#allocation3 + $0x2b8] sm:$0xff] %vm1363, %v1569
        %1606 = vst.msk [vmem:[#allocation3 + $0x2d0] sm:$0xff] %vm1363, %v1570
        %1607 = vst.msk [vmem:[#allocation3 + $0x2e8] sm:$0xff] %vm1363, %v1571
        %1608 = vst.msk [vmem:[#allocation3 + $0x300] sm:$0xff] %vm1363, %v1572
        %1609 = vst.msk [vmem:[#allocation3 + $0x318] sm:$0xff] %vm1363, %v1573
        %1610 = vst.msk [vmem:[#allocation3 + $0x330] sm:$0xff] %vm1363, %v1574
        %1611 = vst.msk [vmem:[#allocation3 + $0x348] sm:$0xff] %vm1363, %v1575
        %v1612 = vld [vmem:[#allocation2 + $0x1] sm:$0xff]
        %v1613 = vld [vmem:[#allocation2 + $0x9] sm:$0xff]
        %v1614 = vld [vmem:[#allocation2 + $0x11] sm:$0xff]
        %v1615 = vld [vmem:[#allocation2 + $0x21] sm:$0xff]
        %v1616 = vld [vmem:[#allocation2 + $0x29] sm:$0xff]
        %v1617 = vld [vmem:[#allocation2 + $0x31] sm:$0xff]
        %v1618 = vld [vmem:[#allocation2 + $0x41] sm:$0xff]
        %v1619 = vld [vmem:[#allocation2 + $0x49] sm:$0xff]
        %v1620 = vld [vmem:[#allocation2 + $0x51] sm:$0xff]
        %v1621 = vld [vmem:[#allocation2 + $0x61] sm:$0xff]
        %v1622 = vld [vmem:[#allocation2 + $0x69] sm:$0xff]
        %v1623 = vld [vmem:[#allocation2 + $0x71] sm:$0xff]
        %v1624 = vld [vmem:[#allocation2 + $0x81] sm:$0xff]
        %v1625 = vld [vmem:[#allocation2 + $0x89] sm:$0xff]
        %v1626 = vld [vmem:[#allocation2 + $0x91] sm:$0xff]
        %v1627 = vld [vmem:[#allocation2 + $0xa1] sm:$0xff]
        %v1628 = vld [vmem:[#allocation2 + $0xa9] sm:$0xff]
        %v1629 = vld [vmem:[#allocation2 + $0xb1] sm:$0xff]
        %v1630 = vld [vmem:[#allocation2 + $0xc1] sm:$0xff]
        %v1631 = vld [vmem:[#allocation2 + $0xc9] sm:$0xff]
        %v1632 = vld [vmem:[#allocation2 + $0xd1] sm:$0xff]
        %v1633 = vld [vmem:[#allocation2 + $0xe1] sm:$0xff]
        %v1634 = vld [vmem:[#allocation2 + $0xe9] sm:$0xff]
        %v1635 = vld [vmem:[#allocation2 + $0xf1] sm:$0xff]
        %v1636 = vld [vmem:[#allocation2 + $0x101] sm:$0xff]
        %v1637 = vld [vmem:[#allocation2 + $0x109] sm:$0xff]
        %v1638 = vld [vmem:[#allocation2 + $0x111] sm:$0xff]
        %v1639 = vld [vmem:[#allocation2 + $0x121] sm:$0xff]
        %v1640 = vld [vmem:[#allocation2 + $0x129] sm:$0xff]
        %v1641 = vld [vmem:[#allocation2 + $0x131] sm:$0xff]
        %v1642 = vld [vmem:[#allocation2 + $0x141] sm:$0xff]
        %v1643 = vld [vmem:[#allocation2 + $0x149] sm:$0xff]
        %v1644 = vld [vmem:[#allocation2 + $0x151] sm:$0xff]
        %v1645 = vld [vmem:[#allocation2 + $0x161] sm:$0xff]
        %v1646 = vld [vmem:[#allocation2 + $0x169] sm:$0xff]
        %v1647 = vld [vmem:[#allocation2 + $0x171] sm:$0xff]
        %v1648 = vld [vmem:[#allocation2 + $0x181] sm:$0xff]
        %v1649 = vld [vmem:[#allocation2 + $0x189] sm:$0xff]
        %v1650 = vld [vmem:[#allocation2 + $0x191] sm:$0xff]
        %v1651 = vld [vmem:[#allocation2 + $0x1a1] sm:$0xff]
        %v1652 = vld [vmem:[#allocation2 + $0x1a9] sm:$0xff]
        %v1653 = vld [vmem:[#allocation2 + $0x1b1] sm:$0xff]
        %v1654 = vld [vmem:[#allocation2 + $0x1c1] sm:$0xff]
        %v1655 = vld [vmem:[#allocation2 + $0x1c9] sm:$0xff]
        %v1656 = vld [vmem:[#allocation2 + $0x1d1] sm:$0xff]
        %v1657 = vld [vmem:[#allocation2 + $0x1e1] sm:$0xff]
        %v1658 = vld [vmem:[#allocation2 + $0x1e9] sm:$0xff]
        %v1659 = vld [vmem:[#allocation2 + $0x1f1] sm:$0xff]
        %v1660 = vld [vmem:[#allocation2 + $0x201] sm:$0xff]
        %v1661 = vld [vmem:[#allocation2 + $0x209] sm:$0xff]
        %v1662 = vld [vmem:[#allocation2 + $0x211] sm:$0xff]
        %v1663 = vld [vmem:[#allocation2 + $0x221] sm:$0xff]
        %v1664 = vld [vmem:[#allocation2 + $0x229] sm:$0xff]
        %v1665 = vld [vmem:[#allocation2 + $0x231] sm:$0xff]
        %v1666 = vld [vmem:[#allocation2 + $0x241] sm:$0xff]
        %v1667 = vld [vmem:[#allocation2 + $0x249] sm:$0xff]
        %v1668 = vld [vmem:[#allocation2 + $0x251] sm:$0xff]
        %v1669 = vld [vmem:[#allocation2 + $0x261] sm:$0xff]
        %v1670 = vld [vmem:[#allocation2 + $0x269] sm:$0xff]
        %v1671 = vld [vmem:[#allocation2 + $0x271] sm:$0xff]
        %v1672 = vld [vmem:[#allocation2 + $0x281] sm:$0xff]
        %v1673 = vld [vmem:[#allocation2 + $0x289] sm:$0xff]
        %v1674 = vld [vmem:[#allocation2 + $0x291] sm:$0xff]
        %v1675 = vld [vmem:[#allocation2 + $0x2a1] sm:$0xff]
        %v1676 = vld [vmem:[#allocation2 + $0x2a9] sm:$0xff]
        %v1677 = vld [vmem:[#allocation2 + $0x2b1] sm:$0xff]
        %v1678 = vld [vmem:[#allocation2 + $0x2c1] sm:$0xff]
        %v1679 = vld [vmem:[#allocation2 + $0x2c9] sm:$0xff]
        %v1680 = vld [vmem:[#allocation2 + $0x2d1] sm:$0xff]
        %v1681 = vld [vmem:[#allocation2 + $0x2e1] sm:$0xff]
        %v1682 = vld [vmem:[#allocation2 + $0x2e9] sm:$0xff]
        %v1683 = vld [vmem:[#allocation2 + $0x2f1] sm:$0xff]
        %v1684 = vpack.c.bf16 %v1613, %v1612
        %v1685 = vpack.c.bf16 %v1615, %v1614
        %v1686 = vpack.c.bf16 %v1617, %v1616
        %v1687 = vpack.c.bf16 %v1619, %v1618
        %v1688 = vpack.c.bf16 %v1621, %v1620
        %v1689 = vpack.c.bf16 %v1623, %v1622
        %v1690 = vpack.c.bf16 %v1625, %v1624
        %v1691 = vpack.c.bf16 %v1627, %v1626
        %v1692 = vpack.c.bf16 %v1629, %v1628
        %v1693 = vpack.c.bf16 %v1631, %v1630
        %v1694 = vpack.c.bf16 %v1633, %v1632
        %v1695 = vpack.c.bf16 %v1635, %v1634
        %v1696 = vpack.c.bf16 %v1637, %v1636
        %v1697 = vpack.c.bf16 %v1639, %v1638
        %v1698 = vpack.c.bf16 %v1641, %v1640
        %v1699 = vpack.c.bf16 %v1643, %v1642
        %v1700 = vpack.c.bf16 %v1645, %v1644
        %v1701 = vpack.c.bf16 %v1647, %v1646
        %v1702 = vpack.c.bf16 %v1649, %v1648
        %v1703 = vpack.c.bf16 %v1651, %v1650
        %v1704 = vpack.c.bf16 %v1653, %v1652
        %v1705 = vpack.c.bf16 %v1655, %v1654
        %v1706 = vpack.c.bf16 %v1657, %v1656
        %v1707 = vpack.c.bf16 %v1659, %v1658
        %v1708 = vpack.c.bf16 %v1661, %v1660
        %v1709 = vpack.c.bf16 %v1663, %v1662
        %v1710 = vpack.c.bf16 %v1665, %v1664
        %v1711 = vpack.c.bf16 %v1667, %v1666
        %v1712 = vpack.c.bf16 %v1669, %v1668
        %v1713 = vpack.c.bf16 %v1671, %v1670
        %v1714 = vpack.c.bf16 %v1673, %v1672
        %v1715 = vpack.c.bf16 %v1675, %v1674
        %v1716 = vpack.c.bf16 %v1677, %v1676
        %v1717 = vpack.c.bf16 %v1679, %v1678
        %v1718 = vpack.c.bf16 %v1681, %v1680
        %v1719 = vpack.c.bf16 %v1683, %v1682
        %1756 = vrot.lane.b32.xlu0 %v1684, 32
        %v1757 = vpop.permute.xlu0 %1756
        %1758 = vrot.lane.b32.xlu0 %v1685, 32
        %v1759 = vpop.permute.xlu0 %1758
        %1760 = vrot.lane.b32.xlu0 %v1686, 32
        %v1761 = vpop.permute.xlu0 %1760
        %1762 = vrot.lane.b32.xlu0 %v1687, 32
        %v1763 = vpop.permute.xlu0 %1762
        %1764 = vrot.lane.b32.xlu0 %v1688, 32
        %v1765 = vpop.permute.xlu0 %1764
        %1766 = vrot.lane.b32.xlu0 %v1689, 32
        %v1767 = vpop.permute.xlu0 %1766
        %1768 = vrot.lane.b32.xlu0 %v1690, 32
        %v1769 = vpop.permute.xlu0 %1768
        %1770 = vrot.lane.b32.xlu0 %v1691, 32
        %v1771 = vpop.permute.xlu0 %1770
        %1772 = vrot.lane.b32.xlu0 %v1692, 32
        %v1773 = vpop.permute.xlu0 %1772
        %1774 = vrot.lane.b32.xlu0 %v1693, 32
        %v1775 = vpop.permute.xlu0 %1774
        %1776 = vrot.lane.b32.xlu0 %v1694, 32
        %v1777 = vpop.permute.xlu0 %1776
        %1778 = vrot.lane.b32.xlu0 %v1695, 32
        %v1779 = vpop.permute.xlu0 %1778
        %1780 = vrot.lane.b32.xlu0 %v1696, 32
        %v1781 = vpop.permute.xlu0 %1780
        %1782 = vrot.lane.b32.xlu0 %v1697, 32
        %v1783 = vpop.permute.xlu0 %1782
        %1784 = vrot.lane.b32.xlu0 %v1698, 32
        %v1785 = vpop.permute.xlu0 %1784
        %1786 = vrot.lane.b32.xlu0 %v1699, 32
        %v1787 = vpop.permute.xlu0 %1786
        %1788 = vrot.lane.b32.xlu0 %v1700, 32
        %v1789 = vpop.permute.xlu0 %1788
        %1790 = vrot.lane.b32.xlu0 %v1701, 32
        %v1791 = vpop.permute.xlu0 %1790
        %1792 = vrot.lane.b32.xlu0 %v1702, 32
        %v1793 = vpop.permute.xlu0 %1792
        %1794 = vrot.lane.b32.xlu0 %v1703, 32
        %v1795 = vpop.permute.xlu0 %1794
        %1796 = vrot.lane.b32.xlu0 %v1704, 32
        %v1797 = vpop.permute.xlu0 %1796
        %1798 = vrot.lane.b32.xlu0 %v1705, 32
        %v1799 = vpop.permute.xlu0 %1798
        %1800 = vrot.lane.b32.xlu0 %v1706, 32
        %v1801 = vpop.permute.xlu0 %1800
        %1802 = vrot.lane.b32.xlu0 %v1707, 32
        %v1803 = vpop.permute.xlu0 %1802
        %1804 = vrot.lane.b32.xlu0 %v1708, 32
        %v1805 = vpop.permute.xlu0 %1804
        %1806 = vrot.lane.b32.xlu0 %v1709, 32
        %v1807 = vpop.permute.xlu0 %1806
        %1808 = vrot.lane.b32.xlu0 %v1710, 32
        %v1809 = vpop.permute.xlu0 %1808
        %1810 = vrot.lane.b32.xlu0 %v1711, 32
        %v1811 = vpop.permute.xlu0 %1810
        %1812 = vrot.lane.b32.xlu0 %v1712, 32
        %v1813 = vpop.permute.xlu0 %1812
        %1814 = vrot.lane.b32.xlu0 %v1713, 32
        %v1815 = vpop.permute.xlu0 %1814
        %1816 = vrot.lane.b32.xlu0 %v1714, 32
        %v1817 = vpop.permute.xlu0 %1816
        %1818 = vrot.lane.b32.xlu0 %v1715, 32
        %v1819 = vpop.permute.xlu0 %1818
        %1820 = vrot.lane.b32.xlu0 %v1716, 32
        %v1821 = vpop.permute.xlu0 %1820
        %1822 = vrot.lane.b32.xlu0 %v1717, 32
        %v1823 = vpop.permute.xlu0 %1822
        %1824 = vrot.lane.b32.xlu0 %v1718, 32
        %v1825 = vpop.permute.xlu0 %1824
        %1826 = vrot.lane.b32.xlu0 %v1719, 32
        %v1827 = vpop.permute.xlu0 %1826
        %vm1864 = vcmask 523520
        %1865 = vst.msk [vmem:[#allocation3] sm:$0xff] %vm1864, %v1757
        %1866 = vst.msk [vmem:[#allocation3 + $0x18] sm:$0xff] %vm1864, %v1759
        %1867 = vst.msk [vmem:[#allocation3 + $0x30] sm:$0xff] %vm1864, %v1761
        %1868 = vst.msk [vmem:[#allocation3 + $0x48] sm:$0xff] %vm1864, %v1763
        %1869 = vst.msk [vmem:[#allocation3 + $0x60] sm:$0xff] %vm1864, %v1765
        %1870 = vst.msk [vmem:[#allocation3 + $0x78] sm:$0xff] %vm1864, %v1767
        %1871 = vst.msk [vmem:[#allocation3 + $0x90] sm:$0xff] %vm1864, %v1769
        %1872 = vst.msk [vmem:[#allocation3 + $0xa8] sm:$0xff] %vm1864, %v1771
        %1873 = vst.msk [vmem:[#allocation3 + $0xc0] sm:$0xff] %vm1864, %v1773
        %1874 = vst.msk [vmem:[#allocation3 + $0xd8] sm:$0xff] %vm1864, %v1775
        %1875 = vst.msk [vmem:[#allocation3 + $0xf0] sm:$0xff] %vm1864, %v1777
        %1876 = vst.msk [vmem:[#allocation3 + $0x108] sm:$0xff] %vm1864, %v1779
        %1877 = vst.msk [vmem:[#allocation3 + $0x120] sm:$0xff] %vm1864, %v1781
        %1878 = vst.msk [vmem:[#allocation3 + $0x138] sm:$0xff] %vm1864, %v1783
        %1879 = vst.msk [vmem:[#allocation3 + $0x150] sm:$0xff] %vm1864, %v1785
        %1880 = vst.msk [vmem:[#allocation3 + $0x168] sm:$0xff] %vm1864, %v1787
        %1881 = vst.msk [vmem:[#allocation3 + $0x180] sm:$0xff] %vm1864, %v1789
        %1882 = vst.msk [vmem:[#allocation3 + $0x198] sm:$0xff] %vm1864, %v1791
        %1883 = vst.msk [vmem:[#allocation3 + $0x1b0] sm:$0xff] %vm1864, %v1793
        %1884 = vst.msk [vmem:[#allocation3 + $0x1c8] sm:$0xff] %vm1864, %v1795
        %1885 = vst.msk [vmem:[#allocation3 + $0x1e0] sm:$0xff] %vm1864, %v1797
        %1886 = vst.msk [vmem:[#allocation3 + $0x1f8] sm:$0xff] %vm1864, %v1799
        %1887 = vst.msk [vmem:[#allocation3 + $0x210] sm:$0xff] %vm1864, %v1801
        %1888 = vst.msk [vmem:[#allocation3 + $0x228] sm:$0xff] %vm1864, %v1803
        %1889 = vst.msk [vmem:[#allocation3 + $0x240] sm:$0xff] %vm1864, %v1805
        %1890 = vst.msk [vmem:[#allocation3 + $0x258] sm:$0xff] %vm1864, %v1807
        %1891 = vst.msk [vmem:[#allocation3 + $0x270] sm:$0xff] %vm1864, %v1809
        %1892 = vst.msk [vmem:[#allocation3 + $0x288] sm:$0xff] %vm1864, %v1811
        %1893 = vst.msk [vmem:[#allocation3 + $0x2a0] sm:$0xff] %vm1864, %v1813
        %1894 = vst.msk [vmem:[#allocation3 + $0x2b8] sm:$0xff] %vm1864, %v1815
        %1895 = vst.msk [vmem:[#allocation3 + $0x2d0] sm:$0xff] %vm1864, %v1817
        %1896 = vst.msk [vmem:[#allocation3 + $0x2e8] sm:$0xff] %vm1864, %v1819
        %1897 = vst.msk [vmem:[#allocation3 + $0x300] sm:$0xff] %vm1864, %v1821
        %1898 = vst.msk [vmem:[#allocation3 + $0x318] sm:$0xff] %vm1864, %v1823
        %1899 = vst.msk [vmem:[#allocation3 + $0x330] sm:$0xff] %vm1864, %v1825
        %1900 = vst.msk [vmem:[#allocation3 + $0x348] sm:$0xff] %vm1864, %v1827
        %v1901 = vld [vmem:[#allocation2 + $0x2] sm:$0xff]
        %v1902 = vld [vmem:[#allocation2 + $0xa] sm:$0xff]
        %v1903 = vld [vmem:[#allocation2 + $0x12] sm:$0xff]
        %v1904 = vld [vmem:[#allocation2 + $0x22] sm:$0xff]
        %v1905 = vld [vmem:[#allocation2 + $0x2a] sm:$0xff]
        %v1906 = vld [vmem:[#allocation2 + $0x32] sm:$0xff]
        %v1907 = vld [vmem:[#allocation2 + $0x42] sm:$0xff]
        %v1908 = vld [vmem:[#allocation2 + $0x4a] sm:$0xff]
        %v1909 = vld [vmem:[#allocation2 + $0x52] sm:$0xff]
        %v1910 = vld [vmem:[#allocation2 + $0x62] sm:$0xff]
        %v1911 = vld [vmem:[#allocation2 + $0x6a] sm:$0xff]
        %v1912 = vld [vmem:[#allocation2 + $0x72] sm:$0xff]
        %v1913 = vld [vmem:[#allocation2 + $0x82] sm:$0xff]
        %v1914 = vld [vmem:[#allocation2 + $0x8a] sm:$0xff]
        %v1915 = vld [vmem:[#allocation2 + $0x92] sm:$0xff]
        %v1916 = vld [vmem:[#allocation2 + $0xa2] sm:$0xff]
        %v1917 = vld [vmem:[#allocation2 + $0xaa] sm:$0xff]
        %v1918 = vld [vmem:[#allocation2 + $0xb2] sm:$0xff]
        %v1919 = vld [vmem:[#allocation2 + $0xc2] sm:$0xff]
        %v1920 = vld [vmem:[#allocation2 + $0xca] sm:$0xff]
        %v1921 = vld [vmem:[#allocation2 + $0xd2] sm:$0xff]
        %v1922 = vld [vmem:[#allocation2 + $0xe2] sm:$0xff]
        %v1923 = vld [vmem:[#allocation2 + $0xea] sm:$0xff]
        %v1924 = vld [vmem:[#allocation2 + $0xf2] sm:$0xff]
        %v1925 = vld [vmem:[#allocation2 + $0x102] sm:$0xff]
        %v1926 = vld [vmem:[#allocation2 + $0x10a] sm:$0xff]
        %v1927 = vld [vmem:[#allocation2 + $0x112] sm:$0xff]
        %v1928 = vld [vmem:[#allocation2 + $0x122] sm:$0xff]
        %v1929 = vld [vmem:[#allocation2 + $0x12a] sm:$0xff]
        %v1930 = vld [vmem:[#allocation2 + $0x132] sm:$0xff]
        %v1931 = vld [vmem:[#allocation2 + $0x142] sm:$0xff]
        %v1932 = vld [vmem:[#allocation2 + $0x14a] sm:$0xff]
        %v1933 = vld [vmem:[#allocation2 + $0x152] sm:$0xff]
        %v1934 = vld [vmem:[#allocation2 + $0x162] sm:$0xff]
        %v1935 = vld [vmem:[#allocation2 + $0x16a] sm:$0xff]
        %v1936 = vld [vmem:[#allocation2 + $0x172] sm:$0xff]
        %v1937 = vld [vmem:[#allocation2 + $0x182] sm:$0xff]
        %v1938 = vld [vmem:[#allocation2 + $0x18a] sm:$0xff]
        %v1939 = vld [vmem:[#allocation2 + $0x192] sm:$0xff]
        %v1940 = vld [vmem:[#allocation2 + $0x1a2] sm:$0xff]
        %v1941 = vld [vmem:[#allocation2 + $0x1aa] sm:$0xff]
        %v1942 = vld [vmem:[#allocation2 + $0x1b2] sm:$0xff]
        %v1943 = vld [vmem:[#allocation2 + $0x1c2] sm:$0xff]
        %v1944 = vld [vmem:[#allocation2 + $0x1ca] sm:$0xff]
        %v1945 = vld [vmem:[#allocation2 + $0x1d2] sm:$0xff]
        %v1946 = vld [vmem:[#allocation2 + $0x1e2] sm:$0xff]
        %v1947 = vld [vmem:[#allocation2 + $0x1ea] sm:$0xff]
        %v1948 = vld [vmem:[#allocation2 + $0x1f2] sm:$0xff]
        %v1949 = vld [vmem:[#allocation2 + $0x202] sm:$0xff]
        %v1950 = vld [vmem:[#allocation2 + $0x20a] sm:$0xff]
        %v1951 = vld [vmem:[#allocation2 + $0x212] sm:$0xff]
        %v1952 = vld [vmem:[#allocation2 + $0x222] sm:$0xff]
        %v1953 = vld [vmem:[#allocation2 + $0x22a] sm:$0xff]
        %v1954 = vld [vmem:[#allocation2 + $0x232] sm:$0xff]
        %v1955 = vld [vmem:[#allocation2 + $0x242] sm:$0xff]
        %v1956 = vld [vmem:[#allocation2 + $0x24a] sm:$0xff]
        %v1957 = vld [vmem:[#allocation2 + $0x252] sm:$0xff]
        %v1958 = vld [vmem:[#allocation2 + $0x262] sm:$0xff]
        %v1959 = vld [vmem:[#allocation2 + $0x26a] sm:$0xff]
        %v1960 = vld [vmem:[#allocation2 + $0x272] sm:$0xff]
        %v1961 = vld [vmem:[#allocation2 + $0x282] sm:$0xff]
        %v1962 = vld [vmem:[#allocation2 + $0x28a] sm:$0xff]
        %v1963 = vld [vmem:[#allocation2 + $0x292] sm:$0xff]
        %v1964 = vld [vmem:[#allocation2 + $0x2a2] sm:$0xff]
        %v1965 = vld [vmem:[#allocation2 + $0x2aa] sm:$0xff]
        %v1966 = vld [vmem:[#allocation2 + $0x2b2] sm:$0xff]
        %v1967 = vld [vmem:[#allocation2 + $0x2c2] sm:$0xff]
        %v1968 = vld [vmem:[#allocation2 + $0x2ca] sm:$0xff]
        %v1969 = vld [vmem:[#allocation2 + $0x2d2] sm:$0xff]
        %v1970 = vld [vmem:[#allocation2 + $0x2e2] sm:$0xff]
        %v1971 = vld [vmem:[#allocation2 + $0x2ea] sm:$0xff]
        %v1972 = vld [vmem:[#allocation2 + $0x2f2] sm:$0xff]
        %v1973 = vpack.c.bf16 %v1902, %v1901
        %v1974 = vpack.c.bf16 %v1904, %v1903
        %v1975 = vpack.c.bf16 %v1906, %v1905
        %v1976 = vpack.c.bf16 %v1908, %v1907
        %v1977 = vpack.c.bf16 %v1910, %v1909
        %v1978 = vpack.c.bf16 %v1912, %v1911
        %v1979 = vpack.c.bf16 %v1914, %v1913
        %v1980 = vpack.c.bf16 %v1916, %v1915
        %v1981 = vpack.c.bf16 %v1918, %v1917
        %v1982 = vpack.c.bf16 %v1920, %v1919
        %v1983 = vpack.c.bf16 %v1922, %v1921
        %v1984 = vpack.c.bf16 %v1924, %v1923
        %v1985 = vpack.c.bf16 %v1926, %v1925
        %v1986 = vpack.c.bf16 %v1928, %v1927
        %v1987 = vpack.c.bf16 %v1930, %v1929
        %v1988 = vpack.c.bf16 %v1932, %v1931
        %v1989 = vpack.c.bf16 %v1934, %v1933
        %v1990 = vpack.c.bf16 %v1936, %v1935
        %v1991 = vpack.c.bf16 %v1938, %v1937
        %v1992 = vpack.c.bf16 %v1940, %v1939
        %v1993 = vpack.c.bf16 %v1942, %v1941
        %v1994 = vpack.c.bf16 %v1944, %v1943
        %v1995 = vpack.c.bf16 %v1946, %v1945
        %v1996 = vpack.c.bf16 %v1948, %v1947
        %v1997 = vpack.c.bf16 %v1950, %v1949
        %v1998 = vpack.c.bf16 %v1952, %v1951
        %v1999 = vpack.c.bf16 %v1954, %v1953
        %v2000 = vpack.c.bf16 %v1956, %v1955
        %v2001 = vpack.c.bf16 %v1958, %v1957
        %v2002 = vpack.c.bf16 %v1960, %v1959
        %v2003 = vpack.c.bf16 %v1962, %v1961
        %v2004 = vpack.c.bf16 %v1964, %v1963
        %v2005 = vpack.c.bf16 %v1966, %v1965
        %v2006 = vpack.c.bf16 %v1968, %v1967
        %v2007 = vpack.c.bf16 %v1970, %v1969
        %v2008 = vpack.c.bf16 %v1972, %v1971
        %2045 = vrot.lane.b32.xlu0 %v1973, 64
        %v2046 = vpop.permute.xlu0 %2045
        %2047 = vrot.lane.b32.xlu0 %v1974, 64
        %v2048 = vpop.permute.xlu0 %2047
        %2049 = vrot.lane.b32.xlu0 %v1975, 64
        %v2050 = vpop.permute.xlu0 %2049
        %2051 = vrot.lane.b32.xlu0 %v1976, 64
        %v2052 = vpop.permute.xlu0 %2051
        %2053 = vrot.lane.b32.xlu0 %v1977, 64
        %v2054 = vpop.permute.xlu0 %2053
        %2055 = vrot.lane.b32.xlu0 %v1978, 64
        %v2056 = vpop.permute.xlu0 %2055
        %2057 = vrot.lane.b32.xlu0 %v1979, 64
        %v2058 = vpop.permute.xlu0 %2057
        %2059 = vrot.lane.b32.xlu0 %v1980, 64
        %v2060 = vpop.permute.xlu0 %2059
        %2061 = vrot.lane.b32.xlu0 %v1981, 64
        %v2062 = vpop.permute.xlu0 %2061
        %2063 = vrot.lane.b32.xlu0 %v1982, 64
        %v2064 = vpop.permute.xlu0 %2063
        %2065 = vrot.lane.b32.xlu0 %v1983, 64
        %v2066 = vpop.permute.xlu0 %2065
        %2067 = vrot.lane.b32.xlu0 %v1984, 64
        %v2068 = vpop.permute.xlu0 %2067
        %2069 = vrot.lane.b32.xlu0 %v1985, 64
        %v2070 = vpop.permute.xlu0 %2069
        %2071 = vrot.lane.b32.xlu0 %v1986, 64
        %v2072 = vpop.permute.xlu0 %2071
        %2073 = vrot.lane.b32.xlu0 %v1987, 64
        %v2074 = vpop.permute.xlu0 %2073
        %2075 = vrot.lane.b32.xlu0 %v1988, 64
        %v2076 = vpop.permute.xlu0 %2075
        %2077 = vrot.lane.b32.xlu0 %v1989, 64
        %v2078 = vpop.permute.xlu0 %2077
        %2079 = vrot.lane.b32.xlu0 %v1990, 64
        %v2080 = vpop.permute.xlu0 %2079
        %2081 = vrot.lane.b32.xlu0 %v1991, 64
        %v2082 = vpop.permute.xlu0 %2081
        %2083 = vrot.lane.b32.xlu0 %v1992, 64
        %v2084 = vpop.permute.xlu0 %2083
        %2085 = vrot.lane.b32.xlu0 %v1993, 64
        %v2086 = vpop.permute.xlu0 %2085
        %2087 = vrot.lane.b32.xlu0 %v1994, 64
        %v2088 = vpop.permute.xlu0 %2087
        %2089 = vrot.lane.b32.xlu0 %v1995, 64
        %v2090 = vpop.permute.xlu0 %2089
        %2091 = vrot.lane.b32.xlu0 %v1996, 64
        %v2092 = vpop.permute.xlu0 %2091
        %2093 = vrot.lane.b32.xlu0 %v1997, 64
        %v2094 = vpop.permute.xlu0 %2093
        %2095 = vrot.lane.b32.xlu0 %v1998, 64
        %v2096 = vpop.permute.xlu0 %2095
        %2097 = vrot.lane.b32.xlu0 %v1999, 64
        %v2098 = vpop.permute.xlu0 %2097
        %2099 = vrot.lane.b32.xlu0 %v2000, 64
        %v2100 = vpop.permute.xlu0 %2099
        %2101 = vrot.lane.b32.xlu0 %v2001, 64
        %v2102 = vpop.permute.xlu0 %2101
        %2103 = vrot.lane.b32.xlu0 %v2002, 64
        %v2104 = vpop.permute.xlu0 %2103
        %2105 = vrot.lane.b32.xlu0 %v2003, 64
        %v2106 = vpop.permute.xlu0 %2105
        %2107 = vrot.lane.b32.xlu0 %v2004, 64
        %v2108 = vpop.permute.xlu0 %2107
        %2109 = vrot.lane.b32.xlu0 %v2005, 64
        %v2110 = vpop.permute.xlu0 %2109
        %2111 = vrot.lane.b32.xlu0 %v2006, 64
        %v2112 = vpop.permute.xlu0 %2111
        %2113 = vrot.lane.b32.xlu0 %v2007, 64
        %v2114 = vpop.permute.xlu0 %2113
        %2115 = vrot.lane.b32.xlu0 %v2008, 64
        %v2116 = vpop.permute.xlu0 %2115
        %vm2153 = vcmask 785920
        %2154 = vst.msk [vmem:[#allocation3] sm:$0xff] %vm2153, %v2046
        %2155 = vst.msk [vmem:[#allocation3 + $0x18] sm:$0xff] %vm2153, %v2048
        %2156 = vst.msk [vmem:[#allocation3 + $0x30] sm:$0xff] %vm2153, %v2050
        %2157 = vst.msk [vmem:[#allocation3 + $0x48] sm:$0xff] %vm2153, %v2052
        %2158 = vst.msk [vmem:[#allocation3 + $0x60] sm:$0xff] %vm2153, %v2054
        %2159 = vst.msk [vmem:[#allocation3 + $0x78] sm:$0xff] %vm2153, %v2056
        %2160 = vst.msk [vmem:[#allocation3 + $0x90] sm:$0xff] %vm2153, %v2058
        %2161 = vst.msk [vmem:[#allocation3 + $0xa8] sm:$0xff] %vm2153, %v2060
        %2162 = vst.msk [vmem:[#allocation3 + $0xc0] sm:$0xff] %vm2153, %v2062
        %2163 = vst.msk [vmem:[#allocation3 + $0xd8] sm:$0xff] %vm2153, %v2064
        %2164 = vst.msk [vmem:[#allocation3 + $0xf0] sm:$0xff] %vm2153, %v2066
        %2165 = vst.msk [vmem:[#allocation3 + $0x108] sm:$0xff] %vm2153, %v2068
        %2166 = vst.msk [vmem:[#allocation3 + $0x120] sm:$0xff] %vm2153, %v2070
        %2167 = vst.msk [vmem:[#allocation3 + $0x138] sm:$0xff] %vm2153, %v2072
        %2168 = vst.msk [vmem:[#allocation3 + $0x150] sm:$0xff] %vm2153, %v2074
        %2169 = vst.msk [vmem:[#allocation3 + $0x168] sm:$0xff] %vm2153, %v2076
        %2170 = vst.msk [vmem:[#allocation3 + $0x180] sm:$0xff] %vm2153, %v2078
        %2171 = vst.msk [vmem:[#allocation3 + $0x198] sm:$0xff] %vm2153, %v2080
        %2172 = vst.msk [vmem:[#allocation3 + $0x1b0] sm:$0xff] %vm2153, %v2082
        %2173 = vst.msk [vmem:[#allocation3 + $0x1c8] sm:$0xff] %vm2153, %v2084
        %2174 = vst.msk [vmem:[#allocation3 + $0x1e0] sm:$0xff] %vm2153, %v2086
        %2175 = vst.msk [vmem:[#allocation3 + $0x1f8] sm:$0xff] %vm2153, %v2088
        %2176 = vst.msk [vmem:[#allocation3 + $0x210] sm:$0xff] %vm2153, %v2090
        %2177 = vst.msk [vmem:[#allocation3 + $0x228] sm:$0xff] %vm2153, %v2092
        %2178 = vst.msk [vmem:[#allocation3 + $0x240] sm:$0xff] %vm2153, %v2094
        %2179 = vst.msk [vmem:[#allocation3 + $0x258] sm:$0xff] %vm2153, %v2096
        %2180 = vst.msk [vmem:[#allocation3 + $0x270] sm:$0xff] %vm2153, %v2098
        %2181 = vst.msk [vmem:[#allocation3 + $0x288] sm:$0xff] %vm2153, %v2100
        %2182 = vst.msk [vmem:[#allocation3 + $0x2a0] sm:$0xff] %vm2153, %v2102
        %2183 = vst.msk [vmem:[#allocation3 + $0x2b8] sm:$0xff] %vm2153, %v2104
        %2184 = vst.msk [vmem:[#allocation3 + $0x2d0] sm:$0xff] %vm2153, %v2106
        %2185 = vst.msk [vmem:[#allocation3 + $0x2e8] sm:$0xff] %vm2153, %v2108
        %2186 = vst.msk [vmem:[#allocation3 + $0x300] sm:$0xff] %vm2153, %v2110
        %2187 = vst.msk [vmem:[#allocation3 + $0x318] sm:$0xff] %vm2153, %v2112
        %2188 = vst.msk [vmem:[#allocation3 + $0x330] sm:$0xff] %vm2153, %v2114
        %2189 = vst.msk [vmem:[#allocation3 + $0x348] sm:$0xff] %vm2153, %v2116
        %s2190 = scalar_lea.vmem [#allocation2], 32
        %v2191 = vld [vmem:[%s2190] sm:$0xff]
        %v2192 = vld [vmem:[%s2190 + $0x8] sm:$0xff]
        %v2193 = vld [vmem:[%s2190 + $0x10] sm:$0xff]
        %v2194 = vld [vmem:[%s2190 + $0x20] sm:$0xff]
        %v2195 = vld [vmem:[%s2190 + $0x28] sm:$0xff]
        %v2196 = vld [vmem:[%s2190 + $0x30] sm:$0xff]
        %v2197 = vld [vmem:[%s2190 + $0x40] sm:$0xff]
        %v2198 = vld [vmem:[%s2190 + $0x48] sm:$0xff]
        %v2199 = vld [vmem:[%s2190 + $0x50] sm:$0xff]
        %v2200 = vld [vmem:[%s2190 + $0x60] sm:$0xff]
        %v2201 = vld [vmem:[%s2190 + $0x68] sm:$0xff]
        %v2202 = vld [vmem:[%s2190 + $0x70] sm:$0xff]
        %v2203 = vld [vmem:[%s2190 + $0x80] sm:$0xff]
        %v2204 = vld [vmem:[%s2190 + $0x88] sm:$0xff]
        %v2205 = vld [vmem:[%s2190 + $0x90] sm:$0xff]
        %v2206 = vld [vmem:[%s2190 + $0xa0] sm:$0xff]
        %v2207 = vld [vmem:[%s2190 + $0xa8] sm:$0xff]
        %v2208 = vld [vmem:[%s2190 + $0xb0] sm:$0xff]
        %v2209 = vld [vmem:[%s2190 + $0xc0] sm:$0xff]
        %v2210 = vld [vmem:[%s2190 + $0xc8] sm:$0xff]
        %v2211 = vld [vmem:[%s2190 + $0xd0] sm:$0xff]
        %v2212 = vld [vmem:[%s2190 + $0xe0] sm:$0xff]
        %v2213 = vld [vmem:[%s2190 + $0xe8] sm:$0xff]
        %v2214 = vld [vmem:[%s2190 + $0xf0] sm:$0xff]
        %v2215 = vld [vmem:[%s2190 + $0x100] sm:$0xff]
        %v2216 = vld [vmem:[%s2190 + $0x108] sm:$0xff]
        %v2217 = vld [vmem:[%s2190 + $0x110] sm:$0xff]
        %v2218 = vld [vmem:[%s2190 + $0x120] sm:$0xff]
        %v2219 = vld [vmem:[%s2190 + $0x128] sm:$0xff]
        %v2220 = vld [vmem:[%s2190 + $0x130] sm:$0xff]
        %v2221 = vld [vmem:[%s2190 + $0x140] sm:$0xff]
        %v2222 = vld [vmem:[%s2190 + $0x148] sm:$0xff]
        %v2223 = vld [vmem:[%s2190 + $0x150] sm:$0xff]
        %v2224 = vld [vmem:[%s2190 + $0x160] sm:$0xff]
        %v2225 = vld [vmem:[%s2190 + $0x168] sm:$0xff]
        %v2226 = vld [vmem:[%s2190 + $0x170] sm:$0xff]
        %v2227 = vld [vmem:[%s2190 + $0x180] sm:$0xff]
        %v2228 = vld [vmem:[%s2190 + $0x188] sm:$0xff]
        %v2229 = vld [vmem:[%s2190 + $0x190] sm:$0xff]
        %v2230 = vld [vmem:[%s2190 + $0x1a0] sm:$0xff]
        %v2231 = vld [vmem:[%s2190 + $0x1a8] sm:$0xff]
        %v2232 = vld [vmem:[%s2190 + $0x1b0] sm:$0xff]
        %v2233 = vld [vmem:[%s2190 + $0x1c0] sm:$0xff]
        %v2234 = vld [vmem:[%s2190 + $0x1c8] sm:$0xff]
        %v2235 = vld [vmem:[%s2190 + $0x1d0] sm:$0xff]
        %v2236 = vld [vmem:[%s2190 + $0x1e0] sm:$0xff]
        %v2237 = vld [vmem:[%s2190 + $0x1e8] sm:$0xff]
        %v2238 = vld [vmem:[%s2190 + $0x1f0] sm:$0xff]
        %v2239 = vld [vmem:[%s2190 + $0x200] sm:$0xff]
        %v2240 = vld [vmem:[%s2190 + $0x208] sm:$0xff]
        %v2241 = vld [vmem:[%s2190 + $0x210] sm:$0xff]
        %v2242 = vld [vmem:[%s2190 + $0x220] sm:$0xff]
        %v2243 = vld [vmem:[%s2190 + $0x228] sm:$0xff]
        %v2244 = vld [vmem:[%s2190 + $0x230] sm:$0xff]
        %v2245 = vld [vmem:[%s2190 + $0x240] sm:$0xff]
        %v2246 = vld [vmem:[%s2190 + $0x248] sm:$0xff]
        %v2247 = vld [vmem:[%s2190 + $0x250] sm:$0xff]
        %v2248 = vld [vmem:[%s2190 + $0x260] sm:$0xff]
        %v2249 = vld [vmem:[%s2190 + $0x268] sm:$0xff]
        %v2250 = vld [vmem:[%s2190 + $0x270] sm:$0xff]
        %v2251 = vld [vmem:[%s2190 + $0x280] sm:$0xff]
        %v2252 = vld [vmem:[%s2190 + $0x288] sm:$0xff]
        %v2253 = vld [vmem:[%s2190 + $0x290] sm:$0xff]
        %v2254 = vld [vmem:[%s2190 + $0x2a0] sm:$0xff]
        %v2255 = vld [vmem:[%s2190 + $0x2a8] sm:$0xff]
        %v2256 = vld [vmem:[%s2190 + $0x2b0] sm:$0xff]
        %v2257 = vld [vmem:[%s2190 + $0x2c0] sm:$0xff]
        %v2258 = vld [vmem:[%s2190 + $0x2c8] sm:$0xff]
        %v2259 = vld [vmem:[%s2190 + $0x2d0] sm:$0xff]
        %v2260 = vld [vmem:[%s2190 + $0x2e0] sm:$0xff]
        %v2261 = vld [vmem:[%s2190 + $0x2e8] sm:$0xff]
        %v2262 = vld [vmem:[%s2190 + $0x2f0] sm:$0xff]
        %v2263 = vpack.c.bf16 %v2192, %v2191
        %v2264 = vpack.c.bf16 %v2194, %v2193
        %v2265 = vpack.c.bf16 %v2196, %v2195
        %v2266 = vpack.c.bf16 %v2198, %v2197
        %v2267 = vpack.c.bf16 %v2200, %v2199
        %v2268 = vpack.c.bf16 %v2202, %v2201
        %v2269 = vpack.c.bf16 %v2204, %v2203
        %v2270 = vpack.c.bf16 %v2206, %v2205
        %v2271 = vpack.c.bf16 %v2208, %v2207
        %v2272 = vpack.c.bf16 %v2210, %v2209
        %v2273 = vpack.c.bf16 %v2212, %v2211
        %v2274 = vpack.c.bf16 %v2214, %v2213
        %v2275 = vpack.c.bf16 %v2216, %v2215
        %v2276 = vpack.c.bf16 %v2218, %v2217
        %v2277 = vpack.c.bf16 %v2220, %v2219
        %v2278 = vpack.c.bf16 %v2222, %v2221
        %v2279 = vpack.c.bf16 %v2224, %v2223
        %v2280 = vpack.c.bf16 %v2226, %v2225
        %v2281 = vpack.c.bf16 %v2228, %v2227
        %v2282 = vpack.c.bf16 %v2230, %v2229
        %v2283 = vpack.c.bf16 %v2232, %v2231
        %v2284 = vpack.c.bf16 %v2234, %v2233
        %v2285 = vpack.c.bf16 %v2236, %v2235
        %v2286 = vpack.c.bf16 %v2238, %v2237
        %v2287 = vpack.c.bf16 %v2240, %v2239
        %v2288 = vpack.c.bf16 %v2242, %v2241
        %v2289 = vpack.c.bf16 %v2244, %v2243
        %v2290 = vpack.c.bf16 %v2246, %v2245
        %v2291 = vpack.c.bf16 %v2248, %v2247
        %v2292 = vpack.c.bf16 %v2250, %v2249
        %v2293 = vpack.c.bf16 %v2252, %v2251
        %v2294 = vpack.c.bf16 %v2254, %v2253
        %v2295 = vpack.c.bf16 %v2256, %v2255
        %v2296 = vpack.c.bf16 %v2258, %v2257
        %v2297 = vpack.c.bf16 %v2260, %v2259
        %v2298 = vpack.c.bf16 %v2262, %v2261
        %2335 = vrot.lane.b32.xlu0 %v2263, 96
        %v2336 = vpop.permute.xlu0 %2335
        %2337 = vrot.lane.b32.xlu0 %v2264, 96
        %v2338 = vpop.permute.xlu0 %2337
        %2339 = vrot.lane.b32.xlu0 %v2265, 96
        %v2340 = vpop.permute.xlu0 %2339
        %2341 = vrot.lane.b32.xlu0 %v2266, 96
        %v2342 = vpop.permute.xlu0 %2341
        %2343 = vrot.lane.b32.xlu0 %v2267, 96
        %v2344 = vpop.permute.xlu0 %2343
        %2345 = vrot.lane.b32.xlu0 %v2268, 96
        %v2346 = vpop.permute.xlu0 %2345
        %2347 = vrot.lane.b32.xlu0 %v2269, 96
        %v2348 = vpop.permute.xlu0 %2347
        %2349 = vrot.lane.b32.xlu0 %v2270, 96
        %v2350 = vpop.permute.xlu0 %2349
        %2351 = vrot.lane.b32.xlu0 %v2271, 96
        %v2352 = vpop.permute.xlu0 %2351
        %2353 = vrot.lane.b32.xlu0 %v2272, 96
        %v2354 = vpop.permute.xlu0 %2353
        %2355 = vrot.lane.b32.xlu0 %v2273, 96
        %v2356 = vpop.permute.xlu0 %2355
        %2357 = vrot.lane.b32.xlu0 %v2274, 96
        %v2358 = vpop.permute.xlu0 %2357
        %2359 = vrot.lane.b32.xlu0 %v2275, 96
        %v2360 = vpop.permute.xlu0 %2359
        %2361 = vrot.lane.b32.xlu0 %v2276, 96
        %v2362 = vpop.permute.xlu0 %2361
        %2363 = vrot.lane.b32.xlu0 %v2277, 96
        %v2364 = vpop.permute.xlu0 %2363
        %2365 = vrot.lane.b32.xlu0 %v2278, 96
        %v2366 = vpop.permute.xlu0 %2365
        %2367 = vrot.lane.b32.xlu0 %v2279, 96
        %v2368 = vpop.permute.xlu0 %2367
        %2369 = vrot.lane.b32.xlu0 %v2280, 96
        %v2370 = vpop.permute.xlu0 %2369
        %2371 = vrot.lane.b32.xlu0 %v2281, 96
        %v2372 = vpop.permute.xlu0 %2371
        %2373 = vrot.lane.b32.xlu0 %v2282, 96
        %v2374 = vpop.permute.xlu0 %2373
        %2375 = vrot.lane.b32.xlu0 %v2283, 96
        %v2376 = vpop.permute.xlu0 %2375
        %2377 = vrot.lane.b32.xlu0 %v2284, 96
        %v2378 = vpop.permute.xlu0 %2377
        %2379 = vrot.lane.b32.xlu0 %v2285, 96
        %v2380 = vpop.permute.xlu0 %2379
        %2381 = vrot.lane.b32.xlu0 %v2286, 96
        %v2382 = vpop.permute.xlu0 %2381
        %2383 = vrot.lane.b32.xlu0 %v2287, 96
        %v2384 = vpop.permute.xlu0 %2383
        %2385 = vrot.lane.b32.xlu0 %v2288, 96
        %v2386 = vpop.permute.xlu0 %2385
        %2387 = vrot.lane.b32.xlu0 %v2289, 96
        %v2388 = vpop.permute.xlu0 %2387
        %2389 = vrot.lane.b32.xlu0 %v2290, 96
        %v2390 = vpop.permute.xlu0 %2389
        %2391 = vrot.lane.b32.xlu0 %v2291, 96
        %v2392 = vpop.permute.xlu0 %2391
        %2393 = vrot.lane.b32.xlu0 %v2292, 96
        %v2394 = vpop.permute.xlu0 %2393
        %2395 = vrot.lane.b32.xlu0 %v2293, 96
        %v2396 = vpop.permute.xlu0 %2395
        %2397 = vrot.lane.b32.xlu0 %v2294, 96
        %v2398 = vpop.permute.xlu0 %2397
        %2399 = vrot.lane.b32.xlu0 %v2295, 96
        %v2400 = vpop.permute.xlu0 %2399
        %2401 = vrot.lane.b32.xlu0 %v2296, 96
        %v2402 = vpop.permute.xlu0 %2401
        %2403 = vrot.lane.b32.xlu0 %v2297, 96
        %v2404 = vpop.permute.xlu0 %2403
        %2405 = vrot.lane.b32.xlu0 %v2298, 96
        %v2406 = vpop.permute.xlu0 %2405
        %vm2443 = vcmask 1048320
        %2444 = vst.msk [vmem:[#allocation3] sm:$0xff] %vm2443, %v2336
        %2445 = vst.msk [vmem:[#allocation3 + $0x18] sm:$0xff] %vm2443, %v2338
        %2446 = vst.msk [vmem:[#allocation3 + $0x30] sm:$0xff] %vm2443, %v2340
        %2447 = vst.msk [vmem:[#allocation3 + $0x48] sm:$0xff] %vm2443, %v2342
        %2448 = vst.msk [vmem:[#allocation3 + $0x60] sm:$0xff] %vm2443, %v2344
        %2449 = vst.msk [vmem:[#allocation3 + $0x78] sm:$0xff] %vm2443, %v2346
        %2450 = vst.msk [vmem:[#allocation3 + $0x90] sm:$0xff] %vm2443, %v2348
        %2451 = vst.msk [vmem:[#allocation3 + $0xa8] sm:$0xff] %vm2443, %v2350
        %2452 = vst.msk [vmem:[#allocation3 + $0xc0] sm:$0xff] %vm2443, %v2352
        %2453 = vst.msk [vmem:[#allocation3 + $0xd8] sm:$0xff] %vm2443, %v2354
        %2454 = vst.msk [vmem:[#allocation3 + $0xf0] sm:$0xff] %vm2443, %v2356
        %2455 = vst.msk [vmem:[#allocation3 + $0x108] sm:$0xff] %vm2443, %v2358
        %2456 = vst.msk [vmem:[#allocation3 + $0x120] sm:$0xff] %vm2443, %v2360
        %2457 = vst.msk [vmem:[#allocation3 + $0x138] sm:$0xff] %vm2443, %v2362
        %2458 = vst.msk [vmem:[#allocation3 + $0x150] sm:$0xff] %vm2443, %v2364
        %2459 = vst.msk [vmem:[#allocation3 + $0x168] sm:$0xff] %vm2443, %v2366
        %2460 = vst.msk [vmem:[#allocation3 + $0x180] sm:$0xff] %vm2443, %v2368
        %2461 = vst.msk [vmem:[#allocation3 + $0x198] sm:$0xff] %vm2443, %v2370
        %2462 = vst.msk [vmem:[#allocation3 + $0x1b0] sm:$0xff] %vm2443, %v2372
        %2463 = vst.msk [vmem:[#allocation3 + $0x1c8] sm:$0xff] %vm2443, %v2374
        %2464 = vst.msk [vmem:[#allocation3 + $0x1e0] sm:$0xff] %vm2443, %v2376
        %2465 = vst.msk [vmem:[#allocation3 + $0x1f8] sm:$0xff] %vm2443, %v2378
        %2466 = vst.msk [vmem:[#allocation3 + $0x210] sm:$0xff] %vm2443, %v2380
        %2467 = vst.msk [vmem:[#allocation3 + $0x228] sm:$0xff] %vm2443, %v2382
        %2468 = vst.msk [vmem:[#allocation3 + $0x240] sm:$0xff] %vm2443, %v2384
        %2469 = vst.msk [vmem:[#allocation3 + $0x258] sm:$0xff] %vm2443, %v2386
        %2470 = vst.msk [vmem:[#allocation3 + $0x270] sm:$0xff] %vm2443, %v2388
        %2471 = vst.msk [vmem:[#allocation3 + $0x288] sm:$0xff] %vm2443, %v2390
        %2472 = vst.msk [vmem:[#allocation3 + $0x2a0] sm:$0xff] %vm2443, %v2392
        %2473 = vst.msk [vmem:[#allocation3 + $0x2b8] sm:$0xff] %vm2443, %v2394
        %2474 = vst.msk [vmem:[#allocation3 + $0x2d0] sm:$0xff] %vm2443, %v2396
        %2475 = vst.msk [vmem:[#allocation3 + $0x2e8] sm:$0xff] %vm2443, %v2398
        %2476 = vst.msk [vmem:[#allocation3 + $0x300] sm:$0xff] %vm2443, %v2400
        %2477 = vst.msk [vmem:[#allocation3 + $0x318] sm:$0xff] %vm2443, %v2402
        %2478 = vst.msk [vmem:[#allocation3 + $0x330] sm:$0xff] %vm2443, %v2404
        %2479 = vst.msk [vmem:[#allocation3 + $0x348] sm:$0xff] %vm2443, %v2406
        %v2480 = vld [vmem:[%s2190 + $0x1] sm:$0xff]
        %v2481 = vld [vmem:[%s2190 + $0x9] sm:$0xff]
        %v2482 = vld [vmem:[%s2190 + $0x11] sm:$0xff]
        %v2483 = vld [vmem:[%s2190 + $0x21] sm:$0xff]
        %v2484 = vld [vmem:[%s2190 + $0x29] sm:$0xff]
        %v2485 = vld [vmem:[%s2190 + $0x31] sm:$0xff]
        %v2486 = vld [vmem:[%s2190 + $0x41] sm:$0xff]
        %v2487 = vld [vmem:[%s2190 + $0x49] sm:$0xff]
        %v2488 = vld [vmem:[%s2190 + $0x51] sm:$0xff]
        %v2489 = vld [vmem:[%s2190 + $0x61] sm:$0xff]
        %v2490 = vld [vmem:[%s2190 + $0x69] sm:$0xff]
        %v2491 = vld [vmem:[%s2190 + $0x71] sm:$0xff]
        %v2492 = vld [vmem:[%s2190 + $0x81] sm:$0xff]
        %v2493 = vld [vmem:[%s2190 + $0x89] sm:$0xff]
        %v2494 = vld [vmem:[%s2190 + $0x91] sm:$0xff]
        %v2495 = vld [vmem:[%s2190 + $0xa1] sm:$0xff]
        %v2496 = vld [vmem:[%s2190 + $0xa9] sm:$0xff]
        %v2497 = vld [vmem:[%s2190 + $0xb1] sm:$0xff]
        %v2498 = vld [vmem:[%s2190 + $0xc1] sm:$0xff]
        %v2499 = vld [vmem:[%s2190 + $0xc9] sm:$0xff]
        %v2500 = vld [vmem:[%s2190 + $0xd1] sm:$0xff]
        %v2501 = vld [vmem:[%s2190 + $0xe1] sm:$0xff]
        %v2502 = vld [vmem:[%s2190 + $0xe9] sm:$0xff]
        %v2503 = vld [vmem:[%s2190 + $0xf1] sm:$0xff]
        %v2504 = vld [vmem:[%s2190 + $0x101] sm:$0xff]
        %v2505 = vld [vmem:[%s2190 + $0x109] sm:$0xff]
        %v2506 = vld [vmem:[%s2190 + $0x111] sm:$0xff]
        %v2507 = vld [vmem:[%s2190 + $0x121] sm:$0xff]
        %v2508 = vld [vmem:[%s2190 + $0x129] sm:$0xff]
        %v2509 = vld [vmem:[%s2190 + $0x131] sm:$0xff]
        %v2510 = vld [vmem:[%s2190 + $0x141] sm:$0xff]
        %v2511 = vld [vmem:[%s2190 + $0x149] sm:$0xff]
        %v2512 = vld [vmem:[%s2190 + $0x151] sm:$0xff]
        %v2513 = vld [vmem:[%s2190 + $0x161] sm:$0xff]
        %v2514 = vld [vmem:[%s2190 + $0x169] sm:$0xff]
        %v2515 = vld [vmem:[%s2190 + $0x171] sm:$0xff]
        %v2516 = vld [vmem:[%s2190 + $0x181] sm:$0xff]
        %v2517 = vld [vmem:[%s2190 + $0x189] sm:$0xff]
        %v2518 = vld [vmem:[%s2190 + $0x191] sm:$0xff]
        %v2519 = vld [vmem:[%s2190 + $0x1a1] sm:$0xff]
        %v2520 = vld [vmem:[%s2190 + $0x1a9] sm:$0xff]
        %v2521 = vld [vmem:[%s2190 + $0x1b1] sm:$0xff]
        %v2522 = vld [vmem:[%s2190 + $0x1c1] sm:$0xff]
        %v2523 = vld [vmem:[%s2190 + $0x1c9] sm:$0xff]
        %v2524 = vld [vmem:[%s2190 + $0x1d1] sm:$0xff]
        %v2525 = vld [vmem:[%s2190 + $0x1e1] sm:$0xff]
        %v2526 = vld [vmem:[%s2190 + $0x1e9] sm:$0xff]
        %v2527 = vld [vmem:[%s2190 + $0x1f1] sm:$0xff]
        %v2528 = vld [vmem:[%s2190 + $0x201] sm:$0xff]
        %v2529 = vld [vmem:[%s2190 + $0x209] sm:$0xff]
        %v2530 = vld [vmem:[%s2190 + $0x211] sm:$0xff]
        %v2531 = vld [vmem:[%s2190 + $0x221] sm:$0xff]
        %v2532 = vld [vmem:[%s2190 + $0x229] sm:$0xff]
        %v2533 = vld [vmem:[%s2190 + $0x231] sm:$0xff]
        %v2534 = vld [vmem:[%s2190 + $0x241] sm:$0xff]
        %v2535 = vld [vmem:[%s2190 + $0x249] sm:$0xff]
        %v2536 = vld [vmem:[%s2190 + $0x251] sm:$0xff]
        %v2537 = vld [vmem:[%s2190 + $0x261] sm:$0xff]
        %v2538 = vld [vmem:[%s2190 + $0x269] sm:$0xff]
        %v2539 = vld [vmem:[%s2190 + $0x271] sm:$0xff]
        %v2540 = vld [vmem:[%s2190 + $0x281] sm:$0xff]
        %v2541 = vld [vmem:[%s2190 + $0x289] sm:$0xff]
        %v2542 = vld [vmem:[%s2190 + $0x291] sm:$0xff]
        %v2543 = vld [vmem:[%s2190 + $0x2a1] sm:$0xff]
        %v2544 = vld [vmem:[%s2190 + $0x2a9] sm:$0xff]
        %v2545 = vld [vmem:[%s2190 + $0x2b1] sm:$0xff]
        %v2546 = vld [vmem:[%s2190 + $0x2c1] sm:$0xff]
        %v2547 = vld [vmem:[%s2190 + $0x2c9] sm:$0xff]
        %v2548 = vld [vmem:[%s2190 + $0x2d1] sm:$0xff]
        %v2549 = vld [vmem:[%s2190 + $0x2e1] sm:$0xff]
        %v2550 = vld [vmem:[%s2190 + $0x2e9] sm:$0xff]
        %v2551 = vld [vmem:[%s2190 + $0x2f1] sm:$0xff]
        %v2552 = vpack.c.bf16 %v2481, %v2480
        %v2553 = vpack.c.bf16 %v2483, %v2482
        %v2554 = vpack.c.bf16 %v2485, %v2484
        %v2555 = vpack.c.bf16 %v2487, %v2486
        %v2556 = vpack.c.bf16 %v2489, %v2488
        %v2557 = vpack.c.bf16 %v2491, %v2490
        %v2558 = vpack.c.bf16 %v2493, %v2492
        %v2559 = vpack.c.bf16 %v2495, %v2494
        %v2560 = vpack.c.bf16 %v2497, %v2496
        %v2561 = vpack.c.bf16 %v2499, %v2498
        %v2562 = vpack.c.bf16 %v2501, %v2500
        %v2563 = vpack.c.bf16 %v2503, %v2502
        %v2564 = vpack.c.bf16 %v2505, %v2504
        %v2565 = vpack.c.bf16 %v2507, %v2506
        %v2566 = vpack.c.bf16 %v2509, %v2508
        %v2567 = vpack.c.bf16 %v2511, %v2510
        %v2568 = vpack.c.bf16 %v2513, %v2512
        %v2569 = vpack.c.bf16 %v2515, %v2514
        %v2570 = vpack.c.bf16 %v2517, %v2516
        %v2571 = vpack.c.bf16 %v2519, %v2518
        %v2572 = vpack.c.bf16 %v2521, %v2520
        %v2573 = vpack.c.bf16 %v2523, %v2522
        %v2574 = vpack.c.bf16 %v2525, %v2524
        %v2575 = vpack.c.bf16 %v2527, %v2526
        %v2576 = vpack.c.bf16 %v2529, %v2528
        %v2577 = vpack.c.bf16 %v2531, %v2530
        %v2578 = vpack.c.bf16 %v2533, %v2532
        %v2579 = vpack.c.bf16 %v2535, %v2534
        %v2580 = vpack.c.bf16 %v2537, %v2536
        %v2581 = vpack.c.bf16 %v2539, %v2538
        %v2582 = vpack.c.bf16 %v2541, %v2540
        %v2583 = vpack.c.bf16 %v2543, %v2542
        %v2584 = vpack.c.bf16 %v2545, %v2544
        %v2585 = vpack.c.bf16 %v2547, %v2546
        %v2586 = vpack.c.bf16 %v2549, %v2548
        %v2587 = vpack.c.bf16 %v2551, %v2550
        %2588 = vst.msk [vmem:[#allocation3 + $0x8] sm:$0xff] %vm1363, %v2552
        %2589 = vst.msk [vmem:[#allocation3 + $0x20] sm:$0xff] %vm1363, %v2553
        %2590 = vst.msk [vmem:[#allocation3 + $0x38] sm:$0xff] %vm1363, %v2554
        %2591 = vst.msk [vmem:[#allocation3 + $0x50] sm:$0xff] %vm1363, %v2555
        %2592 = vst.msk [vmem:[#allocation3 + $0x68] sm:$0xff] %vm1363, %v2556
        %2593 = vst.msk [vmem:[#allocation3 + $0x80] sm:$0xff] %vm1363, %v2557
        %2594 = vst.msk [vmem:[#allocation3 + $0x98] sm:$0xff] %vm1363, %v2558
        %2595 = vst.msk [vmem:[#allocation3 + $0xb0] sm:$0xff] %vm1363, %v2559
        %2596 = vst.msk [vmem:[#allocation3 + $0xc8] sm:$0xff] %vm1363, %v2560
        %2597 = vst.msk [vmem:[#allocation3 + $0xe0] sm:$0xff] %vm1363, %v2561
        %2598 = vst.msk [vmem:[#allocation3 + $0xf8] sm:$0xff] %vm1363, %v2562
        %2599 = vst.msk [vmem:[#allocation3 + $0x110] sm:$0xff] %vm1363, %v2563
        %2600 = vst.msk [vmem:[#allocation3 + $0x128] sm:$0xff] %vm1363, %v2564
        %2601 = vst.msk [vmem:[#allocation3 + $0x140] sm:$0xff] %vm1363, %v2565
        %2602 = vst.msk [vmem:[#allocation3 + $0x158] sm:$0xff] %vm1363, %v2566
        %2603 = vst.msk [vmem:[#allocation3 + $0x170] sm:$0xff] %vm1363, %v2567
        %2604 = vst.msk [vmem:[#allocation3 + $0x188] sm:$0xff] %vm1363, %v2568
        %2605 = vst.msk [vmem:[#allocation3 + $0x1a0] sm:$0xff] %vm1363, %v2569
        %2606 = vst.msk [vmem:[#allocation3 + $0x1b8] sm:$0xff] %vm1363, %v2570
        %2607 = vst.msk [vmem:[#allocation3 + $0x1d0] sm:$0xff] %vm1363, %v2571
        %2608 = vst.msk [vmem:[#allocation3 + $0x1e8] sm:$0xff] %vm1363, %v2572
        %2609 = vst.msk [vmem:[#allocation3 + $0x200] sm:$0xff] %vm1363, %v2573
        %2610 = vst.msk [vmem:[#allocation3 + $0x218] sm:$0xff] %vm1363, %v2574
        %2611 = vst.msk [vmem:[#allocation3 + $0x230] sm:$0xff] %vm1363, %v2575
        %2612 = vst.msk [vmem:[#allocation3 + $0x248] sm:$0xff] %vm1363, %v2576
        %2613 = vst.msk [vmem:[#allocation3 + $0x260] sm:$0xff] %vm1363, %v2577
        %2614 = vst.msk [vmem:[#allocation3 + $0x278] sm:$0xff] %vm1363, %v2578
        %2615 = vst.msk [vmem:[#allocation3 + $0x290] sm:$0xff] %vm1363, %v2579
        %2616 = vst.msk [vmem:[#allocation3 + $0x2a8] sm:$0xff] %vm1363, %v2580
        %2617 = vst.msk [vmem:[#allocation3 + $0x2c0] sm:$0xff] %vm1363, %v2581
        %2618 = vst.msk [vmem:[#allocation3 + $0x2d8] sm:$0xff] %vm1363, %v2582
        %2619 = vst.msk [vmem:[#allocation3 + $0x2f0] sm:$0xff] %vm1363, %v2583
        %2620 = vst.msk [vmem:[#allocation3 + $0x308] sm:$0xff] %vm1363, %v2584
        %2621 = vst.msk [vmem:[#allocation3 + $0x320] sm:$0xff] %vm1363, %v2585
        %2622 = vst.msk [vmem:[#allocation3 + $0x338] sm:$0xff] %vm1363, %v2586
        %2623 = vst.msk [vmem:[#allocation3 + $0x350] sm:$0xff] %vm1363, %v2587
        %v2624 = vld [vmem:[%s2190 + $0x2] sm:$0xff]
        %v2625 = vld [vmem:[%s2190 + $0xa] sm:$0xff]
        %v2626 = vld [vmem:[%s2190 + $0x12] sm:$0xff]
        %v2627 = vld [vmem:[%s2190 + $0x22] sm:$0xff]
        %v2628 = vld [vmem:[%s2190 + $0x2a] sm:$0xff]
        %v2629 = vld [vmem:[%s2190 + $0x32] sm:$0xff]
        %v2630 = vld [vmem:[%s2190 + $0x42] sm:$0xff]
        %v2631 = vld [vmem:[%s2190 + $0x4a] sm:$0xff]
        %v2632 = vld [vmem:[%s2190 + $0x52] sm:$0xff]
        %v2633 = vld [vmem:[%s2190 + $0x62] sm:$0xff]
        %v2634 = vld [vmem:[%s2190 + $0x6a] sm:$0xff]
        %v2635 = vld [vmem:[%s2190 + $0x72] sm:$0xff]
        %v2636 = vld [vmem:[%s2190 + $0x82] sm:$0xff]
        %v2637 = vld [vmem:[%s2190 + $0x8a] sm:$0xff]
        %v2638 = vld [vmem:[%s2190 + $0x92] sm:$0xff]
        %v2639 = vld [vmem:[%s2190 + $0xa2] sm:$0xff]
        %v2640 = vld [vmem:[%s2190 + $0xaa] sm:$0xff]
        %v2641 = vld [vmem:[%s2190 + $0xb2] sm:$0xff]
        %v2642 = vld [vmem:[%s2190 + $0xc2] sm:$0xff]
        %v2643 = vld [vmem:[%s2190 + $0xca] sm:$0xff]
        %v2644 = vld [vmem:[%s2190 + $0xd2] sm:$0xff]
        %v2645 = vld [vmem:[%s2190 + $0xe2] sm:$0xff]
        %v2646 = vld [vmem:[%s2190 + $0xea] sm:$0xff]
        %v2647 = vld [vmem:[%s2190 + $0xf2] sm:$0xff]
        %v2648 = vld [vmem:[%s2190 + $0x102] sm:$0xff]
        %v2649 = vld [vmem:[%s2190 + $0x10a] sm:$0xff]
        %v2650 = vld [vmem:[%s2190 + $0x112] sm:$0xff]
        %v2651 = vld [vmem:[%s2190 + $0x122] sm:$0xff]
        %v2652 = vld [vmem:[%s2190 + $0x12a] sm:$0xff]
        %v2653 = vld [vmem:[%s2190 + $0x132] sm:$0xff]
        %v2654 = vld [vmem:[%s2190 + $0x142] sm:$0xff]
        %v2655 = vld [vmem:[%s2190 + $0x14a] sm:$0xff]
        %v2656 = vld [vmem:[%s2190 + $0x152] sm:$0xff]
        %v2657 = vld [vmem:[%s2190 + $0x162] sm:$0xff]
        %v2658 = vld [vmem:[%s2190 + $0x16a] sm:$0xff]
        %v2659 = vld [vmem:[%s2190 + $0x172] sm:$0xff]
        %v2660 = vld [vmem:[%s2190 + $0x182] sm:$0xff]
        %v2661 = vld [vmem:[%s2190 + $0x18a] sm:$0xff]
        %v2662 = vld [vmem:[%s2190 + $0x192] sm:$0xff]
        %v2663 = vld [vmem:[%s2190 + $0x1a2] sm:$0xff]
        %v2664 = vld [vmem:[%s2190 + $0x1aa] sm:$0xff]
        %v2665 = vld [vmem:[%s2190 + $0x1b2] sm:$0xff]
        %v2666 = vld [vmem:[%s2190 + $0x1c2] sm:$0xff]
        %v2667 = vld [vmem:[%s2190 + $0x1ca] sm:$0xff]
        %v2668 = vld [vmem:[%s2190 + $0x1d2] sm:$0xff]
        %v2669 = vld [vmem:[%s2190 + $0x1e2] sm:$0xff]
        %v2670 = vld [vmem:[%s2190 + $0x1ea] sm:$0xff]
        %v2671 = vld [vmem:[%s2190 + $0x1f2] sm:$0xff]
        %v2672 = vld [vmem:[%s2190 + $0x202] sm:$0xff]
        %v2673 = vld [vmem:[%s2190 + $0x20a] sm:$0xff]
        %v2674 = vld [vmem:[%s2190 + $0x212] sm:$0xff]
        %v2675 = vld [vmem:[%s2190 + $0x222] sm:$0xff]
        %v2676 = vld [vmem:[%s2190 + $0x22a] sm:$0xff]
        %v2677 = vld [vmem:[%s2190 + $0x232] sm:$0xff]
        %v2678 = vld [vmem:[%s2190 + $0x242] sm:$0xff]
        %v2679 = vld [vmem:[%s2190 + $0x24a] sm:$0xff]
        %v2680 = vld [vmem:[%s2190 + $0x252] sm:$0xff]
        %v2681 = vld [vmem:[%s2190 + $0x262] sm:$0xff]
        %v2682 = vld [vmem:[%s2190 + $0x26a] sm:$0xff]
        %v2683 = vld [vmem:[%s2190 + $0x272] sm:$0xff]
        %v2684 = vld [vmem:[%s2190 + $0x282] sm:$0xff]
        %v2685 = vld [vmem:[%s2190 + $0x28a] sm:$0xff]
        %v2686 = vld [vmem:[%s2190 + $0x292] sm:$0xff]
        %v2687 = vld [vmem:[%s2190 + $0x2a2] sm:$0xff]
        %v2688 = vld [vmem:[%s2190 + $0x2aa] sm:$0xff]
        %v2689 = vld [vmem:[%s2190 + $0x2b2] sm:$0xff]
        %v2690 = vld [vmem:[%s2190 + $0x2c2] sm:$0xff]
        %v2691 = vld [vmem:[%s2190 + $0x2ca] sm:$0xff]
        %v2692 = vld [vmem:[%s2190 + $0x2d2] sm:$0xff]
        %v2693 = vld [vmem:[%s2190 + $0x2e2] sm:$0xff]
        %v2694 = vld [vmem:[%s2190 + $0x2ea] sm:$0xff]
        %v2695 = vld [vmem:[%s2190 + $0x2f2] sm:$0xff]
        %v2696 = vpack.c.bf16 %v2625, %v2624
        %v2697 = vpack.c.bf16 %v2627, %v2626
        %v2698 = vpack.c.bf16 %v2629, %v2628
        %v2699 = vpack.c.bf16 %v2631, %v2630
        %v2700 = vpack.c.bf16 %v2633, %v2632
        %v2701 = vpack.c.bf16 %v2635, %v2634
        %v2702 = vpack.c.bf16 %v2637, %v2636
        %v2703 = vpack.c.bf16 %v2639, %v2638
        %v2704 = vpack.c.bf16 %v2641, %v2640
        %v2705 = vpack.c.bf16 %v2643, %v2642
        %v2706 = vpack.c.bf16 %v2645, %v2644
        %v2707 = vpack.c.bf16 %v2647, %v2646
        %v2708 = vpack.c.bf16 %v2649, %v2648
        %v2709 = vpack.c.bf16 %v2651, %v2650
        %v2710 = vpack.c.bf16 %v2653, %v2652
        %v2711 = vpack.c.bf16 %v2655, %v2654
        %v2712 = vpack.c.bf16 %v2657, %v2656
        %v2713 = vpack.c.bf16 %v2659, %v2658
        %v2714 = vpack.c.bf16 %v2661, %v2660
        %v2715 = vpack.c.bf16 %v2663, %v2662
        %v2716 = vpack.c.bf16 %v2665, %v2664
        %v2717 = vpack.c.bf16 %v2667, %v2666
        %v2718 = vpack.c.bf16 %v2669, %v2668
        %v2719 = vpack.c.bf16 %v2671, %v2670
        %v2720 = vpack.c.bf16 %v2673, %v2672
        %v2721 = vpack.c.bf16 %v2675, %v2674
        %v2722 = vpack.c.bf16 %v2677, %v2676
        %v2723 = vpack.c.bf16 %v2679, %v2678
        %v2724 = vpack.c.bf16 %v2681, %v2680
        %v2725 = vpack.c.bf16 %v2683, %v2682
        %v2726 = vpack.c.bf16 %v2685, %v2684
        %v2727 = vpack.c.bf16 %v2687, %v2686
        %v2728 = vpack.c.bf16 %v2689, %v2688
        %v2729 = vpack.c.bf16 %v2691, %v2690
        %v2730 = vpack.c.bf16 %v2693, %v2692
        %v2731 = vpack.c.bf16 %v2695, %v2694
        %2768 = vrot.lane.b32.xlu0 %v2696, 32
        %v2769 = vpop.permute.xlu0 %2768
        %2770 = vrot.lane.b32.xlu0 %v2697, 32
        %v2771 = vpop.permute.xlu0 %2770
        %2772 = vrot.lane.b32.xlu0 %v2698, 32
        %v2773 = vpop.permute.xlu0 %2772
        %2774 = vrot.lane.b32.xlu0 %v2699, 32
        %v2775 = vpop.permute.xlu0 %2774
        %2776 = vrot.lane.b32.xlu0 %v2700, 32
        %v2777 = vpop.permute.xlu0 %2776
        %2778 = vrot.lane.b32.xlu0 %v2701, 32
        %v2779 = vpop.permute.xlu0 %2778
        %2780 = vrot.lane.b32.xlu0 %v2702, 32
        %v2781 = vpop.permute.xlu0 %2780
        %2782 = vrot.lane.b32.xlu0 %v2703, 32
        %v2783 = vpop.permute.xlu0 %2782
        %2784 = vrot.lane.b32.xlu0 %v2704, 32
        %v2785 = vpop.permute.xlu0 %2784
        %2786 = vrot.lane.b32.xlu0 %v2705, 32
        %v2787 = vpop.permute.xlu0 %2786
        %2788 = vrot.lane.b32.xlu0 %v2706, 32
        %v2789 = vpop.permute.xlu0 %2788
        %2790 = vrot.lane.b32.xlu0 %v2707, 32
        %v2791 = vpop.permute.xlu0 %2790
        %2792 = vrot.lane.b32.xlu0 %v2708, 32
        %v2793 = vpop.permute.xlu0 %2792
        %2794 = vrot.lane.b32.xlu0 %v2709, 32
        %v2795 = vpop.permute.xlu0 %2794
        %2796 = vrot.lane.b32.xlu0 %v2710, 32
        %v2797 = vpop.permute.xlu0 %2796
        %2798 = vrot.lane.b32.xlu0 %v2711, 32
        %v2799 = vpop.permute.xlu0 %2798
        %2800 = vrot.lane.b32.xlu0 %v2712, 32
        %v2801 = vpop.permute.xlu0 %2800
        %2802 = vrot.lane.b32.xlu0 %v2713, 32
        %v2803 = vpop.permute.xlu0 %2802
        %2804 = vrot.lane.b32.xlu0 %v2714, 32
        %v2805 = vpop.permute.xlu0 %2804
        %2806 = vrot.lane.b32.xlu0 %v2715, 32
        %v2807 = vpop.permute.xlu0 %2806
        %2808 = vrot.lane.b32.xlu0 %v2716, 32
        %v2809 = vpop.permute.xlu0 %2808
        %2810 = vrot.lane.b32.xlu0 %v2717, 32
        %v2811 = vpop.permute.xlu0 %2810
        %2812 = vrot.lane.b32.xlu0 %v2718, 32
        %v2813 = vpop.permute.xlu0 %2812
        %2814 = vrot.lane.b32.xlu0 %v2719, 32
        %v2815 = vpop.permute.xlu0 %2814
        %2816 = vrot.lane.b32.xlu0 %v2720, 32
        %v2817 = vpop.permute.xlu0 %2816
        %2818 = vrot.lane.b32.xlu0 %v2721, 32
        %v2819 = vpop.permute.xlu0 %2818
        %2820 = vrot.lane.b32.xlu0 %v2722, 32
        %v2821 = vpop.permute.xlu0 %2820
        %2822 = vrot.lane.b32.xlu0 %v2723, 32
        %v2823 = vpop.permute.xlu0 %2822
        %2824 = vrot.lane.b32.xlu0 %v2724, 32
        %v2825 = vpop.permute.xlu0 %2824
        %2826 = vrot.lane.b32.xlu0 %v2725, 32
        %v2827 = vpop.permute.xlu0 %2826
        %2828 = vrot.lane.b32.xlu0 %v2726, 32
        %v2829 = vpop.permute.xlu0 %2828
        %2830 = vrot.lane.b32.xlu0 %v2727, 32
        %v2831 = vpop.permute.xlu0 %2830
        %2832 = vrot.lane.b32.xlu0 %v2728, 32
        %v2833 = vpop.permute.xlu0 %2832
        %2834 = vrot.lane.b32.xlu0 %v2729, 32
        %v2835 = vpop.permute.xlu0 %2834
        %2836 = vrot.lane.b32.xlu0 %v2730, 32
        %v2837 = vpop.permute.xlu0 %2836
        %2838 = vrot.lane.b32.xlu0 %v2731, 32
        %v2839 = vpop.permute.xlu0 %2838
        %2876 = vst.msk [vmem:[#allocation3 + $0x8] sm:$0xff] %vm1864, %v2769
        %2877 = vst.msk [vmem:[#allocation3 + $0x20] sm:$0xff] %vm1864, %v2771
        %2878 = vst.msk [vmem:[#allocation3 + $0x38] sm:$0xff] %vm1864, %v2773
        %2879 = vst.msk [vmem:[#allocation3 + $0x50] sm:$0xff] %vm1864, %v2775
        %2880 = vst.msk [vmem:[#allocation3 + $0x68] sm:$0xff] %vm1864, %v2777
        %2881 = vst.msk [vmem:[#allocation3 + $0x80] sm:$0xff] %vm1864, %v2779
        %2882 = vst.msk [vmem:[#allocation3 + $0x98] sm:$0xff] %vm1864, %v2781
        %2883 = vst.msk [vmem:[#allocation3 + $0xb0] sm:$0xff] %vm1864, %v2783
        %2884 = vst.msk [vmem:[#allocation3 + $0xc8] sm:$0xff] %vm1864, %v2785
        %2885 = vst.msk [vmem:[#allocation3 + $0xe0] sm:$0xff] %vm1864, %v2787
        %2886 = vst.msk [vmem:[#allocation3 + $0xf8] sm:$0xff] %vm1864, %v2789
        %2887 = vst.msk [vmem:[#allocation3 + $0x110] sm:$0xff] %vm1864, %v2791
        %2888 = vst.msk [vmem:[#allocation3 + $0x128] sm:$0xff] %vm1864, %v2793
        %2889 = vst.msk [vmem:[#allocation3 + $0x140] sm:$0xff] %vm1864, %v2795
        %2890 = vst.msk [vmem:[#allocation3 + $0x158] sm:$0xff] %vm1864, %v2797
        %2891 = vst.msk [vmem:[#allocation3 + $0x170] sm:$0xff] %vm1864, %v2799
        %2892 = vst.msk [vmem:[#allocation3 + $0x188] sm:$0xff] %vm1864, %v2801
        %2893 = vst.msk [vmem:[#allocation3 + $0x1a0] sm:$0xff] %vm1864, %v2803
        %2894 = vst.msk [vmem:[#allocation3 + $0x1b8] sm:$0xff] %vm1864, %v2805
        %2895 = vst.msk [vmem:[#allocation3 + $0x1d0] sm:$0xff] %vm1864, %v2807
        %2896 = vst.msk [vmem:[#allocation3 + $0x1e8] sm:$0xff] %vm1864, %v2809
        %2897 = vst.msk [vmem:[#allocation3 + $0x200] sm:$0xff] %vm1864, %v2811
        %2898 = vst.msk [vmem:[#allocation3 + $0x218] sm:$0xff] %vm1864, %v2813
        %2899 = vst.msk [vmem:[#allocation3 + $0x230] sm:$0xff] %vm1864, %v2815
        %2900 = vst.msk [vmem:[#allocation3 + $0x248] sm:$0xff] %vm1864, %v2817
        %2901 = vst.msk [vmem:[#allocation3 + $0x260] sm:$0xff] %vm1864, %v2819
        %2902 = vst.msk [vmem:[#allocation3 + $0x278] sm:$0xff] %vm1864, %v2821
        %2903 = vst.msk [vmem:[#allocation3 + $0x290] sm:$0xff] %vm1864, %v2823
        %2904 = vst.msk [vmem:[#allocation3 + $0x2a8] sm:$0xff] %vm1864, %v2825
        %2905 = vst.msk [vmem:[#allocation3 + $0x2c0] sm:$0xff] %vm1864, %v2827
        %2906 = vst.msk [vmem:[#allocation3 + $0x2d8] sm:$0xff] %vm1864, %v2829
        %2907 = vst.msk [vmem:[#allocation3 + $0x2f0] sm:$0xff] %vm1864, %v2831
        %2908 = vst.msk [vmem:[#allocation3 + $0x308] sm:$0xff] %vm1864, %v2833
        %2909 = vst.msk [vmem:[#allocation3 + $0x320] sm:$0xff] %vm1864, %v2835
        %2910 = vst.msk [vmem:[#allocation3 + $0x338] sm:$0xff] %vm1864, %v2837
        %2911 = vst.msk [vmem:[#allocation3 + $0x350] sm:$0xff] %vm1864, %v2839
        %s2912 = scalar_lea.vmem [#allocation2], 64
        %v2913 = vld [vmem:[%s2912] sm:$0xff]
        %v2914 = vld [vmem:[%s2912 + $0x8] sm:$0xff]
        %v2915 = vld [vmem:[%s2912 + $0x10] sm:$0xff]
        %v2916 = vld [vmem:[%s2912 + $0x20] sm:$0xff]
        %v2917 = vld [vmem:[%s2912 + $0x28] sm:$0xff]
        %v2918 = vld [vmem:[%s2912 + $0x30] sm:$0xff]
        %v2919 = vld [vmem:[%s2912 + $0x40] sm:$0xff]
        %v2920 = vld [vmem:[%s2912 + $0x48] sm:$0xff]
        %v2921 = vld [vmem:[%s2912 + $0x50] sm:$0xff]
        %v2922 = vld [vmem:[%s2912 + $0x60] sm:$0xff]
        %v2923 = vld [vmem:[%s2912 + $0x68] sm:$0xff]
        %v2924 = vld [vmem:[%s2912 + $0x70] sm:$0xff]
        %v2925 = vld [vmem:[%s2912 + $0x80] sm:$0xff]
        %v2926 = vld [vmem:[%s2912 + $0x88] sm:$0xff]
        %v2927 = vld [vmem:[%s2912 + $0x90] sm:$0xff]
        %v2928 = vld [vmem:[%s2912 + $0xa0] sm:$0xff]
        %v2929 = vld [vmem:[%s2912 + $0xa8] sm:$0xff]
        %v2930 = vld [vmem:[%s2912 + $0xb0] sm:$0xff]
        %v2931 = vld [vmem:[%s2912 + $0xc0] sm:$0xff]
        %v2932 = vld [vmem:[%s2912 + $0xc8] sm:$0xff]
        %v2933 = vld [vmem:[%s2912 + $0xd0] sm:$0xff]
        %v2934 = vld [vmem:[%s2912 + $0xe0] sm:$0xff]
        %v2935 = vld [vmem:[%s2912 + $0xe8] sm:$0xff]
        %v2936 = vld [vmem:[%s2912 + $0xf0] sm:$0xff]
        %v2937 = vld [vmem:[%s2912 + $0x100] sm:$0xff]
        %v2938 = vld [vmem:[%s2912 + $0x108] sm:$0xff]
        %v2939 = vld [vmem:[%s2912 + $0x110] sm:$0xff]
        %v2940 = vld [vmem:[%s2912 + $0x120] sm:$0xff]
        %v2941 = vld [vmem:[%s2912 + $0x128] sm:$0xff]
        %v2942 = vld [vmem:[%s2912 + $0x130] sm:$0xff]
        %v2943 = vld [vmem:[%s2912 + $0x140] sm:$0xff]
        %v2944 = vld [vmem:[%s2912 + $0x148] sm:$0xff]
        %v2945 = vld [vmem:[%s2912 + $0x150] sm:$0xff]
        %v2946 = vld [vmem:[%s2912 + $0x160] sm:$0xff]
        %v2947 = vld [vmem:[%s2912 + $0x168] sm:$0xff]
        %v2948 = vld [vmem:[%s2912 + $0x170] sm:$0xff]
        %v2949 = vld [vmem:[%s2912 + $0x180] sm:$0xff]
        %v2950 = vld [vmem:[%s2912 + $0x188] sm:$0xff]
        %v2951 = vld [vmem:[%s2912 + $0x190] sm:$0xff]
        %v2952 = vld [vmem:[%s2912 + $0x1a0] sm:$0xff]
        %v2953 = vld [vmem:[%s2912 + $0x1a8] sm:$0xff]
        %v2954 = vld [vmem:[%s2912 + $0x1b0] sm:$0xff]
        %v2955 = vld [vmem:[%s2912 + $0x1c0] sm:$0xff]
        %v2956 = vld [vmem:[%s2912 + $0x1c8] sm:$0xff]
        %v2957 = vld [vmem:[%s2912 + $0x1d0] sm:$0xff]
        %v2958 = vld [vmem:[%s2912 + $0x1e0] sm:$0xff]
        %v2959 = vld [vmem:[%s2912 + $0x1e8] sm:$0xff]
        %v2960 = vld [vmem:[%s2912 + $0x1f0] sm:$0xff]
        %v2961 = vld [vmem:[%s2912 + $0x200] sm:$0xff]
        %v2962 = vld [vmem:[%s2912 + $0x208] sm:$0xff]
        %v2963 = vld [vmem:[%s2912 + $0x210] sm:$0xff]
        %v2964 = vld [vmem:[%s2912 + $0x220] sm:$0xff]
        %v2965 = vld [vmem:[%s2912 + $0x228] sm:$0xff]
        %v2966 = vld [vmem:[%s2912 + $0x230] sm:$0xff]
        %v2967 = vld [vmem:[%s2912 + $0x240] sm:$0xff]
        %v2968 = vld [vmem:[%s2912 + $0x248] sm:$0xff]
        %v2969 = vld [vmem:[%s2912 + $0x250] sm:$0xff]
        %v2970 = vld [vmem:[%s2912 + $0x260] sm:$0xff]
        %v2971 = vld [vmem:[%s2912 + $0x268] sm:$0xff]
        %v2972 = vld [vmem:[%s2912 + $0x270] sm:$0xff]
        %v2973 = vld [vmem:[%s2912 + $0x280] sm:$0xff]
        %v2974 = vld [vmem:[%s2912 + $0x288] sm:$0xff]
        %v2975 = vld [vmem:[%s2912 + $0x290] sm:$0xff]
        %v2976 = vld [vmem:[%s2912 + $0x2a0] sm:$0xff]
        %v2977 = vld [vmem:[%s2912 + $0x2a8] sm:$0xff]
        %v2978 = vld [vmem:[%s2912 + $0x2b0] sm:$0xff]
        %v2979 = vld [vmem:[%s2912 + $0x2c0] sm:$0xff]
        %v2980 = vld [vmem:[%s2912 + $0x2c8] sm:$0xff]
        %v2981 = vld [vmem:[%s2912 + $0x2d0] sm:$0xff]
        %v2982 = vld [vmem:[%s2912 + $0x2e0] sm:$0xff]
        %v2983 = vld [vmem:[%s2912 + $0x2e8] sm:$0xff]
        %v2984 = vld [vmem:[%s2912 + $0x2f0] sm:$0xff]
        %v2985 = vpack.c.bf16 %v2914, %v2913
        %v2986 = vpack.c.bf16 %v2916, %v2915
        %v2987 = vpack.c.bf16 %v2918, %v2917
        %v2988 = vpack.c.bf16 %v2920, %v2919
        %v2989 = vpack.c.bf16 %v2922, %v2921
        %v2990 = vpack.c.bf16 %v2924, %v2923
        %v2991 = vpack.c.bf16 %v2926, %v2925
        %v2992 = vpack.c.bf16 %v2928, %v2927
        %v2993 = vpack.c.bf16 %v2930, %v2929
        %v2994 = vpack.c.bf16 %v2932, %v2931
        %v2995 = vpack.c.bf16 %v2934, %v2933
        %v2996 = vpack.c.bf16 %v2936, %v2935
        %v2997 = vpack.c.bf16 %v2938, %v2937
        %v2998 = vpack.c.bf16 %v2940, %v2939
        %v2999 = vpack.c.bf16 %v2942, %v2941
        %v3000 = vpack.c.bf16 %v2944, %v2943
        %v3001 = vpack.c.bf16 %v2946, %v2945
        %v3002 = vpack.c.bf16 %v2948, %v2947
        %v3003 = vpack.c.bf16 %v2950, %v2949
        %v3004 = vpack.c.bf16 %v2952, %v2951
        %v3005 = vpack.c.bf16 %v2954, %v2953
        %v3006 = vpack.c.bf16 %v2956, %v2955
        %v3007 = vpack.c.bf16 %v2958, %v2957
        %v3008 = vpack.c.bf16 %v2960, %v2959
        %v3009 = vpack.c.bf16 %v2962, %v2961
        %v3010 = vpack.c.bf16 %v2964, %v2963
        %v3011 = vpack.c.bf16 %v2966, %v2965
        %v3012 = vpack.c.bf16 %v2968, %v2967
        %v3013 = vpack.c.bf16 %v2970, %v2969
        %v3014 = vpack.c.bf16 %v2972, %v2971
        %v3015 = vpack.c.bf16 %v2974, %v2973
        %v3016 = vpack.c.bf16 %v2976, %v2975
        %v3017 = vpack.c.bf16 %v2978, %v2977
        %v3018 = vpack.c.bf16 %v2980, %v2979
        %v3019 = vpack.c.bf16 %v2982, %v2981
        %v3020 = vpack.c.bf16 %v2984, %v2983
        %3057 = vrot.lane.b32.xlu0 %v2985, 64
        %v3058 = vpop.permute.xlu0 %3057
        %3059 = vrot.lane.b32.xlu0 %v2986, 64
        %v3060 = vpop.permute.xlu0 %3059
        %3061 = vrot.lane.b32.xlu0 %v2987, 64
        %v3062 = vpop.permute.xlu0 %3061
        %3063 = vrot.lane.b32.xlu0 %v2988, 64
        %v3064 = vpop.permute.xlu0 %3063
        %3065 = vrot.lane.b32.xlu0 %v2989, 64
        %v3066 = vpop.permute.xlu0 %3065
        %3067 = vrot.lane.b32.xlu0 %v2990, 64
        %v3068 = vpop.permute.xlu0 %3067
        %3069 = vrot.lane.b32.xlu0 %v2991, 64
        %v3070 = vpop.permute.xlu0 %3069
        %3071 = vrot.lane.b32.xlu0 %v2992, 64
        %v3072 = vpop.permute.xlu0 %3071
        %3073 = vrot.lane.b32.xlu0 %v2993, 64
        %v3074 = vpop.permute.xlu0 %3073
        %3075 = vrot.lane.b32.xlu0 %v2994, 64
        %v3076 = vpop.permute.xlu0 %3075
        %3077 = vrot.lane.b32.xlu0 %v2995, 64
        %v3078 = vpop.permute.xlu0 %3077
        %3079 = vrot.lane.b32.xlu0 %v2996, 64
        %v3080 = vpop.permute.xlu0 %3079
        %3081 = vrot.lane.b32.xlu0 %v2997, 64
        %v3082 = vpop.permute.xlu0 %3081
        %3083 = vrot.lane.b32.xlu0 %v2998, 64
        %v3084 = vpop.permute.xlu0 %3083
        %3085 = vrot.lane.b32.xlu0 %v2999, 64
        %v3086 = vpop.permute.xlu0 %3085
        %3087 = vrot.lane.b32.xlu0 %v3000, 64
        %v3088 = vpop.permute.xlu0 %3087
        %3089 = vrot.lane.b32.xlu0 %v3001, 64
        %v3090 = vpop.permute.xlu0 %3089
        %3091 = vrot.lane.b32.xlu0 %v3002, 64
        %v3092 = vpop.permute.xlu0 %3091
        %3093 = vrot.lane.b32.xlu0 %v3003, 64
        %v3094 = vpop.permute.xlu0 %3093
        %3095 = vrot.lane.b32.xlu0 %v3004, 64
        %v3096 = vpop.permute.xlu0 %3095
        %3097 = vrot.lane.b32.xlu0 %v3005, 64
        %v3098 = vpop.permute.xlu0 %3097
        %3099 = vrot.lane.b32.xlu0 %v3006, 64
        %v3100 = vpop.permute.xlu0 %3099
        %3101 = vrot.lane.b32.xlu0 %v3007, 64
        %v3102 = vpop.permute.xlu0 %3101
        %3103 = vrot.lane.b32.xlu0 %v3008, 64
        %v3104 = vpop.permute.xlu0 %3103
        %3105 = vrot.lane.b32.xlu0 %v3009, 64
        %v3106 = vpop.permute.xlu0 %3105
        %3107 = vrot.lane.b32.xlu0 %v3010, 64
        %v3108 = vpop.permute.xlu0 %3107
        %3109 = vrot.lane.b32.xlu0 %v3011, 64
        %v3110 = vpop.permute.xlu0 %3109
        %3111 = vrot.lane.b32.xlu0 %v3012, 64
        %v3112 = vpop.permute.xlu0 %3111
        %3113 = vrot.lane.b32.xlu0 %v3013, 64
        %v3114 = vpop.permute.xlu0 %3113
        %3115 = vrot.lane.b32.xlu0 %v3014, 64
        %v3116 = vpop.permute.xlu0 %3115
        %3117 = vrot.lane.b32.xlu0 %v3015, 64
        %v3118 = vpop.permute.xlu0 %3117
        %3119 = vrot.lane.b32.xlu0 %v3016, 64
        %v3120 = vpop.permute.xlu0 %3119
        %3121 = vrot.lane.b32.xlu0 %v3017, 64
        %v3122 = vpop.permute.xlu0 %3121
        %3123 = vrot.lane.b32.xlu0 %v3018, 64
        %v3124 = vpop.permute.xlu0 %3123
        %3125 = vrot.lane.b32.xlu0 %v3019, 64
        %v3126 = vpop.permute.xlu0 %3125
        %3127 = vrot.lane.b32.xlu0 %v3020, 64
        %v3128 = vpop.permute.xlu0 %3127
        %3165 = vst.msk [vmem:[#allocation3 + $0x8] sm:$0xff] %vm2153, %v3058
        %3166 = vst.msk [vmem:[#allocation3 + $0x20] sm:$0xff] %vm2153, %v3060
        %3167 = vst.msk [vmem:[#allocation3 + $0x38] sm:$0xff] %vm2153, %v3062
        %3168 = vst.msk [vmem:[#allocation3 + $0x50] sm:$0xff] %vm2153, %v3064
        %3169 = vst.msk [vmem:[#allocation3 + $0x68] sm:$0xff] %vm2153, %v3066
        %3170 = vst.msk [vmem:[#allocation3 + $0x80] sm:$0xff] %vm2153, %v3068
        %3171 = vst.msk [vmem:[#allocation3 + $0x98] sm:$0xff] %vm2153, %v3070
        %3172 = vst.msk [vmem:[#allocation3 + $0xb0] sm:$0xff] %vm2153, %v3072
        %3173 = vst.msk [vmem:[#allocation3 + $0xc8] sm:$0xff] %vm2153, %v3074
        %3174 = vst.msk [vmem:[#allocation3 + $0xe0] sm:$0xff] %vm2153, %v3076
        %3175 = vst.msk [vmem:[#allocation3 + $0xf8] sm:$0xff] %vm2153, %v3078
        %3176 = vst.msk [vmem:[#allocation3 + $0x110] sm:$0xff] %vm2153, %v3080
        %3177 = vst.msk [vmem:[#allocation3 + $0x128] sm:$0xff] %vm2153, %v3082
        %3178 = vst.msk [vmem:[#allocation3 + $0x140] sm:$0xff] %vm2153, %v3084
        %3179 = vst.msk [vmem:[#allocation3 + $0x158] sm:$0xff] %vm2153, %v3086
        %3180 = vst.msk [vmem:[#allocation3 + $0x170] sm:$0xff] %vm2153, %v3088
        %3181 = vst.msk [vmem:[#allocation3 + $0x188] sm:$0xff] %vm2153, %v3090
        %3182 = vst.msk [vmem:[#allocation3 + $0x1a0] sm:$0xff] %vm2153, %v3092
        %3183 = vst.msk [vmem:[#allocation3 + $0x1b8] sm:$0xff] %vm2153, %v3094
        %3184 = vst.msk [vmem:[#allocation3 + $0x1d0] sm:$0xff] %vm2153, %v3096
        %3185 = vst.msk [vmem:[#allocation3 + $0x1e8] sm:$0xff] %vm2153, %v3098
        %3186 = vst.msk [vmem:[#allocation3 + $0x200] sm:$0xff] %vm2153, %v3100
        %3187 = vst.msk [vmem:[#allocation3 + $0x218] sm:$0xff] %vm2153, %v3102
        %3188 = vst.msk [vmem:[#allocation3 + $0x230] sm:$0xff] %vm2153, %v3104
        %3189 = vst.msk [vmem:[#allocation3 + $0x248] sm:$0xff] %vm2153, %v3106
        %3190 = vst.msk [vmem:[#allocation3 + $0x260] sm:$0xff] %vm2153, %v3108
        %3191 = vst.msk [vmem:[#allocation3 + $0x278] sm:$0xff] %vm2153, %v3110
        %3192 = vst.msk [vmem:[#allocation3 + $0x290] sm:$0xff] %vm2153, %v3112
        %3193 = vst.msk [vmem:[#allocation3 + $0x2a8] sm:$0xff] %vm2153, %v3114
        %3194 = vst.msk [vmem:[#allocation3 + $0x2c0] sm:$0xff] %vm2153, %v3116
        %3195 = vst.msk [vmem:[#allocation3 + $0x2d8] sm:$0xff] %vm2153, %v3118
        %3196 = vst.msk [vmem:[#allocation3 + $0x2f0] sm:$0xff] %vm2153, %v3120
        %3197 = vst.msk [vmem:[#allocation3 + $0x308] sm:$0xff] %vm2153, %v3122
        %3198 = vst.msk [vmem:[#allocation3 + $0x320] sm:$0xff] %vm2153, %v3124
        %3199 = vst.msk [vmem:[#allocation3 + $0x338] sm:$0xff] %vm2153, %v3126
        %3200 = vst.msk [vmem:[#allocation3 + $0x350] sm:$0xff] %vm2153, %v3128
        %v3201 = vld [vmem:[%s2912 + $0x1] sm:$0xff]
        %v3202 = vld [vmem:[%s2912 + $0x9] sm:$0xff]
        %v3203 = vld [vmem:[%s2912 + $0x11] sm:$0xff]
        %v3204 = vld [vmem:[%s2912 + $0x21] sm:$0xff]
        %v3205 = vld [vmem:[%s2912 + $0x29] sm:$0xff]
        %v3206 = vld [vmem:[%s2912 + $0x31] sm:$0xff]
        %v3207 = vld [vmem:[%s2912 + $0x41] sm:$0xff]
        %v3208 = vld [vmem:[%s2912 + $0x49] sm:$0xff]
        %v3209 = vld [vmem:[%s2912 + $0x51] sm:$0xff]
        %v3210 = vld [vmem:[%s2912 + $0x61] sm:$0xff]
        %v3211 = vld [vmem:[%s2912 + $0x69] sm:$0xff]
        %v3212 = vld [vmem:[%s2912 + $0x71] sm:$0xff]
        %v3213 = vld [vmem:[%s2912 + $0x81] sm:$0xff]
        %v3214 = vld [vmem:[%s2912 + $0x89] sm:$0xff]
        %v3215 = vld [vmem:[%s2912 + $0x91] sm:$0xff]
        %v3216 = vld [vmem:[%s2912 + $0xa1] sm:$0xff]
        %v3217 = vld [vmem:[%s2912 + $0xa9] sm:$0xff]
        %v3218 = vld [vmem:[%s2912 + $0xb1] sm:$0xff]
        %v3219 = vld [vmem:[%s2912 + $0xc1] sm:$0xff]
        %v3220 = vld [vmem:[%s2912 + $0xc9] sm:$0xff]
        %v3221 = vld [vmem:[%s2912 + $0xd1] sm:$0xff]
        %v3222 = vld [vmem:[%s2912 + $0xe1] sm:$0xff]
        %v3223 = vld [vmem:[%s2912 + $0xe9] sm:$0xff]
        %v3224 = vld [vmem:[%s2912 + $0xf1] sm:$0xff]
        %v3225 = vld [vmem:[%s2912 + $0x101] sm:$0xff]
        %v3226 = vld [vmem:[%s2912 + $0x109] sm:$0xff]
        %v3227 = vld [vmem:[%s2912 + $0x111] sm:$0xff]
        %v3228 = vld [vmem:[%s2912 + $0x121] sm:$0xff]
        %v3229 = vld [vmem:[%s2912 + $0x129] sm:$0xff]
        %v3230 = vld [vmem:[%s2912 + $0x131] sm:$0xff]
        %v3231 = vld [vmem:[%s2912 + $0x141] sm:$0xff]
        %v3232 = vld [vmem:[%s2912 + $0x149] sm:$0xff]
        %v3233 = vld [vmem:[%s2912 + $0x151] sm:$0xff]
        %v3234 = vld [vmem:[%s2912 + $0x161] sm:$0xff]
        %v3235 = vld [vmem:[%s2912 + $0x169] sm:$0xff]
        %v3236 = vld [vmem:[%s2912 + $0x171] sm:$0xff]
        %v3237 = vld [vmem:[%s2912 + $0x181] sm:$0xff]
        %v3238 = vld [vmem:[%s2912 + $0x189] sm:$0xff]
        %v3239 = vld [vmem:[%s2912 + $0x191] sm:$0xff]
        %v3240 = vld [vmem:[%s2912 + $0x1a1] sm:$0xff]
        %v3241 = vld [vmem:[%s2912 + $0x1a9] sm:$0xff]
        %v3242 = vld [vmem:[%s2912 + $0x1b1] sm:$0xff]
        %v3243 = vld [vmem:[%s2912 + $0x1c1] sm:$0xff]
        %v3244 = vld [vmem:[%s2912 + $0x1c9] sm:$0xff]
        %v3245 = vld [vmem:[%s2912 + $0x1d1] sm:$0xff]
        %v3246 = vld [vmem:[%s2912 + $0x1e1] sm:$0xff]
        %v3247 = vld [vmem:[%s2912 + $0x1e9] sm:$0xff]
        %v3248 = vld [vmem:[%s2912 + $0x1f1] sm:$0xff]
        %v3249 = vld [vmem:[%s2912 + $0x201] sm:$0xff]
        %v3250 = vld [vmem:[%s2912 + $0x209] sm:$0xff]
        %v3251 = vld [vmem:[%s2912 + $0x211] sm:$0xff]
        %v3252 = vld [vmem:[%s2912 + $0x221] sm:$0xff]
        %v3253 = vld [vmem:[%s2912 + $0x229] sm:$0xff]
        %v3254 = vld [vmem:[%s2912 + $0x231] sm:$0xff]
        %v3255 = vld [vmem:[%s2912 + $0x241] sm:$0xff]
        %v3256 = vld [vmem:[%s2912 + $0x249] sm:$0xff]
        %v3257 = vld [vmem:[%s2912 + $0x251] sm:$0xff]
        %v3258 = vld [vmem:[%s2912 + $0x261] sm:$0xff]
        %v3259 = vld [vmem:[%s2912 + $0x269] sm:$0xff]
        %v3260 = vld [vmem:[%s2912 + $0x271] sm:$0xff]
        %v3261 = vld [vmem:[%s2912 + $0x281] sm:$0xff]
        %v3262 = vld [vmem:[%s2912 + $0x289] sm:$0xff]
        %v3263 = vld [vmem:[%s2912 + $0x291] sm:$0xff]
        %v3264 = vld [vmem:[%s2912 + $0x2a1] sm:$0xff]
        %v3265 = vld [vmem:[%s2912 + $0x2a9] sm:$0xff]
        %v3266 = vld [vmem:[%s2912 + $0x2b1] sm:$0xff]
        %v3267 = vld [vmem:[%s2912 + $0x2c1] sm:$0xff]
        %v3268 = vld [vmem:[%s2912 + $0x2c9] sm:$0xff]
        %v3269 = vld [vmem:[%s2912 + $0x2d1] sm:$0xff]
        %v3270 = vld [vmem:[%s2912 + $0x2e1] sm:$0xff]
        %v3271 = vld [vmem:[%s2912 + $0x2e9] sm:$0xff]
        %v3272 = vld [vmem:[%s2912 + $0x2f1] sm:$0xff]
        %v3273 = vpack.c.bf16 %v3202, %v3201
        %v3274 = vpack.c.bf16 %v3204, %v3203
        %v3275 = vpack.c.bf16 %v3206, %v3205
        %v3276 = vpack.c.bf16 %v3208, %v3207
        %v3277 = vpack.c.bf16 %v3210, %v3209
        %v3278 = vpack.c.bf16 %v3212, %v3211
        %v3279 = vpack.c.bf16 %v3214, %v3213
        %v3280 = vpack.c.bf16 %v3216, %v3215
        %v3281 = vpack.c.bf16 %v3218, %v3217
        %v3282 = vpack.c.bf16 %v3220, %v3219
        %v3283 = vpack.c.bf16 %v3222, %v3221
        %v3284 = vpack.c.bf16 %v3224, %v3223
        %v3285 = vpack.c.bf16 %v3226, %v3225
        %v3286 = vpack.c.bf16 %v3228, %v3227
        %v3287 = vpack.c.bf16 %v3230, %v3229
        %v3288 = vpack.c.bf16 %v3232, %v3231
        %v3289 = vpack.c.bf16 %v3234, %v3233
        %v3290 = vpack.c.bf16 %v3236, %v3235
        %v3291 = vpack.c.bf16 %v3238, %v3237
        %v3292 = vpack.c.bf16 %v3240, %v3239
        %v3293 = vpack.c.bf16 %v3242, %v3241
        %v3294 = vpack.c.bf16 %v3244, %v3243
        %v3295 = vpack.c.bf16 %v3246, %v3245
        %v3296 = vpack.c.bf16 %v3248, %v3247
        %v3297 = vpack.c.bf16 %v3250, %v3249
        %v3298 = vpack.c.bf16 %v3252, %v3251
        %v3299 = vpack.c.bf16 %v3254, %v3253
        %v3300 = vpack.c.bf16 %v3256, %v3255
        %v3301 = vpack.c.bf16 %v3258, %v3257
        %v3302 = vpack.c.bf16 %v3260, %v3259
        %v3303 = vpack.c.bf16 %v3262, %v3261
        %v3304 = vpack.c.bf16 %v3264, %v3263
        %v3305 = vpack.c.bf16 %v3266, %v3265
        %v3306 = vpack.c.bf16 %v3268, %v3267
        %v3307 = vpack.c.bf16 %v3270, %v3269
        %v3308 = vpack.c.bf16 %v3272, %v3271
        %3345 = vrot.lane.b32.xlu0 %v3273, 96
        %v3346 = vpop.permute.xlu0 %3345
        %3347 = vrot.lane.b32.xlu0 %v3274, 96
        %v3348 = vpop.permute.xlu0 %3347
        %3349 = vrot.lane.b32.xlu0 %v3275, 96
        %v3350 = vpop.permute.xlu0 %3349
        %3351 = vrot.lane.b32.xlu0 %v3276, 96
        %v3352 = vpop.permute.xlu0 %3351
        %3353 = vrot.lane.b32.xlu0 %v3277, 96
        %v3354 = vpop.permute.xlu0 %3353
        %3355 = vrot.lane.b32.xlu0 %v3278, 96
        %v3356 = vpop.permute.xlu0 %3355
        %3357 = vrot.lane.b32.xlu0 %v3279, 96
        %v3358 = vpop.permute.xlu0 %3357
        %3359 = vrot.lane.b32.xlu0 %v3280, 96
        %v3360 = vpop.permute.xlu0 %3359
        %3361 = vrot.lane.b32.xlu0 %v3281, 96
        %v3362 = vpop.permute.xlu0 %3361
        %3363 = vrot.lane.b32.xlu0 %v3282, 96
        %v3364 = vpop.permute.xlu0 %3363
        %3365 = vrot.lane.b32.xlu0 %v3283, 96
        %v3366 = vpop.permute.xlu0 %3365
        %3367 = vrot.lane.b32.xlu0 %v3284, 96
        %v3368 = vpop.permute.xlu0 %3367
        %3369 = vrot.lane.b32.xlu0 %v3285, 96
        %v3370 = vpop.permute.xlu0 %3369
        %3371 = vrot.lane.b32.xlu0 %v3286, 96
        %v3372 = vpop.permute.xlu0 %3371
        %3373 = vrot.lane.b32.xlu0 %v3287, 96
        %v3374 = vpop.permute.xlu0 %3373
        %3375 = vrot.lane.b32.xlu0 %v3288, 96
        %v3376 = vpop.permute.xlu0 %3375
        %3377 = vrot.lane.b32.xlu0 %v3289, 96
        %v3378 = vpop.permute.xlu0 %3377
        %3379 = vrot.lane.b32.xlu0 %v3290, 96
        %v3380 = vpop.permute.xlu0 %3379
        %3381 = vrot.lane.b32.xlu0 %v3291, 96
        %v3382 = vpop.permute.xlu0 %3381
        %3383 = vrot.lane.b32.xlu0 %v3292, 96
        %v3384 = vpop.permute.xlu0 %3383
        %3385 = vrot.lane.b32.xlu0 %v3293, 96
        %v3386 = vpop.permute.xlu0 %3385
        %3387 = vrot.lane.b32.xlu0 %v3294, 96
        %v3388 = vpop.permute.xlu0 %3387
        %3389 = vrot.lane.b32.xlu0 %v3295, 96
        %v3390 = vpop.permute.xlu0 %3389
        %3391 = vrot.lane.b32.xlu0 %v3296, 96
        %v3392 = vpop.permute.xlu0 %3391
        %3393 = vrot.lane.b32.xlu0 %v3297, 96
        %v3394 = vpop.permute.xlu0 %3393
        %3395 = vrot.lane.b32.xlu0 %v3298, 96
        %v3396 = vpop.permute.xlu0 %3395
        %3397 = vrot.lane.b32.xlu0 %v3299, 96
        %v3398 = vpop.permute.xlu0 %3397
        %3399 = vrot.lane.b32.xlu0 %v3300, 96
        %v3400 = vpop.permute.xlu0 %3399
        %3401 = vrot.lane.b32.xlu0 %v3301, 96
        %v3402 = vpop.permute.xlu0 %3401
        %3403 = vrot.lane.b32.xlu0 %v3302, 96
        %v3404 = vpop.permute.xlu0 %3403
        %3405 = vrot.lane.b32.xlu0 %v3303, 96
        %v3406 = vpop.permute.xlu0 %3405
        %3407 = vrot.lane.b32.xlu0 %v3304, 96
        %v3408 = vpop.permute.xlu0 %3407
        %3409 = vrot.lane.b32.xlu0 %v3305, 96
        %v3410 = vpop.permute.xlu0 %3409
        %3411 = vrot.lane.b32.xlu0 %v3306, 96
        %v3412 = vpop.permute.xlu0 %3411
        %3413 = vrot.lane.b32.xlu0 %v3307, 96
        %v3414 = vpop.permute.xlu0 %3413
        %3415 = vrot.lane.b32.xlu0 %v3308, 96
        %v3416 = vpop.permute.xlu0 %3415
        %3453 = vst.msk [vmem:[#allocation3 + $0x8] sm:$0xff] %vm2443, %v3346
        %3454 = vst.msk [vmem:[#allocation3 + $0x20] sm:$0xff] %vm2443, %v3348
        %3455 = vst.msk [vmem:[#allocation3 + $0x38] sm:$0xff] %vm2443, %v3350
        %3456 = vst.msk [vmem:[#allocation3 + $0x50] sm:$0xff] %vm2443, %v3352
        %3457 = vst.msk [vmem:[#allocation3 + $0x68] sm:$0xff] %vm2443, %v3354
        %3458 = vst.msk [vmem:[#allocation3 + $0x80] sm:$0xff] %vm2443, %v3356
        %3459 = vst.msk [vmem:[#allocation3 + $0x98] sm:$0xff] %vm2443, %v3358
        %3460 = vst.msk [vmem:[#allocation3 + $0xb0] sm:$0xff] %vm2443, %v3360
        %3461 = vst.msk [vmem:[#allocation3 + $0xc8] sm:$0xff] %vm2443, %v3362
        %3462 = vst.msk [vmem:[#allocation3 + $0xe0] sm:$0xff] %vm2443, %v3364
        %3463 = vst.msk [vmem:[#allocation3 + $0xf8] sm:$0xff] %vm2443, %v3366
        %3464 = vst.msk [vmem:[#allocation3 + $0x110] sm:$0xff] %vm2443, %v3368
        %3465 = vst.msk [vmem:[#allocation3 + $0x128] sm:$0xff] %vm2443, %v3370
        %3466 = vst.msk [vmem:[#allocation3 + $0x140] sm:$0xff] %vm2443, %v3372
        %3467 = vst.msk [vmem:[#allocation3 + $0x158] sm:$0xff] %vm2443, %v3374
        %3468 = vst.msk [vmem:[#allocation3 + $0x170] sm:$0xff] %vm2443, %v3376
        %3469 = vst.msk [vmem:[#allocation3 + $0x188] sm:$0xff] %vm2443, %v3378
        %3470 = vst.msk [vmem:[#allocation3 + $0x1a0] sm:$0xff] %vm2443, %v3380
        %3471 = vst.msk [vmem:[#allocation3 + $0x1b8] sm:$0xff] %vm2443, %v3382
        %3472 = vst.msk [vmem:[#allocation3 + $0x1d0] sm:$0xff] %vm2443, %v3384
        %3473 = vst.msk [vmem:[#allocation3 + $0x1e8] sm:$0xff] %vm2443, %v3386
        %3474 = vst.msk [vmem:[#allocation3 + $0x200] sm:$0xff] %vm2443, %v3388
        %3475 = vst.msk [vmem:[#allocation3 + $0x218] sm:$0xff] %vm2443, %v3390
        %3476 = vst.msk [vmem:[#allocation3 + $0x230] sm:$0xff] %vm2443, %v3392
        %3477 = vst.msk [vmem:[#allocation3 + $0x248] sm:$0xff] %vm2443, %v3394
        %3478 = vst.msk [vmem:[#allocation3 + $0x260] sm:$0xff] %vm2443, %v3396
        %3479 = vst.msk [vmem:[#allocation3 + $0x278] sm:$0xff] %vm2443, %v3398
        %3480 = vst.msk [vmem:[#allocation3 + $0x290] sm:$0xff] %vm2443, %v3400
        %3481 = vst.msk [vmem:[#allocation3 + $0x2a8] sm:$0xff] %vm2443, %v3402
        %3482 = vst.msk [vmem:[#allocation3 + $0x2c0] sm:$0xff] %vm2443, %v3404
        %3483 = vst.msk [vmem:[#allocation3 + $0x2d8] sm:$0xff] %vm2443, %v3406
        %3484 = vst.msk [vmem:[#allocation3 + $0x2f0] sm:$0xff] %vm2443, %v3408
        %3485 = vst.msk [vmem:[#allocation3 + $0x308] sm:$0xff] %vm2443, %v3410
        %3486 = vst.msk [vmem:[#allocation3 + $0x320] sm:$0xff] %vm2443, %v3412
        %3487 = vst.msk [vmem:[#allocation3 + $0x338] sm:$0xff] %vm2443, %v3414
        %3488 = vst.msk [vmem:[#allocation3 + $0x350] sm:$0xff] %vm2443, %v3416
        %v3489 = vld [vmem:[%s2912 + $0x2] sm:$0xff]
        %v3490 = vld [vmem:[%s2912 + $0xa] sm:$0xff]
        %v3491 = vld [vmem:[%s2912 + $0x12] sm:$0xff]
        %v3492 = vld [vmem:[%s2912 + $0x22] sm:$0xff]
        %v3493 = vld [vmem:[%s2912 + $0x2a] sm:$0xff]
        %v3494 = vld [vmem:[%s2912 + $0x32] sm:$0xff]
        %v3495 = vld [vmem:[%s2912 + $0x42] sm:$0xff]
        %v3496 = vld [vmem:[%s2912 + $0x4a] sm:$0xff]
        %v3497 = vld [vmem:[%s2912 + $0x52] sm:$0xff]
        %v3498 = vld [vmem:[%s2912 + $0x62] sm:$0xff]
        %v3499 = vld [vmem:[%s2912 + $0x6a] sm:$0xff]
        %v3500 = vld [vmem:[%s2912 + $0x72] sm:$0xff]
        %v3501 = vld [vmem:[%s2912 + $0x82] sm:$0xff]
        %v3502 = vld [vmem:[%s2912 + $0x8a] sm:$0xff]
        %v3503 = vld [vmem:[%s2912 + $0x92] sm:$0xff]
        %v3504 = vld [vmem:[%s2912 + $0xa2] sm:$0xff]
        %v3505 = vld [vmem:[%s2912 + $0xaa] sm:$0xff]
        %v3506 = vld [vmem:[%s2912 + $0xb2] sm:$0xff]
        %v3507 = vld [vmem:[%s2912 + $0xc2] sm:$0xff]
        %v3508 = vld [vmem:[%s2912 + $0xca] sm:$0xff]
        %v3509 = vld [vmem:[%s2912 + $0xd2] sm:$0xff]
        %v3510 = vld [vmem:[%s2912 + $0xe2] sm:$0xff]
        %v3511 = vld [vmem:[%s2912 + $0xea] sm:$0xff]
        %v3512 = vld [vmem:[%s2912 + $0xf2] sm:$0xff]
        %v3513 = vld [vmem:[%s2912 + $0x102] sm:$0xff]
        %v3514 = vld [vmem:[%s2912 + $0x10a] sm:$0xff]
        %v3515 = vld [vmem:[%s2912 + $0x112] sm:$0xff]
        %v3516 = vld [vmem:[%s2912 + $0x122] sm:$0xff]
        %v3517 = vld [vmem:[%s2912 + $0x12a] sm:$0xff]
        %v3518 = vld [vmem:[%s2912 + $0x132] sm:$0xff]
        %v3519 = vld [vmem:[%s2912 + $0x142] sm:$0xff]
        %v3520 = vld [vmem:[%s2912 + $0x14a] sm:$0xff]
        %v3521 = vld [vmem:[%s2912 + $0x152] sm:$0xff]
        %v3522 = vld [vmem:[%s2912 + $0x162] sm:$0xff]
        %v3523 = vld [vmem:[%s2912 + $0x16a] sm:$0xff]
        %v3524 = vld [vmem:[%s2912 + $0x172] sm:$0xff]
        %v3525 = vld [vmem:[%s2912 + $0x182] sm:$0xff]
        %v3526 = vld [vmem:[%s2912 + $0x18a] sm:$0xff]
        %v3527 = vld [vmem:[%s2912 + $0x192] sm:$0xff]
        %v3528 = vld [vmem:[%s2912 + $0x1a2] sm:$0xff]
        %v3529 = vld [vmem:[%s2912 + $0x1aa] sm:$0xff]
        %v3530 = vld [vmem:[%s2912 + $0x1b2] sm:$0xff]
        %v3531 = vld [vmem:[%s2912 + $0x1c2] sm:$0xff]
        %v3532 = vld [vmem:[%s2912 + $0x1ca] sm:$0xff]
        %v3533 = vld [vmem:[%s2912 + $0x1d2] sm:$0xff]
        %v3534 = vld [vmem:[%s2912 + $0x1e2] sm:$0xff]
        %v3535 = vld [vmem:[%s2912 + $0x1ea] sm:$0xff]
        %v3536 = vld [vmem:[%s2912 + $0x1f2] sm:$0xff]
        %v3537 = vld [vmem:[%s2912 + $0x202] sm:$0xff]
        %v3538 = vld [vmem:[%s2912 + $0x20a] sm:$0xff]
        %v3539 = vld [vmem:[%s2912 + $0x212] sm:$0xff]
        %v3540 = vld [vmem:[%s2912 + $0x222] sm:$0xff]
        %v3541 = vld [vmem:[%s2912 + $0x22a] sm:$0xff]
        %v3542 = vld [vmem:[%s2912 + $0x232] sm:$0xff]
        %v3543 = vld [vmem:[%s2912 + $0x242] sm:$0xff]
        %v3544 = vld [vmem:[%s2912 + $0x24a] sm:$0xff]
        %v3545 = vld [vmem:[%s2912 + $0x252] sm:$0xff]
        %v3546 = vld [vmem:[%s2912 + $0x262] sm:$0xff]
        %v3547 = vld [vmem:[%s2912 + $0x26a] sm:$0xff]
        %v3548 = vld [vmem:[%s2912 + $0x272] sm:$0xff]
        %v3549 = vld [vmem:[%s2912 + $0x282] sm:$0xff]
        %v3550 = vld [vmem:[%s2912 + $0x28a] sm:$0xff]
        %v3551 = vld [vmem:[%s2912 + $0x292] sm:$0xff]
        %v3552 = vld [vmem:[%s2912 + $0x2a2] sm:$0xff]
        %v3553 = vld [vmem:[%s2912 + $0x2aa] sm:$0xff]
        %v3554 = vld [vmem:[%s2912 + $0x2b2] sm:$0xff]
        %v3555 = vld [vmem:[%s2912 + $0x2c2] sm:$0xff]
        %v3556 = vld [vmem:[%s2912 + $0x2ca] sm:$0xff]
        %v3557 = vld [vmem:[%s2912 + $0x2d2] sm:$0xff]
        %v3558 = vld [vmem:[%s2912 + $0x2e2] sm:$0xff]
        %v3559 = vld [vmem:[%s2912 + $0x2ea] sm:$0xff]
        %v3560 = vld [vmem:[%s2912 + $0x2f2] sm:$0xff]
        %v3561 = vpack.c.bf16 %v3490, %v3489
        %v3562 = vpack.c.bf16 %v3492, %v3491
        %v3563 = vpack.c.bf16 %v3494, %v3493
        %v3564 = vpack.c.bf16 %v3496, %v3495
        %v3565 = vpack.c.bf16 %v3498, %v3497
        %v3566 = vpack.c.bf16 %v3500, %v3499
        %v3567 = vpack.c.bf16 %v3502, %v3501
        %v3568 = vpack.c.bf16 %v3504, %v3503
        %v3569 = vpack.c.bf16 %v3506, %v3505
        %v3570 = vpack.c.bf16 %v3508, %v3507
        %v3571 = vpack.c.bf16 %v3510, %v3509
        %v3572 = vpack.c.bf16 %v3512, %v3511
        %v3573 = vpack.c.bf16 %v3514, %v3513
        %v3574 = vpack.c.bf16 %v3516, %v3515
        %v3575 = vpack.c.bf16 %v3518, %v3517
        %v3576 = vpack.c.bf16 %v3520, %v3519
        %v3577 = vpack.c.bf16 %v3522, %v3521
        %v3578 = vpack.c.bf16 %v3524, %v3523
        %v3579 = vpack.c.bf16 %v3526, %v3525
        %v3580 = vpack.c.bf16 %v3528, %v3527
        %v3581 = vpack.c.bf16 %v3530, %v3529
        %v3582 = vpack.c.bf16 %v3532, %v3531
        %v3583 = vpack.c.bf16 %v3534, %v3533
        %v3584 = vpack.c.bf16 %v3536, %v3535
        %v3585 = vpack.c.bf16 %v3538, %v3537
        %v3586 = vpack.c.bf16 %v3540, %v3539
        %v3587 = vpack.c.bf16 %v3542, %v3541
        %v3588 = vpack.c.bf16 %v3544, %v3543
        %v3589 = vpack.c.bf16 %v3546, %v3545
        %v3590 = vpack.c.bf16 %v3548, %v3547
        %v3591 = vpack.c.bf16 %v3550, %v3549
        %v3592 = vpack.c.bf16 %v3552, %v3551
        %v3593 = vpack.c.bf16 %v3554, %v3553
        %v3594 = vpack.c.bf16 %v3556, %v3555
        %v3595 = vpack.c.bf16 %v3558, %v3557
        %v3596 = vpack.c.bf16 %v3560, %v3559
        %3597 = vst.msk [vmem:[#allocation3 + $0x10] sm:$0xff] %vm1363, %v3561
        %3598 = vst.msk [vmem:[#allocation3 + $0x28] sm:$0xff] %vm1363, %v3562
        %3599 = vst.msk [vmem:[#allocation3 + $0x40] sm:$0xff] %vm1363, %v3563
        %3600 = vst.msk [vmem:[#allocation3 + $0x58] sm:$0xff] %vm1363, %v3564
        %3601 = vst.msk [vmem:[#allocation3 + $0x70] sm:$0xff] %vm1363, %v3565
        %3602 = vst.msk [vmem:[#allocation3 + $0x88] sm:$0xff] %vm1363, %v3566
        %3603 = vst.msk [vmem:[#allocation3 + $0xa0] sm:$0xff] %vm1363, %v3567
        %3604 = vst.msk [vmem:[#allocation3 + $0xb8] sm:$0xff] %vm1363, %v3568
        %3605 = vst.msk [vmem:[#allocation3 + $0xd0] sm:$0xff] %vm1363, %v3569
        %3606 = vst.msk [vmem:[#allocation3 + $0xe8] sm:$0xff] %vm1363, %v3570
        %3607 = vst.msk [vmem:[#allocation3 + $0x100] sm:$0xff] %vm1363, %v3571
        %3608 = vst.msk [vmem:[#allocation3 + $0x118] sm:$0xff] %vm1363, %v3572
        %3609 = vst.msk [vmem:[#allocation3 + $0x130] sm:$0xff] %vm1363, %v3573
        %3610 = vst.msk [vmem:[#allocation3 + $0x148] sm:$0xff] %vm1363, %v3574
        %3611 = vst.msk [vmem:[#allocation3 + $0x160] sm:$0xff] %vm1363, %v3575
        %3612 = vst.msk [vmem:[#allocation3 + $0x178] sm:$0xff] %vm1363, %v3576
        %3613 = vst.msk [vmem:[#allocation3 + $0x190] sm:$0xff] %vm1363, %v3577
        %3614 = vst.msk [vmem:[#allocation3 + $0x1a8] sm:$0xff] %vm1363, %v3578
        %3615 = vst.msk [vmem:[#allocation3 + $0x1c0] sm:$0xff] %vm1363, %v3579
        %3616 = vst.msk [vmem:[#allocation3 + $0x1d8] sm:$0xff] %vm1363, %v3580
        %3617 = vst.msk [vmem:[#allocation3 + $0x1f0] sm:$0xff] %vm1363, %v3581
        %3618 = vst.msk [vmem:[#allocation3 + $0x208] sm:$0xff] %vm1363, %v3582
        %3619 = vst.msk [vmem:[#allocation3 + $0x220] sm:$0xff] %vm1363, %v3583
        %3620 = vst.msk [vmem:[#allocation3 + $0x238] sm:$0xff] %vm1363, %v3584
        %3621 = vst.msk [vmem:[#allocation3 + $0x250] sm:$0xff] %vm1363, %v3585
        %3622 = vst.msk [vmem:[#allocation3 + $0x268] sm:$0xff] %vm1363, %v3586
        %3623 = vst.msk [vmem:[#allocation3 + $0x280] sm:$0xff] %vm1363, %v3587
        %3624 = vst.msk [vmem:[#allocation3 + $0x298] sm:$0xff] %vm1363, %v3588
        %3625 = vst.msk [vmem:[#allocation3 + $0x2b0] sm:$0xff] %vm1363, %v3589
        %3626 = vst.msk [vmem:[#allocation3 + $0x2c8] sm:$0xff] %vm1363, %v3590
        %3627 = vst.msk [vmem:[#allocation3 + $0x2e0] sm:$0xff] %vm1363, %v3591
        %3628 = vst.msk [vmem:[#allocation3 + $0x2f8] sm:$0xff] %vm1363, %v3592
        %3629 = vst.msk [vmem:[#allocation3 + $0x310] sm:$0xff] %vm1363, %v3593
        %3630 = vst.msk [vmem:[#allocation3 + $0x328] sm:$0xff] %vm1363, %v3594
        %3631 = vst.msk [vmem:[#allocation3 + $0x340] sm:$0xff] %vm1363, %v3595
        %3632 = vst.msk [vmem:[#allocation3 + $0x358] sm:$0xff] %vm1363, %v3596
        %v3633 = vld [vmem:[#allocation3] sm:$0xff]
        %v3634 = vld [vmem:[#allocation3 + $0x8] sm:$0xff]
        %v3635 = vld [vmem:[#allocation3 + $0x10] sm:$0xff]
        %v3636 = vld [vmem:[#allocation3 + $0x18] sm:$0xff]
        %v3637 = vld [vmem:[#allocation3 + $0x20] sm:$0xff]
        %v3638 = vld [vmem:[#allocation3 + $0x28] sm:$0xff]
        %v3639 = vld [vmem:[#allocation3 + $0x30] sm:$0xff]
        %v3640 = vld [vmem:[#allocation3 + $0x38] sm:$0xff]
        %v3641 = vld [vmem:[#allocation3 + $0x40] sm:$0xff]
        %v3642 = vld [vmem:[#allocation3 + $0x48] sm:$0xff]
        %v3643 = vld [vmem:[#allocation3 + $0x50] sm:$0xff]
        %v3644 = vld [vmem:[#allocation3 + $0x58] sm:$0xff]
        %v3645 = vld [vmem:[#allocation3 + $0x60] sm:$0xff]
        %v3646 = vld [vmem:[#allocation3 + $0x68] sm:$0xff]
        %v3647 = vld [vmem:[#allocation3 + $0x70] sm:$0xff]
        %v3648 = vld [vmem:[#allocation3 + $0x78] sm:$0xff]
        %v3649 = vld [vmem:[#allocation3 + $0x80] sm:$0xff]
        %v3650 = vld [vmem:[#allocation3 + $0x88] sm:$0xff]
        %v3651 = vld [vmem:[#allocation3 + $0x90] sm:$0xff]
        %v3652 = vld [vmem:[#allocation3 + $0x98] sm:$0xff]
        %v3653 = vld [vmem:[#allocation3 + $0xa0] sm:$0xff]
        %v3654 = vld [vmem:[#allocation3 + $0xa8] sm:$0xff]
        %v3655 = vld [vmem:[#allocation3 + $0xb0] sm:$0xff]
        %v3656 = vld [vmem:[#allocation3 + $0xb8] sm:$0xff]
        %v3657 = vld [vmem:[#allocation3 + $0xc0] sm:$0xff]
        %v3658 = vld [vmem:[#allocation3 + $0xc8] sm:$0xff]
        %v3659 = vld [vmem:[#allocation3 + $0xd0] sm:$0xff]
        %v3660 = vld [vmem:[#allocation3 + $0xd8] sm:$0xff]
        %v3661 = vld [vmem:[#allocation3 + $0xe0] sm:$0xff]
        %v3662 = vld [vmem:[#allocation3 + $0xe8] sm:$0xff]
        %v3663 = vld [vmem:[#allocation3 + $0xf0] sm:$0xff]
        %v3664 = vld [vmem:[#allocation3 + $0xf8] sm:$0xff]
        %v3665 = vld [vmem:[#allocation3 + $0x100] sm:$0xff]
        %v3666 = vld [vmem:[#allocation3 + $0x108] sm:$0xff]
        %v3667 = vld [vmem:[#allocation3 + $0x110] sm:$0xff]
        %v3668 = vld [vmem:[#allocation3 + $0x118] sm:$0xff]
        %v3669 = vld [vmem:[#allocation3 + $0x120] sm:$0xff]
        %v3670 = vld [vmem:[#allocation3 + $0x128] sm:$0xff]
        %v3671 = vld [vmem:[#allocation3 + $0x130] sm:$0xff]
        %v3672 = vld [vmem:[#allocation3 + $0x138] sm:$0xff]
        %v3673 = vld [vmem:[#allocation3 + $0x140] sm:$0xff]
        %v3674 = vld [vmem:[#allocation3 + $0x148] sm:$0xff]
        %v3675 = vld [vmem:[#allocation3 + $0x150] sm:$0xff]
        %v3676 = vld [vmem:[#allocation3 + $0x158] sm:$0xff]
        %v3677 = vld [vmem:[#allocation3 + $0x160] sm:$0xff]
        %v3678 = vld [vmem:[#allocation3 + $0x168] sm:$0xff]
        %v3679 = vld [vmem:[#allocation3 + $0x170] sm:$0xff]
        %v3680 = vld [vmem:[#allocation3 + $0x178] sm:$0xff]
        %v3681 = vld [vmem:[#allocation3 + $0x180] sm:$0xff]
        %v3682 = vld [vmem:[#allocation3 + $0x188] sm:$0xff]
        %v3683 = vld [vmem:[#allocation3 + $0x190] sm:$0xff]
        %v3684 = vld [vmem:[#allocation3 + $0x198] sm:$0xff]
        %v3685 = vld [vmem:[#allocation3 + $0x1a0] sm:$0xff]
        %v3686 = vld [vmem:[#allocation3 + $0x1a8] sm:$0xff]
        %v3687 = vld [vmem:[#allocation3 + $0x1b0] sm:$0xff]
        %v3688 = vld [vmem:[#allocation3 + $0x1b8] sm:$0xff]
        %v3689 = vld [vmem:[#allocation3 + $0x1c0] sm:$0xff]
        %v3690 = vld [vmem:[#allocation3 + $0x1c8] sm:$0xff]
        %v3691 = vld [vmem:[#allocation3 + $0x1d0] sm:$0xff]
        %v3692 = vld [vmem:[#allocation3 + $0x1d8] sm:$0xff]
        %v3693 = vld [vmem:[#allocation3 + $0x1e0] sm:$0xff]
        %v3694 = vld [vmem:[#allocation3 + $0x1e8] sm:$0xff]
        %v3695 = vld [vmem:[#allocation3 + $0x1f0] sm:$0xff]
        %v3696 = vld [vmem:[#allocation3 + $0x1f8] sm:$0xff]
        %v3697 = vld [vmem:[#allocation3 + $0x200] sm:$0xff]
        %v3698 = vld [vmem:[#allocation3 + $0x208] sm:$0xff]
        %v3699 = vld [vmem:[#allocation3 + $0x210] sm:$0xff]
        %v3700 = vld [vmem:[#allocation3 + $0x218] sm:$0xff]
        %v3701 = vld [vmem:[#allocation3 + $0x220] sm:$0xff]
        %v3702 = vld [vmem:[#allocation3 + $0x228] sm:$0xff]
        %v3703 = vld [vmem:[#allocation3 + $0x230] sm:$0xff]
        %v3704 = vld [vmem:[#allocation3 + $0x238] sm:$0xff]
        %v3705 = vld [vmem:[#allocation3 + $0x240] sm:$0xff]
        %v3706 = vld [vmem:[#allocation3 + $0x248] sm:$0xff]
        %v3707 = vld [vmem:[#allocation3 + $0x250] sm:$0xff]
        %v3708 = vld [vmem:[#allocation3 + $0x258] sm:$0xff]
        %v3709 = vld [vmem:[#allocation3 + $0x260] sm:$0xff]
        %v3710 = vld [vmem:[#allocation3 + $0x268] sm:$0xff]
        %v3711 = vld [vmem:[#allocation3 + $0x270] sm:$0xff]
        %v3712 = vld [vmem:[#allocation3 + $0x278] sm:$0xff]
        %v3713 = vld [vmem:[#allocation3 + $0x280] sm:$0xff]
        %v3714 = vld [vmem:[#allocation3 + $0x288] sm:$0xff]
        %v3715 = vld [vmem:[#allocation3 + $0x290] sm:$0xff]
        %v3716 = vld [vmem:[#allocation3 + $0x298] sm:$0xff]
        %v3717 = vld [vmem:[#allocation3 + $0x2a0] sm:$0xff]
        %v3718 = vld [vmem:[#allocation3 + $0x2a8] sm:$0xff]
        %v3719 = vld [vmem:[#allocation3 + $0x2b0] sm:$0xff]
        %v3720 = vld [vmem:[#allocation3 + $0x2b8] sm:$0xff]
        %v3721 = vld [vmem:[#allocation3 + $0x2c0] sm:$0xff]
        %v3722 = vld [vmem:[#allocation3 + $0x2c8] sm:$0xff]
        %v3723 = vld [vmem:[#allocation3 + $0x2d0] sm:$0xff]
        %v3724 = vld [vmem:[#allocation3 + $0x2d8] sm:$0xff]
        %v3725 = vld [vmem:[#allocation3 + $0x2e0] sm:$0xff]
        %v3726 = vld [vmem:[#allocation3 + $0x2e8] sm:$0xff]
        %v3727 = vld [vmem:[#allocation3 + $0x2f0] sm:$0xff]
        %v3728 = vld [vmem:[#allocation3 + $0x2f8] sm:$0xff]
        %v3729 = vld [vmem:[#allocation3 + $0x300] sm:$0xff]
        %v3730 = vld [vmem:[#allocation3 + $0x308] sm:$0xff]
        %v3731 = vld [vmem:[#allocation3 + $0x310] sm:$0xff]
        %v3732 = vld [vmem:[#allocation3 + $0x318] sm:$0xff]
        %v3733 = vld [vmem:[#allocation3 + $0x320] sm:$0xff]
        %v3734 = vld [vmem:[#allocation3 + $0x328] sm:$0xff]
        %v3735 = vld [vmem:[#allocation3 + $0x330] sm:$0xff]
        %v3736 = vld [vmem:[#allocation3 + $0x338] sm:$0xff]
        %v3737 = vld [vmem:[#allocation3 + $0x340] sm:$0xff]
        %v3738 = vld [vmem:[#allocation3 + $0x348] sm:$0xff]
        %v3739 = vld [vmem:[#allocation3 + $0x350] sm:$0xff]
        %v3740 = vld [vmem:[#allocation3 + $0x358] sm:$0xff]
        %v3741 = vld [vmem:[%s3] sm:$0xf]
        %v3742 = vld [vmem:[%s3 + $0x4] sm:$0xf]
        %v3743 = vld [vmem:[%s3 + $0x8] sm:$0xf]
        %v3744 = vld [vmem:[%s3 + $0xc] sm:$0xf]
        %v3745 = vld [vmem:[%s3 + $0x10] sm:$0xf]
        %v3746 = vld [vmem:[%s3 + $0x14] sm:$0xf]
        %v3747 = vld [vmem:[%s3 + $0x18] sm:$0xf]
        %v3748 = vld [vmem:[%s3 + $0x1c] sm:$0xf]
        %v3749 = vld [vmem:[%s3 + $0x20] sm:$0xf]
        %v3750 = vld [vmem:[%s3 + $0x24] sm:$0xf]
        %v3751 = vld [vmem:[%s3 + $0x28] sm:$0xf]
        %v3752 = vld [vmem:[%s3 + $0x2c] sm:$0xf]
        %v3753 = vld [vmem:[%s3 + $0x30] sm:$0xf]
        %v3754 = vld [vmem:[%s3 + $0x34] sm:$0xf]
        %v3755 = vld [vmem:[%s3 + $0x38] sm:$0xf]
        %v3756 = vld [vmem:[%s3 + $0x3c] sm:$0xf]
        %v3757 = vld [vmem:[%s3 + $0x40] sm:$0xf]
        %v3758 = vld [vmem:[%s3 + $0x44] sm:$0xf]
        %v3759 = vld [vmem:[%s3 + $0x48] sm:$0xf]
        %v3760 = vld [vmem:[%s3 + $0x4c] sm:$0xf]
        %v3761 = vld [vmem:[%s3 + $0x50] sm:$0xf]
        %v3762 = vld [vmem:[%s3 + $0x54] sm:$0xf]
        %v3763 = vld [vmem:[%s3 + $0x58] sm:$0xf]
        %v3764 = vld [vmem:[%s3 + $0x5c] sm:$0xf]
        %v3765 = vld [vmem:[%s3 + $0x60] sm:$0xf]
        %v3766 = vld [vmem:[%s3 + $0x64] sm:$0xf]
        %v3767 = vld [vmem:[%s3 + $0x68] sm:$0xf]
        %v3768 = vld [vmem:[%s3 + $0x6c] sm:$0xf]
        %v3769 = vld [vmem:[%s3 + $0x70] sm:$0xf]
        %v3770 = vld [vmem:[%s3 + $0x74] sm:$0xf]
        %v3771 = vld [vmem:[%s3 + $0x78] sm:$0xf]
        %v3772 = vld [vmem:[%s3 + $0x7c] sm:$0xf]
        %v3773 = vld [vmem:[%s3 + $0x80] sm:$0xf]
        %v3774 = vld [vmem:[%s3 + $0x84] sm:$0xf]
        %v3775 = vld [vmem:[%s3 + $0x88] sm:$0xf]
        %v3776 = vld [vmem:[%s3 + $0x8c] sm:$0xf]
        %v3813 = vunpack.c.l.b16 %v3741
        %v3814 = vunpack.c.l.b16 %v3742
        %v3815 = vunpack.c.l.b16 %v3743
        %v3816 = vunpack.c.l.b16 %v3744
        %v3817 = vunpack.c.l.b16 %v3745
        %v3818 = vunpack.c.l.b16 %v3746
        %v3819 = vunpack.c.l.b16 %v3747
        %v3820 = vunpack.c.l.b16 %v3748
        %v3821 = vunpack.c.l.b16 %v3749
        %v3822 = vunpack.c.l.b16 %v3750
        %v3823 = vunpack.c.l.b16 %v3751
        %v3824 = vunpack.c.l.b16 %v3752
        %v3825 = vunpack.c.l.b16 %v3753
        %v3826 = vunpack.c.l.b16 %v3754
        %v3827 = vunpack.c.l.b16 %v3755
        %v3828 = vunpack.c.l.b16 %v3756
        %v3829 = vunpack.c.l.b16 %v3757
        %v3830 = vunpack.c.l.b16 %v3758
        %v3831 = vunpack.c.l.b16 %v3759
        %v3832 = vunpack.c.l.b16 %v3760
        %v3833 = vunpack.c.l.b16 %v3761
        %v3834 = vunpack.c.l.b16 %v3762
        %v3835 = vunpack.c.l.b16 %v3763
        %v3836 = vunpack.c.l.b16 %v3764
        %v3837 = vunpack.c.l.b16 %v3765
        %v3838 = vunpack.c.l.b16 %v3766
        %v3839 = vunpack.c.l.b16 %v3767
        %v3840 = vunpack.c.l.b16 %v3768
        %v3841 = vunpack.c.l.b16 %v3769
        %v3842 = vunpack.c.l.b16 %v3770
        %v3843 = vunpack.c.l.b16 %v3771
        %v3844 = vunpack.c.l.b16 %v3772
        %v3845 = vunpack.c.l.b16 %v3773
        %v3846 = vunpack.c.l.b16 %v3774
        %v3847 = vunpack.c.l.b16 %v3775
        %v3848 = vunpack.c.l.b16 %v3776
        %v3849 = vpack.c.b16 %v3814, %v3813
        %v3850 = vpack.c.b16 %v3816, %v3815
        %v3851 = vpack.c.b16 %v3818, %v3817
        %v3852 = vpack.c.b16 %v3820, %v3819
        %v3853 = vpack.c.b16 %v3822, %v3821
        %v3854 = vpack.c.b16 %v3824, %v3823
        %v3855 = vpack.c.b16 %v3826, %v3825
        %v3856 = vpack.c.b16 %v3828, %v3827
        %v3857 = vpack.c.b16 %v3830, %v3829
        %v3858 = vpack.c.b16 %v3832, %v3831
        %v3859 = vpack.c.b16 %v3834, %v3833
        %v3860 = vpack.c.b16 %v3836, %v3835
        %v3861 = vpack.c.b16 %v3838, %v3837
        %v3862 = vpack.c.b16 %v3840, %v3839
        %v3863 = vpack.c.b16 %v3842, %v3841
        %v3864 = vpack.c.b16 %v3844, %v3843
        %v3865 = vpack.c.b16 %v3846, %v3845
        %v3866 = vpack.c.b16 %v3848, %v3847
        %v3886 = vsel %vm1363, %v3635, 0
        %v3889 = vsel %vm1363, %v3638, 0
        %v3892 = vsel %vm1363, %v3641, 0
        %v3895 = vsel %vm1363, %v3644, 0
        %v3898 = vsel %vm1363, %v3647, 0
        %v3901 = vsel %vm1363, %v3650, 0
        %v3904 = vsel %vm1363, %v3653, 0
        %v3907 = vsel %vm1363, %v3656, 0
        %v3910 = vsel %vm1363, %v3659, 0
        %v3913 = vsel %vm1363, %v3662, 0
        %v3916 = vsel %vm1363, %v3665, 0
        %v3919 = vsel %vm1363, %v3668, 0
        %v3922 = vsel %vm1363, %v3671, 0
        %v3925 = vsel %vm1363, %v3674, 0
        %v3928 = vsel %vm1363, %v3677, 0
        %v3931 = vsel %vm1363, %v3680, 0
        %v3934 = vsel %vm1363, %v3683, 0
        %v3937 = vsel %vm1363, %v3686, 0
        %v3940 = vsel %vm1363, %v3689, 0
        %v3943 = vsel %vm1363, %v3692, 0
        %v3946 = vsel %vm1363, %v3695, 0
        %v3949 = vsel %vm1363, %v3698, 0
        %v3952 = vsel %vm1363, %v3701, 0
        %v3955 = vsel %vm1363, %v3704, 0
        %v3958 = vsel %vm1363, %v3707, 0
        %v3961 = vsel %vm1363, %v3710, 0
        %v3964 = vsel %vm1363, %v3713, 0
        %v3967 = vsel %vm1363, %v3716, 0
        %v3970 = vsel %vm1363, %v3719, 0
        %v3973 = vsel %vm1363, %v3722, 0
        %v3976 = vsel %vm1363, %v3725, 0
        %v3979 = vsel %vm1363, %v3728, 0
        %v3982 = vsel %vm1363, %v3731, 0
        %v3985 = vsel %vm1363, %v3734, 0
        %v3988 = vsel %vm1363, %v3737, 0
        %v3991 = vsel %vm1363, %v3740, 0
        %3993 = vmatprep.subr.bf16.mxu0 0
        %3994 = vmatpush1.bf16.msra.mxu0 %v3849
        %3995 = vmatprep.subr.bf16.mxu0 0
        %3996 = vmatpush1.bf16.msra.mxu0 %v3850
        %3997 = vmatprep.subr.bf16.mxu0 0
        %3998 = vmatpush1.bf16.msra.mxu0 %v3851
        %3999 = vmatprep.subr.bf16.mxu0 0
        %4000 = vmatpush1.bf16.msra.mxu0 %v3852
        %4001 = vmatprep.subr.bf16.mxu0 0
        %4002 = vmatpush1.bf16.msra.mxu0 %v3853
        %4003 = vmatprep.subr.bf16.mxu0 0
        %4004 = vmatpush1.bf16.msra.mxu0 %v3854
        %4005 = vmatprep.subr.bf16.mxu0 0
        %4006 = vmatpush1.bf16.msra.mxu0 %v3855
        %4007 = vmatprep.subr.bf16.mxu0 0
        %4008 = vmatpush1.bf16.msra.mxu0 %v3856
        %4009 = vmatprep.subr.bf16.mxu0 0
        %4010 = vmatpush1.bf16.msra.mxu0 %v3857
        %4011 = vmatprep.subr.bf16.mxu0 0
        %4012 = vmatpush1.bf16.msra.mxu0 %v3858
        %4013 = vmatprep.subr.bf16.mxu0 0
        %4014 = vmatpush1.bf16.msra.mxu0 %v3859
        %4015 = vmatprep.subr.bf16.mxu0 0
        %4016 = vmatpush1.bf16.msra.mxu0 %v3860
        %4017 = vmatprep.subr.bf16.mxu0 0
        %4018 = vmatpush1.bf16.msra.mxu0 %v3861
        %4019 = vmatprep.subr.bf16.mxu0 0
        %4020 = vmatpush1.bf16.msra.mxu0 %v3862
        %4021 = vmatprep.subr.bf16.mxu0 0
        %4022 = vmatpush1.bf16.msra.mxu0 %v3863
        %4023 = vmatprep.subr.bf16.mxu0 0
        %4024 = vmatpush1.bf16.msra.mxu0 %v3864
        %4025 = vmatprep.mubr.bf16.mxu0 %v3634
        %4026 = vmatmul.mubr.bf16.gmra.mrb[0].mxu0 %v3633
        %v4027 = vpop.f32.mrb[0].mxu0
        %v4028 = vadd.f32 0.0, %v4027
        %v4029 = vpop.f32.mrb[0].mxu0
        %v4030 = vpop.f32.mrb[0].mxu0
        %v4031 = vadd.f32 0.0, %v4030
        %v4032 = vpop.f32.mrb[0].mxu0
        %4033 = vmatprep.mubr.bf16.mxu0 %v3637
        %4034 = vmatmul.mubr.bf16.gmra.mrb[0].mxu0 %v3636
        %v4035 = vpop.f32.mrb[0].mxu0
        %v4036 = vadd.f32 0.0, %v4035
        %v4037 = vpop.f32.mrb[0].mxu0
        %v4038 = vpop.f32.mrb[0].mxu0
        %v4039 = vadd.f32 0.0, %v4038
        %v4040 = vpop.f32.mrb[0].mxu0
        %4041 = vmatprep.mubr.bf16.mxu0 %v3640
        %4042 = vmatmul.mubr.bf16.gmra.mrb[0].mxu0 %v3639
        %v4043 = vpop.f32.mrb[0].mxu0
        %v4044 = vadd.f32 0.0, %v4043
        %v4045 = vpop.f32.mrb[0].mxu0
        %v4046 = vpop.f32.mrb[0].mxu0
        %v4047 = vadd.f32 0.0, %v4046
        %v4048 = vpop.f32.mrb[0].mxu0
        %4049 = vmatprep.mubr.bf16.mxu0 %v3643
        %4050 = vmatmul.mubr.bf16.gmra.mrb[0].mxu0 %v3642
        %v4051 = vpop.f32.mrb[0].mxu0
        %v4052 = vadd.f32 0.0, %v4051
        %v4053 = vpop.f32.mrb[0].mxu0
        %v4054 = vpop.f32.mrb[0].mxu0
        %v4055 = vadd.f32 0.0, %v4054
        %v4056 = vpop.f32.mrb[0].mxu0
        %4057 = vmatprep.mubr.bf16.mxu0 %v3646
        %4058 = vmatmul.mubr.bf16.gmra.mrb[0].mxu0 %v3645
        %v4059 = vpop.f32.mrb[0].mxu0
        %v4060 = vadd.f32 0.0, %v4059
        %v4061 = vpop.f32.mrb[0].mxu0
        %v4062 = vpop.f32.mrb[0].mxu0
        %v4063 = vadd.f32 0.0, %v4062
        %v4064 = vpop.f32.mrb[0].mxu0
        %4065 = vmatprep.mubr.bf16.mxu0 %v3649
        %4066 = vmatmul.mubr.bf16.gmra.mrb[0].mxu0 %v3648
        %v4067 = vpop.f32.mrb[0].mxu0
        %v4068 = vadd.f32 0.0, %v4067
        %v4069 = vpop.f32.mrb[0].mxu0
        %v4070 = vpop.f32.mrb[0].mxu0
        %v4071 = vadd.f32 0.0, %v4070
        %v4072 = vpop.f32.mrb[0].mxu0
        %4073 = vmatprep.mubr.bf16.mxu0 %v3652
        %4074 = vmatmul.mubr.bf16.gmra.mrb[0].mxu0 %v3651
        %v4075 = vpop.f32.mrb[0].mxu0
        %v4076 = vadd.f32 0.0, %v4075
        %v4077 = vpop.f32.mrb[0].mxu0
        %v4078 = vpop.f32.mrb[0].mxu0
        %v4079 = vadd.f32 0.0, %v4078
        %v4080 = vpop.f32.mrb[0].mxu0
        %4081 = vmatprep.mubr.bf16.mxu0 %v3655
        %4082 = vmatmul.mubr.bf16.gmra.mrb[0].mxu0 %v3654
        %v4083 = vpop.f32.mrb[0].mxu0
        %v4084 = vadd.f32 0.0, %v4083
        %v4085 = vpop.f32.mrb[0].mxu0
        %v4086 = vpop.f32.mrb[0].mxu0
        %v4087 = vadd.f32 0.0, %v4086
        %v4088 = vpop.f32.mrb[0].mxu0
        %4089 = vmatprep.mubr.bf16.mxu0 %v3658
        %4090 = vmatmul.mubr.bf16.gmra.mrb[0].mxu0 %v3657
        %v4091 = vpop.f32.mrb[0].mxu0
        %v4092 = vadd.f32 0.0, %v4091
        %v4093 = vpop.f32.mrb[0].mxu0
        %v4094 = vpop.f32.mrb[0].mxu0
        %v4095 = vadd.f32 0.0, %v4094
        %v4096 = vpop.f32.mrb[0].mxu0
        %4097 = vmatprep.mubr.bf16.mxu0 %v3661
        %4098 = vmatmul.mubr.bf16.gmra.mrb[0].mxu0 %v3660
        %v4099 = vpop.f32.mrb[0].mxu0
        %v4100 = vadd.f32 0.0, %v4099
        %v4101 = vpop.f32.mrb[0].mxu0
        %v4102 = vpop.f32.mrb[0].mxu0
        %v4103 = vadd.f32 0.0, %v4102
        %v4104 = vpop.f32.mrb[0].mxu0
        %4105 = vmatprep.mubr.bf16.mxu0 %v3664
        %4106 = vmatmul.mubr.bf16.gmra.mrb[0].mxu0 %v3663
        %v4107 = vpop.f32.mrb[0].mxu0
        %v4108 = vadd.f32 0.0, %v4107
        %v4109 = vpop.f32.mrb[0].mxu0
        %v4110 = vpop.f32.mrb[0].mxu0
        %v4111 = vadd.f32 0.0, %v4110
        %v4112 = vpop.f32.mrb[0].mxu0
        %4113 = vmatprep.mubr.bf16.mxu0 %v3667
        %4114 = vmatmul.mubr.bf16.gmra.mrb[0].mxu0 %v3666
        %v4115 = vpop.f32.mrb[0].mxu0
        %v4116 = vadd.f32 0.0, %v4115
        %v4117 = vpop.f32.mrb[0].mxu0
        %v4118 = vpop.f32.mrb[0].mxu0
        %v4119 = vadd.f32 0.0, %v4118
        %v4120 = vpop.f32.mrb[0].mxu0
        %4121 = vmatprep.mubr.bf16.mxu0 %v3670
        %4122 = vmatmul.mubr.bf16.gmra.mrb[0].mxu0 %v3669
        %v4123 = vpop.f32.mrb[0].mxu0
        %v4124 = vadd.f32 0.0, %v4123
        %v4125 = vpop.f32.mrb[0].mxu0
        %v4126 = vpop.f32.mrb[0].mxu0
        %v4127 = vadd.f32 0.0, %v4126
        %v4128 = vpop.f32.mrb[0].mxu0
        %4129 = vmatprep.mubr.bf16.mxu0 %v3673
        %4130 = vmatmul.mubr.bf16.gmra.mrb[0].mxu0 %v3672
        %v4131 = vpop.f32.mrb[0].mxu0
        %v4132 = vadd.f32 0.0, %v4131
        %v4133 = vpop.f32.mrb[0].mxu0
        %v4134 = vpop.f32.mrb[0].mxu0
        %v4135 = vadd.f32 0.0, %v4134
        %v4136 = vpop.f32.mrb[0].mxu0
        %4137 = vmatprep.mubr.bf16.mxu0 %v3676
        %4138 = vmatmul.mubr.bf16.gmra.mrb[0].mxu0 %v3675
        %v4139 = vpop.f32.mrb[0].mxu0
        %v4140 = vadd.f32 0.0, %v4139
        %v4141 = vpop.f32.mrb[0].mxu0
        %v4142 = vpop.f32.mrb[0].mxu0
        %v4143 = vadd.f32 0.0, %v4142
        %v4144 = vpop.f32.mrb[0].mxu0
        %4145 = vmatprep.mubr.bf16.mxu0 %v3679
        %4146 = vmatmul.mubr.bf16.gmra.mrb[0].mxu0 %v3678
        %v4147 = vpop.f32.mrb[0].mxu0
        %v4148 = vadd.f32 0.0, %v4147
        %v4149 = vpop.f32.mrb[0].mxu0
        %v4150 = vpop.f32.mrb[0].mxu0
        %v4151 = vadd.f32 0.0, %v4150
        %v4152 = vpop.f32.mrb[0].mxu0
        %4153 = vmatprep.mubr.bf16.mxu0 %v3682
        %4154 = vmatmul.mubr.bf16.gmra.mrb[0].mxu0 %v3681
        %v4155 = vpop.f32.mrb[0].mxu0
        %v4156 = vadd.f32 0.0, %v4155
        %v4157 = vpop.f32.mrb[0].mxu0
        %v4158 = vpop.f32.mrb[0].mxu0
        %v4159 = vadd.f32 0.0, %v4158
        %v4160 = vpop.f32.mrb[0].mxu0
        %4161 = vmatprep.mubr.bf16.mxu0 %v3685
        %4162 = vmatmul.mubr.bf16.gmra.mrb[0].mxu0 %v3684
        %v4163 = vpop.f32.mrb[0].mxu0
        %v4164 = vadd.f32 0.0, %v4163
        %v4165 = vpop.f32.mrb[0].mxu0
        %v4166 = vpop.f32.mrb[0].mxu0
        %v4167 = vadd.f32 0.0, %v4166
        %v4168 = vpop.f32.mrb[0].mxu0
        %4169 = vmatprep.mubr.bf16.mxu0 %v3688
        %4170 = vmatmul.mubr.bf16.gmra.mrb[0].mxu0 %v3687
        %v4171 = vpop.f32.mrb[0].mxu0
        %v4172 = vadd.f32 0.0, %v4171
        %v4173 = vpop.f32.mrb[0].mxu0
        %v4174 = vpop.f32.mrb[0].mxu0
        %v4175 = vadd.f32 0.0, %v4174
        %v4176 = vpop.f32.mrb[0].mxu0
        %4177 = vmatprep.mubr.bf16.mxu0 %v3691
        %4178 = vmatmul.mubr.bf16.gmra.mrb[0].mxu0 %v3690
        %v4179 = vpop.f32.mrb[0].mxu0
        %v4180 = vadd.f32 0.0, %v4179
        %v4181 = vpop.f32.mrb[0].mxu0
        %v4182 = vpop.f32.mrb[0].mxu0
        %v4183 = vadd.f32 0.0, %v4182
        %v4184 = vpop.f32.mrb[0].mxu0
        %4185 = vmatprep.mubr.bf16.mxu0 %v3694
        %4186 = vmatmul.mubr.bf16.gmra.mrb[0].mxu0 %v3693
        %v4187 = vpop.f32.mrb[0].mxu0
        %v4188 = vadd.f32 0.0, %v4187
        %v4189 = vpop.f32.mrb[0].mxu0
        %v4190 = vpop.f32.mrb[0].mxu0
        %v4191 = vadd.f32 0.0, %v4190
        %v4192 = vpop.f32.mrb[0].mxu0
        %4193 = vmatprep.mubr.bf16.mxu0 %v3697
        %4194 = vmatmul.mubr.bf16.gmra.mrb[0].mxu0 %v3696
        %v4195 = vpop.f32.mrb[0].mxu0
        %v4196 = vadd.f32 0.0, %v4195
        %v4197 = vpop.f32.mrb[0].mxu0
        %v4198 = vpop.f32.mrb[0].mxu0
        %v4199 = vadd.f32 0.0, %v4198
        %v4200 = vpop.f32.mrb[0].mxu0
        %4201 = vmatprep.mubr.bf16.mxu0 %v3700
        %4202 = vmatmul.mubr.bf16.gmra.mrb[0].mxu0 %v3699
        %v4203 = vpop.f32.mrb[0].mxu0
        %v4204 = vadd.f32 0.0, %v4203
        %v4205 = vpop.f32.mrb[0].mxu0
        %v4206 = vpop.f32.mrb[0].mxu0
        %v4207 = vadd.f32 0.0, %v4206
        %v4208 = vpop.f32.mrb[0].mxu0
        %4209 = vmatprep.mubr.bf16.mxu0 %v3703
        %4210 = vmatmul.mubr.bf16.gmra.mrb[0].mxu0 %v3702
        %v4211 = vpop.f32.mrb[0].mxu0
        %v4212 = vadd.f32 0.0, %v4211
        %v4213 = vpop.f32.mrb[0].mxu0
        %v4214 = vpop.f32.mrb[0].mxu0
        %v4215 = vadd.f32 0.0, %v4214
        %v4216 = vpop.f32.mrb[0].mxu0
        %4217 = vmatprep.mubr.bf16.mxu0 %v3706
        %4218 = vmatmul.mubr.bf16.gmra.mrb[0].mxu0 %v3705
        %v4219 = vpop.f32.mrb[0].mxu0
        %v4220 = vadd.f32 0.0, %v4219
        %v4221 = vpop.f32.mrb[0].mxu0
        %v4222 = vpop.f32.mrb[0].mxu0
        %v4223 = vadd.f32 0.0, %v4222
        %v4224 = vpop.f32.mrb[0].mxu0
        %4225 = vmatprep.mubr.bf16.mxu0 %v3709
        %4226 = vmatmul.mubr.bf16.gmra.mrb[0].mxu0 %v3708
        %v4227 = vpop.f32.mrb[0].mxu0
        %v4228 = vadd.f32 0.0, %v4227
        %v4229 = vpop.f32.mrb[0].mxu0
        %v4230 = vpop.f32.mrb[0].mxu0
        %v4231 = vadd.f32 0.0, %v4230
        %v4232 = vpop.f32.mrb[0].mxu0
        %4233 = vmatprep.mubr.bf16.mxu0 %v3712
        %4234 = vmatmul.mubr.bf16.gmra.mrb[0].mxu0 %v3711
        %v4235 = vpop.f32.mrb[0].mxu0
        %v4236 = vadd.f32 0.0, %v4235
        %v4237 = vpop.f32.mrb[0].mxu0
        %v4238 = vpop.f32.mrb[0].mxu0
        %v4239 = vadd.f32 0.0, %v4238
        %v4240 = vpop.f32.mrb[0].mxu0
        %4241 = vmatprep.mubr.bf16.mxu0 %v3715
        %4242 = vmatmul.mubr.bf16.gmra.mrb[0].mxu0 %v3714
        %v4243 = vpop.f32.mrb[0].mxu0
        %v4244 = vadd.f32 0.0, %v4243
        %v4245 = vpop.f32.mrb[0].mxu0
        %v4246 = vpop.f32.mrb[0].mxu0
        %v4247 = vadd.f32 0.0, %v4246
        %v4248 = vpop.f32.mrb[0].mxu0
        %4249 = vmatprep.mubr.bf16.mxu0 %v3718
        %4250 = vmatmul.mubr.bf16.gmra.mrb[0].mxu0 %v3717
        %v4251 = vpop.f32.mrb[0].mxu0
        %v4252 = vadd.f32 0.0, %v4251
        %v4253 = vpop.f32.mrb[0].mxu0
        %v4254 = vpop.f32.mrb[0].mxu0
        %v4255 = vadd.f32 0.0, %v4254
        %v4256 = vpop.f32.mrb[0].mxu0
        %4257 = vmatprep.mubr.bf16.mxu0 %v3721
        %4258 = vmatmul.mubr.bf16.gmra.mrb[0].mxu0 %v3720
        %v4259 = vpop.f32.mrb[0].mxu0
        %v4260 = vadd.f32 0.0, %v4259
        %v4261 = vpop.f32.mrb[0].mxu0
        %v4262 = vpop.f32.mrb[0].mxu0
        %v4263 = vadd.f32 0.0, %v4262
        %v4264 = vpop.f32.mrb[0].mxu0
        %4265 = vmatprep.mubr.bf16.mxu0 %v3724
        %4266 = vmatmul.mubr.bf16.gmra.mrb[0].mxu0 %v3723
        %v4267 = vpop.f32.mrb[0].mxu0
        %v4268 = vadd.f32 0.0, %v4267
        %v4269 = vpop.f32.mrb[0].mxu0
        %v4270 = vpop.f32.mrb[0].mxu0
        %v4271 = vadd.f32 0.0, %v4270
        %v4272 = vpop.f32.mrb[0].mxu0
        %4273 = vmatprep.mubr.bf16.mxu0 %v3727
        %4274 = vmatmul.mubr.bf16.gmra.mrb[0].mxu0 %v3726
        %v4275 = vpop.f32.mrb[0].mxu0
        %v4276 = vadd.f32 0.0, %v4275
        %v4277 = vpop.f32.mrb[0].mxu0
        %v4278 = vpop.f32.mrb[0].mxu0
        %v4279 = vadd.f32 0.0, %v4278
        %v4280 = vpop.f32.mrb[0].mxu0
        %4281 = vmatprep.mubr.bf16.mxu0 %v3730
        %4282 = vmatmul.mubr.bf16.gmra.mrb[0].mxu0 %v3729
        %v4283 = vpop.f32.mrb[0].mxu0
        %v4284 = vadd.f32 0.0, %v4283
        %v4285 = vpop.f32.mrb[0].mxu0
        %v4286 = vpop.f32.mrb[0].mxu0
        %v4287 = vadd.f32 0.0, %v4286
        %v4288 = vpop.f32.mrb[0].mxu0
        %4289 = vmatprep.mubr.bf16.mxu0 %v3733
        %4290 = vmatmul.mubr.bf16.gmra.mrb[0].mxu0 %v3732
        %v4291 = vpop.f32.mrb[0].mxu0
        %v4292 = vadd.f32 0.0, %v4291
        %v4293 = vpop.f32.mrb[0].mxu0
        %v4294 = vpop.f32.mrb[0].mxu0
        %v4295 = vadd.f32 0.0, %v4294
        %v4296 = vpop.f32.mrb[0].mxu0
        %4297 = vmatprep.mubr.bf16.mxu0 %v3736
        %4298 = vmatmul.mubr.bf16.gmra.mrb[0].mxu0 %v3735
        %v4299 = vpop.f32.mrb[0].mxu0
        %v4300 = vadd.f32 0.0, %v4299
        %v4301 = vpop.f32.mrb[0].mxu0
        %v4302 = vpop.f32.mrb[0].mxu0
        %v4303 = vadd.f32 0.0, %v4302
        %v4304 = vpop.f32.mrb[0].mxu0
        %4305 = vmatprep.mubr.bf16.mxu0 %v3739
        %4306 = vmatmul.mubr.bf16.gmra.mrb[0].mxu0 %v3738
        %v4307 = vpop.f32.mrb[0].mxu0
        %v4308 = vadd.f32 0.0, %v4307
        %v4309 = vpop.f32.mrb[0].mxu0
        %v4310 = vpop.f32.mrb[0].mxu0
        %v4311 = vadd.f32 0.0, %v4310
        %v4312 = vpop.f32.mrb[0].mxu0
        %4313 = vdwg.mxu0
        %4314 = vmatprep.subr.bf16.mxu0 0
        %4315 = vmatpush1.bf16.msra.mxu0 %v3865
        %4316 = vmatprep.subr.bf16.mxu0 0
        %4317 = vmatpush1.bf16.msra.mxu0 %v3866
        %4318 = vmatprep.subr.bf16.mxu0 0
        %4319 = vmatpush1.bf16.msra.mxu0 0
        %4320 = vmatprep.subr.bf16.mxu0 0
        %4321 = vmatpush1.bf16.msra.mxu0 0
        %4322 = vmatprep.subr.bf16.mxu0 0
        %4323 = vmatpush1.bf16.msra.mxu0 0
        %4324 = vmatprep.subr.bf16.mxu0 0
        %4325 = vmatpush1.bf16.msra.mxu0 0
        %4326 = vmatprep.subr.bf16.mxu0 0
        %4327 = vmatpush1.bf16.msra.mxu0 0
        %4328 = vmatprep.subr.bf16.mxu0 0
        %4329 = vmatpush1.bf16.msra.mxu0 0
        %4330 = vmatprep.subr.bf16.mxu0 0
        %4331 = vmatpush1.bf16.msra.mxu0 0
        %4332 = vmatprep.subr.bf16.mxu0 0
        %4333 = vmatpush1.bf16.msra.mxu0 0
        %4334 = vmatprep.subr.bf16.mxu0 0
        %4335 = vmatpush1.bf16.msra.mxu0 0
        %4336 = vmatprep.subr.bf16.mxu0 0
        %4337 = vmatpush1.bf16.msra.mxu0 0
        %4338 = vmatprep.subr.bf16.mxu0 0
        %4339 = vmatpush1.bf16.msra.mxu0 0
        %4340 = vmatprep.subr.bf16.mxu0 0
        %4341 = vmatpush1.bf16.msra.mxu0 0
        %4342 = vmatprep.subr.bf16.mxu0 0
        %4343 = vmatpush1.bf16.msra.mxu0 0
        %4344 = vmatprep.subr.bf16.mxu0 0
        %4345 = vmatpush1.bf16.msra.mxu0 0
        %4346 = vmatprep.mubr.bf16.mxu0 0
        %4347 = vmatmul.mubr.bf16.gmra.mrb[0].mxu0 %v3886
        %v4348 = vpop.f32.mrb[0].mxu0
        %v4349 = vadd.f32 %v4028, %v4348
        %v4350 = vpop.f32.mrb[0].mxu0
        %v4351 = vpop.f32.mrb[0].mxu0
        %v4352 = vadd.f32 %v4031, %v4351
        %v4353 = vpop.f32.mrb[0].mxu0
        %4354 = vmatprep.mubr.bf16.mxu0 0
        %4355 = vmatmul.mubr.bf16.gmra.mrb[0].mxu0 %v3889
        %v4356 = vpop.f32.mrb[0].mxu0
        %v4357 = vadd.f32 %v4036, %v4356
        %v4358 = vpop.f32.mrb[0].mxu0
        %v4359 = vpop.f32.mrb[0].mxu0
        %v4360 = vadd.f32 %v4039, %v4359
        %v4361 = vpop.f32.mrb[0].mxu0
        %4362 = vmatprep.mubr.bf16.mxu0 0
        %4363 = vmatmul.mubr.bf16.gmra.mrb[0].mxu0 %v3892
        %v4364 = vpop.f32.mrb[0].mxu0
        %v4365 = vadd.f32 %v4044, %v4364
        %v4366 = vpop.f32.mrb[0].mxu0
        %v4367 = vpop.f32.mrb[0].mxu0
        %v4368 = vadd.f32 %v4047, %v4367
        %v4369 = vpop.f32.mrb[0].mxu0
        %4370 = vmatprep.mubr.bf16.mxu0 0
        %4371 = vmatmul.mubr.bf16.gmra.mrb[0].mxu0 %v3895
        %v4372 = vpop.f32.mrb[0].mxu0
        %v4373 = vadd.f32 %v4052, %v4372
        %v4374 = vpop.f32.mrb[0].mxu0
        %v4375 = vpop.f32.mrb[0].mxu0
        %v4376 = vadd.f32 %v4055, %v4375
        %v4377 = vpop.f32.mrb[0].mxu0
        %4378 = vmatprep.mubr.bf16.mxu0 0
        %4379 = vmatmul.mubr.bf16.gmra.mrb[0].mxu0 %v3898
        %v4380 = vpop.f32.mrb[0].mxu0
        %v4381 = vadd.f32 %v4060, %v4380
        %v4382 = vpop.f32.mrb[0].mxu0
        %v4383 = vpop.f32.mrb[0].mxu0
        %v4384 = vadd.f32 %v4063, %v4383
        %v4385 = vpop.f32.mrb[0].mxu0
        %4386 = vmatprep.mubr.bf16.mxu0 0
        %4387 = vmatmul.mubr.bf16.gmra.mrb[0].mxu0 %v3901
        %v4388 = vpop.f32.mrb[0].mxu0
        %v4389 = vadd.f32 %v4068, %v4388
        %v4390 = vpop.f32.mrb[0].mxu0
        %v4391 = vpop.f32.mrb[0].mxu0
        %v4392 = vadd.f32 %v4071, %v4391
        %v4393 = vpop.f32.mrb[0].mxu0
        %4394 = vmatprep.mubr.bf16.mxu0 0
        %4395 = vmatmul.mubr.bf16.gmra.mrb[0].mxu0 %v3904
        %v4396 = vpop.f32.mrb[0].mxu0
        %v4397 = vadd.f32 %v4076, %v4396
        %v4398 = vpop.f32.mrb[0].mxu0
        %v4399 = vpop.f32.mrb[0].mxu0
        %v4400 = vadd.f32 %v4079, %v4399
        %v4401 = vpop.f32.mrb[0].mxu0
        %4402 = vmatprep.mubr.bf16.mxu0 0
        %4403 = vmatmul.mubr.bf16.gmra.mrb[0].mxu0 %v3907
        %v4404 = vpop.f32.mrb[0].mxu0
        %v4405 = vadd.f32 %v4084, %v4404
        %v4406 = vpop.f32.mrb[0].mxu0
        %v4407 = vpop.f32.mrb[0].mxu0
        %v4408 = vadd.f32 %v4087, %v4407
        %v4409 = vpop.f32.mrb[0].mxu0
        %4410 = vmatprep.mubr.bf16.mxu0 0
        %4411 = vmatmul.mubr.bf16.gmra.mrb[0].mxu0 %v3910
        %v4412 = vpop.f32.mrb[0].mxu0
        %v4413 = vadd.f32 %v4092, %v4412
        %v4414 = vpop.f32.mrb[0].mxu0
        %v4415 = vpop.f32.mrb[0].mxu0
        %v4416 = vadd.f32 %v4095, %v4415
        %v4417 = vpop.f32.mrb[0].mxu0
        %4418 = vmatprep.mubr.bf16.mxu0 0
        %4419 = vmatmul.mubr.bf16.gmra.mrb[0].mxu0 %v3913
        %v4420 = vpop.f32.mrb[0].mxu0
        %v4421 = vadd.f32 %v4100, %v4420
        %v4422 = vpop.f32.mrb[0].mxu0
        %v4423 = vpop.f32.mrb[0].mxu0
        %v4424 = vadd.f32 %v4103, %v4423
        %v4425 = vpop.f32.mrb[0].mxu0
        %4426 = vmatprep.mubr.bf16.mxu0 0
        %4427 = vmatmul.mubr.bf16.gmra.mrb[0].mxu0 %v3916
        %v4428 = vpop.f32.mrb[0].mxu0
        %v4429 = vadd.f32 %v4108, %v4428
        %v4430 = vpop.f32.mrb[0].mxu0
        %v4431 = vpop.f32.mrb[0].mxu0
        %v4432 = vadd.f32 %v4111, %v4431
        %v4433 = vpop.f32.mrb[0].mxu0
        %4434 = vmatprep.mubr.bf16.mxu0 0
        %4435 = vmatmul.mubr.bf16.gmra.mrb[0].mxu0 %v3919
        %v4436 = vpop.f32.mrb[0].mxu0
        %v4437 = vadd.f32 %v4116, %v4436
        %v4438 = vpop.f32.mrb[0].mxu0
        %v4439 = vpop.f32.mrb[0].mxu0
        %v4440 = vadd.f32 %v4119, %v4439
        %v4441 = vpop.f32.mrb[0].mxu0
        %4442 = vmatprep.mubr.bf16.mxu0 0
        %4443 = vmatmul.mubr.bf16.gmra.mrb[0].mxu0 %v3922
        %v4444 = vpop.f32.mrb[0].mxu0
        %v4445 = vadd.f32 %v4124, %v4444
        %v4446 = vpop.f32.mrb[0].mxu0
        %v4447 = vpop.f32.mrb[0].mxu0
        %v4448 = vadd.f32 %v4127, %v4447
        %v4449 = vpop.f32.mrb[0].mxu0
        %4450 = vmatprep.mubr.bf16.mxu0 0
        %4451 = vmatmul.mubr.bf16.gmra.mrb[0].mxu0 %v3925
        %v4452 = vpop.f32.mrb[0].mxu0
        %v4453 = vadd.f32 %v4132, %v4452
        %v4454 = vpop.f32.mrb[0].mxu0
        %v4455 = vpop.f32.mrb[0].mxu0
        %v4456 = vadd.f32 %v4135, %v4455
        %v4457 = vpop.f32.mrb[0].mxu0
        %4458 = vmatprep.mubr.bf16.mxu0 0
        %4459 = vmatmul.mubr.bf16.gmra.mrb[0].mxu0 %v3928
        %v4460 = vpop.f32.mrb[0].mxu0
        %v4461 = vadd.f32 %v4140, %v4460
        %v4462 = vpop.f32.mrb[0].mxu0
        %v4463 = vpop.f32.mrb[0].mxu0
        %v4464 = vadd.f32 %v4143, %v4463
        %v4465 = vpop.f32.mrb[0].mxu0
        %4466 = vmatprep.mubr.bf16.mxu0 0
        %4467 = vmatmul.mubr.bf16.gmra.mrb[0].mxu0 %v3931
        %v4468 = vpop.f32.mrb[0].mxu0
        %v4469 = vadd.f32 %v4148, %v4468
        %v4470 = vpop.f32.mrb[0].mxu0
        %v4471 = vpop.f32.mrb[0].mxu0
        %v4472 = vadd.f32 %v4151, %v4471
        %v4473 = vpop.f32.mrb[0].mxu0
        %4474 = vmatprep.mubr.bf16.mxu0 0
        %4475 = vmatmul.mubr.bf16.gmra.mrb[0].mxu0 %v3934
        %v4476 = vpop.f32.mrb[0].mxu0
        %v4477 = vadd.f32 %v4156, %v4476
        %v4478 = vpop.f32.mrb[0].mxu0
        %v4479 = vpop.f32.mrb[0].mxu0
        %v4480 = vadd.f32 %v4159, %v4479
        %v4481 = vpop.f32.mrb[0].mxu0
        %4482 = vmatprep.mubr.bf16.mxu0 0
        %4483 = vmatmul.mubr.bf16.gmra.mrb[0].mxu0 %v3937
        %v4484 = vpop.f32.mrb[0].mxu0
        %v4485 = vadd.f32 %v4164, %v4484
        %v4486 = vpop.f32.mrb[0].mxu0
        %v4487 = vpop.f32.mrb[0].mxu0
        %v4488 = vadd.f32 %v4167, %v4487
        %v4489 = vpop.f32.mrb[0].mxu0
        %4490 = vmatprep.mubr.bf16.mxu0 0
        %4491 = vmatmul.mubr.bf16.gmra.mrb[0].mxu0 %v3940
        %v4492 = vpop.f32.mrb[0].mxu0
        %v4493 = vadd.f32 %v4172, %v4492
        %v4494 = vpop.f32.mrb[0].mxu0
        %v4495 = vpop.f32.mrb[0].mxu0
        %v4496 = vadd.f32 %v4175, %v4495
        %v4497 = vpop.f32.mrb[0].mxu0
        %4498 = vmatprep.mubr.bf16.mxu0 0
        %4499 = vmatmul.mubr.bf16.gmra.mrb[0].mxu0 %v3943
        %v4500 = vpop.f32.mrb[0].mxu0
        %v4501 = vadd.f32 %v4180, %v4500
        %v4502 = vpop.f32.mrb[0].mxu0
        %v4503 = vpop.f32.mrb[0].mxu0
        %v4504 = vadd.f32 %v4183, %v4503
        %v4505 = vpop.f32.mrb[0].mxu0
        %4506 = vmatprep.mubr.bf16.mxu0 0
        %4507 = vmatmul.mubr.bf16.gmra.mrb[0].mxu0 %v3946
        %v4508 = vpop.f32.mrb[0].mxu0
        %v4509 = vadd.f32 %v4188, %v4508
        %v4510 = vpop.f32.mrb[0].mxu0
        %v4511 = vpop.f32.mrb[0].mxu0
        %v4512 = vadd.f32 %v4191, %v4511
        %v4513 = vpop.f32.mrb[0].mxu0
        %4514 = vmatprep.mubr.bf16.mxu0 0
        %4515 = vmatmul.mubr.bf16.gmra.mrb[0].mxu0 %v3949
        %v4516 = vpop.f32.mrb[0].mxu0
        %v4517 = vadd.f32 %v4196, %v4516
        %v4518 = vpop.f32.mrb[0].mxu0
        %v4519 = vpop.f32.mrb[0].mxu0
        %v4520 = vadd.f32 %v4199, %v4519
        %v4521 = vpop.f32.mrb[0].mxu0
        %4522 = vmatprep.mubr.bf16.mxu0 0
        %4523 = vmatmul.mubr.bf16.gmra.mrb[0].mxu0 %v3952
        %v4524 = vpop.f32.mrb[0].mxu0
        %v4525 = vadd.f32 %v4204, %v4524
        %v4526 = vpop.f32.mrb[0].mxu0
        %v4527 = vpop.f32.mrb[0].mxu0
        %v4528 = vadd.f32 %v4207, %v4527
        %v4529 = vpop.f32.mrb[0].mxu0
        %4530 = vmatprep.mubr.bf16.mxu0 0
        %4531 = vmatmul.mubr.bf16.gmra.mrb[0].mxu0 %v3955
        %v4532 = vpop.f32.mrb[0].mxu0
        %v4533 = vadd.f32 %v4212, %v4532
        %v4534 = vpop.f32.mrb[0].mxu0
        %v4535 = vpop.f32.mrb[0].mxu0
        %v4536 = vadd.f32 %v4215, %v4535
        %v4537 = vpop.f32.mrb[0].mxu0
        %4538 = vmatprep.mubr.bf16.mxu0 0
        %4539 = vmatmul.mubr.bf16.gmra.mrb[0].mxu0 %v3958
        %v4540 = vpop.f32.mrb[0].mxu0
        %v4541 = vadd.f32 %v4220, %v4540
        %v4542 = vpop.f32.mrb[0].mxu0
        %v4543 = vpop.f32.mrb[0].mxu0
        %v4544 = vadd.f32 %v4223, %v4543
        %v4545 = vpop.f32.mrb[0].mxu0
        %4546 = vmatprep.mubr.bf16.mxu0 0
        %4547 = vmatmul.mubr.bf16.gmra.mrb[0].mxu0 %v3961
        %v4548 = vpop.f32.mrb[0].mxu0
        %v4549 = vadd.f32 %v4228, %v4548
        %v4550 = vpop.f32.mrb[0].mxu0
        %v4551 = vpop.f32.mrb[0].mxu0
        %v4552 = vadd.f32 %v4231, %v4551
        %v4553 = vpop.f32.mrb[0].mxu0
        %4554 = vmatprep.mubr.bf16.mxu0 0
        %4555 = vmatmul.mubr.bf16.gmra.mrb[0].mxu0 %v3964
        %v4556 = vpop.f32.mrb[0].mxu0
        %v4557 = vadd.f32 %v4236, %v4556
        %v4558 = vpop.f32.mrb[0].mxu0
        %v4559 = vpop.f32.mrb[0].mxu0
        %v4560 = vadd.f32 %v4239, %v4559
        %v4561 = vpop.f32.mrb[0].mxu0
        %4562 = vmatprep.mubr.bf16.mxu0 0
        %4563 = vmatmul.mubr.bf16.gmra.mrb[0].mxu0 %v3967
        %v4564 = vpop.f32.mrb[0].mxu0
        %v4565 = vadd.f32 %v4244, %v4564
        %v4566 = vpop.f32.mrb[0].mxu0
        %v4567 = vpop.f32.mrb[0].mxu0
        %v4568 = vadd.f32 %v4247, %v4567
        %v4569 = vpop.f32.mrb[0].mxu0
        %4570 = vmatprep.mubr.bf16.mxu0 0
        %4571 = vmatmul.mubr.bf16.gmra.mrb[0].mxu0 %v3970
        %v4572 = vpop.f32.mrb[0].mxu0
        %v4573 = vadd.f32 %v4252, %v4572
        %v4574 = vpop.f32.mrb[0].mxu0
        %v4575 = vpop.f32.mrb[0].mxu0
        %v4576 = vadd.f32 %v4255, %v4575
        %v4577 = vpop.f32.mrb[0].mxu0
        %4578 = vmatprep.mubr.bf16.mxu0 0
        %4579 = vmatmul.mubr.bf16.gmra.mrb[0].mxu0 %v3973
        %v4580 = vpop.f32.mrb[0].mxu0
        %v4581 = vadd.f32 %v4260, %v4580
        %v4582 = vpop.f32.mrb[0].mxu0
        %v4583 = vpop.f32.mrb[0].mxu0
        %v4584 = vadd.f32 %v4263, %v4583
        %v4585 = vpop.f32.mrb[0].mxu0
        %4586 = vmatprep.mubr.bf16.mxu0 0
        %4587 = vmatmul.mubr.bf16.gmra.mrb[0].mxu0 %v3976
        %v4588 = vpop.f32.mrb[0].mxu0
        %v4589 = vadd.f32 %v4268, %v4588
        %v4590 = vpop.f32.mrb[0].mxu0
        %v4591 = vpop.f32.mrb[0].mxu0
        %v4592 = vadd.f32 %v4271, %v4591
        %v4593 = vpop.f32.mrb[0].mxu0
        %4594 = vmatprep.mubr.bf16.mxu0 0
        %4595 = vmatmul.mubr.bf16.gmra.mrb[0].mxu0 %v3979
        %v4596 = vpop.f32.mrb[0].mxu0
        %v4597 = vadd.f32 %v4276, %v4596
        %v4598 = vpop.f32.mrb[0].mxu0
        %v4599 = vpop.f32.mrb[0].mxu0
        %v4600 = vadd.f32 %v4279, %v4599
        %v4601 = vpop.f32.mrb[0].mxu0
        %4602 = vmatprep.mubr.bf16.mxu0 0
        %4603 = vmatmul.mubr.bf16.gmra.mrb[0].mxu0 %v3982
        %v4604 = vpop.f32.mrb[0].mxu0
        %v4605 = vadd.f32 %v4284, %v4604
        %v4606 = vpop.f32.mrb[0].mxu0
        %v4607 = vpop.f32.mrb[0].mxu0
        %v4608 = vadd.f32 %v4287, %v4607
        %v4609 = vpop.f32.mrb[0].mxu0
        %4610 = vmatprep.mubr.bf16.mxu0 0
        %4611 = vmatmul.mubr.bf16.gmra.mrb[0].mxu0 %v3985
        %v4612 = vpop.f32.mrb[0].mxu0
        %v4613 = vadd.f32 %v4292, %v4612
        %v4614 = vpop.f32.mrb[0].mxu0
        %v4615 = vpop.f32.mrb[0].mxu0
        %v4616 = vadd.f32 %v4295, %v4615
        %v4617 = vpop.f32.mrb[0].mxu0
        %4618 = vmatprep.mubr.bf16.mxu0 0
        %4619 = vmatmul.mubr.bf16.gmra.mrb[0].mxu0 %v3988
        %v4620 = vpop.f32.mrb[0].mxu0
        %v4621 = vadd.f32 %v4300, %v4620
        %v4622 = vpop.f32.mrb[0].mxu0
        %v4623 = vpop.f32.mrb[0].mxu0
        %v4624 = vadd.f32 %v4303, %v4623
        %v4625 = vpop.f32.mrb[0].mxu0
        %4626 = vmatprep.mubr.bf16.mxu0 0
        %4627 = vmatmul.mubr.bf16.gmra.mrb[0].mxu0 %v3991
        %v4628 = vpop.f32.mrb[0].mxu0
        %v4629 = vadd.f32 %v4308, %v4628
        %v4630 = vpop.f32.mrb[0].mxu0
        %v4631 = vpop.f32.mrb[0].mxu0
        %v4632 = vadd.f32 %v4311, %v4631
        %v4633 = vpop.f32.mrb[0].mxu0
        %4634 = vdwg.mxu0
        %vm4635 = vcmask 523264
        %4636 = vst.msk [vmem:[#allocation4] sm:$0xff] %vm4635, %v4349
        %4637 = vst.msk [vmem:[#allocation4 + $0x8] sm:$0xff] %vm4635, %v4352
        %4638 = vst.msk [vmem:[#allocation4 + $0x10] sm:$0xff] %vm4635, %v4357
        %4639 = vst.msk [vmem:[#allocation4 + $0x18] sm:$0xff] %vm4635, %v4360
        %4640 = vst.msk [vmem:[#allocation4 + $0x20] sm:$0xff] %vm4635, %v4365
        %4641 = vst.msk [vmem:[#allocation4 + $0x28] sm:$0xff] %vm4635, %v4368
        %4642 = vst.msk [vmem:[#allocation4 + $0x30] sm:$0xff] %vm4635, %v4373
        %4643 = vst.msk [vmem:[#allocation4 + $0x38] sm:$0xff] %vm4635, %v4376
        %4644 = vst.msk [vmem:[#allocation4 + $0x40] sm:$0xff] %vm4635, %v4381
        %4645 = vst.msk [vmem:[#allocation4 + $0x48] sm:$0xff] %vm4635, %v4384
        %4646 = vst.msk [vmem:[#allocation4 + $0x50] sm:$0xff] %vm4635, %v4389
        %4647 = vst.msk [vmem:[#allocation4 + $0x58] sm:$0xff] %vm4635, %v4392
        %4648 = vst.msk [vmem:[#allocation4 + $0x60] sm:$0xff] %vm4635, %v4397
        %4649 = vst.msk [vmem:[#allocation4 + $0x68] sm:$0xff] %vm4635, %v4400
        %4650 = vst.msk [vmem:[#allocation4 + $0x70] sm:$0xff] %vm4635, %v4405
        %4651 = vst.msk [vmem:[#allocation4 + $0x78] sm:$0xff] %vm4635, %v4408
        %4652 = vst.msk [vmem:[#allocation4 + $0x80] sm:$0xff] %vm4635, %v4413
        %4653 = vst.msk [vmem:[#allocation4 + $0x88] sm:$0xff] %vm4635, %v4416
        %4654 = vst.msk [vmem:[#allocation4 + $0x90] sm:$0xff] %vm4635, %v4421
        %4655 = vst.msk [vmem:[#allocation4 + $0x98] sm:$0xff] %vm4635, %v4424
        %4656 = vst.msk [vmem:[#allocation4 + $0xa0] sm:$0xff] %vm4635, %v4429
        %4657 = vst.msk [vmem:[#allocation4 + $0xa8] sm:$0xff] %vm4635, %v4432
        %4658 = vst.msk [vmem:[#allocation4 + $0xb0] sm:$0xff] %vm4635, %v4437
        %4659 = vst.msk [vmem:[#allocation4 + $0xb8] sm:$0xff] %vm4635, %v4440
        %4660 = vst.msk [vmem:[#allocation4 + $0xc0] sm:$0xff] %vm4635, %v4445
        %4661 = vst.msk [vmem:[#allocation4 + $0xc8] sm:$0xff] %vm4635, %v4448
        %4662 = vst.msk [vmem:[#allocation4 + $0xd0] sm:$0xff] %vm4635, %v4453
        %4663 = vst.msk [vmem:[#allocation4 + $0xd8] sm:$0xff] %vm4635, %v4456
        %4664 = vst.msk [vmem:[#allocation4 + $0xe0] sm:$0xff] %vm4635, %v4461
        %4665 = vst.msk [vmem:[#allocation4 + $0xe8] sm:$0xff] %vm4635, %v4464
        %4666 = vst.msk [vmem:[#allocation4 + $0xf0] sm:$0xff] %vm4635, %v4469
        %4667 = vst.msk [vmem:[#allocation4 + $0xf8] sm:$0xff] %vm4635, %v4472
        %4668 = vst.msk [vmem:[#allocation4 + $0x100] sm:$0xff] %vm4635, %v4477
        %4669 = vst.msk [vmem:[#allocation4 + $0x108] sm:$0xff] %vm4635, %v4480
        %4670 = vst.msk [vmem:[#allocation4 + $0x110] sm:$0xff] %vm4635, %v4485
        %4671 = vst.msk [vmem:[#allocation4 + $0x118] sm:$0xff] %vm4635, %v4488
        %4672 = vst.msk [vmem:[#allocation4 + $0x120] sm:$0xff] %vm4635, %v4493
        %4673 = vst.msk [vmem:[#allocation4 + $0x128] sm:$0xff] %vm4635, %v4496
        %4674 = vst.msk [vmem:[#allocation4 + $0x130] sm:$0xff] %vm4635, %v4501
        %4675 = vst.msk [vmem:[#allocation4 + $0x138] sm:$0xff] %vm4635, %v4504
        %4676 = vst.msk [vmem:[#allocation4 + $0x140] sm:$0xff] %vm4635, %v4509
        %4677 = vst.msk [vmem:[#allocation4 + $0x148] sm:$0xff] %vm4635, %v4512
        %4678 = vst.msk [vmem:[#allocation4 + $0x150] sm:$0xff] %vm4635, %v4517
        %4679 = vst.msk [vmem:[#allocation4 + $0x158] sm:$0xff] %vm4635, %v4520
        %4680 = vst.msk [vmem:[#allocation4 + $0x160] sm:$0xff] %vm4635, %v4525
        %4681 = vst.msk [vmem:[#allocation4 + $0x168] sm:$0xff] %vm4635, %v4528
        %4682 = vst.msk [vmem:[#allocation4 + $0x170] sm:$0xff] %vm4635, %v4533
        %4683 = vst.msk [vmem:[#allocation4 + $0x178] sm:$0xff] %vm4635, %v4536
        %4684 = vst.msk [vmem:[#allocation4 + $0x180] sm:$0xff] %vm4635, %v4541
        %4685 = vst.msk [vmem:[#allocation4 + $0x188] sm:$0xff] %vm4635, %v4544
        %4686 = vst.msk [vmem:[#allocation4 + $0x190] sm:$0xff] %vm4635, %v4549
        %4687 = vst.msk [vmem:[#allocation4 + $0x198] sm:$0xff] %vm4635, %v4552
        %4688 = vst.msk [vmem:[#allocation4 + $0x1a0] sm:$0xff] %vm4635, %v4557
        %4689 = vst.msk [vmem:[#allocation4 + $0x1a8] sm:$0xff] %vm4635, %v4560
        %4690 = vst.msk [vmem:[#allocation4 + $0x1b0] sm:$0xff] %vm4635, %v4565
        %4691 = vst.msk [vmem:[#allocation4 + $0x1b8] sm:$0xff] %vm4635, %v4568
        %4692 = vst.msk [vmem:[#allocation4 + $0x1c0] sm:$0xff] %vm4635, %v4573
        %4693 = vst.msk [vmem:[#allocation4 + $0x1c8] sm:$0xff] %vm4635, %v4576
        %4694 = vst.msk [vmem:[#allocation4 + $0x1d0] sm:$0xff] %vm4635, %v4581
        %4695 = vst.msk [vmem:[#allocation4 + $0x1d8] sm:$0xff] %vm4635, %v4584
        %4696 = vst.msk [vmem:[#allocation4 + $0x1e0] sm:$0xff] %vm4635, %v4589
        %4697 = vst.msk [vmem:[#allocation4 + $0x1e8] sm:$0xff] %vm4635, %v4592
        %4698 = vst.msk [vmem:[#allocation4 + $0x1f0] sm:$0xff] %vm4635, %v4597
        %4699 = vst.msk [vmem:[#allocation4 + $0x1f8] sm:$0xff] %vm4635, %v4600
        %4700 = vst.msk [vmem:[#allocation4 + $0x200] sm:$0xff] %vm4635, %v4605
        %4701 = vst.msk [vmem:[#allocation4 + $0x208] sm:$0xff] %vm4635, %v4608
        %4702 = vst.msk [vmem:[#allocation4 + $0x210] sm:$0xff] %vm4635, %v4613
        %4703 = vst.msk [vmem:[#allocation4 + $0x218] sm:$0xff] %vm4635, %v4616
        %4704 = vst.msk [vmem:[#allocation4 + $0x220] sm:$0xff] %vm4635, %v4621
        %4705 = vst.msk [vmem:[#allocation4 + $0x228] sm:$0xff] %vm4635, %v4624
        %4706 = vst.msk [vmem:[#allocation4 + $0x230] sm:$0xff] %vm4635, %v4629
        %4707 = vst.msk [vmem:[#allocation4 + $0x238] sm:$0xff] %vm4635, %v4632
        %v4708 = vld [vmem:[#allocation4] ss:$2 sm:$0xff]
        %s4709 = scalar_lea.vmem [#allocation4], 16
        %v4710 = vld [vmem:[%s4709] ss:$2 sm:$0xf]
        %s4711 = scalar_lea.vmem [#allocation4], 24
        %v4712 = vld [vmem:[%s4711] ss:$2 sm:$0xff]
        %s4713 = scalar_lea.vmem [#allocation4], 40
        %v4714 = vld [vmem:[%s4713] ss:$2 sm:$0xf]
        %s4715 = scalar_lea.vmem [#allocation4], 48
        %v4716 = vld [vmem:[%s4715] ss:$2 sm:$0xff]
        %s4717 = scalar_lea.vmem [#allocation4], 64
        %v4718 = vld [vmem:[%s4717] ss:$2 sm:$0xf]
        %s4719 = scalar_lea.vmem [#allocation4], 72
        %v4720 = vld [vmem:[%s4719] ss:$2 sm:$0xff]
        %s4721 = scalar_lea.vmem [#allocation4], 88
        %v4722 = vld [vmem:[%s4721] ss:$2 sm:$0xf]
        %s4723 = scalar_lea.vmem [#allocation4], 96
        %v4724 = vld [vmem:[%s4723] ss:$2 sm:$0xff]
        %s4725 = scalar_lea.vmem [#allocation4], 112
        %v4726 = vld [vmem:[%s4725] ss:$2 sm:$0xf]
        %s4727 = scalar_lea.vmem [#allocation4], 120
        %v4728 = vld [vmem:[%s4727] ss:$2 sm:$0xff]
        %s4729 = scalar_lea.vmem [#allocation4], 136
        %v4730 = vld [vmem:[%s4729] ss:$2 sm:$0xf]
        %s4731 = scalar_lea.vmem [#allocation4], 144
        %v4732 = vld [vmem:[%s4731] ss:$2 sm:$0xff]
        %s4733 = scalar_lea.vmem [#allocation4], 160
        %v4734 = vld [vmem:[%s4733] ss:$2 sm:$0xf]
        %s4735 = scalar_lea.vmem [#allocation4], 168
        %v4736 = vld [vmem:[%s4735] ss:$2 sm:$0xff]
        %s4737 = scalar_lea.vmem [#allocation4], 184
        %v4738 = vld [vmem:[%s4737] ss:$2 sm:$0xf]
        %s4739 = scalar_lea.vmem [#allocation4], 192
        %v4740 = vld [vmem:[%s4739] ss:$2 sm:$0xff]
        %s4741 = scalar_lea.vmem [#allocation4], 208
        %v4742 = vld [vmem:[%s4741] ss:$2 sm:$0xf]
        %s4743 = scalar_lea.vmem [#allocation4], 216
        %v4744 = vld [vmem:[%s4743] ss:$2 sm:$0xff]
        %s4745 = scalar_lea.vmem [#allocation4], 232
        %v4746 = vld [vmem:[%s4745] ss:$2 sm:$0xf]
        %s4747 = scalar_lea.vmem [#allocation4], 240
        %v4748 = vld [vmem:[%s4747] ss:$2 sm:$0xff]
        %s4749 = scalar_lea.vmem [#allocation4], 256
        %v4750 = vld [vmem:[%s4749] ss:$2 sm:$0xf]
        %s4751 = scalar_lea.vmem [#allocation4], 264
        %v4752 = vld [vmem:[%s4751] ss:$2 sm:$0xff]
        %s4753 = scalar_lea.vmem [#allocation4], 280
        %v4754 = vld [vmem:[%s4753] ss:$2 sm:$0xf]
        %s4755 = scalar_lea.vmem [#allocation4], 288
        %v4756 = vld [vmem:[%s4755] ss:$2 sm:$0xff]
        %s4757 = scalar_lea.vmem [#allocation4], 304
        %v4758 = vld [vmem:[%s4757] ss:$2 sm:$0xf]
        %s4759 = scalar_lea.vmem [#allocation4], 312
        %v4760 = vld [vmem:[%s4759] ss:$2 sm:$0xff]
        %s4761 = scalar_lea.vmem [#allocation4], 328
        %v4762 = vld [vmem:[%s4761] ss:$2 sm:$0xf]
        %s4763 = scalar_lea.vmem [#allocation4], 336
        %v4764 = vld [vmem:[%s4763] ss:$2 sm:$0xff]
        %s4765 = scalar_lea.vmem [#allocation4], 352
        %v4766 = vld [vmem:[%s4765] ss:$2 sm:$0xf]
        %s4767 = scalar_lea.vmem [#allocation4], 360
        %v4768 = vld [vmem:[%s4767] ss:$2 sm:$0xff]
        %s4769 = scalar_lea.vmem [#allocation4], 376
        %v4770 = vld [vmem:[%s4769] ss:$2 sm:$0xf]
        %s4771 = scalar_lea.vmem [#allocation4], 384
        %v4772 = vld [vmem:[%s4771] ss:$2 sm:$0xff]
        %s4773 = scalar_lea.vmem [#allocation4], 400
        %v4774 = vld [vmem:[%s4773] ss:$2 sm:$0xf]
        %s4775 = scalar_lea.vmem [#allocation4], 408
        %v4776 = vld [vmem:[%s4775] ss:$2 sm:$0xff]
        %s4777 = scalar_lea.vmem [#allocation4], 424
        %v4778 = vld [vmem:[%s4777] ss:$2 sm:$0xf]
        %s4779 = scalar_lea.vmem [#allocation4], 432
        %v4780 = vld [vmem:[%s4779] ss:$2 sm:$0xff]
        %s4781 = scalar_lea.vmem [#allocation4], 448
        %v4782 = vld [vmem:[%s4781] ss:$2 sm:$0xf]
        %s4783 = scalar_lea.vmem [#allocation4], 456
        %v4784 = vld [vmem:[%s4783] ss:$2 sm:$0xff]
        %s4785 = scalar_lea.vmem [#allocation4], 472
        %v4786 = vld [vmem:[%s4785] ss:$2 sm:$0xf]
        %s4787 = scalar_lea.vmem [#allocation4], 480
        %v4788 = vld [vmem:[%s4787] ss:$2 sm:$0xff]
        %s4789 = scalar_lea.vmem [#allocation4], 496
        %v4790 = vld [vmem:[%s4789] ss:$2 sm:$0xf]
        %s4791 = scalar_lea.vmem [#allocation4], 504
        %v4792 = vld [vmem:[%s4791] ss:$2 sm:$0xff]
        %s4793 = scalar_lea.vmem [#allocation4], 520
        %v4794 = vld [vmem:[%s4793] ss:$2 sm:$0xf]
        %s4795 = scalar_lea.vmem [#allocation4], 528
        %v4796 = vld [vmem:[%s4795] ss:$2 sm:$0xff]
        %s4797 = scalar_lea.vmem [#allocation4], 544
        %v4798 = vld [vmem:[%s4797] ss:$2 sm:$0xf]
        %s4799 = scalar_lea.vmem [#allocation4], 552
        %v4800 = vld [vmem:[%s4799] ss:$2 sm:$0xff]
        %s4801 = scalar_lea.vmem [#allocation4], 568
        %v4802 = vld [vmem:[%s4801] ss:$2 sm:$0xf]
        %s4803 = scalar_lea.vmem [#allocation4], 1
        %v4804 = vld [vmem:[%s4803] ss:$2 sm:$0xff]
        %s4805 = scalar_lea.vmem [#allocation4], 17
        %v4806 = vld [vmem:[%s4805] ss:$2 sm:$0xf]
        %s4807 = scalar_lea.vmem [#allocation4], 25
        %v4808 = vld [vmem:[%s4807] ss:$2 sm:$0xff]
        %s4809 = scalar_lea.vmem [#allocation4], 41
        %v4810 = vld [vmem:[%s4809] ss:$2 sm:$0xf]
        %s4811 = scalar_lea.vmem [#allocation4], 49
        %v4812 = vld [vmem:[%s4811] ss:$2 sm:$0xff]
        %s4813 = scalar_lea.vmem [#allocation4], 65
        %v4814 = vld [vmem:[%s4813] ss:$2 sm:$0xf]
        %s4815 = scalar_lea.vmem [#allocation4], 73
        %v4816 = vld [vmem:[%s4815] ss:$2 sm:$0xff]
        %s4817 = scalar_lea.vmem [#allocation4], 89
        %v4818 = vld [vmem:[%s4817] ss:$2 sm:$0xf]
        %s4819 = scalar_lea.vmem [#allocation4], 97
        %v4820 = vld [vmem:[%s4819] ss:$2 sm:$0xff]
        %s4821 = scalar_lea.vmem [#allocation4], 113
        %v4822 = vld [vmem:[%s4821] ss:$2 sm:$0xf]
        %s4823 = scalar_lea.vmem [#allocation4], 121
        %v4824 = vld [vmem:[%s4823] ss:$2 sm:$0xff]
        %s4825 = scalar_lea.vmem [#allocation4], 137
        %v4826 = vld [vmem:[%s4825] ss:$2 sm:$0xf]
        %s4827 = scalar_lea.vmem [#allocation4], 145
        %v4828 = vld [vmem:[%s4827] ss:$2 sm:$0xff]
        %s4829 = scalar_lea.vmem [#allocation4], 161
        %v4830 = vld [vmem:[%s4829] ss:$2 sm:$0xf]
        %s4831 = scalar_lea.vmem [#allocation4], 169
        %v4832 = vld [vmem:[%s4831] ss:$2 sm:$0xff]
        %s4833 = scalar_lea.vmem [#allocation4], 185
        %v4834 = vld [vmem:[%s4833] ss:$2 sm:$0xf]
        %s4835 = scalar_lea.vmem [#allocation4], 193
        %v4836 = vld [vmem:[%s4835] ss:$2 sm:$0xff]
        %s4837 = scalar_lea.vmem [#allocation4], 209
        %v4838 = vld [vmem:[%s4837] ss:$2 sm:$0xf]
        %s4839 = scalar_lea.vmem [#allocation4], 217
        %v4840 = vld [vmem:[%s4839] ss:$2 sm:$0xff]
        %s4841 = scalar_lea.vmem [#allocation4], 233
        %v4842 = vld [vmem:[%s4841] ss:$2 sm:$0xf]
        %s4843 = scalar_lea.vmem [#allocation4], 241
        %v4844 = vld [vmem:[%s4843] ss:$2 sm:$0xff]
        %s4845 = scalar_lea.vmem [#allocation4], 257
        %v4846 = vld [vmem:[%s4845] ss:$2 sm:$0xf]
        %s4847 = scalar_lea.vmem [#allocation4], 265
        %v4848 = vld [vmem:[%s4847] ss:$2 sm:$0xff]
        %s4849 = scalar_lea.vmem [#allocation4], 281
        %v4850 = vld [vmem:[%s4849] ss:$2 sm:$0xf]
        %s4851 = scalar_lea.vmem [#allocation4], 289
        %v4852 = vld [vmem:[%s4851] ss:$2 sm:$0xff]
        %s4853 = scalar_lea.vmem [#allocation4], 305
        %v4854 = vld [vmem:[%s4853] ss:$2 sm:$0xf]
        %s4855 = scalar_lea.vmem [#allocation4], 313
        %v4856 = vld [vmem:[%s4855] ss:$2 sm:$0xff]
        %s4857 = scalar_lea.vmem [#allocation4], 329
        %v4858 = vld [vmem:[%s4857] ss:$2 sm:$0xf]
        %s4859 = scalar_lea.vmem [#allocation4], 337
        %v4860 = vld [vmem:[%s4859] ss:$2 sm:$0xff]
        %s4861 = scalar_lea.vmem [#allocation4], 353
        %v4862 = vld [vmem:[%s4861] ss:$2 sm:$0xf]
        %s4863 = scalar_lea.vmem [#allocation4], 361
        %v4864 = vld [vmem:[%s4863] ss:$2 sm:$0xff]
        %s4865 = scalar_lea.vmem [#allocation4], 377
        %v4866 = vld [vmem:[%s4865] ss:$2 sm:$0xf]
        %s4867 = scalar_lea.vmem [#allocation4], 385
        %v4868 = vld [vmem:[%s4867] ss:$2 sm:$0xff]
        %s4869 = scalar_lea.vmem [#allocation4], 401
        %v4870 = vld [vmem:[%s4869] ss:$2 sm:$0xf]
        %s4871 = scalar_lea.vmem [#allocation4], 409
        %v4872 = vld [vmem:[%s4871] ss:$2 sm:$0xff]
        %s4873 = scalar_lea.vmem [#allocation4], 425
        %v4874 = vld [vmem:[%s4873] ss:$2 sm:$0xf]
        %s4875 = scalar_lea.vmem [#allocation4], 433
        %v4876 = vld [vmem:[%s4875] ss:$2 sm:$0xff]
        %s4877 = scalar_lea.vmem [#allocation4], 449
        %v4878 = vld [vmem:[%s4877] ss:$2 sm:$0xf]
        %s4879 = scalar_lea.vmem [#allocation4], 457
        %v4880 = vld [vmem:[%s4879] ss:$2 sm:$0xff]
        %s4881 = scalar_lea.vmem [#allocation4], 473
        %v4882 = vld [vmem:[%s4881] ss:$2 sm:$0xf]
        %s4883 = scalar_lea.vmem [#allocation4], 481
        %v4884 = vld [vmem:[%s4883] ss:$2 sm:$0xff]
        %s4885 = scalar_lea.vmem [#allocation4], 497
        %v4886 = vld [vmem:[%s4885] ss:$2 sm:$0xf]
        %s4887 = scalar_lea.vmem [#allocation4], 505
        %v4888 = vld [vmem:[%s4887] ss:$2 sm:$0xff]
        %s4889 = scalar_lea.vmem [#allocation4], 521
        %v4890 = vld [vmem:[%s4889] ss:$2 sm:$0xf]
        %s4891 = scalar_lea.vmem [#allocation4], 529
        %v4892 = vld [vmem:[%s4891] ss:$2 sm:$0xff]
        %s4893 = scalar_lea.vmem [#allocation4], 545
        %v4894 = vld [vmem:[%s4893] ss:$2 sm:$0xf]
        %s4895 = scalar_lea.vmem [#allocation4], 553
        %v4896 = vld [vmem:[%s4895] ss:$2 sm:$0xff]
        %s4897 = scalar_lea.vmem [#allocation4], 569
        %v4898 = vld [vmem:[%s4897] ss:$2 sm:$0xf]
        %v4899 = vmax.f32 %v4708, %v4804
        %v4900 = vmax.f32 %v4710, %v4806
        %v4901 = vmax.f32 %v4712, %v4808
        %v4902 = vmax.f32 %v4714, %v4810
        %v4903 = vmax.f32 %v4716, %v4812
        %v4904 = vmax.f32 %v4718, %v4814
        %v4905 = vmax.f32 %v4720, %v4816
        %v4906 = vmax.f32 %v4722, %v4818
        %v4907 = vmax.f32 %v4724, %v4820
        %v4908 = vmax.f32 %v4726, %v4822
        %v4909 = vmax.f32 %v4728, %v4824
        %v4910 = vmax.f32 %v4730, %v4826
        %v4911 = vmax.f32 %v4732, %v4828
        %v4912 = vmax.f32 %v4734, %v4830
        %v4913 = vmax.f32 %v4736, %v4832
        %v4914 = vmax.f32 %v4738, %v4834
        %v4915 = vmax.f32 %v4740, %v4836
        %v4916 = vmax.f32 %v4742, %v4838
        %v4917 = vmax.f32 %v4744, %v4840
        %v4918 = vmax.f32 %v4746, %v4842
        %v4919 = vmax.f32 %v4748, %v4844
        %v4920 = vmax.f32 %v4750, %v4846
        %v4921 = vmax.f32 %v4752, %v4848
        %v4922 = vmax.f32 %v4754, %v4850
        %v4923 = vmax.f32 %v4756, %v4852
        %v4924 = vmax.f32 %v4758, %v4854
        %v4925 = vmax.f32 %v4760, %v4856
        %v4926 = vmax.f32 %v4762, %v4858
        %v4927 = vmax.f32 %v4764, %v4860
        %v4928 = vmax.f32 %v4766, %v4862
        %v4929 = vmax.f32 %v4768, %v4864
        %v4930 = vmax.f32 %v4770, %v4866
        %v4931 = vmax.f32 %v4772, %v4868
        %v4932 = vmax.f32 %v4774, %v4870
        %v4933 = vmax.f32 %v4776, %v4872
        %v4934 = vmax.f32 %v4778, %v4874
        %v4935 = vmax.f32 %v4780, %v4876
        %v4936 = vmax.f32 %v4782, %v4878
        %v4937 = vmax.f32 %v4784, %v4880
        %v4938 = vmax.f32 %v4786, %v4882
        %v4939 = vmax.f32 %v4788, %v4884
        %v4940 = vmax.f32 %v4790, %v4886
        %v4941 = vmax.f32 %v4792, %v4888
        %v4942 = vmax.f32 %v4794, %v4890
        %v4943 = vmax.f32 %v4796, %v4892
        %v4944 = vmax.f32 %v4798, %v4894
        %v4945 = vmax.f32 %v4800, %v4896
        %v4946 = vmax.f32 %v4802, %v4898
        %v4947 = vmax.f32 %v4899, %v4901
        %v4948 = vmax.f32 %v4900, %v4902
        %v4949 = vmax.f32 %v4903, %v4905
        %v4950 = vmax.f32 %v4904, %v4906
        %v4951 = vmax.f32 %v4907, %v4909
        %v4952 = vmax.f32 %v4908, %v4910
        %v4953 = vmax.f32 %v4911, %v4913
        %v4954 = vmax.f32 %v4912, %v4914
        %v4955 = vmax.f32 %v4915, %v4917
        %v4956 = vmax.f32 %v4916, %v4918
        %v4957 = vmax.f32 %v4919, %v4921
        %v4958 = vmax.f32 %v4920, %v4922
        %v4959 = vmax.f32 %v4923, %v4925
        %v4960 = vmax.f32 %v4924, %v4926
        %v4961 = vmax.f32 %v4927, %v4929
        %v4962 = vmax.f32 %v4928, %v4930
        %v4963 = vmax.f32 %v4931, %v4933
        %v4964 = vmax.f32 %v4932, %v4934
        %v4965 = vmax.f32 %v4935, %v4937
        %v4966 = vmax.f32 %v4936, %v4938
        %v4967 = vmax.f32 %v4939, %v4941
        %v4968 = vmax.f32 %v4940, %v4942
        %v4969 = vmax.f32 %v4943, %v4945
        %v4970 = vmax.f32 %v4944, %v4946
        %v4971 = vld [vmem:[#allocation9] sm:$0x1]
        %v4973 = vlaneseq
        %v4974 = vshrl.u32 %v4973, 7
        %v4975 = vsub.s32 0, %v4974
        %v4976 = vrot.slane %v4971, %v4975
        %v4978 = vadd.f32 %v4947, %v4976
        %v4979 = vadd.f32 %v4948, %v4976
        %v4980 = vadd.f32 %v4949, %v4976
        %v4981 = vadd.f32 %v4950, %v4976
        %v4982 = vadd.f32 %v4951, %v4976
        %v4983 = vadd.f32 %v4952, %v4976
        %v4984 = vadd.f32 %v4953, %v4976
        %v4985 = vadd.f32 %v4954, %v4976
        %v4986 = vadd.f32 %v4955, %v4976
        %v4987 = vadd.f32 %v4956, %v4976
        %v4988 = vadd.f32 %v4957, %v4976
        %v4989 = vadd.f32 %v4958, %v4976
        %v4990 = vadd.f32 %v4959, %v4976
        %v4991 = vadd.f32 %v4960, %v4976
        %v4992 = vadd.f32 %v4961, %v4976
        %v4993 = vadd.f32 %v4962, %v4976
        %v4994 = vadd.f32 %v4963, %v4976
        %v4995 = vadd.f32 %v4964, %v4976
        %v4996 = vadd.f32 %v4965, %v4976
        %v4997 = vadd.f32 %v4966, %v4976
        %v4998 = vadd.f32 %v4967, %v4976
        %v4999 = vadd.f32 %v4968, %v4976
        %v5000 = vadd.f32 %v4969, %v4976
        %v5001 = vadd.f32 %v4970, %v4976
        %v5002 = vmax.f32 %v4978, 0.0
        %v5003 = vmax.f32 %v4979, 0.0
        %v5004 = vmax.f32 %v4980, 0.0
        %v5005 = vmax.f32 %v4981, 0.0
        %v5006 = vmax.f32 %v4982, 0.0
        %v5007 = vmax.f32 %v4983, 0.0
        %v5008 = vmax.f32 %v4984, 0.0
        %v5009 = vmax.f32 %v4985, 0.0
        %v5010 = vmax.f32 %v4986, 0.0
        %v5011 = vmax.f32 %v4987, 0.0
        %v5012 = vmax.f32 %v4988, 0.0
        %v5013 = vmax.f32 %v4989, 0.0
        %v5014 = vmax.f32 %v4990, 0.0
        %v5015 = vmax.f32 %v4991, 0.0
        %v5016 = vmax.f32 %v4992, 0.0
        %v5017 = vmax.f32 %v4993, 0.0
        %v5018 = vmax.f32 %v4994, 0.0
        %v5019 = vmax.f32 %v4995, 0.0
        %v5020 = vmax.f32 %v4996, 0.0
        %v5021 = vmax.f32 %v4997, 0.0
        %v5022 = vmax.f32 %v4998, 0.0
        %v5023 = vmax.f32 %v4999, 0.0
        %v5024 = vmax.f32 %v5000, 0.0
        %v5025 = vmax.f32 %v5001, 0.0
        %v5026 = vpack.c.bf16 %v5003, %v5002
        %v5027 = vpack.c.bf16 %v5005, %v5004
        %v5028 = vpack.c.bf16 %v5007, %v5006
        %v5029 = vpack.c.bf16 %v5009, %v5008
        %v5030 = vpack.c.bf16 %v5011, %v5010
        %v5031 = vpack.c.bf16 %v5013, %v5012
        %v5032 = vpack.c.bf16 %v5015, %v5014
        %v5033 = vpack.c.bf16 %v5017, %v5016
        %v5034 = vpack.c.bf16 %v5019, %v5018
        %v5035 = vpack.c.bf16 %v5021, %v5020
        %v5036 = vpack.c.bf16 %v5023, %v5022
        %v5037 = vpack.c.bf16 %v5025, %v5024
        %v5050 = vunpack.c.l.b16 %v5026
        %v5051 = vunpack.c.h.b16 %v5026
        %v5052 = vunpack.c.l.b16 %v5027
        %v5053 = vunpack.c.h.b16 %v5027
        %v5054 = vunpack.c.l.b16 %v5028
        %v5055 = vunpack.c.h.b16 %v5028
        %v5056 = vunpack.c.l.b16 %v5029
        %v5057 = vunpack.c.h.b16 %v5029
        %v5058 = vunpack.c.l.b16 %v5030
        %v5059 = vunpack.c.h.b16 %v5030
        %v5060 = vunpack.c.l.b16 %v5031
        %v5061 = vunpack.c.h.b16 %v5031
        %v5062 = vunpack.c.l.b16 %v5032
        %v5063 = vunpack.c.h.b16 %v5032
        %v5064 = vunpack.c.l.b16 %v5033
        %v5065 = vunpack.c.h.b16 %v5033
        %v5066 = vunpack.c.l.b16 %v5034
        %v5067 = vunpack.c.h.b16 %v5034
        %v5068 = vunpack.c.l.b16 %v5035
        %v5069 = vunpack.c.h.b16 %v5035
        %v5070 = vunpack.c.l.b16 %v5036
        %v5071 = vunpack.c.h.b16 %v5036
        %v5072 = vunpack.c.l.b16 %v5037
        %v5073 = vunpack.c.h.b16 %v5037
        %v5074 = vpack.c.b16 %v5050, %v5050
        %v5075 = vpack.c.b16 %v5051, %v5051
        %v5076 = vpack.c.b16 %v5052, %v5052
        %v5077 = vpack.c.b16 %v5053, %v5053
        %v5078 = vpack.c.b16 %v5054, %v5054
        %v5079 = vpack.c.b16 %v5055, %v5055
        %v5080 = vpack.c.b16 %v5056, %v5056
        %v5081 = vpack.c.b16 %v5057, %v5057
        %v5082 = vpack.c.b16 %v5058, %v5058
        %v5083 = vpack.c.b16 %v5059, %v5059
        %v5084 = vpack.c.b16 %v5060, %v5060
        %v5085 = vpack.c.b16 %v5061, %v5061
        %v5086 = vpack.c.b16 %v5062, %v5062
        %v5087 = vpack.c.b16 %v5063, %v5063
        %v5088 = vpack.c.b16 %v5064, %v5064
        %v5089 = vpack.c.b16 %v5065, %v5065
        %v5090 = vpack.c.b16 %v5066, %v5066
        %v5091 = vpack.c.b16 %v5067, %v5067
        %v5092 = vpack.c.b16 %v5068, %v5068
        %v5093 = vpack.c.b16 %v5069, %v5069
        %v5094 = vpack.c.b16 %v5070, %v5070
        %v5095 = vpack.c.b16 %v5071, %v5071
        %v5096 = vpack.c.b16 %v5072, %v5072
        %v5097 = vpack.c.b16 %v5073, %v5073
        %vm5122 = vcmask 519168
        %5123 = vst.msk [vmem:[%s266] sm:$0xf] %vm5122, %v5074
        %vm5124 = vcmask 517120
        %5125 = vst.msk [vmem:[%s266 + $0x4] sm:$0x3] %vm5124, %v5075
        %5126 = vst.msk [vmem:[%s266 + $0x8] sm:$0xf] %vm5122, %v5076
        %5127 = vst.msk [vmem:[%s266 + $0xc] sm:$0x3] %vm5124, %v5077
        %5128 = vst.msk [vmem:[%s266 + $0x10] sm:$0xf] %vm5122, %v5078
        %5129 = vst.msk [vmem:[%s266 + $0x14] sm:$0x3] %vm5124, %v5079
        %5130 = vst.msk [vmem:[%s266 + $0x18] sm:$0xf] %vm5122, %v5080
        %5131 = vst.msk [vmem:[%s266 + $0x1c] sm:$0x3] %vm5124, %v5081
        %5132 = vst.msk [vmem:[%s266 + $0x20] sm:$0xf] %vm5122, %v5082
        %5133 = vst.msk [vmem:[%s266 + $0x24] sm:$0x3] %vm5124, %v5083
        %5134 = vst.msk [vmem:[%s266 + $0x28] sm:$0xf] %vm5122, %v5084
        %5135 = vst.msk [vmem:[%s266 + $0x2c] sm:$0x3] %vm5124, %v5085
        %5136 = vst.msk [vmem:[%s266 + $0x30] sm:$0xf] %vm5122, %v5086
        %5137 = vst.msk [vmem:[%s266 + $0x34] sm:$0x3] %vm5124, %v5087
        %5138 = vst.msk [vmem:[%s266 + $0x38] sm:$0xf] %vm5122, %v5088
        %5139 = vst.msk [vmem:[%s266 + $0x3c] sm:$0x3] %vm5124, %v5089
        %5140 = vst.msk [vmem:[%s266 + $0x40] sm:$0xf] %vm5122, %v5090
        %5141 = vst.msk [vmem:[%s266 + $0x44] sm:$0x3] %vm5124, %v5091
        %5142 = vst.msk [vmem:[%s266 + $0x48] sm:$0xf] %vm5122, %v5092
        %5143 = vst.msk [vmem:[%s266 + $0x4c] sm:$0x3] %vm5124, %v5093
        %5144 = vst.msk [vmem:[%s266 + $0x50] sm:$0xf] %vm5122, %v5094
        %5145 = vst.msk [vmem:[%s266 + $0x54] sm:$0x3] %vm5124, %v5095
        %5146 = vst.msk [vmem:[%s266 + $0x58] sm:$0xf] %vm5122, %v5096
        %5147 = vst.msk [vmem:[%s266 + $0x5c] sm:$0x3] %vm5124, %v5097
        %p5148 = scmp.lt.s32.totalorder %s18, 1
        %s5149 = scalar_select %p5148, %s18, 1
        %s5150 = smul.addr %s5149, 24
        %s5151 = smul.addr %s5150, 4
        %s5152 = scalar_lea.vmem %s5, %s5151
        // Predicated region
        $region53: #{basic_net_forward.2} parent=39 // pred_check
          %p5153 = pneg %p146
        $region54: #{basic_net_forward.2} parent=39 // pred_check_branch
          %5155 = sbr.rel (%p5153) target = $region56
        $region55: #{basic_net_forward.2} parent=39 // pred_region
          _
        $region56: #{basic_net_forward.2} parent=39 // pred_fallthru
          _
      $region40: #{basic_net_forward.2} parent=5 // pred_fallthru
        _
      %p5156 = scmp.le.s32.totalorder 2, %s13
      // Predicated region
      $region57: #{basic_net_forward.2} parent=5 // pred_check
        %p5157 = pneg %p5156
      $region58: #{basic_net_forward.2} parent=5 // pred_check_branch
        %5159 = sbr.rel (%p5157) target = $region60
      $region59: #{basic_net_forward.2} parent=5 // pred_region
        %s5160 = ssub.s32 %s13, 2
        // Predicated region
        $region61: #{basic_net_forward.2} parent=59 // pred_check
          %p5161 = pneg %p152
        $region62: #{basic_net_forward.2} parent=59 // pred_check_branch
          %5163 = sbr.rel (%p5161) target = $region64
        $region63: #{basic_net_forward.2} parent=59 // pred_region
          %p5164 = scmp.lt.s32.totalorder %s19, 1
          %s5165 = scalar_select %p5164, %s19, 1
          %s5166 = smul.addr %s5165, 24
          %s5167 = smul.addr %s5166, 4
          %s5168 = scalar_lea.vmem %s5, %s5167
        $region64: #{basic_net_forward.2} parent=59 // pred_fallthru
          _
      $region60: #{basic_net_forward.2} parent=5 // pred_fallthru
        _
    $region6: #{basic_net_forward.2} parent=1 // loop_footer
      %s17 = sadd.s32 1, %s13
    $region7: #{basic_net_forward.2} parent=1 // loop_footer_branch
      %12 = sbr.rel target = $region3
    $region8: #{basic_net_forward.2} parent=1 // loop_exit
      _
    %5169 = vsyncpa [#allocation6], 1
    %s5170 = scalar_lea.sflag [#allocation6], 1
    %5171 = vsyncpa %s5170, 1
    %5172 = vsyncpa [#allocation8], 1

// kernel: basic_net_forward.3
$region0: #{basic_net_forward.3}
  #allocation0 [shape = 'u32[]', space=smem, size = 0x4, offset = 0x4, fixed_abs, tag = 'smem constant byte address 0x4 - core index']
  #allocation1 [shape = 'u32[144,128]{1,0:T(1,128)}', space=vmem, size = 0x12000, scoped, tag = 'internal scratch']
  %s0 = inlined_call_operand.vmem [shape: bf16[2,9216], index: 0, kind: input, shape index: {}]
  %s1 = inlined_call_operand.vmem [shape: bf16[9216,128], index: 1, kind: input, shape index: {}]
  %s2 = inlined_call_operand.vmem [shape: f32[1,128], index: 2, kind: input, shape index: {}]
  %s3 = inlined_call_operand.vmem [shape: bf16[128,128], index: 3, kind: input, shape index: {}]
  %s4 = inlined_call_operand.vmem [shape: f32[1,128], index: 4, kind: input, shape index: {}]
  %s5 = inlined_call_operand.hbm [shape: f32[2,128], index: 5, kind: output, shape index: {}]
  %s6 = sld [smem:[#allocation0]]
  $region30: #{basic_net_forward.3} parent=0
    _
  %s8 = ssub.s32 1, %s6
  %s9 = scalar_select 0, %s8, %s6
  $region1: #{basic_net_forward.3} parent=0
    #allocation2 [shape = 'u8[1024]{0}', space=vmem, size = 0x400, scoped, tag = 'output window, operand 0, single buffered']
    #allocation3 [shape = 's32[1]{0}', space=sflag, size = 0x4, scoped, tag = 'scoped memory for basic_net_forward.3']
    %10 = vsyncpa [#allocation3], 0
    // Predicated region
    $region2: #{basic_net_forward.3} parent=1 // pred_check
      _
    $region3: #{basic_net_forward.3} parent=1 // pred_check_branch
      %12 = sbr.rel (0) target = $region5
    $region4: #{basic_net_forward.3} parent=1 // pred_region
      _
    $region5: #{basic_net_forward.3} parent=1 // pred_fallthru
      _
    // Predicated region
    $region6: #{basic_net_forward.3} parent=1 // pred_check
      _
    $region7: #{basic_net_forward.3} parent=1 // pred_check_branch
      %14 = sbr.rel (0) target = $region9
    $region8: #{basic_net_forward.3} parent=1 // pred_region
      _
    $region9: #{basic_net_forward.3} parent=1 // pred_fallthru
      _
    // Predicated region
    $region10: #{basic_net_forward.3} parent=1 // pred_check
      _
    $region11: #{basic_net_forward.3} parent=1 // pred_check_branch
      %16 = sbr.rel (0) target = $region13
    $region12: #{basic_net_forward.3} parent=1 // pred_region
      _
    $region13: #{basic_net_forward.3} parent=1 // pred_fallthru
      _
    // Predicated region
    $region14: #{basic_net_forward.3} parent=1 // pred_check
      _
    $region15: #{basic_net_forward.3} parent=1 // pred_check_branch
      %18 = sbr.rel (0) target = $region17
    $region16: #{basic_net_forward.3} parent=1 // pred_region
      _
    $region17: #{basic_net_forward.3} parent=1 // pred_fallthru
      _
    // Predicated region
    $region18: #{basic_net_forward.3} parent=1 // pred_check
      _
    $region19: #{basic_net_forward.3} parent=1 // pred_check_branch
      %20 = sbr.rel (0) target = $region21
    $region20: #{basic_net_forward.3} parent=1 // pred_region
      _
    $region21: #{basic_net_forward.3} parent=1 // pred_fallthru
      _
    %v22 = vld [vmem:[%s0] sm:$0xff]
    %v23 = vld [vmem:[%s0 + $0x8] sm:$0xff]
    %v24 = vld [vmem:[%s0 + $0x10] sm:$0xff]
    %v25 = vld [vmem:[%s0 + $0x18] sm:$0xff]
    %v26 = vld [vmem:[%s0 + $0x20] sm:$0xff]
    %v27 = vld [vmem:[%s0 + $0x28] sm:$0xff]
    %v28 = vld [vmem:[%s0 + $0x30] sm:$0xff]
    %v29 = vld [vmem:[%s0 + $0x38] sm:$0xff]
    %v30 = vld [vmem:[%s0 + $0x40] sm:$0xff]
    %v31 = vld [vmem:[%s1] sm:$0xf]
    %v32 = vld [vmem:[%s1 + $0x4] sm:$0xf]
    %v33 = vld [vmem:[%s1 + $0x8] sm:$0xf]
    %v34 = vld [vmem:[%s1 + $0xc] sm:$0xf]
    %v35 = vld [vmem:[%s1 + $0x10] sm:$0xf]
    %v36 = vld [vmem:[%s1 + $0x14] sm:$0xf]
    %v37 = vld [vmem:[%s1 + $0x18] sm:$0xf]
    %v38 = vld [vmem:[%s1 + $0x1c] sm:$0xf]
    %v39 = vld [vmem:[%s1 + $0x20] sm:$0xf]
    %v40 = vld [vmem:[%s1 + $0x24] sm:$0xf]
    %v41 = vld [vmem:[%s1 + $0x28] sm:$0xf]
    %v42 = vld [vmem:[%s1 + $0x2c] sm:$0xf]
    %v43 = vld [vmem:[%s1 + $0x30] sm:$0xf]
    %v44 = vld [vmem:[%s1 + $0x34] sm:$0xf]
    %v45 = vld [vmem:[%s1 + $0x38] sm:$0xf]
    %v46 = vld [vmem:[%s1 + $0x3c] sm:$0xf]
    %v47 = vld [vmem:[%s1 + $0x40] sm:$0xf]
    %v48 = vld [vmem:[%s1 + $0x44] sm:$0xf]
    %v49 = vld [vmem:[%s1 + $0x48] sm:$0xf]
    %v50 = vld [vmem:[%s1 + $0x4c] sm:$0xf]
    %v51 = vld [vmem:[%s1 + $0x50] sm:$0xf]
    %v52 = vld [vmem:[%s1 + $0x54] sm:$0xf]
    %v53 = vld [vmem:[%s1 + $0x58] sm:$0xf]
    %v54 = vld [vmem:[%s1 + $0x5c] sm:$0xf]
    %v55 = vld [vmem:[%s1 + $0x60] sm:$0xf]
    %v56 = vld [vmem:[%s1 + $0x64] sm:$0xf]
    %v57 = vld [vmem:[%s1 + $0x68] sm:$0xf]
    %v58 = vld [vmem:[%s1 + $0x6c] sm:$0xf]
    %v59 = vld [vmem:[%s1 + $0x70] sm:$0xf]
    %v60 = vld [vmem:[%s1 + $0x74] sm:$0xf]
    %v61 = vld [vmem:[%s1 + $0x78] sm:$0xf]
    %v62 = vld [vmem:[%s1 + $0x7c] sm:$0xf]
    %v63 = vld [vmem:[%s1 + $0x80] sm:$0xf]
    %v64 = vld [vmem:[%s1 + $0x84] sm:$0xf]
    %v65 = vld [vmem:[%s1 + $0x88] sm:$0xf]
    %v66 = vld [vmem:[%s1 + $0x8c] sm:$0xf]
    %v67 = vld [vmem:[%s1 + $0x90] sm:$0xf]
    %v68 = vld [vmem:[%s1 + $0x94] sm:$0xf]
    %v69 = vld [vmem:[%s1 + $0x98] sm:$0xf]
    %v70 = vld [vmem:[%s1 + $0x9c] sm:$0xf]
    %v71 = vld [vmem:[%s1 + $0xa0] sm:$0xf]
    %v72 = vld [vmem:[%s1 + $0xa4] sm:$0xf]
    %v73 = vld [vmem:[%s1 + $0xa8] sm:$0xf]
    %v74 = vld [vmem:[%s1 + $0xac] sm:$0xf]
    %v75 = vld [vmem:[%s1 + $0xb0] sm:$0xf]
    %v76 = vld [vmem:[%s1 + $0xb4] sm:$0xf]
    %v77 = vld [vmem:[%s1 + $0xb8] sm:$0xf]
    %v78 = vld [vmem:[%s1 + $0xbc] sm:$0xf]
    %v79 = vld [vmem:[%s1 + $0xc0] sm:$0xf]
    %v80 = vld [vmem:[%s1 + $0xc4] sm:$0xf]
    %v81 = vld [vmem:[%s1 + $0xc8] sm:$0xf]
    %v82 = vld [vmem:[%s1 + $0xcc] sm:$0xf]
    %v83 = vld [vmem:[%s1 + $0xd0] sm:$0xf]
    %v84 = vld [vmem:[%s1 + $0xd4] sm:$0xf]
    %v85 = vld [vmem:[%s1 + $0xd8] sm:$0xf]
    %v86 = vld [vmem:[%s1 + $0xdc] sm:$0xf]
    %v87 = vld [vmem:[%s1 + $0xe0] sm:$0xf]
    %v88 = vld [vmem:[%s1 + $0xe4] sm:$0xf]
    %v89 = vld [vmem:[%s1 + $0xe8] sm:$0xf]
    %v90 = vld [vmem:[%s1 + $0xec] sm:$0xf]
    %v91 = vld [vmem:[%s1 + $0xf0] sm:$0xf]
    %v92 = vld [vmem:[%s1 + $0xf4] sm:$0xf]
    %v93 = vld [vmem:[%s1 + $0xf8] sm:$0xf]
    %v94 = vld [vmem:[%s1 + $0xfc] sm:$0xf]
    %v95 = vld [vmem:[%s1 + $0x100] sm:$0xf]
    %v96 = vld [vmem:[%s1 + $0x104] sm:$0xf]
    %v97 = vld [vmem:[%s1 + $0x108] sm:$0xf]
    %v98 = vld [vmem:[%s1 + $0x10c] sm:$0xf]
    %v99 = vld [vmem:[%s1 + $0x110] sm:$0xf]
    %v100 = vld [vmem:[%s1 + $0x114] sm:$0xf]
    %v101 = vld [vmem:[%s1 + $0x118] sm:$0xf]
    %v102 = vld [vmem:[%s1 + $0x11c] sm:$0xf]
    %v103 = vld [vmem:[%s1 + $0x120] sm:$0xf]
    %v104 = vld [vmem:[%s1 + $0x124] sm:$0xf]
    %v105 = vld [vmem:[%s1 + $0x128] sm:$0xf]
    %v106 = vld [vmem:[%s1 + $0x12c] sm:$0xf]
    %v107 = vld [vmem:[%s1 + $0x130] sm:$0xf]
    %v108 = vld [vmem:[%s1 + $0x134] sm:$0xf]
    %v109 = vld [vmem:[%s1 + $0x138] sm:$0xf]
    %v110 = vld [vmem:[%s1 + $0x13c] sm:$0xf]
    %v111 = vld [vmem:[%s1 + $0x140] sm:$0xf]
    %v112 = vld [vmem:[%s1 + $0x144] sm:$0xf]
    %v113 = vld [vmem:[%s1 + $0x148] sm:$0xf]
    %v114 = vld [vmem:[%s1 + $0x14c] sm:$0xf]
    %v115 = vld [vmem:[%s1 + $0x150] sm:$0xf]
    %v116 = vld [vmem:[%s1 + $0x154] sm:$0xf]
    %v117 = vld [vmem:[%s1 + $0x158] sm:$0xf]
    %v118 = vld [vmem:[%s1 + $0x15c] sm:$0xf]
    %v119 = vld [vmem:[%s1 + $0x160] sm:$0xf]
    %v120 = vld [vmem:[%s1 + $0x164] sm:$0xf]
    %v121 = vld [vmem:[%s1 + $0x168] sm:$0xf]
    %v122 = vld [vmem:[%s1 + $0x16c] sm:$0xf]
    %v123 = vld [vmem:[%s1 + $0x170] sm:$0xf]
    %v124 = vld [vmem:[%s1 + $0x174] sm:$0xf]
    %v125 = vld [vmem:[%s1 + $0x178] sm:$0xf]
    %v126 = vld [vmem:[%s1 + $0x17c] sm:$0xf]
    %v127 = vld [vmem:[%s1 + $0x180] sm:$0xf]
    %v128 = vld [vmem:[%s1 + $0x184] sm:$0xf]
    %v129 = vld [vmem:[%s1 + $0x188] sm:$0xf]
    %v130 = vld [vmem:[%s1 + $0x18c] sm:$0xf]
    %v131 = vld [vmem:[%s1 + $0x190] sm:$0xf]
    %v132 = vld [vmem:[%s1 + $0x194] sm:$0xf]
    %v133 = vld [vmem:[%s1 + $0x198] sm:$0xf]
    %v134 = vld [vmem:[%s1 + $0x19c] sm:$0xf]
    %v135 = vld [vmem:[%s1 + $0x1a0] sm:$0xf]
    %v136 = vld [vmem:[%s1 + $0x1a4] sm:$0xf]
    %v137 = vld [vmem:[%s1 + $0x1a8] sm:$0xf]
    %v138 = vld [vmem:[%s1 + $0x1ac] sm:$0xf]
    %v139 = vld [vmem:[%s1 + $0x1b0] sm:$0xf]
    %v140 = vld [vmem:[%s1 + $0x1b4] sm:$0xf]
    %v141 = vld [vmem:[%s1 + $0x1b8] sm:$0xf]
    %v142 = vld [vmem:[%s1 + $0x1bc] sm:$0xf]
    %v143 = vld [vmem:[%s1 + $0x1c0] sm:$0xf]
    %v144 = vld [vmem:[%s1 + $0x1c4] sm:$0xf]
    %v145 = vld [vmem:[%s1 + $0x1c8] sm:$0xf]
    %v146 = vld [vmem:[%s1 + $0x1cc] sm:$0xf]
    %v147 = vld [vmem:[%s1 + $0x1d0] sm:$0xf]
    %v148 = vld [vmem:[%s1 + $0x1d4] sm:$0xf]
    %v149 = vld [vmem:[%s1 + $0x1d8] sm:$0xf]
    %v150 = vld [vmem:[%s1 + $0x1dc] sm:$0xf]
    %v151 = vld [vmem:[%s1 + $0x1e0] sm:$0xf]
    %v152 = vld [vmem:[%s1 + $0x1e4] sm:$0xf]
    %v153 = vld [vmem:[%s1 + $0x1e8] sm:$0xf]
    %v154 = vld [vmem:[%s1 + $0x1ec] sm:$0xf]
    %v155 = vld [vmem:[%s1 + $0x1f0] sm:$0xf]
    %v156 = vld [vmem:[%s1 + $0x1f4] sm:$0xf]
    %v157 = vld [vmem:[%s1 + $0x1f8] sm:$0xf]
    %v158 = vld [vmem:[%s1 + $0x1fc] sm:$0xf]
    %v159 = vld [vmem:[%s1 + $0x200] sm:$0xf]
    %v160 = vld [vmem:[%s1 + $0x204] sm:$0xf]
    %v161 = vld [vmem:[%s1 + $0x208] sm:$0xf]
    %v162 = vld [vmem:[%s1 + $0x20c] sm:$0xf]
    %v163 = vld [vmem:[%s1 + $0x210] sm:$0xf]
    %v164 = vld [vmem:[%s1 + $0x214] sm:$0xf]
    %v165 = vld [vmem:[%s1 + $0x218] sm:$0xf]
    %v166 = vld [vmem:[%s1 + $0x21c] sm:$0xf]
    %v167 = vld [vmem:[%s1 + $0x220] sm:$0xf]
    %v168 = vld [vmem:[%s1 + $0x224] sm:$0xf]
    %v169 = vld [vmem:[%s1 + $0x228] sm:$0xf]
    %v170 = vld [vmem:[%s1 + $0x22c] sm:$0xf]
    %v171 = vld [vmem:[%s1 + $0x230] sm:$0xf]
    %v172 = vld [vmem:[%s1 + $0x234] sm:$0xf]
    %v173 = vld [vmem:[%s1 + $0x238] sm:$0xf]
    %v174 = vld [vmem:[%s1 + $0x23c] sm:$0xf]
    %v175 = vld [vmem:[%s1 + $0x240] sm:$0xf]
    %v176 = vld [vmem:[%s1 + $0x244] sm:$0xf]
    %v177 = vld [vmem:[%s1 + $0x248] sm:$0xf]
    %v178 = vld [vmem:[%s1 + $0x24c] sm:$0xf]
    %v179 = vld [vmem:[%s1 + $0x250] sm:$0xf]
    %v180 = vld [vmem:[%s1 + $0x254] sm:$0xf]
    %v181 = vld [vmem:[%s1 + $0x258] sm:$0xf]
    %v182 = vld [vmem:[%s1 + $0x25c] sm:$0xf]
    %v183 = vld [vmem:[%s1 + $0x260] sm:$0xf]
    %v184 = vld [vmem:[%s1 + $0x264] sm:$0xf]
    %v185 = vld [vmem:[%s1 + $0x268] sm:$0xf]
    %v186 = vld [vmem:[%s1 + $0x26c] sm:$0xf]
    %v187 = vld [vmem:[%s1 + $0x270] sm:$0xf]
    %v188 = vld [vmem:[%s1 + $0x274] sm:$0xf]
    %v189 = vld [vmem:[%s1 + $0x278] sm:$0xf]
    %v190 = vld [vmem:[%s1 + $0x27c] sm:$0xf]
    %v191 = vld [vmem:[%s1 + $0x280] sm:$0xf]
    %v192 = vld [vmem:[%s1 + $0x284] sm:$0xf]
    %v193 = vld [vmem:[%s1 + $0x288] sm:$0xf]
    %v194 = vld [vmem:[%s1 + $0x28c] sm:$0xf]
    %v195 = vld [vmem:[%s1 + $0x290] sm:$0xf]
    %v196 = vld [vmem:[%s1 + $0x294] sm:$0xf]
    %v197 = vld [vmem:[%s1 + $0x298] sm:$0xf]
    %v198 = vld [vmem:[%s1 + $0x29c] sm:$0xf]
    %v199 = vld [vmem:[%s1 + $0x2a0] sm:$0xf]
    %v200 = vld [vmem:[%s1 + $0x2a4] sm:$0xf]
    %v201 = vld [vmem:[%s1 + $0x2a8] sm:$0xf]
    %v202 = vld [vmem:[%s1 + $0x2ac] sm:$0xf]
    %v203 = vld [vmem:[%s1 + $0x2b0] sm:$0xf]
    %v204 = vld [vmem:[%s1 + $0x2b4] sm:$0xf]
    %v205 = vld [vmem:[%s1 + $0x2b8] sm:$0xf]
    %v206 = vld [vmem:[%s1 + $0x2bc] sm:$0xf]
    %v207 = vld [vmem:[%s1 + $0x2c0] sm:$0xf]
    %v208 = vld [vmem:[%s1 + $0x2c4] sm:$0xf]
    %v209 = vld [vmem:[%s1 + $0x2c8] sm:$0xf]
    %v210 = vld [vmem:[%s1 + $0x2cc] sm:$0xf]
    %v211 = vld [vmem:[%s1 + $0x2d0] sm:$0xf]
    %v212 = vld [vmem:[%s1 + $0x2d4] sm:$0xf]
    %v213 = vld [vmem:[%s1 + $0x2d8] sm:$0xf]
    %v214 = vld [vmem:[%s1 + $0x2dc] sm:$0xf]
    %v215 = vld [vmem:[%s1 + $0x2e0] sm:$0xf]
    %v216 = vld [vmem:[%s1 + $0x2e4] sm:$0xf]
    %v217 = vld [vmem:[%s1 + $0x2e8] sm:$0xf]
    %v218 = vld [vmem:[%s1 + $0x2ec] sm:$0xf]
    %v219 = vld [vmem:[%s1 + $0x2f0] sm:$0xf]
    %v220 = vld [vmem:[%s1 + $0x2f4] sm:$0xf]
    %v221 = vld [vmem:[%s1 + $0x2f8] sm:$0xf]
    %v222 = vld [vmem:[%s1 + $0x2fc] sm:$0xf]
    %v223 = vld [vmem:[%s1 + $0x300] sm:$0xf]
    %v224 = vld [vmem:[%s1 + $0x304] sm:$0xf]
    %v225 = vld [vmem:[%s1 + $0x308] sm:$0xf]
    %v226 = vld [vmem:[%s1 + $0x30c] sm:$0xf]
    %v227 = vld [vmem:[%s1 + $0x310] sm:$0xf]
    %v228 = vld [vmem:[%s1 + $0x314] sm:$0xf]
    %v229 = vld [vmem:[%s1 + $0x318] sm:$0xf]
    %v230 = vld [vmem:[%s1 + $0x31c] sm:$0xf]
    %v231 = vld [vmem:[%s1 + $0x320] sm:$0xf]
    %v232 = vld [vmem:[%s1 + $0x324] sm:$0xf]
    %v233 = vld [vmem:[%s1 + $0x328] sm:$0xf]
    %v234 = vld [vmem:[%s1 + $0x32c] sm:$0xf]
    %v235 = vld [vmem:[%s1 + $0x330] sm:$0xf]
    %v236 = vld [vmem:[%s1 + $0x334] sm:$0xf]
    %v237 = vld [vmem:[%s1 + $0x338] sm:$0xf]
    %v238 = vld [vmem:[%s1 + $0x33c] sm:$0xf]
    %v239 = vld [vmem:[%s1 + $0x340] sm:$0xf]
    %v240 = vld [vmem:[%s1 + $0x344] sm:$0xf]
    %v241 = vld [vmem:[%s1 + $0x348] sm:$0xf]
    %v242 = vld [vmem:[%s1 + $0x34c] sm:$0xf]
    %v243 = vld [vmem:[%s1 + $0x350] sm:$0xf]
    %v244 = vld [vmem:[%s1 + $0x354] sm:$0xf]
    %v245 = vld [vmem:[%s1 + $0x358] sm:$0xf]
    %v246 = vld [vmem:[%s1 + $0x35c] sm:$0xf]
    %v247 = vld [vmem:[%s1 + $0x360] sm:$0xf]
    %v248 = vld [vmem:[%s1 + $0x364] sm:$0xf]
    %v249 = vld [vmem:[%s1 + $0x368] sm:$0xf]
    %v250 = vld [vmem:[%s1 + $0x36c] sm:$0xf]
    %v251 = vld [vmem:[%s1 + $0x370] sm:$0xf]
    %v252 = vld [vmem:[%s1 + $0x374] sm:$0xf]
    %v253 = vld [vmem:[%s1 + $0x378] sm:$0xf]
    %v254 = vld [vmem:[%s1 + $0x37c] sm:$0xf]
    %v255 = vld [vmem:[%s1 + $0x380] sm:$0xf]
    %v256 = vld [vmem:[%s1 + $0x384] sm:$0xf]
    %v257 = vld [vmem:[%s1 + $0x388] sm:$0xf]
    %v258 = vld [vmem:[%s1 + $0x38c] sm:$0xf]
    %v259 = vld [vmem:[%s1 + $0x390] sm:$0xf]
    %v260 = vld [vmem:[%s1 + $0x394] sm:$0xf]
    %v261 = vld [vmem:[%s1 + $0x398] sm:$0xf]
    %v262 = vld [vmem:[%s1 + $0x39c] sm:$0xf]
    %v263 = vld [vmem:[%s1 + $0x3a0] sm:$0xf]
    %v264 = vld [vmem:[%s1 + $0x3a4] sm:$0xf]
    %v265 = vld [vmem:[%s1 + $0x3a8] sm:$0xf]
    %v266 = vld [vmem:[%s1 + $0x3ac] sm:$0xf]
    %v267 = vld [vmem:[%s1 + $0x3b0] sm:$0xf]
    %v268 = vld [vmem:[%s1 + $0x3b4] sm:$0xf]
    %v269 = vld [vmem:[%s1 + $0x3b8] sm:$0xf]
    %v270 = vld [vmem:[%s1 + $0x3bc] sm:$0xf]
    %v271 = vld [vmem:[%s1 + $0x3c0] sm:$0xf]
    %v272 = vld [vmem:[%s1 + $0x3c4] sm:$0xf]
    %v273 = vld [vmem:[%s1 + $0x3c8] sm:$0xf]
    %v274 = vld [vmem:[%s1 + $0x3cc] sm:$0xf]
    %v275 = vld [vmem:[%s1 + $0x3d0] sm:$0xf]
    %v276 = vld [vmem:[%s1 + $0x3d4] sm:$0xf]
    %v277 = vld [vmem:[%s1 + $0x3d8] sm:$0xf]
    %v278 = vld [vmem:[%s1 + $0x3dc] sm:$0xf]
    %v279 = vld [vmem:[%s1 + $0x3e0] sm:$0xf]
    %v280 = vld [vmem:[%s1 + $0x3e4] sm:$0xf]
    %v281 = vld [vmem:[%s1 + $0x3e8] sm:$0xf]
    %v282 = vld [vmem:[%s1 + $0x3ec] sm:$0xf]
    %v283 = vld [vmem:[%s1 + $0x3f0] sm:$0xf]
    %v284 = vld [vmem:[%s1 + $0x3f4] sm:$0xf]
    %v285 = vld [vmem:[%s1 + $0x3f8] sm:$0xf]
    %v286 = vld [vmem:[%s1 + $0x3fc] sm:$0xf]
    %v287 = vld [vmem:[%s1 + $0x400] sm:$0xf]
    %v288 = vld [vmem:[%s1 + $0x404] sm:$0xf]
    %v289 = vld [vmem:[%s1 + $0x408] sm:$0xf]
    %v290 = vld [vmem:[%s1 + $0x40c] sm:$0xf]
    %v291 = vld [vmem:[%s1 + $0x410] sm:$0xf]
    %v292 = vld [vmem:[%s1 + $0x414] sm:$0xf]
    %v293 = vld [vmem:[%s1 + $0x418] sm:$0xf]
    %v294 = vld [vmem:[%s1 + $0x41c] sm:$0xf]
    %v295 = vld [vmem:[%s1 + $0x420] sm:$0xf]
    %v296 = vld [vmem:[%s1 + $0x424] sm:$0xf]
    %v297 = vld [vmem:[%s1 + $0x428] sm:$0xf]
    %v298 = vld [vmem:[%s1 + $0x42c] sm:$0xf]
    %v299 = vld [vmem:[%s1 + $0x430] sm:$0xf]
    %v300 = vld [vmem:[%s1 + $0x434] sm:$0xf]
    %v301 = vld [vmem:[%s1 + $0x438] sm:$0xf]
    %v302 = vld [vmem:[%s1 + $0x43c] sm:$0xf]
    %v303 = vld [vmem:[%s1 + $0x440] sm:$0xf]
    %v304 = vld [vmem:[%s1 + $0x444] sm:$0xf]
    %v305 = vld [vmem:[%s1 + $0x448] sm:$0xf]
    %v306 = vld [vmem:[%s1 + $0x44c] sm:$0xf]
    %v307 = vld [vmem:[%s1 + $0x450] sm:$0xf]
    %v308 = vld [vmem:[%s1 + $0x454] sm:$0xf]
    %v309 = vld [vmem:[%s1 + $0x458] sm:$0xf]
    %v310 = vld [vmem:[%s1 + $0x45c] sm:$0xf]
    %v311 = vld [vmem:[%s1 + $0x460] sm:$0xf]
    %v312 = vld [vmem:[%s1 + $0x464] sm:$0xf]
    %v313 = vld [vmem:[%s1 + $0x468] sm:$0xf]
    %v314 = vld [vmem:[%s1 + $0x46c] sm:$0xf]
    %v315 = vld [vmem:[%s1 + $0x470] sm:$0xf]
    %v316 = vld [vmem:[%s1 + $0x474] sm:$0xf]
    %v317 = vld [vmem:[%s1 + $0x478] sm:$0xf]
    %v318 = vld [vmem:[%s1 + $0x47c] sm:$0xf]
    %v319 = vld [vmem:[%s1 + $0x480] sm:$0xf]
    %v320 = vld [vmem:[%s1 + $0x484] sm:$0xf]
    %v321 = vld [vmem:[%s1 + $0x488] sm:$0xf]
    %v322 = vld [vmem:[%s1 + $0x48c] sm:$0xf]
    %v323 = vld [vmem:[%s1 + $0x490] sm:$0xf]
    %v324 = vld [vmem:[%s1 + $0x494] sm:$0xf]
    %v325 = vld [vmem:[%s1 + $0x498] sm:$0xf]
    %v326 = vld [vmem:[%s1 + $0x49c] sm:$0xf]
    %v327 = vld [vmem:[%s1 + $0x4a0] sm:$0xf]
    %v328 = vld [vmem:[%s1 + $0x4a4] sm:$0xf]
    %v329 = vld [vmem:[%s1 + $0x4a8] sm:$0xf]
    %v330 = vld [vmem:[%s1 + $0x4ac] sm:$0xf]
    %v331 = vld [vmem:[%s1 + $0x4b0] sm:$0xf]
    %v332 = vld [vmem:[%s1 + $0x4b4] sm:$0xf]
    %v333 = vld [vmem:[%s1 + $0x4b8] sm:$0xf]
    %v334 = vld [vmem:[%s1 + $0x4bc] sm:$0xf]
    %v335 = vld [vmem:[%s1 + $0x4c0] sm:$0xf]
    %v336 = vld [vmem:[%s1 + $0x4c4] sm:$0xf]
    %v337 = vld [vmem:[%s1 + $0x4c8] sm:$0xf]
    %v338 = vld [vmem:[%s1 + $0x4cc] sm:$0xf]
    %v339 = vld [vmem:[%s1 + $0x4d0] sm:$0xf]
    %v340 = vld [vmem:[%s1 + $0x4d4] sm:$0xf]
    %v341 = vld [vmem:[%s1 + $0x4d8] sm:$0xf]
    %v342 = vld [vmem:[%s1 + $0x4dc] sm:$0xf]
    %v343 = vld [vmem:[%s1 + $0x4e0] sm:$0xf]
    %v344 = vld [vmem:[%s1 + $0x4e4] sm:$0xf]
    %v345 = vld [vmem:[%s1 + $0x4e8] sm:$0xf]
    %v346 = vld [vmem:[%s1 + $0x4ec] sm:$0xf]
    %v347 = vld [vmem:[%s1 + $0x4f0] sm:$0xf]
    %v348 = vld [vmem:[%s1 + $0x4f4] sm:$0xf]
    %v349 = vld [vmem:[%s1 + $0x4f8] sm:$0xf]
    %v350 = vld [vmem:[%s1 + $0x4fc] sm:$0xf]
    %v351 = vld [vmem:[%s1 + $0x500] sm:$0xf]
    %v352 = vld [vmem:[%s1 + $0x504] sm:$0xf]
    %v353 = vld [vmem:[%s1 + $0x508] sm:$0xf]
    %v354 = vld [vmem:[%s1 + $0x50c] sm:$0xf]
    %v355 = vld [vmem:[%s1 + $0x510] sm:$0xf]
    %v356 = vld [vmem:[%s1 + $0x514] sm:$0xf]
    %v357 = vld [vmem:[%s1 + $0x518] sm:$0xf]
    %v358 = vld [vmem:[%s1 + $0x51c] sm:$0xf]
    %v359 = vld [vmem:[%s1 + $0x520] sm:$0xf]
    %v360 = vld [vmem:[%s1 + $0x524] sm:$0xf]
    %v361 = vld [vmem:[%s1 + $0x528] sm:$0xf]
    %v362 = vld [vmem:[%s1 + $0x52c] sm:$0xf]
    %v363 = vld [vmem:[%s1 + $0x530] sm:$0xf]
    %v364 = vld [vmem:[%s1 + $0x534] sm:$0xf]
    %v365 = vld [vmem:[%s1 + $0x538] sm:$0xf]
    %v366 = vld [vmem:[%s1 + $0x53c] sm:$0xf]
    %v367 = vld [vmem:[%s1 + $0x540] sm:$0xf]
    %v368 = vld [vmem:[%s1 + $0x544] sm:$0xf]
    %v369 = vld [vmem:[%s1 + $0x548] sm:$0xf]
    %v370 = vld [vmem:[%s1 + $0x54c] sm:$0xf]
    %v371 = vld [vmem:[%s1 + $0x550] sm:$0xf]
    %v372 = vld [vmem:[%s1 + $0x554] sm:$0xf]
    %v373 = vld [vmem:[%s1 + $0x558] sm:$0xf]
    %v374 = vld [vmem:[%s1 + $0x55c] sm:$0xf]
    %v375 = vld [vmem:[%s1 + $0x560] sm:$0xf]
    %v376 = vld [vmem:[%s1 + $0x564] sm:$0xf]
    %v377 = vld [vmem:[%s1 + $0x568] sm:$0xf]
    %v378 = vld [vmem:[%s1 + $0x56c] sm:$0xf]
    %v379 = vld [vmem:[%s1 + $0x570] sm:$0xf]
    %v380 = vld [vmem:[%s1 + $0x574] sm:$0xf]
    %v381 = vld [vmem:[%s1 + $0x578] sm:$0xf]
    %v382 = vld [vmem:[%s1 + $0x57c] sm:$0xf]
    %v383 = vld [vmem:[%s1 + $0x580] sm:$0xf]
    %v384 = vld [vmem:[%s1 + $0x584] sm:$0xf]
    %v385 = vld [vmem:[%s1 + $0x588] sm:$0xf]
    %v386 = vld [vmem:[%s1 + $0x58c] sm:$0xf]
    %v387 = vld [vmem:[%s1 + $0x590] sm:$0xf]
    %v388 = vld [vmem:[%s1 + $0x594] sm:$0xf]
    %v389 = vld [vmem:[%s1 + $0x598] sm:$0xf]
    %v390 = vld [vmem:[%s1 + $0x59c] sm:$0xf]
    %v391 = vld [vmem:[%s1 + $0x5a0] sm:$0xf]
    %v392 = vld [vmem:[%s1 + $0x5a4] sm:$0xf]
    %v393 = vld [vmem:[%s1 + $0x5a8] sm:$0xf]
    %v394 = vld [vmem:[%s1 + $0x5ac] sm:$0xf]
    %v395 = vld [vmem:[%s1 + $0x5b0] sm:$0xf]
    %v396 = vld [vmem:[%s1 + $0x5b4] sm:$0xf]
    %v397 = vld [vmem:[%s1 + $0x5b8] sm:$0xf]
    %v398 = vld [vmem:[%s1 + $0x5bc] sm:$0xf]
    %v399 = vld [vmem:[%s1 + $0x5c0] sm:$0xf]
    %v400 = vld [vmem:[%s1 + $0x5c4] sm:$0xf]
    %v401 = vld [vmem:[%s1 + $0x5c8] sm:$0xf]
    %v402 = vld [vmem:[%s1 + $0x5cc] sm:$0xf]
    %v403 = vld [vmem:[%s1 + $0x5d0] sm:$0xf]
    %v404 = vld [vmem:[%s1 + $0x5d4] sm:$0xf]
    %v405 = vld [vmem:[%s1 + $0x5d8] sm:$0xf]
    %v406 = vld [vmem:[%s1 + $0x5dc] sm:$0xf]
    %v407 = vld [vmem:[%s1 + $0x5e0] sm:$0xf]
    %v408 = vld [vmem:[%s1 + $0x5e4] sm:$0xf]
    %v409 = vld [vmem:[%s1 + $0x5e8] sm:$0xf]
    %v410 = vld [vmem:[%s1 + $0x5ec] sm:$0xf]
    %v411 = vld [vmem:[%s1 + $0x5f0] sm:$0xf]
    %v412 = vld [vmem:[%s1 + $0x5f4] sm:$0xf]
    %v413 = vld [vmem:[%s1 + $0x5f8] sm:$0xf]
    %v414 = vld [vmem:[%s1 + $0x5fc] sm:$0xf]
    %v415 = vld [vmem:[%s1 + $0x600] sm:$0xf]
    %v416 = vld [vmem:[%s1 + $0x604] sm:$0xf]
    %v417 = vld [vmem:[%s1 + $0x608] sm:$0xf]
    %v418 = vld [vmem:[%s1 + $0x60c] sm:$0xf]
    %v419 = vld [vmem:[%s1 + $0x610] sm:$0xf]
    %v420 = vld [vmem:[%s1 + $0x614] sm:$0xf]
    %v421 = vld [vmem:[%s1 + $0x618] sm:$0xf]
    %v422 = vld [vmem:[%s1 + $0x61c] sm:$0xf]
    %v423 = vld [vmem:[%s1 + $0x620] sm:$0xf]
    %v424 = vld [vmem:[%s1 + $0x624] sm:$0xf]
    %v425 = vld [vmem:[%s1 + $0x628] sm:$0xf]
    %v426 = vld [vmem:[%s1 + $0x62c] sm:$0xf]
    %v427 = vld [vmem:[%s1 + $0x630] sm:$0xf]
    %v428 = vld [vmem:[%s1 + $0x634] sm:$0xf]
    %v429 = vld [vmem:[%s1 + $0x638] sm:$0xf]
    %v430 = vld [vmem:[%s1 + $0x63c] sm:$0xf]
    %v431 = vld [vmem:[%s1 + $0x640] sm:$0xf]
    %v432 = vld [vmem:[%s1 + $0x644] sm:$0xf]
    %v433 = vld [vmem:[%s1 + $0x648] sm:$0xf]
    %v434 = vld [vmem:[%s1 + $0x64c] sm:$0xf]
    %v435 = vld [vmem:[%s1 + $0x650] sm:$0xf]
    %v436 = vld [vmem:[%s1 + $0x654] sm:$0xf]
    %v437 = vld [vmem:[%s1 + $0x658] sm:$0xf]
    %v438 = vld [vmem:[%s1 + $0x65c] sm:$0xf]
    %v439 = vld [vmem:[%s1 + $0x660] sm:$0xf]
    %v440 = vld [vmem:[%s1 + $0x664] sm:$0xf]
    %v441 = vld [vmem:[%s1 + $0x668] sm:$0xf]
    %v442 = vld [vmem:[%s1 + $0x66c] sm:$0xf]
    %v443 = vld [vmem:[%s1 + $0x670] sm:$0xf]
    %v444 = vld [vmem:[%s1 + $0x674] sm:$0xf]
    %v445 = vld [vmem:[%s1 + $0x678] sm:$0xf]
    %v446 = vld [vmem:[%s1 + $0x67c] sm:$0xf]
    %v447 = vld [vmem:[%s1 + $0x680] sm:$0xf]
    %v448 = vld [vmem:[%s1 + $0x684] sm:$0xf]
    %v449 = vld [vmem:[%s1 + $0x688] sm:$0xf]
    %v450 = vld [vmem:[%s1 + $0x68c] sm:$0xf]
    %v451 = vld [vmem:[%s1 + $0x690] sm:$0xf]
    %v452 = vld [vmem:[%s1 + $0x694] sm:$0xf]
    %v453 = vld [vmem:[%s1 + $0x698] sm:$0xf]
    %v454 = vld [vmem:[%s1 + $0x69c] sm:$0xf]
    %v455 = vld [vmem:[%s1 + $0x6a0] sm:$0xf]
    %v456 = vld [vmem:[%s1 + $0x6a4] sm:$0xf]
    %v457 = vld [vmem:[%s1 + $0x6a8] sm:$0xf]
    %v458 = vld [vmem:[%s1 + $0x6ac] sm:$0xf]
    %v459 = vld [vmem:[%s1 + $0x6b0] sm:$0xf]
    %v460 = vld [vmem:[%s1 + $0x6b4] sm:$0xf]
    %v461 = vld [vmem:[%s1 + $0x6b8] sm:$0xf]
    %v462 = vld [vmem:[%s1 + $0x6bc] sm:$0xf]
    %v463 = vld [vmem:[%s1 + $0x6c0] sm:$0xf]
    %v464 = vld [vmem:[%s1 + $0x6c4] sm:$0xf]
    %v465 = vld [vmem:[%s1 + $0x6c8] sm:$0xf]
    %v466 = vld [vmem:[%s1 + $0x6cc] sm:$0xf]
    %v467 = vld [vmem:[%s1 + $0x6d0] sm:$0xf]
    %v468 = vld [vmem:[%s1 + $0x6d4] sm:$0xf]
    %v469 = vld [vmem:[%s1 + $0x6d8] sm:$0xf]
    %v470 = vld [vmem:[%s1 + $0x6dc] sm:$0xf]
    %v471 = vld [vmem:[%s1 + $0x6e0] sm:$0xf]
    %v472 = vld [vmem:[%s1 + $0x6e4] sm:$0xf]
    %v473 = vld [vmem:[%s1 + $0x6e8] sm:$0xf]
    %v474 = vld [vmem:[%s1 + $0x6ec] sm:$0xf]
    %v475 = vld [vmem:[%s1 + $0x6f0] sm:$0xf]
    %v476 = vld [vmem:[%s1 + $0x6f4] sm:$0xf]
    %v477 = vld [vmem:[%s1 + $0x6f8] sm:$0xf]
    %v478 = vld [vmem:[%s1 + $0x6fc] sm:$0xf]
    %v479 = vld [vmem:[%s1 + $0x700] sm:$0xf]
    %v480 = vld [vmem:[%s1 + $0x704] sm:$0xf]
    %v481 = vld [vmem:[%s1 + $0x708] sm:$0xf]
    %v482 = vld [vmem:[%s1 + $0x70c] sm:$0xf]
    %v483 = vld [vmem:[%s1 + $0x710] sm:$0xf]
    %v484 = vld [vmem:[%s1 + $0x714] sm:$0xf]
    %v485 = vld [vmem:[%s1 + $0x718] sm:$0xf]
    %v486 = vld [vmem:[%s1 + $0x71c] sm:$0xf]
    %v487 = vld [vmem:[%s1 + $0x720] sm:$0xf]
    %v488 = vld [vmem:[%s1 + $0x724] sm:$0xf]
    %v489 = vld [vmem:[%s1 + $0x728] sm:$0xf]
    %v490 = vld [vmem:[%s1 + $0x72c] sm:$0xf]
    %v491 = vld [vmem:[%s1 + $0x730] sm:$0xf]
    %v492 = vld [vmem:[%s1 + $0x734] sm:$0xf]
    %v493 = vld [vmem:[%s1 + $0x738] sm:$0xf]
    %v494 = vld [vmem:[%s1 + $0x73c] sm:$0xf]
    %v495 = vld [vmem:[%s1 + $0x740] sm:$0xf]
    %v496 = vld [vmem:[%s1 + $0x744] sm:$0xf]
    %v497 = vld [vmem:[%s1 + $0x748] sm:$0xf]
    %v498 = vld [vmem:[%s1 + $0x74c] sm:$0xf]
    %v499 = vld [vmem:[%s1 + $0x750] sm:$0xf]
    %v500 = vld [vmem:[%s1 + $0x754] sm:$0xf]
    %v501 = vld [vmem:[%s1 + $0x758] sm:$0xf]
    %v502 = vld [vmem:[%s1 + $0x75c] sm:$0xf]
    %v503 = vld [vmem:[%s1 + $0x760] sm:$0xf]
    %v504 = vld [vmem:[%s1 + $0x764] sm:$0xf]
    %v505 = vld [vmem:[%s1 + $0x768] sm:$0xf]
    %v506 = vld [vmem:[%s1 + $0x76c] sm:$0xf]
    %v507 = vld [vmem:[%s1 + $0x770] sm:$0xf]
    %v508 = vld [vmem:[%s1 + $0x774] sm:$0xf]
    %v509 = vld [vmem:[%s1 + $0x778] sm:$0xf]
    %v510 = vld [vmem:[%s1 + $0x77c] sm:$0xf]
    %v511 = vld [vmem:[%s1 + $0x780] sm:$0xf]
    %v512 = vld [vmem:[%s1 + $0x784] sm:$0xf]
    %v513 = vld [vmem:[%s1 + $0x788] sm:$0xf]
    %v514 = vld [vmem:[%s1 + $0x78c] sm:$0xf]
    %v515 = vld [vmem:[%s1 + $0x790] sm:$0xf]
    %v516 = vld [vmem:[%s1 + $0x794] sm:$0xf]
    %v517 = vld [vmem:[%s1 + $0x798] sm:$0xf]
    %v518 = vld [vmem:[%s1 + $0x79c] sm:$0xf]
    %v519 = vld [vmem:[%s1 + $0x7a0] sm:$0xf]
    %v520 = vld [vmem:[%s1 + $0x7a4] sm:$0xf]
    %v521 = vld [vmem:[%s1 + $0x7a8] sm:$0xf]
    %v522 = vld [vmem:[%s1 + $0x7ac] sm:$0xf]
    %v523 = vld [vmem:[%s1 + $0x7b0] sm:$0xf]
    %v524 = vld [vmem:[%s1 + $0x7b4] sm:$0xf]
    %v525 = vld [vmem:[%s1 + $0x7b8] sm:$0xf]
    %v526 = vld [vmem:[%s1 + $0x7bc] sm:$0xf]
    %v527 = vld [vmem:[%s1 + $0x7c0] sm:$0xf]
    %v528 = vld [vmem:[%s1 + $0x7c4] sm:$0xf]
    %v529 = vld [vmem:[%s1 + $0x7c8] sm:$0xf]
    %v530 = vld [vmem:[%s1 + $0x7cc] sm:$0xf]
    %v531 = vld [vmem:[%s1 + $0x7d0] sm:$0xf]
    %v532 = vld [vmem:[%s1 + $0x7d4] sm:$0xf]
    %v533 = vld [vmem:[%s1 + $0x7d8] sm:$0xf]
    %v534 = vld [vmem:[%s1 + $0x7dc] sm:$0xf]
    %v535 = vld [vmem:[%s1 + $0x7e0] sm:$0xf]
    %v536 = vld [vmem:[%s1 + $0x7e4] sm:$0xf]
    %v537 = vld [vmem:[%s1 + $0x7e8] sm:$0xf]
    %v538 = vld [vmem:[%s1 + $0x7ec] sm:$0xf]
    %v539 = vld [vmem:[%s1 + $0x7f0] sm:$0xf]
    %v540 = vld [vmem:[%s1 + $0x7f4] sm:$0xf]
    %v541 = vld [vmem:[%s1 + $0x7f8] sm:$0xf]
    %v542 = vld [vmem:[%s1 + $0x7fc] sm:$0xf]
    %v543 = vld [vmem:[%s1 + $0x800] sm:$0xf]
    %v544 = vld [vmem:[%s1 + $0x804] sm:$0xf]
    %v545 = vld [vmem:[%s1 + $0x808] sm:$0xf]
    %v546 = vld [vmem:[%s1 + $0x80c] sm:$0xf]
    %v547 = vld [vmem:[%s1 + $0x810] sm:$0xf]
    %v548 = vld [vmem:[%s1 + $0x814] sm:$0xf]
    %v549 = vld [vmem:[%s1 + $0x818] sm:$0xf]
    %v550 = vld [vmem:[%s1 + $0x81c] sm:$0xf]
    %v551 = vld [vmem:[%s1 + $0x820] sm:$0xf]
    %v552 = vld [vmem:[%s1 + $0x824] sm:$0xf]
    %v553 = vld [vmem:[%s1 + $0x828] sm:$0xf]
    %v554 = vld [vmem:[%s1 + $0x82c] sm:$0xf]
    %v555 = vld [vmem:[%s1 + $0x830] sm:$0xf]
    %v556 = vld [vmem:[%s1 + $0x834] sm:$0xf]
    %v557 = vld [vmem:[%s1 + $0x838] sm:$0xf]
    %v558 = vld [vmem:[%s1 + $0x83c] sm:$0xf]
    %v559 = vld [vmem:[%s1 + $0x840] sm:$0xf]
    %v560 = vld [vmem:[%s1 + $0x844] sm:$0xf]
    %v561 = vld [vmem:[%s1 + $0x848] sm:$0xf]
    %v562 = vld [vmem:[%s1 + $0x84c] sm:$0xf]
    %v563 = vld [vmem:[%s1 + $0x850] sm:$0xf]
    %v564 = vld [vmem:[%s1 + $0x854] sm:$0xf]
    %v565 = vld [vmem:[%s1 + $0x858] sm:$0xf]
    %v566 = vld [vmem:[%s1 + $0x85c] sm:$0xf]
    %v567 = vld [vmem:[%s1 + $0x860] sm:$0xf]
    %v568 = vld [vmem:[%s1 + $0x864] sm:$0xf]
    %v569 = vld [vmem:[%s1 + $0x868] sm:$0xf]
    %v570 = vld [vmem:[%s1 + $0x86c] sm:$0xf]
    %v571 = vld [vmem:[%s1 + $0x870] sm:$0xf]
    %v572 = vld [vmem:[%s1 + $0x874] sm:$0xf]
    %v573 = vld [vmem:[%s1 + $0x878] sm:$0xf]
    %v574 = vld [vmem:[%s1 + $0x87c] sm:$0xf]
    %v575 = vld [vmem:[%s1 + $0x880] sm:$0xf]
    %v576 = vld [vmem:[%s1 + $0x884] sm:$0xf]
    %v577 = vld [vmem:[%s1 + $0x888] sm:$0xf]
    %v578 = vld [vmem:[%s1 + $0x88c] sm:$0xf]
    %v579 = vld [vmem:[%s1 + $0x890] sm:$0xf]
    %v580 = vld [vmem:[%s1 + $0x894] sm:$0xf]
    %v581 = vld [vmem:[%s1 + $0x898] sm:$0xf]
    %v582 = vld [vmem:[%s1 + $0x89c] sm:$0xf]
    %v583 = vld [vmem:[%s1 + $0x8a0] sm:$0xf]
    %v584 = vld [vmem:[%s1 + $0x8a4] sm:$0xf]
    %v585 = vld [vmem:[%s1 + $0x8a8] sm:$0xf]
    %v586 = vld [vmem:[%s1 + $0x8ac] sm:$0xf]
    %v587 = vld [vmem:[%s1 + $0x8b0] sm:$0xf]
    %v588 = vld [vmem:[%s1 + $0x8b4] sm:$0xf]
    %v589 = vld [vmem:[%s1 + $0x8b8] sm:$0xf]
    %v590 = vld [vmem:[%s1 + $0x8bc] sm:$0xf]
    %v591 = vld [vmem:[%s1 + $0x8c0] sm:$0xf]
    %v592 = vld [vmem:[%s1 + $0x8c4] sm:$0xf]
    %v593 = vld [vmem:[%s1 + $0x8c8] sm:$0xf]
    %v594 = vld [vmem:[%s1 + $0x8cc] sm:$0xf]
    %v595 = vld [vmem:[%s1 + $0x8d0] sm:$0xf]
    %v596 = vld [vmem:[%s1 + $0x8d4] sm:$0xf]
    %v597 = vld [vmem:[%s1 + $0x8d8] sm:$0xf]
    %v598 = vld [vmem:[%s1 + $0x8dc] sm:$0xf]
    %v599 = vld [vmem:[%s1 + $0x8e0] sm:$0xf]
    %v600 = vld [vmem:[%s1 + $0x8e4] sm:$0xf]
    %v601 = vld [vmem:[%s1 + $0x8e8] sm:$0xf]
    %v602 = vld [vmem:[%s1 + $0x8ec] sm:$0xf]
    %v603 = vld [vmem:[%s1 + $0x8f0] sm:$0xf]
    %v604 = vld [vmem:[%s1 + $0x8f4] sm:$0xf]
    %v605 = vld [vmem:[%s1 + $0x8f8] sm:$0xf]
    %v606 = vld [vmem:[%s1 + $0x8fc] sm:$0xf]
    %v607 = vld [vmem:[%s1 + $0x900] sm:$0xf]
    %v608 = vld [vmem:[%s1 + $0x904] sm:$0xf]
    %v609 = vld [vmem:[%s1 + $0x908] sm:$0xf]
    %v610 = vld [vmem:[%s1 + $0x90c] sm:$0xf]
    %v611 = vld [vmem:[%s1 + $0x910] sm:$0xf]
    %v612 = vld [vmem:[%s1 + $0x914] sm:$0xf]
    %v613 = vld [vmem:[%s1 + $0x918] sm:$0xf]
    %v614 = vld [vmem:[%s1 + $0x91c] sm:$0xf]
    %v615 = vld [vmem:[%s1 + $0x920] sm:$0xf]
    %v616 = vld [vmem:[%s1 + $0x924] sm:$0xf]
    %v617 = vld [vmem:[%s1 + $0x928] sm:$0xf]
    %v618 = vld [vmem:[%s1 + $0x92c] sm:$0xf]
    %v619 = vld [vmem:[%s1 + $0x930] sm:$0xf]
    %v620 = vld [vmem:[%s1 + $0x934] sm:$0xf]
    %v621 = vld [vmem:[%s1 + $0x938] sm:$0xf]
    %v622 = vld [vmem:[%s1 + $0x93c] sm:$0xf]
    %v623 = vld [vmem:[%s1 + $0x940] sm:$0xf]
    %v624 = vld [vmem:[%s1 + $0x944] sm:$0xf]
    %v625 = vld [vmem:[%s1 + $0x948] sm:$0xf]
    %v626 = vld [vmem:[%s1 + $0x94c] sm:$0xf]
    %v627 = vld [vmem:[%s1 + $0x950] sm:$0xf]
    %v628 = vld [vmem:[%s1 + $0x954] sm:$0xf]
    %v629 = vld [vmem:[%s1 + $0x958] sm:$0xf]
    %v630 = vld [vmem:[%s1 + $0x95c] sm:$0xf]
    %v631 = vld [vmem:[%s1 + $0x960] sm:$0xf]
    %v632 = vld [vmem:[%s1 + $0x964] sm:$0xf]
    %v633 = vld [vmem:[%s1 + $0x968] sm:$0xf]
    %v634 = vld [vmem:[%s1 + $0x96c] sm:$0xf]
    %v635 = vld [vmem:[%s1 + $0x970] sm:$0xf]
    %v636 = vld [vmem:[%s1 + $0x974] sm:$0xf]
    %v637 = vld [vmem:[%s1 + $0x978] sm:$0xf]
    %v638 = vld [vmem:[%s1 + $0x97c] sm:$0xf]
    %v639 = vld [vmem:[%s1 + $0x980] sm:$0xf]
    %v640 = vld [vmem:[%s1 + $0x984] sm:$0xf]
    %v641 = vld [vmem:[%s1 + $0x988] sm:$0xf]
    %v642 = vld [vmem:[%s1 + $0x98c] sm:$0xf]
    %v643 = vld [vmem:[%s1 + $0x990] sm:$0xf]
    %v644 = vld [vmem:[%s1 + $0x994] sm:$0xf]
    %v645 = vld [vmem:[%s1 + $0x998] sm:$0xf]
    %v646 = vld [vmem:[%s1 + $0x99c] sm:$0xf]
    %v647 = vld [vmem:[%s1 + $0x9a0] sm:$0xf]
    %v648 = vld [vmem:[%s1 + $0x9a4] sm:$0xf]
    %v649 = vld [vmem:[%s1 + $0x9a8] sm:$0xf]
    %v650 = vld [vmem:[%s1 + $0x9ac] sm:$0xf]
    %v651 = vld [vmem:[%s1 + $0x9b0] sm:$0xf]
    %v652 = vld [vmem:[%s1 + $0x9b4] sm:$0xf]
    %v653 = vld [vmem:[%s1 + $0x9b8] sm:$0xf]
    %v654 = vld [vmem:[%s1 + $0x9bc] sm:$0xf]
    %v655 = vld [vmem:[%s1 + $0x9c0] sm:$0xf]
    %v656 = vld [vmem:[%s1 + $0x9c4] sm:$0xf]
    %v657 = vld [vmem:[%s1 + $0x9c8] sm:$0xf]
    %v658 = vld [vmem:[%s1 + $0x9cc] sm:$0xf]
    %v659 = vld [vmem:[%s1 + $0x9d0] sm:$0xf]
    %v660 = vld [vmem:[%s1 + $0x9d4] sm:$0xf]
    %v661 = vld [vmem:[%s1 + $0x9d8] sm:$0xf]
    %v662 = vld [vmem:[%s1 + $0x9dc] sm:$0xf]
    %v663 = vld [vmem:[%s1 + $0x9e0] sm:$0xf]
    %v664 = vld [vmem:[%s1 + $0x9e4] sm:$0xf]
    %v665 = vld [vmem:[%s1 + $0x9e8] sm:$0xf]
    %v666 = vld [vmem:[%s1 + $0x9ec] sm:$0xf]
    %v667 = vld [vmem:[%s1 + $0x9f0] sm:$0xf]
    %v668 = vld [vmem:[%s1 + $0x9f4] sm:$0xf]
    %v669 = vld [vmem:[%s1 + $0x9f8] sm:$0xf]
    %v670 = vld [vmem:[%s1 + $0x9fc] sm:$0xf]
    %v671 = vld [vmem:[%s1 + $0xa00] sm:$0xf]
    %v672 = vld [vmem:[%s1 + $0xa04] sm:$0xf]
    %v673 = vld [vmem:[%s1 + $0xa08] sm:$0xf]
    %v674 = vld [vmem:[%s1 + $0xa0c] sm:$0xf]
    %v675 = vld [vmem:[%s1 + $0xa10] sm:$0xf]
    %v676 = vld [vmem:[%s1 + $0xa14] sm:$0xf]
    %v677 = vld [vmem:[%s1 + $0xa18] sm:$0xf]
    %v678 = vld [vmem:[%s1 + $0xa1c] sm:$0xf]
    %v679 = vld [vmem:[%s1 + $0xa20] sm:$0xf]
    %v680 = vld [vmem:[%s1 + $0xa24] sm:$0xf]
    %v681 = vld [vmem:[%s1 + $0xa28] sm:$0xf]
    %v682 = vld [vmem:[%s1 + $0xa2c] sm:$0xf]
    %v683 = vld [vmem:[%s1 + $0xa30] sm:$0xf]
    %v684 = vld [vmem:[%s1 + $0xa34] sm:$0xf]
    %v685 = vld [vmem:[%s1 + $0xa38] sm:$0xf]
    %v686 = vld [vmem:[%s1 + $0xa3c] sm:$0xf]
    %v687 = vld [vmem:[%s1 + $0xa40] sm:$0xf]
    %v688 = vld [vmem:[%s1 + $0xa44] sm:$0xf]
    %v689 = vld [vmem:[%s1 + $0xa48] sm:$0xf]
    %v690 = vld [vmem:[%s1 + $0xa4c] sm:$0xf]
    %v691 = vld [vmem:[%s1 + $0xa50] sm:$0xf]
    %v692 = vld [vmem:[%s1 + $0xa54] sm:$0xf]
    %v693 = vld [vmem:[%s1 + $0xa58] sm:$0xf]
    %v694 = vld [vmem:[%s1 + $0xa5c] sm:$0xf]
    %v695 = vld [vmem:[%s1 + $0xa60] sm:$0xf]
    %v696 = vld [vmem:[%s1 + $0xa64] sm:$0xf]
    %v697 = vld [vmem:[%s1 + $0xa68] sm:$0xf]
    %v698 = vld [vmem:[%s1 + $0xa6c] sm:$0xf]
    %v699 = vld [vmem:[%s1 + $0xa70] sm:$0xf]
    %v700 = vld [vmem:[%s1 + $0xa74] sm:$0xf]
    %v701 = vld [vmem:[%s1 + $0xa78] sm:$0xf]
    %v702 = vld [vmem:[%s1 + $0xa7c] sm:$0xf]
    %v703 = vld [vmem:[%s1 + $0xa80] sm:$0xf]
    %v704 = vld [vmem:[%s1 + $0xa84] sm:$0xf]
    %v705 = vld [vmem:[%s1 + $0xa88] sm:$0xf]
    %v706 = vld [vmem:[%s1 + $0xa8c] sm:$0xf]
    %v707 = vld [vmem:[%s1 + $0xa90] sm:$0xf]
    %v708 = vld [vmem:[%s1 + $0xa94] sm:$0xf]
    %v709 = vld [vmem:[%s1 + $0xa98] sm:$0xf]
    %v710 = vld [vmem:[%s1 + $0xa9c] sm:$0xf]
    %v711 = vld [vmem:[%s1 + $0xaa0] sm:$0xf]
    %v712 = vld [vmem:[%s1 + $0xaa4] sm:$0xf]
    %v713 = vld [vmem:[%s1 + $0xaa8] sm:$0xf]
    %v714 = vld [vmem:[%s1 + $0xaac] sm:$0xf]
    %v715 = vld [vmem:[%s1 + $0xab0] sm:$0xf]
    %v716 = vld [vmem:[%s1 + $0xab4] sm:$0xf]
    %v717 = vld [vmem:[%s1 + $0xab8] sm:$0xf]
    %v718 = vld [vmem:[%s1 + $0xabc] sm:$0xf]
    %v719 = vld [vmem:[%s1 + $0xac0] sm:$0xf]
    %v720 = vld [vmem:[%s1 + $0xac4] sm:$0xf]
    %v721 = vld [vmem:[%s1 + $0xac8] sm:$0xf]
    %v722 = vld [vmem:[%s1 + $0xacc] sm:$0xf]
    %v723 = vld [vmem:[%s1 + $0xad0] sm:$0xf]
    %v724 = vld [vmem:[%s1 + $0xad4] sm:$0xf]
    %v725 = vld [vmem:[%s1 + $0xad8] sm:$0xf]
    %v726 = vld [vmem:[%s1 + $0xadc] sm:$0xf]
    %v727 = vld [vmem:[%s1 + $0xae0] sm:$0xf]
    %v728 = vld [vmem:[%s1 + $0xae4] sm:$0xf]
    %v729 = vld [vmem:[%s1 + $0xae8] sm:$0xf]
    %v730 = vld [vmem:[%s1 + $0xaec] sm:$0xf]
    %v731 = vld [vmem:[%s1 + $0xaf0] sm:$0xf]
    %v732 = vld [vmem:[%s1 + $0xaf4] sm:$0xf]
    %v733 = vld [vmem:[%s1 + $0xaf8] sm:$0xf]
    %v734 = vld [vmem:[%s1 + $0xafc] sm:$0xf]
    %v735 = vld [vmem:[%s1 + $0xb00] sm:$0xf]
    %v736 = vld [vmem:[%s1 + $0xb04] sm:$0xf]
    %v737 = vld [vmem:[%s1 + $0xb08] sm:$0xf]
    %v738 = vld [vmem:[%s1 + $0xb0c] sm:$0xf]
    %v739 = vld [vmem:[%s1 + $0xb10] sm:$0xf]
    %v740 = vld [vmem:[%s1 + $0xb14] sm:$0xf]
    %v741 = vld [vmem:[%s1 + $0xb18] sm:$0xf]
    %v742 = vld [vmem:[%s1 + $0xb1c] sm:$0xf]
    %v743 = vld [vmem:[%s1 + $0xb20] sm:$0xf]
    %v744 = vld [vmem:[%s1 + $0xb24] sm:$0xf]
    %v745 = vld [vmem:[%s1 + $0xb28] sm:$0xf]
    %v746 = vld [vmem:[%s1 + $0xb2c] sm:$0xf]
    %v747 = vld [vmem:[%s1 + $0xb30] sm:$0xf]
    %v748 = vld [vmem:[%s1 + $0xb34] sm:$0xf]
    %v749 = vld [vmem:[%s1 + $0xb38] sm:$0xf]
    %v750 = vld [vmem:[%s1 + $0xb3c] sm:$0xf]
    %v751 = vld [vmem:[%s1 + $0xb40] sm:$0xf]
    %v752 = vld [vmem:[%s1 + $0xb44] sm:$0xf]
    %v753 = vld [vmem:[%s1 + $0xb48] sm:$0xf]
    %v754 = vld [vmem:[%s1 + $0xb4c] sm:$0xf]
    %v755 = vld [vmem:[%s1 + $0xb50] sm:$0xf]
    %v756 = vld [vmem:[%s1 + $0xb54] sm:$0xf]
    %v757 = vld [vmem:[%s1 + $0xb58] sm:$0xf]
    %v758 = vld [vmem:[%s1 + $0xb5c] sm:$0xf]
    %v759 = vld [vmem:[%s1 + $0xb60] sm:$0xf]
    %v760 = vld [vmem:[%s1 + $0xb64] sm:$0xf]
    %v761 = vld [vmem:[%s1 + $0xb68] sm:$0xf]
    %v762 = vld [vmem:[%s1 + $0xb6c] sm:$0xf]
    %v763 = vld [vmem:[%s1 + $0xb70] sm:$0xf]
    %v764 = vld [vmem:[%s1 + $0xb74] sm:$0xf]
    %v765 = vld [vmem:[%s1 + $0xb78] sm:$0xf]
    %v766 = vld [vmem:[%s1 + $0xb7c] sm:$0xf]
    %v767 = vld [vmem:[%s1 + $0xb80] sm:$0xf]
    %v768 = vld [vmem:[%s1 + $0xb84] sm:$0xf]
    %v769 = vld [vmem:[%s1 + $0xb88] sm:$0xf]
    %v770 = vld [vmem:[%s1 + $0xb8c] sm:$0xf]
    %v771 = vld [vmem:[%s1 + $0xb90] sm:$0xf]
    %v772 = vld [vmem:[%s1 + $0xb94] sm:$0xf]
    %v773 = vld [vmem:[%s1 + $0xb98] sm:$0xf]
    %v774 = vld [vmem:[%s1 + $0xb9c] sm:$0xf]
    %v775 = vld [vmem:[%s1 + $0xba0] sm:$0xf]
    %v776 = vld [vmem:[%s1 + $0xba4] sm:$0xf]
    %v777 = vld [vmem:[%s1 + $0xba8] sm:$0xf]
    %v778 = vld [vmem:[%s1 + $0xbac] sm:$0xf]
    %v779 = vld [vmem:[%s1 + $0xbb0] sm:$0xf]
    %v780 = vld [vmem:[%s1 + $0xbb4] sm:$0xf]
    %v781 = vld [vmem:[%s1 + $0xbb8] sm:$0xf]
    %v782 = vld [vmem:[%s1 + $0xbbc] sm:$0xf]
    %v783 = vld [vmem:[%s1 + $0xbc0] sm:$0xf]
    %v784 = vld [vmem:[%s1 + $0xbc4] sm:$0xf]
    %v785 = vld [vmem:[%s1 + $0xbc8] sm:$0xf]
    %v786 = vld [vmem:[%s1 + $0xbcc] sm:$0xf]
    %v787 = vld [vmem:[%s1 + $0xbd0] sm:$0xf]
    %v788 = vld [vmem:[%s1 + $0xbd4] sm:$0xf]
    %v789 = vld [vmem:[%s1 + $0xbd8] sm:$0xf]
    %v790 = vld [vmem:[%s1 + $0xbdc] sm:$0xf]
    %v791 = vld [vmem:[%s1 + $0xbe0] sm:$0xf]
    %v792 = vld [vmem:[%s1 + $0xbe4] sm:$0xf]
    %v793 = vld [vmem:[%s1 + $0xbe8] sm:$0xf]
    %v794 = vld [vmem:[%s1 + $0xbec] sm:$0xf]
    %v795 = vld [vmem:[%s1 + $0xbf0] sm:$0xf]
    %v796 = vld [vmem:[%s1 + $0xbf4] sm:$0xf]
    %v797 = vld [vmem:[%s1 + $0xbf8] sm:$0xf]
    %v798 = vld [vmem:[%s1 + $0xbfc] sm:$0xf]
    %v799 = vld [vmem:[%s1 + $0xc00] sm:$0xf]
    %v800 = vld [vmem:[%s1 + $0xc04] sm:$0xf]
    %v801 = vld [vmem:[%s1 + $0xc08] sm:$0xf]
    %v802 = vld [vmem:[%s1 + $0xc0c] sm:$0xf]
    %v803 = vld [vmem:[%s1 + $0xc10] sm:$0xf]
    %v804 = vld [vmem:[%s1 + $0xc14] sm:$0xf]
    %v805 = vld [vmem:[%s1 + $0xc18] sm:$0xf]
    %v806 = vld [vmem:[%s1 + $0xc1c] sm:$0xf]
    %v807 = vld [vmem:[%s1 + $0xc20] sm:$0xf]
    %v808 = vld [vmem:[%s1 + $0xc24] sm:$0xf]
    %v809 = vld [vmem:[%s1 + $0xc28] sm:$0xf]
    %v810 = vld [vmem:[%s1 + $0xc2c] sm:$0xf]
    %v811 = vld [vmem:[%s1 + $0xc30] sm:$0xf]
    %v812 = vld [vmem:[%s1 + $0xc34] sm:$0xf]
    %v813 = vld [vmem:[%s1 + $0xc38] sm:$0xf]
    %v814 = vld [vmem:[%s1 + $0xc3c] sm:$0xf]
    %v815 = vld [vmem:[%s1 + $0xc40] sm:$0xf]
    %v816 = vld [vmem:[%s1 + $0xc44] sm:$0xf]
    %v817 = vld [vmem:[%s1 + $0xc48] sm:$0xf]
    %v818 = vld [vmem:[%s1 + $0xc4c] sm:$0xf]
    %v819 = vld [vmem:[%s1 + $0xc50] sm:$0xf]
    %v820 = vld [vmem:[%s1 + $0xc54] sm:$0xf]
    %v821 = vld [vmem:[%s1 + $0xc58] sm:$0xf]
    %v822 = vld [vmem:[%s1 + $0xc5c] sm:$0xf]
    %v823 = vld [vmem:[%s1 + $0xc60] sm:$0xf]
    %v824 = vld [vmem:[%s1 + $0xc64] sm:$0xf]
    %v825 = vld [vmem:[%s1 + $0xc68] sm:$0xf]
    %v826 = vld [vmem:[%s1 + $0xc6c] sm:$0xf]
    %v827 = vld [vmem:[%s1 + $0xc70] sm:$0xf]
    %v828 = vld [vmem:[%s1 + $0xc74] sm:$0xf]
    %v829 = vld [vmem:[%s1 + $0xc78] sm:$0xf]
    %v830 = vld [vmem:[%s1 + $0xc7c] sm:$0xf]
    %v831 = vld [vmem:[%s1 + $0xc80] sm:$0xf]
    %v832 = vld [vmem:[%s1 + $0xc84] sm:$0xf]
    %v833 = vld [vmem:[%s1 + $0xc88] sm:$0xf]
    %v834 = vld [vmem:[%s1 + $0xc8c] sm:$0xf]
    %v835 = vld [vmem:[%s1 + $0xc90] sm:$0xf]
    %v836 = vld [vmem:[%s1 + $0xc94] sm:$0xf]
    %v837 = vld [vmem:[%s1 + $0xc98] sm:$0xf]
    %v838 = vld [vmem:[%s1 + $0xc9c] sm:$0xf]
    %v839 = vld [vmem:[%s1 + $0xca0] sm:$0xf]
    %v840 = vld [vmem:[%s1 + $0xca4] sm:$0xf]
    %v841 = vld [vmem:[%s1 + $0xca8] sm:$0xf]
    %v842 = vld [vmem:[%s1 + $0xcac] sm:$0xf]
    %v843 = vld [vmem:[%s1 + $0xcb0] sm:$0xf]
    %v844 = vld [vmem:[%s1 + $0xcb4] sm:$0xf]
    %v845 = vld [vmem:[%s1 + $0xcb8] sm:$0xf]
    %v846 = vld [vmem:[%s1 + $0xcbc] sm:$0xf]
    %v847 = vld [vmem:[%s1 + $0xcc0] sm:$0xf]
    %v848 = vld [vmem:[%s1 + $0xcc4] sm:$0xf]
    %v849 = vld [vmem:[%s1 + $0xcc8] sm:$0xf]
    %v850 = vld [vmem:[%s1 + $0xccc] sm:$0xf]
    %v851 = vld [vmem:[%s1 + $0xcd0] sm:$0xf]
    %v852 = vld [vmem:[%s1 + $0xcd4] sm:$0xf]
    %v853 = vld [vmem:[%s1 + $0xcd8] sm:$0xf]
    %v854 = vld [vmem:[%s1 + $0xcdc] sm:$0xf]
    %v855 = vld [vmem:[%s1 + $0xce0] sm:$0xf]
    %v856 = vld [vmem:[%s1 + $0xce4] sm:$0xf]
    %v857 = vld [vmem:[%s1 + $0xce8] sm:$0xf]
    %v858 = vld [vmem:[%s1 + $0xcec] sm:$0xf]
    %v859 = vld [vmem:[%s1 + $0xcf0] sm:$0xf]
    %v860 = vld [vmem:[%s1 + $0xcf4] sm:$0xf]
    %v861 = vld [vmem:[%s1 + $0xcf8] sm:$0xf]
    %v862 = vld [vmem:[%s1 + $0xcfc] sm:$0xf]
    %v863 = vld [vmem:[%s1 + $0xd00] sm:$0xf]
    %v864 = vld [vmem:[%s1 + $0xd04] sm:$0xf]
    %v865 = vld [vmem:[%s1 + $0xd08] sm:$0xf]
    %v866 = vld [vmem:[%s1 + $0xd0c] sm:$0xf]
    %v867 = vld [vmem:[%s1 + $0xd10] sm:$0xf]
    %v868 = vld [vmem:[%s1 + $0xd14] sm:$0xf]
    %v869 = vld [vmem:[%s1 + $0xd18] sm:$0xf]
    %v870 = vld [vmem:[%s1 + $0xd1c] sm:$0xf]
    %v871 = vld [vmem:[%s1 + $0xd20] sm:$0xf]
    %v872 = vld [vmem:[%s1 + $0xd24] sm:$0xf]
    %v873 = vld [vmem:[%s1 + $0xd28] sm:$0xf]
    %v874 = vld [vmem:[%s1 + $0xd2c] sm:$0xf]
    %v875 = vld [vmem:[%s1 + $0xd30] sm:$0xf]
    %v876 = vld [vmem:[%s1 + $0xd34] sm:$0xf]
    %v877 = vld [vmem:[%s1 + $0xd38] sm:$0xf]
    %v878 = vld [vmem:[%s1 + $0xd3c] sm:$0xf]
    %v879 = vld [vmem:[%s1 + $0xd40] sm:$0xf]
    %v880 = vld [vmem:[%s1 + $0xd44] sm:$0xf]
    %v881 = vld [vmem:[%s1 + $0xd48] sm:$0xf]
    %v882 = vld [vmem:[%s1 + $0xd4c] sm:$0xf]
    %v883 = vld [vmem:[%s1 + $0xd50] sm:$0xf]
    %v884 = vld [vmem:[%s1 + $0xd54] sm:$0xf]
    %v885 = vld [vmem:[%s1 + $0xd58] sm:$0xf]
    %v886 = vld [vmem:[%s1 + $0xd5c] sm:$0xf]
    %v887 = vld [vmem:[%s1 + $0xd60] sm:$0xf]
    %v888 = vld [vmem:[%s1 + $0xd64] sm:$0xf]
    %v889 = vld [vmem:[%s1 + $0xd68] sm:$0xf]
    %v890 = vld [vmem:[%s1 + $0xd6c] sm:$0xf]
    %v891 = vld [vmem:[%s1 + $0xd70] sm:$0xf]
    %v892 = vld [vmem:[%s1 + $0xd74] sm:$0xf]
    %v893 = vld [vmem:[%s1 + $0xd78] sm:$0xf]
    %v894 = vld [vmem:[%s1 + $0xd7c] sm:$0xf]
    %v895 = vld [vmem:[%s1 + $0xd80] sm:$0xf]
    %v896 = vld [vmem:[%s1 + $0xd84] sm:$0xf]
    %v897 = vld [vmem:[%s1 + $0xd88] sm:$0xf]
    %v898 = vld [vmem:[%s1 + $0xd8c] sm:$0xf]
    %v899 = vld [vmem:[%s1 + $0xd90] sm:$0xf]
    %v900 = vld [vmem:[%s1 + $0xd94] sm:$0xf]
    %v901 = vld [vmem:[%s1 + $0xd98] sm:$0xf]
    %v902 = vld [vmem:[%s1 + $0xd9c] sm:$0xf]
    %v903 = vld [vmem:[%s1 + $0xda0] sm:$0xf]
    %v904 = vld [vmem:[%s1 + $0xda4] sm:$0xf]
    %v905 = vld [vmem:[%s1 + $0xda8] sm:$0xf]
    %v906 = vld [vmem:[%s1 + $0xdac] sm:$0xf]
    %v907 = vld [vmem:[%s1 + $0xdb0] sm:$0xf]
    %v908 = vld [vmem:[%s1 + $0xdb4] sm:$0xf]
    %v909 = vld [vmem:[%s1 + $0xdb8] sm:$0xf]
    %v910 = vld [vmem:[%s1 + $0xdbc] sm:$0xf]
    %v911 = vld [vmem:[%s1 + $0xdc0] sm:$0xf]
    %v912 = vld [vmem:[%s1 + $0xdc4] sm:$0xf]
    %v913 = vld [vmem:[%s1 + $0xdc8] sm:$0xf]
    %v914 = vld [vmem:[%s1 + $0xdcc] sm:$0xf]
    %v915 = vld [vmem:[%s1 + $0xdd0] sm:$0xf]
    %v916 = vld [vmem:[%s1 + $0xdd4] sm:$0xf]
    %v917 = vld [vmem:[%s1 + $0xdd8] sm:$0xf]
    %v918 = vld [vmem:[%s1 + $0xddc] sm:$0xf]
    %v919 = vld [vmem:[%s1 + $0xde0] sm:$0xf]
    %v920 = vld [vmem:[%s1 + $0xde4] sm:$0xf]
    %v921 = vld [vmem:[%s1 + $0xde8] sm:$0xf]
    %v922 = vld [vmem:[%s1 + $0xdec] sm:$0xf]
    %v923 = vld [vmem:[%s1 + $0xdf0] sm:$0xf]
    %v924 = vld [vmem:[%s1 + $0xdf4] sm:$0xf]
    %v925 = vld [vmem:[%s1 + $0xdf8] sm:$0xf]
    %v926 = vld [vmem:[%s1 + $0xdfc] sm:$0xf]
    %v927 = vld [vmem:[%s1 + $0xe00] sm:$0xf]
    %v928 = vld [vmem:[%s1 + $0xe04] sm:$0xf]
    %v929 = vld [vmem:[%s1 + $0xe08] sm:$0xf]
    %v930 = vld [vmem:[%s1 + $0xe0c] sm:$0xf]
    %v931 = vld [vmem:[%s1 + $0xe10] sm:$0xf]
    %v932 = vld [vmem:[%s1 + $0xe14] sm:$0xf]
    %v933 = vld [vmem:[%s1 + $0xe18] sm:$0xf]
    %v934 = vld [vmem:[%s1 + $0xe1c] sm:$0xf]
    %v935 = vld [vmem:[%s1 + $0xe20] sm:$0xf]
    %v936 = vld [vmem:[%s1 + $0xe24] sm:$0xf]
    %v937 = vld [vmem:[%s1 + $0xe28] sm:$0xf]
    %v938 = vld [vmem:[%s1 + $0xe2c] sm:$0xf]
    %v939 = vld [vmem:[%s1 + $0xe30] sm:$0xf]
    %v940 = vld [vmem:[%s1 + $0xe34] sm:$0xf]
    %v941 = vld [vmem:[%s1 + $0xe38] sm:$0xf]
    %v942 = vld [vmem:[%s1 + $0xe3c] sm:$0xf]
    %v943 = vld [vmem:[%s1 + $0xe40] sm:$0xf]
    %v944 = vld [vmem:[%s1 + $0xe44] sm:$0xf]
    %v945 = vld [vmem:[%s1 + $0xe48] sm:$0xf]
    %v946 = vld [vmem:[%s1 + $0xe4c] sm:$0xf]
    %v947 = vld [vmem:[%s1 + $0xe50] sm:$0xf]
    %v948 = vld [vmem:[%s1 + $0xe54] sm:$0xf]
    %v949 = vld [vmem:[%s1 + $0xe58] sm:$0xf]
    %v950 = vld [vmem:[%s1 + $0xe5c] sm:$0xf]
    %v951 = vld [vmem:[%s1 + $0xe60] sm:$0xf]
    %v952 = vld [vmem:[%s1 + $0xe64] sm:$0xf]
    %v953 = vld [vmem:[%s1 + $0xe68] sm:$0xf]
    %v954 = vld [vmem:[%s1 + $0xe6c] sm:$0xf]
    %v955 = vld [vmem:[%s1 + $0xe70] sm:$0xf]
    %v956 = vld [vmem:[%s1 + $0xe74] sm:$0xf]
    %v957 = vld [vmem:[%s1 + $0xe78] sm:$0xf]
    %v958 = vld [vmem:[%s1 + $0xe7c] sm:$0xf]
    %v959 = vld [vmem:[%s1 + $0xe80] sm:$0xf]
    %v960 = vld [vmem:[%s1 + $0xe84] sm:$0xf]
    %v961 = vld [vmem:[%s1 + $0xe88] sm:$0xf]
    %v962 = vld [vmem:[%s1 + $0xe8c] sm:$0xf]
    %v963 = vld [vmem:[%s1 + $0xe90] sm:$0xf]
    %v964 = vld [vmem:[%s1 + $0xe94] sm:$0xf]
    %v965 = vld [vmem:[%s1 + $0xe98] sm:$0xf]
    %v966 = vld [vmem:[%s1 + $0xe9c] sm:$0xf]
    %v967 = vld [vmem:[%s1 + $0xea0] sm:$0xf]
    %v968 = vld [vmem:[%s1 + $0xea4] sm:$0xf]
    %v969 = vld [vmem:[%s1 + $0xea8] sm:$0xf]
    %v970 = vld [vmem:[%s1 + $0xeac] sm:$0xf]
    %v971 = vld [vmem:[%s1 + $0xeb0] sm:$0xf]
    %v972 = vld [vmem:[%s1 + $0xeb4] sm:$0xf]
    %v973 = vld [vmem:[%s1 + $0xeb8] sm:$0xf]
    %v974 = vld [vmem:[%s1 + $0xebc] sm:$0xf]
    %v975 = vld [vmem:[%s1 + $0xec0] sm:$0xf]
    %v976 = vld [vmem:[%s1 + $0xec4] sm:$0xf]
    %v977 = vld [vmem:[%s1 + $0xec8] sm:$0xf]
    %v978 = vld [vmem:[%s1 + $0xecc] sm:$0xf]
    %v979 = vld [vmem:[%s1 + $0xed0] sm:$0xf]
    %v980 = vld [vmem:[%s1 + $0xed4] sm:$0xf]
    %v981 = vld [vmem:[%s1 + $0xed8] sm:$0xf]
    %v982 = vld [vmem:[%s1 + $0xedc] sm:$0xf]
    %v983 = vld [vmem:[%s1 + $0xee0] sm:$0xf]
    %v984 = vld [vmem:[%s1 + $0xee4] sm:$0xf]
    %v985 = vld [vmem:[%s1 + $0xee8] sm:$0xf]
    %v986 = vld [vmem:[%s1 + $0xeec] sm:$0xf]
    %v987 = vld [vmem:[%s1 + $0xef0] sm:$0xf]
    %v988 = vld [vmem:[%s1 + $0xef4] sm:$0xf]
    %v989 = vld [vmem:[%s1 + $0xef8] sm:$0xf]
    %v990 = vld [vmem:[%s1 + $0xefc] sm:$0xf]
    %v991 = vld [vmem:[%s1 + $0xf00] sm:$0xf]
    %v992 = vld [vmem:[%s1 + $0xf04] sm:$0xf]
    %v993 = vld [vmem:[%s1 + $0xf08] sm:$0xf]
    %v994 = vld [vmem:[%s1 + $0xf0c] sm:$0xf]
    %v995 = vld [vmem:[%s1 + $0xf10] sm:$0xf]
    %v996 = vld [vmem:[%s1 + $0xf14] sm:$0xf]
    %v997 = vld [vmem:[%s1 + $0xf18] sm:$0xf]
    %v998 = vld [vmem:[%s1 + $0xf1c] sm:$0xf]
    %v999 = vld [vmem:[%s1 + $0xf20] sm:$0xf]
    %v1000 = vld [vmem:[%s1 + $0xf24] sm:$0xf]
    %v1001 = vld [vmem:[%s1 + $0xf28] sm:$0xf]
    %v1002 = vld [vmem:[%s1 + $0xf2c] sm:$0xf]
    %v1003 = vld [vmem:[%s1 + $0xf30] sm:$0xf]
    %v1004 = vld [vmem:[%s1 + $0xf34] sm:$0xf]
    %v1005 = vld [vmem:[%s1 + $0xf38] sm:$0xf]
    %v1006 = vld [vmem:[%s1 + $0xf3c] sm:$0xf]
    %v1007 = vld [vmem:[%s1 + $0xf40] sm:$0xf]
    %v1008 = vld [vmem:[%s1 + $0xf44] sm:$0xf]
    %v1009 = vld [vmem:[%s1 + $0xf48] sm:$0xf]
    %v1010 = vld [vmem:[%s1 + $0xf4c] sm:$0xf]
    %v1011 = vld [vmem:[%s1 + $0xf50] sm:$0xf]
    %v1012 = vld [vmem:[%s1 + $0xf54] sm:$0xf]
    %v1013 = vld [vmem:[%s1 + $0xf58] sm:$0xf]
    %v1014 = vld [vmem:[%s1 + $0xf5c] sm:$0xf]
    %v1015 = vld [vmem:[%s1 + $0xf60] sm:$0xf]
    %v1016 = vld [vmem:[%s1 + $0xf64] sm:$0xf]
    %v1017 = vld [vmem:[%s1 + $0xf68] sm:$0xf]
    %v1018 = vld [vmem:[%s1 + $0xf6c] sm:$0xf]
    %v1019 = vld [vmem:[%s1 + $0xf70] sm:$0xf]
    %v1020 = vld [vmem:[%s1 + $0xf74] sm:$0xf]
    %v1021 = vld [vmem:[%s1 + $0xf78] sm:$0xf]
    %v1022 = vld [vmem:[%s1 + $0xf7c] sm:$0xf]
    %v1023 = vld [vmem:[%s1 + $0xf80] sm:$0xf]
    %v1024 = vld [vmem:[%s1 + $0xf84] sm:$0xf]
    %v1025 = vld [vmem:[%s1 + $0xf88] sm:$0xf]
    %v1026 = vld [vmem:[%s1 + $0xf8c] sm:$0xf]
    %v1027 = vld [vmem:[%s1 + $0xf90] sm:$0xf]
    %v1028 = vld [vmem:[%s1 + $0xf94] sm:$0xf]
    %v1029 = vld [vmem:[%s1 + $0xf98] sm:$0xf]
    %v1030 = vld [vmem:[%s1 + $0xf9c] sm:$0xf]
    %v1031 = vld [vmem:[%s1 + $0xfa0] sm:$0xf]
    %v1032 = vld [vmem:[%s1 + $0xfa4] sm:$0xf]
    %v1033 = vld [vmem:[%s1 + $0xfa8] sm:$0xf]
    %v1034 = vld [vmem:[%s1 + $0xfac] sm:$0xf]
    %v1035 = vld [vmem:[%s1 + $0xfb0] sm:$0xf]
    %v1036 = vld [vmem:[%s1 + $0xfb4] sm:$0xf]
    %v1037 = vld [vmem:[%s1 + $0xfb8] sm:$0xf]
    %v1038 = vld [vmem:[%s1 + $0xfbc] sm:$0xf]
    %v1039 = vld [vmem:[%s1 + $0xfc0] sm:$0xf]
    %v1040 = vld [vmem:[%s1 + $0xfc4] sm:$0xf]
    %v1041 = vld [vmem:[%s1 + $0xfc8] sm:$0xf]
    %v1042 = vld [vmem:[%s1 + $0xfcc] sm:$0xf]
    %v1043 = vld [vmem:[%s1 + $0xfd0] sm:$0xf]
    %v1044 = vld [vmem:[%s1 + $0xfd4] sm:$0xf]
    %v1045 = vld [vmem:[%s1 + $0xfd8] sm:$0xf]
    %v1046 = vld [vmem:[%s1 + $0xfdc] sm:$0xf]
    %v1047 = vld [vmem:[%s1 + $0xfe0] sm:$0xf]
    %v1048 = vld [vmem:[%s1 + $0xfe4] sm:$0xf]
    %v1049 = vld [vmem:[%s1 + $0xfe8] sm:$0xf]
    %v1050 = vld [vmem:[%s1 + $0xfec] sm:$0xf]
    %v1051 = vld [vmem:[%s1 + $0xff0] sm:$0xf]
    %v1052 = vld [vmem:[%s1 + $0xff4] sm:$0xf]
    %v1053 = vld [vmem:[%s1 + $0xff8] sm:$0xf]
    %v1054 = vld [vmem:[%s1 + $0xffc] sm:$0xf]
    %v1055 = vld [vmem:[%s1 + $0x1000] sm:$0xf]
    %v1056 = vld [vmem:[%s1 + $0x1004] sm:$0xf]
    %v1057 = vld [vmem:[%s1 + $0x1008] sm:$0xf]
    %v1058 = vld [vmem:[%s1 + $0x100c] sm:$0xf]
    %v1059 = vld [vmem:[%s1 + $0x1010] sm:$0xf]
    %v1060 = vld [vmem:[%s1 + $0x1014] sm:$0xf]
    %v1061 = vld [vmem:[%s1 + $0x1018] sm:$0xf]
    %v1062 = vld [vmem:[%s1 + $0x101c] sm:$0xf]
    %v1063 = vld [vmem:[%s1 + $0x1020] sm:$0xf]
    %v1064 = vld [vmem:[%s1 + $0x1024] sm:$0xf]
    %v1065 = vld [vmem:[%s1 + $0x1028] sm:$0xf]
    %v1066 = vld [vmem:[%s1 + $0x102c] sm:$0xf]
    %v1067 = vld [vmem:[%s1 + $0x1030] sm:$0xf]
    %v1068 = vld [vmem:[%s1 + $0x1034] sm:$0xf]
    %v1069 = vld [vmem:[%s1 + $0x1038] sm:$0xf]
    %v1070 = vld [vmem:[%s1 + $0x103c] sm:$0xf]
    %v1071 = vld [vmem:[%s1 + $0x1040] sm:$0xf]
    %v1072 = vld [vmem:[%s1 + $0x1044] sm:$0xf]
    %v1073 = vld [vmem:[%s1 + $0x1048] sm:$0xf]
    %v1074 = vld [vmem:[%s1 + $0x104c] sm:$0xf]
    %v1075 = vld [vmem:[%s1 + $0x1050] sm:$0xf]
    %v1076 = vld [vmem:[%s1 + $0x1054] sm:$0xf]
    %v1077 = vld [vmem:[%s1 + $0x1058] sm:$0xf]
    %v1078 = vld [vmem:[%s1 + $0x105c] sm:$0xf]
    %v1079 = vld [vmem:[%s1 + $0x1060] sm:$0xf]
    %v1080 = vld [vmem:[%s1 + $0x1064] sm:$0xf]
    %v1081 = vld [vmem:[%s1 + $0x1068] sm:$0xf]
    %v1082 = vld [vmem:[%s1 + $0x106c] sm:$0xf]
    %v1083 = vld [vmem:[%s1 + $0x1070] sm:$0xf]
    %v1084 = vld [vmem:[%s1 + $0x1074] sm:$0xf]
    %v1085 = vld [vmem:[%s1 + $0x1078] sm:$0xf]
    %v1086 = vld [vmem:[%s1 + $0x107c] sm:$0xf]
    %v1087 = vld [vmem:[%s1 + $0x1080] sm:$0xf]
    %v1088 = vld [vmem:[%s1 + $0x1084] sm:$0xf]
    %v1089 = vld [vmem:[%s1 + $0x1088] sm:$0xf]
    %v1090 = vld [vmem:[%s1 + $0x108c] sm:$0xf]
    %v1091 = vld [vmem:[%s1 + $0x1090] sm:$0xf]
    %v1092 = vld [vmem:[%s1 + $0x1094] sm:$0xf]
    %v1093 = vld [vmem:[%s1 + $0x1098] sm:$0xf]
    %v1094 = vld [vmem:[%s1 + $0x109c] sm:$0xf]
    %v1095 = vld [vmem:[%s1 + $0x10a0] sm:$0xf]
    %v1096 = vld [vmem:[%s1 + $0x10a4] sm:$0xf]
    %v1097 = vld [vmem:[%s1 + $0x10a8] sm:$0xf]
    %v1098 = vld [vmem:[%s1 + $0x10ac] sm:$0xf]
    %v1099 = vld [vmem:[%s1 + $0x10b0] sm:$0xf]
    %v1100 = vld [vmem:[%s1 + $0x10b4] sm:$0xf]
    %v1101 = vld [vmem:[%s1 + $0x10b8] sm:$0xf]
    %v1102 = vld [vmem:[%s1 + $0x10bc] sm:$0xf]
    %v1103 = vld [vmem:[%s1 + $0x10c0] sm:$0xf]
    %v1104 = vld [vmem:[%s1 + $0x10c4] sm:$0xf]
    %v1105 = vld [vmem:[%s1 + $0x10c8] sm:$0xf]
    %v1106 = vld [vmem:[%s1 + $0x10cc] sm:$0xf]
    %v1107 = vld [vmem:[%s1 + $0x10d0] sm:$0xf]
    %v1108 = vld [vmem:[%s1 + $0x10d4] sm:$0xf]
    %v1109 = vld [vmem:[%s1 + $0x10d8] sm:$0xf]
    %v1110 = vld [vmem:[%s1 + $0x10dc] sm:$0xf]
    %v1111 = vld [vmem:[%s1 + $0x10e0] sm:$0xf]
    %v1112 = vld [vmem:[%s1 + $0x10e4] sm:$0xf]
    %v1113 = vld [vmem:[%s1 + $0x10e8] sm:$0xf]
    %v1114 = vld [vmem:[%s1 + $0x10ec] sm:$0xf]
    %v1115 = vld [vmem:[%s1 + $0x10f0] sm:$0xf]
    %v1116 = vld [vmem:[%s1 + $0x10f4] sm:$0xf]
    %v1117 = vld [vmem:[%s1 + $0x10f8] sm:$0xf]
    %v1118 = vld [vmem:[%s1 + $0x10fc] sm:$0xf]
    %v1119 = vld [vmem:[%s1 + $0x1100] sm:$0xf]
    %v1120 = vld [vmem:[%s1 + $0x1104] sm:$0xf]
    %v1121 = vld [vmem:[%s1 + $0x1108] sm:$0xf]
    %v1122 = vld [vmem:[%s1 + $0x110c] sm:$0xf]
    %v1123 = vld [vmem:[%s1 + $0x1110] sm:$0xf]
    %v1124 = vld [vmem:[%s1 + $0x1114] sm:$0xf]
    %v1125 = vld [vmem:[%s1 + $0x1118] sm:$0xf]
    %v1126 = vld [vmem:[%s1 + $0x111c] sm:$0xf]
    %v1127 = vld [vmem:[%s1 + $0x1120] sm:$0xf]
    %v1128 = vld [vmem:[%s1 + $0x1124] sm:$0xf]
    %v1129 = vld [vmem:[%s1 + $0x1128] sm:$0xf]
    %v1130 = vld [vmem:[%s1 + $0x112c] sm:$0xf]
    %v1131 = vld [vmem:[%s1 + $0x1130] sm:$0xf]
    %v1132 = vld [vmem:[%s1 + $0x1134] sm:$0xf]
    %v1133 = vld [vmem:[%s1 + $0x1138] sm:$0xf]
    %v1134 = vld [vmem:[%s1 + $0x113c] sm:$0xf]
    %v1135 = vld [vmem:[%s1 + $0x1140] sm:$0xf]
    %v1136 = vld [vmem:[%s1 + $0x1144] sm:$0xf]
    %v1137 = vld [vmem:[%s1 + $0x1148] sm:$0xf]
    %v1138 = vld [vmem:[%s1 + $0x114c] sm:$0xf]
    %v1139 = vld [vmem:[%s1 + $0x1150] sm:$0xf]
    %v1140 = vld [vmem:[%s1 + $0x1154] sm:$0xf]
    %v1141 = vld [vmem:[%s1 + $0x1158] sm:$0xf]
    %v1142 = vld [vmem:[%s1 + $0x115c] sm:$0xf]
    %v1143 = vld [vmem:[%s1 + $0x1160] sm:$0xf]
    %v1144 = vld [vmem:[%s1 + $0x1164] sm:$0xf]
    %v1145 = vld [vmem:[%s1 + $0x1168] sm:$0xf]
    %v1146 = vld [vmem:[%s1 + $0x116c] sm:$0xf]
    %v1147 = vld [vmem:[%s1 + $0x1170] sm:$0xf]
    %v1148 = vld [vmem:[%s1 + $0x1174] sm:$0xf]
    %v1149 = vld [vmem:[%s1 + $0x1178] sm:$0xf]
    %v1150 = vld [vmem:[%s1 + $0x117c] sm:$0xf]
    %v1151 = vld [vmem:[%s1 + $0x1180] sm:$0xf]
    %v1152 = vld [vmem:[%s1 + $0x1184] sm:$0xf]
    %v1153 = vld [vmem:[%s1 + $0x1188] sm:$0xf]
    %v1154 = vld [vmem:[%s1 + $0x118c] sm:$0xf]
    %v1155 = vld [vmem:[%s1 + $0x1190] sm:$0xf]
    %v1156 = vld [vmem:[%s1 + $0x1194] sm:$0xf]
    %v1157 = vld [vmem:[%s1 + $0x1198] sm:$0xf]
    %v1158 = vld [vmem:[%s1 + $0x119c] sm:$0xf]
    %v1159 = vld [vmem:[%s1 + $0x11a0] sm:$0xf]
    %v1160 = vld [vmem:[%s1 + $0x11a4] sm:$0xf]
    %v1161 = vld [vmem:[%s1 + $0x11a8] sm:$0xf]
    %v1162 = vld [vmem:[%s1 + $0x11ac] sm:$0xf]
    %v1163 = vld [vmem:[%s1 + $0x11b0] sm:$0xf]
    %v1164 = vld [vmem:[%s1 + $0x11b4] sm:$0xf]
    %v1165 = vld [vmem:[%s1 + $0x11b8] sm:$0xf]
    %v1166 = vld [vmem:[%s1 + $0x11bc] sm:$0xf]
    %v1167 = vld [vmem:[%s1 + $0x11c0] sm:$0xf]
    %v1168 = vld [vmem:[%s1 + $0x11c4] sm:$0xf]
    %v1169 = vld [vmem:[%s1 + $0x11c8] sm:$0xf]
    %v1170 = vld [vmem:[%s1 + $0x11cc] sm:$0xf]
    %v1171 = vld [vmem:[%s1 + $0x11d0] sm:$0xf]
    %v1172 = vld [vmem:[%s1 + $0x11d4] sm:$0xf]
    %v1173 = vld [vmem:[%s1 + $0x11d8] sm:$0xf]
    %v1174 = vld [vmem:[%s1 + $0x11dc] sm:$0xf]
    %v1175 = vld [vmem:[%s1 + $0x11e0] sm:$0xf]
    %v1176 = vld [vmem:[%s1 + $0x11e4] sm:$0xf]
    %v1177 = vld [vmem:[%s1 + $0x11e8] sm:$0xf]
    %v1178 = vld [vmem:[%s1 + $0x11ec] sm:$0xf]
    %v1179 = vld [vmem:[%s1 + $0x11f0] sm:$0xf]
    %v1180 = vld [vmem:[%s1 + $0x11f4] sm:$0xf]
    %v1181 = vld [vmem:[%s1 + $0x11f8] sm:$0xf]
    %v1182 = vld [vmem:[%s1 + $0x11fc] sm:$0xf]
    %v1183 = vld [vmem:[%s2] sm:$0x1]
    %v1185 = vlaneseq
    %v1186 = vshrl.u32 %v1185, 7
    %v1187 = vsub.s32 0, %v1186
    %v1188 = vrot.slane %v1183, %v1187
    %v1199 = vcombine.high %v22, %v22
    %v1201 = vunpack.c.l.s4 1966171168
    %v1202 = vunpack.c.0.s8 %v1201
    %v1203 = vlaneseq
    %v1204 = vshrl.u32 %v1203, 7
    %v1205 = vsub.s32 %v1202, %v1204
    %v1206 = vrot.slane %v22, %v1205
    %v1208 = vunpack.c.l.s4 1966171168
    %v1209 = vunpack.c.0.s8 %v1208
    %v1210 = vlaneseq
    %v1211 = vshrl.u32 %v1210, 7
    %v1212 = vsub.s32 %v1209, %v1211
    %v1213 = vrot.slane %v1199, %v1212
    %v1214 = vcombine.high %v1206, %v1206
    %v1215 = vcombine.high %v1213, %v1213
    %v1217 = vunpack.c.l.s4 1966171168
    %v1218 = vunpack.c.0.s8 %v1217
    %v1219 = vlaneseq
    %v1220 = vshrl.u32 %v1219, 7
    %v1221 = vsub.s32 %v1218, %v1220
    %v1222 = vrot.slane %v1206, %v1221
    %v1224 = vunpack.c.l.s4 1966171168
    %v1225 = vunpack.c.0.s8 %v1224
    %v1226 = vlaneseq
    %v1227 = vshrl.u32 %v1226, 7
    %v1228 = vsub.s32 %v1225, %v1227
    %v1229 = vrot.slane %v1213, %v1228
    %v1231 = vunpack.c.l.s4 1966171168
    %v1232 = vunpack.c.0.s8 %v1231
    %v1233 = vlaneseq
    %v1234 = vshrl.u32 %v1233, 7
    %v1235 = vsub.s32 %v1232, %v1234
    %v1236 = vrot.slane %v1214, %v1235
    %v1238 = vunpack.c.l.s4 1966171168
    %v1239 = vunpack.c.0.s8 %v1238
    %v1240 = vlaneseq
    %v1241 = vshrl.u32 %v1240, 7
    %v1242 = vsub.s32 %v1239, %v1241
    %v1243 = vrot.slane %v1215, %v1242
    %v1244 = vcombine.high %v1222, %v1222
    %v1245 = vcombine.high %v1229, %v1229
    %v1246 = vcombine.high %v1236, %v1236
    %v1247 = vcombine.high %v1243, %v1243
    %v1248 = vcombine.high %v23, %v23
    %v1250 = vunpack.c.l.s4 1966171168
    %v1251 = vunpack.c.0.s8 %v1250
    %v1252 = vlaneseq
    %v1253 = vshrl.u32 %v1252, 7
    %v1254 = vsub.s32 %v1251, %v1253
    %v1255 = vrot.slane %v23, %v1254
    %v1257 = vunpack.c.l.s4 1966171168
    %v1258 = vunpack.c.0.s8 %v1257
    %v1259 = vlaneseq
    %v1260 = vshrl.u32 %v1259, 7
    %v1261 = vsub.s32 %v1258, %v1260
    %v1262 = vrot.slane %v1248, %v1261
    %v1263 = vcombine.high %v1255, %v1255
    %v1264 = vcombine.high %v1262, %v1262
    %v1266 = vunpack.c.l.s4 1966171168
    %v1267 = vunpack.c.0.s8 %v1266
    %v1268 = vlaneseq
    %v1269 = vshrl.u32 %v1268, 7
    %v1270 = vsub.s32 %v1267, %v1269
    %v1271 = vrot.slane %v1255, %v1270
    %v1273 = vunpack.c.l.s4 1966171168
    %v1274 = vunpack.c.0.s8 %v1273
    %v1275 = vlaneseq
    %v1276 = vshrl.u32 %v1275, 7
    %v1277 = vsub.s32 %v1274, %v1276
    %v1278 = vrot.slane %v1262, %v1277
    %v1280 = vunpack.c.l.s4 1966171168
    %v1281 = vunpack.c.0.s8 %v1280
    %v1282 = vlaneseq
    %v1283 = vshrl.u32 %v1282, 7
    %v1284 = vsub.s32 %v1281, %v1283
    %v1285 = vrot.slane %v1263, %v1284
    %v1287 = vunpack.c.l.s4 1966171168
    %v1288 = vunpack.c.0.s8 %v1287
    %v1289 = vlaneseq
    %v1290 = vshrl.u32 %v1289, 7
    %v1291 = vsub.s32 %v1288, %v1290
    %v1292 = vrot.slane %v1264, %v1291
    %v1293 = vcombine.high %v1271, %v1271
    %v1294 = vcombine.high %v1278, %v1278
    %v1295 = vcombine.high %v1285, %v1285
    %v1296 = vcombine.high %v1292, %v1292
    %v1297 = vcombine.high %v24, %v24
    %v1299 = vunpack.c.l.s4 1966171168
    %v1300 = vunpack.c.0.s8 %v1299
    %v1301 = vlaneseq
    %v1302 = vshrl.u32 %v1301, 7
    %v1303 = vsub.s32 %v1300, %v1302
    %v1304 = vrot.slane %v24, %v1303
    %v1306 = vunpack.c.l.s4 1966171168
    %v1307 = vunpack.c.0.s8 %v1306
    %v1308 = vlaneseq
    %v1309 = vshrl.u32 %v1308, 7
    %v1310 = vsub.s32 %v1307, %v1309
    %v1311 = vrot.slane %v1297, %v1310
    %v1312 = vcombine.high %v1304, %v1304
    %v1313 = vcombine.high %v1311, %v1311
    %v1315 = vunpack.c.l.s4 1966171168
    %v1316 = vunpack.c.0.s8 %v1315
    %v1317 = vlaneseq
    %v1318 = vshrl.u32 %v1317, 7
    %v1319 = vsub.s32 %v1316, %v1318
    %v1320 = vrot.slane %v1304, %v1319
    %v1322 = vunpack.c.l.s4 1966171168
    %v1323 = vunpack.c.0.s8 %v1322
    %v1324 = vlaneseq
    %v1325 = vshrl.u32 %v1324, 7
    %v1326 = vsub.s32 %v1323, %v1325
    %v1327 = vrot.slane %v1311, %v1326
    %v1329 = vunpack.c.l.s4 1966171168
    %v1330 = vunpack.c.0.s8 %v1329
    %v1331 = vlaneseq
    %v1332 = vshrl.u32 %v1331, 7
    %v1333 = vsub.s32 %v1330, %v1332
    %v1334 = vrot.slane %v1312, %v1333
    %v1336 = vunpack.c.l.s4 1966171168
    %v1337 = vunpack.c.0.s8 %v1336
    %v1338 = vlaneseq
    %v1339 = vshrl.u32 %v1338, 7
    %v1340 = vsub.s32 %v1337, %v1339
    %v1341 = vrot.slane %v1313, %v1340
    %v1342 = vcombine.high %v1320, %v1320
    %v1343 = vcombine.high %v1327, %v1327
    %v1344 = vcombine.high %v1334, %v1334
    %v1345 = vcombine.high %v1341, %v1341
    %v1346 = vcombine.high %v25, %v25
    %v1348 = vunpack.c.l.s4 1966171168
    %v1349 = vunpack.c.0.s8 %v1348
    %v1350 = vlaneseq
    %v1351 = vshrl.u32 %v1350, 7
    %v1352 = vsub.s32 %v1349, %v1351
    %v1353 = vrot.slane %v25, %v1352
    %v1355 = vunpack.c.l.s4 1966171168
    %v1356 = vunpack.c.0.s8 %v1355
    %v1357 = vlaneseq
    %v1358 = vshrl.u32 %v1357, 7
    %v1359 = vsub.s32 %v1356, %v1358
    %v1360 = vrot.slane %v1346, %v1359
    %v1361 = vcombine.high %v1353, %v1353
    %v1362 = vcombine.high %v1360, %v1360
    %v1364 = vunpack.c.l.s4 1966171168
    %v1365 = vunpack.c.0.s8 %v1364
    %v1366 = vlaneseq
    %v1367 = vshrl.u32 %v1366, 7
    %v1368 = vsub.s32 %v1365, %v1367
    %v1369 = vrot.slane %v1353, %v1368
    %v1371 = vunpack.c.l.s4 1966171168
    %v1372 = vunpack.c.0.s8 %v1371
    %v1373 = vlaneseq
    %v1374 = vshrl.u32 %v1373, 7
    %v1375 = vsub.s32 %v1372, %v1374
    %v1376 = vrot.slane %v1360, %v1375
    %v1378 = vunpack.c.l.s4 1966171168
    %v1379 = vunpack.c.0.s8 %v1378
    %v1380 = vlaneseq
    %v1381 = vshrl.u32 %v1380, 7
    %v1382 = vsub.s32 %v1379, %v1381
    %v1383 = vrot.slane %v1361, %v1382
    %v1385 = vunpack.c.l.s4 1966171168
    %v1386 = vunpack.c.0.s8 %v1385
    %v1387 = vlaneseq
    %v1388 = vshrl.u32 %v1387, 7
    %v1389 = vsub.s32 %v1386, %v1388
    %v1390 = vrot.slane %v1362, %v1389
    %v1391 = vcombine.high %v1369, %v1369
    %v1392 = vcombine.high %v1376, %v1376
    %v1393 = vcombine.high %v1383, %v1383
    %v1394 = vcombine.high %v1390, %v1390
    %v1395 = vcombine.high %v26, %v26
    %v1397 = vunpack.c.l.s4 1966171168
    %v1398 = vunpack.c.0.s8 %v1397
    %v1399 = vlaneseq
    %v1400 = vshrl.u32 %v1399, 7
    %v1401 = vsub.s32 %v1398, %v1400
    %v1402 = vrot.slane %v26, %v1401
    %v1404 = vunpack.c.l.s4 1966171168
    %v1405 = vunpack.c.0.s8 %v1404
    %v1406 = vlaneseq
    %v1407 = vshrl.u32 %v1406, 7
    %v1408 = vsub.s32 %v1405, %v1407
    %v1409 = vrot.slane %v1395, %v1408
    %v1410 = vcombine.high %v1402, %v1402
    %v1411 = vcombine.high %v1409, %v1409
    %v1413 = vunpack.c.l.s4 1966171168
    %v1414 = vunpack.c.0.s8 %v1413
    %v1415 = vlaneseq
    %v1416 = vshrl.u32 %v1415, 7
    %v1417 = vsub.s32 %v1414, %v1416
    %v1418 = vrot.slane %v1402, %v1417
    %v1420 = vunpack.c.l.s4 1966171168
    %v1421 = vunpack.c.0.s8 %v1420
    %v1422 = vlaneseq
    %v1423 = vshrl.u32 %v1422, 7
    %v1424 = vsub.s32 %v1421, %v1423
    %v1425 = vrot.slane %v1409, %v1424
    %v1427 = vunpack.c.l.s4 1966171168
    %v1428 = vunpack.c.0.s8 %v1427
    %v1429 = vlaneseq
    %v1430 = vshrl.u32 %v1429, 7
    %v1431 = vsub.s32 %v1428, %v1430
    %v1432 = vrot.slane %v1410, %v1431
    %v1434 = vunpack.c.l.s4 1966171168
    %v1435 = vunpack.c.0.s8 %v1434
    %v1436 = vlaneseq
    %v1437 = vshrl.u32 %v1436, 7
    %v1438 = vsub.s32 %v1435, %v1437
    %v1439 = vrot.slane %v1411, %v1438
    %v1440 = vcombine.high %v1418, %v1418
    %v1441 = vcombine.high %v1425, %v1425
    %v1442 = vcombine.high %v1432, %v1432
    %v1443 = vcombine.high %v1439, %v1439
    %v1444 = vcombine.high %v27, %v27
    %v1446 = vunpack.c.l.s4 1966171168
    %v1447 = vunpack.c.0.s8 %v1446
    %v1448 = vlaneseq
    %v1449 = vshrl.u32 %v1448, 7
    %v1450 = vsub.s32 %v1447, %v1449
    %v1451 = vrot.slane %v27, %v1450
    %v1453 = vunpack.c.l.s4 1966171168
    %v1454 = vunpack.c.0.s8 %v1453
    %v1455 = vlaneseq
    %v1456 = vshrl.u32 %v1455, 7
    %v1457 = vsub.s32 %v1454, %v1456
    %v1458 = vrot.slane %v1444, %v1457
    %v1459 = vcombine.high %v1451, %v1451
    %v1460 = vcombine.high %v1458, %v1458
    %v1462 = vunpack.c.l.s4 1966171168
    %v1463 = vunpack.c.0.s8 %v1462
    %v1464 = vlaneseq
    %v1465 = vshrl.u32 %v1464, 7
    %v1466 = vsub.s32 %v1463, %v1465
    %v1467 = vrot.slane %v1451, %v1466
    %v1469 = vunpack.c.l.s4 1966171168
    %v1470 = vunpack.c.0.s8 %v1469
    %v1471 = vlaneseq
    %v1472 = vshrl.u32 %v1471, 7
    %v1473 = vsub.s32 %v1470, %v1472
    %v1474 = vrot.slane %v1458, %v1473
    %v1476 = vunpack.c.l.s4 1966171168
    %v1477 = vunpack.c.0.s8 %v1476
    %v1478 = vlaneseq
    %v1479 = vshrl.u32 %v1478, 7
    %v1480 = vsub.s32 %v1477, %v1479
    %v1481 = vrot.slane %v1459, %v1480
    %v1483 = vunpack.c.l.s4 1966171168
    %v1484 = vunpack.c.0.s8 %v1483
    %v1485 = vlaneseq
    %v1486 = vshrl.u32 %v1485, 7
    %v1487 = vsub.s32 %v1484, %v1486
    %v1488 = vrot.slane %v1460, %v1487
    %v1489 = vcombine.high %v1467, %v1467
    %v1490 = vcombine.high %v1474, %v1474
    %v1491 = vcombine.high %v1481, %v1481
    %v1492 = vcombine.high %v1488, %v1488
    %v1493 = vcombine.high %v28, %v28
    %v1495 = vunpack.c.l.s4 1966171168
    %v1496 = vunpack.c.0.s8 %v1495
    %v1497 = vlaneseq
    %v1498 = vshrl.u32 %v1497, 7
    %v1499 = vsub.s32 %v1496, %v1498
    %v1500 = vrot.slane %v28, %v1499
    %v1502 = vunpack.c.l.s4 1966171168
    %v1503 = vunpack.c.0.s8 %v1502
    %v1504 = vlaneseq
    %v1505 = vshrl.u32 %v1504, 7
    %v1506 = vsub.s32 %v1503, %v1505
    %v1507 = vrot.slane %v1493, %v1506
    %v1508 = vcombine.high %v1500, %v1500
    %v1509 = vcombine.high %v1507, %v1507
    %v1511 = vunpack.c.l.s4 1966171168
    %v1512 = vunpack.c.0.s8 %v1511
    %v1513 = vlaneseq
    %v1514 = vshrl.u32 %v1513, 7
    %v1515 = vsub.s32 %v1512, %v1514
    %v1516 = vrot.slane %v1500, %v1515
    %v1518 = vunpack.c.l.s4 1966171168
    %v1519 = vunpack.c.0.s8 %v1518
    %v1520 = vlaneseq
    %v1521 = vshrl.u32 %v1520, 7
    %v1522 = vsub.s32 %v1519, %v1521
    %v1523 = vrot.slane %v1507, %v1522
    %v1525 = vunpack.c.l.s4 1966171168
    %v1526 = vunpack.c.0.s8 %v1525
    %v1527 = vlaneseq
    %v1528 = vshrl.u32 %v1527, 7
    %v1529 = vsub.s32 %v1526, %v1528
    %v1530 = vrot.slane %v1508, %v1529
    %v1532 = vunpack.c.l.s4 1966171168
    %v1533 = vunpack.c.0.s8 %v1532
    %v1534 = vlaneseq
    %v1535 = vshrl.u32 %v1534, 7
    %v1536 = vsub.s32 %v1533, %v1535
    %v1537 = vrot.slane %v1509, %v1536
    %v1538 = vcombine.high %v1516, %v1516
    %v1539 = vcombine.high %v1523, %v1523
    %v1540 = vcombine.high %v1530, %v1530
    %v1541 = vcombine.high %v1537, %v1537
    %v1542 = vcombine.high %v29, %v29
    %v1544 = vunpack.c.l.s4 1966171168
    %v1545 = vunpack.c.0.s8 %v1544
    %v1546 = vlaneseq
    %v1547 = vshrl.u32 %v1546, 7
    %v1548 = vsub.s32 %v1545, %v1547
    %v1549 = vrot.slane %v29, %v1548
    %v1551 = vunpack.c.l.s4 1966171168
    %v1552 = vunpack.c.0.s8 %v1551
    %v1553 = vlaneseq
    %v1554 = vshrl.u32 %v1553, 7
    %v1555 = vsub.s32 %v1552, %v1554
    %v1556 = vrot.slane %v1542, %v1555
    %v1557 = vcombine.high %v1549, %v1549
    %v1558 = vcombine.high %v1556, %v1556
    %v1560 = vunpack.c.l.s4 1966171168
    %v1561 = vunpack.c.0.s8 %v1560
    %v1562 = vlaneseq
    %v1563 = vshrl.u32 %v1562, 7
    %v1564 = vsub.s32 %v1561, %v1563
    %v1565 = vrot.slane %v1549, %v1564
    %v1567 = vunpack.c.l.s4 1966171168
    %v1568 = vunpack.c.0.s8 %v1567
    %v1569 = vlaneseq
    %v1570 = vshrl.u32 %v1569, 7
    %v1571 = vsub.s32 %v1568, %v1570
    %v1572 = vrot.slane %v1556, %v1571
    %v1574 = vunpack.c.l.s4 1966171168
    %v1575 = vunpack.c.0.s8 %v1574
    %v1576 = vlaneseq
    %v1577 = vshrl.u32 %v1576, 7
    %v1578 = vsub.s32 %v1575, %v1577
    %v1579 = vrot.slane %v1557, %v1578
    %v1581 = vunpack.c.l.s4 1966171168
    %v1582 = vunpack.c.0.s8 %v1581
    %v1583 = vlaneseq
    %v1584 = vshrl.u32 %v1583, 7
    %v1585 = vsub.s32 %v1582, %v1584
    %v1586 = vrot.slane %v1558, %v1585
    %v1587 = vcombine.high %v1565, %v1565
    %v1588 = vcombine.high %v1572, %v1572
    %v1589 = vcombine.high %v1579, %v1579
    %v1590 = vcombine.high %v1586, %v1586
    %v1591 = vcombine.high %v30, %v30
    %v1593 = vunpack.c.l.s4 1966171168
    %v1594 = vunpack.c.0.s8 %v1593
    %v1595 = vlaneseq
    %v1596 = vshrl.u32 %v1595, 7
    %v1597 = vsub.s32 %v1594, %v1596
    %v1598 = vrot.slane %v30, %v1597
    %v1600 = vunpack.c.l.s4 1966171168
    %v1601 = vunpack.c.0.s8 %v1600
    %v1602 = vlaneseq
    %v1603 = vshrl.u32 %v1602, 7
    %v1604 = vsub.s32 %v1601, %v1603
    %v1605 = vrot.slane %v1591, %v1604
    %v1606 = vcombine.high %v1598, %v1598
    %v1607 = vcombine.high %v1605, %v1605
    %v1609 = vunpack.c.l.s4 1966171168
    %v1610 = vunpack.c.0.s8 %v1609
    %v1611 = vlaneseq
    %v1612 = vshrl.u32 %v1611, 7
    %v1613 = vsub.s32 %v1610, %v1612
    %v1614 = vrot.slane %v1598, %v1613
    %v1616 = vunpack.c.l.s4 1966171168
    %v1617 = vunpack.c.0.s8 %v1616
    %v1618 = vlaneseq
    %v1619 = vshrl.u32 %v1618, 7
    %v1620 = vsub.s32 %v1617, %v1619
    %v1621 = vrot.slane %v1605, %v1620
    %v1623 = vunpack.c.l.s4 1966171168
    %v1624 = vunpack.c.0.s8 %v1623
    %v1625 = vlaneseq
    %v1626 = vshrl.u32 %v1625, 7
    %v1627 = vsub.s32 %v1624, %v1626
    %v1628 = vrot.slane %v1606, %v1627
    %v1630 = vunpack.c.l.s4 1966171168
    %v1631 = vunpack.c.0.s8 %v1630
    %v1632 = vlaneseq
    %v1633 = vshrl.u32 %v1632, 7
    %v1634 = vsub.s32 %v1631, %v1633
    %v1635 = vrot.slane %v1607, %v1634
    %v1636 = vcombine.high %v1614, %v1614
    %v1637 = vcombine.high %v1621, %v1621
    %v1638 = vcombine.high %v1628, %v1628
    %v1639 = vcombine.high %v1635, %v1635
    %v2864 = vunpack.c.l.b16 %v31
    %v2865 = vunpack.c.l.b16 %v32
    %v2866 = vunpack.c.l.b16 %v33
    %v2867 = vunpack.c.l.b16 %v34
    %v2868 = vunpack.c.l.b16 %v35
    %v2869 = vunpack.c.l.b16 %v36
    %v2870 = vunpack.c.l.b16 %v37
    %v2871 = vunpack.c.l.b16 %v38
    %v2872 = vunpack.c.l.b16 %v39
    %v2873 = vunpack.c.l.b16 %v40
    %v2874 = vunpack.c.l.b16 %v41
    %v2875 = vunpack.c.l.b16 %v42
    %v2876 = vunpack.c.l.b16 %v43
    %v2877 = vunpack.c.l.b16 %v44
    %v2878 = vunpack.c.l.b16 %v45
    %v2879 = vunpack.c.l.b16 %v46
    %v2880 = vunpack.c.l.b16 %v47
    %v2881 = vunpack.c.l.b16 %v48
    %v2882 = vunpack.c.l.b16 %v49
    %v2883 = vunpack.c.l.b16 %v50
    %v2884 = vunpack.c.l.b16 %v51
    %v2885 = vunpack.c.l.b16 %v52
    %v2886 = vunpack.c.l.b16 %v53
    %v2887 = vunpack.c.l.b16 %v54
    %v2888 = vunpack.c.l.b16 %v55
    %v2889 = vunpack.c.l.b16 %v56
    %v2890 = vunpack.c.l.b16 %v57
    %v2891 = vunpack.c.l.b16 %v58
    %v2892 = vunpack.c.l.b16 %v59
    %v2893 = vunpack.c.l.b16 %v60
    %v2894 = vunpack.c.l.b16 %v61
    %v2895 = vunpack.c.l.b16 %v62
    %v2896 = vunpack.c.l.b16 %v63
    %v2897 = vunpack.c.l.b16 %v64
    %v2898 = vunpack.c.l.b16 %v65
    %v2899 = vunpack.c.l.b16 %v66
    %v2900 = vunpack.c.l.b16 %v67
    %v2901 = vunpack.c.l.b16 %v68
    %v2902 = vunpack.c.l.b16 %v69
    %v2903 = vunpack.c.l.b16 %v70
    %v2904 = vunpack.c.l.b16 %v71
    %v2905 = vunpack.c.l.b16 %v72
    %v2906 = vunpack.c.l.b16 %v73
    %v2907 = vunpack.c.l.b16 %v74
    %v2908 = vunpack.c.l.b16 %v75
    %v2909 = vunpack.c.l.b16 %v76
    %v2910 = vunpack.c.l.b16 %v77
    %v2911 = vunpack.c.l.b16 %v78
    %v2912 = vunpack.c.l.b16 %v79
    %v2913 = vunpack.c.l.b16 %v80
    %v2914 = vunpack.c.l.b16 %v81
    %v2915 = vunpack.c.l.b16 %v82
    %v2916 = vunpack.c.l.b16 %v83
    %v2917 = vunpack.c.l.b16 %v84
    %v2918 = vunpack.c.l.b16 %v85
    %v2919 = vunpack.c.l.b16 %v86
    %v2920 = vunpack.c.l.b16 %v87
    %v2921 = vunpack.c.l.b16 %v88
    %v2922 = vunpack.c.l.b16 %v89
    %v2923 = vunpack.c.l.b16 %v90
    %v2924 = vunpack.c.l.b16 %v91
    %v2925 = vunpack.c.l.b16 %v92
    %v2926 = vunpack.c.l.b16 %v93
    %v2927 = vunpack.c.l.b16 %v94
    %v2928 = vunpack.c.l.b16 %v95
    %v2929 = vunpack.c.l.b16 %v96
    %v2930 = vunpack.c.l.b16 %v97
    %v2931 = vunpack.c.l.b16 %v98
    %v2932 = vunpack.c.l.b16 %v99
    %v2933 = vunpack.c.l.b16 %v100
    %v2934 = vunpack.c.l.b16 %v101
    %v2935 = vunpack.c.l.b16 %v102
    %v2936 = vunpack.c.l.b16 %v103
    %v2937 = vunpack.c.l.b16 %v104
    %v2938 = vunpack.c.l.b16 %v105
    %v2939 = vunpack.c.l.b16 %v106
    %v2940 = vunpack.c.l.b16 %v107
    %v2941 = vunpack.c.l.b16 %v108
    %v2942 = vunpack.c.l.b16 %v109
    %v2943 = vunpack.c.l.b16 %v110
    %v2944 = vunpack.c.l.b16 %v111
    %v2945 = vunpack.c.l.b16 %v112
    %v2946 = vunpack.c.l.b16 %v113
    %v2947 = vunpack.c.l.b16 %v114
    %v2948 = vunpack.c.l.b16 %v115
    %v2949 = vunpack.c.l.b16 %v116
    %v2950 = vunpack.c.l.b16 %v117
    %v2951 = vunpack.c.l.b16 %v118
    %v2952 = vunpack.c.l.b16 %v119
    %v2953 = vunpack.c.l.b16 %v120
    %v2954 = vunpack.c.l.b16 %v121
    %v2955 = vunpack.c.l.b16 %v122
    %v2956 = vunpack.c.l.b16 %v123
    %v2957 = vunpack.c.l.b16 %v124
    %v2958 = vunpack.c.l.b16 %v125
    %v2959 = vunpack.c.l.b16 %v126
    %v2960 = vunpack.c.l.b16 %v127
    %v2961 = vunpack.c.l.b16 %v128
    %v2962 = vunpack.c.l.b16 %v129
    %v2963 = vunpack.c.l.b16 %v130
    %v2964 = vunpack.c.l.b16 %v131
    %v2965 = vunpack.c.l.b16 %v132
    %v2966 = vunpack.c.l.b16 %v133
    %v2967 = vunpack.c.l.b16 %v134
    %v2968 = vunpack.c.l.b16 %v135
    %v2969 = vunpack.c.l.b16 %v136
    %v2970 = vunpack.c.l.b16 %v137
    %v2971 = vunpack.c.l.b16 %v138
    %v2972 = vunpack.c.l.b16 %v139
    %v2973 = vunpack.c.l.b16 %v140
    %v2974 = vunpack.c.l.b16 %v141
    %v2975 = vunpack.c.l.b16 %v142
    %v2976 = vunpack.c.l.b16 %v143
    %v2977 = vunpack.c.l.b16 %v144
    %v2978 = vunpack.c.l.b16 %v145
    %v2979 = vunpack.c.l.b16 %v146
    %v2980 = vunpack.c.l.b16 %v147
    %v2981 = vunpack.c.l.b16 %v148
    %v2982 = vunpack.c.l.b16 %v149
    %v2983 = vunpack.c.l.b16 %v150
    %v2984 = vunpack.c.l.b16 %v151
    %v2985 = vunpack.c.l.b16 %v152
    %v2986 = vunpack.c.l.b16 %v153
    %v2987 = vunpack.c.l.b16 %v154
    %v2988 = vunpack.c.l.b16 %v155
    %v2989 = vunpack.c.l.b16 %v156
    %v2990 = vunpack.c.l.b16 %v157
    %v2991 = vunpack.c.l.b16 %v158
    %v2992 = vunpack.c.l.b16 %v159
    %v2993 = vunpack.c.l.b16 %v160
    %v2994 = vunpack.c.l.b16 %v161
    %v2995 = vunpack.c.l.b16 %v162
    %v2996 = vunpack.c.l.b16 %v163
    %v2997 = vunpack.c.l.b16 %v164
    %v2998 = vunpack.c.l.b16 %v165
    %v2999 = vunpack.c.l.b16 %v166
    %v3000 = vunpack.c.l.b16 %v167
    %v3001 = vunpack.c.l.b16 %v168
    %v3002 = vunpack.c.l.b16 %v169
    %v3003 = vunpack.c.l.b16 %v170
    %v3004 = vunpack.c.l.b16 %v171
    %v3005 = vunpack.c.l.b16 %v172
    %v3006 = vunpack.c.l.b16 %v173
    %v3007 = vunpack.c.l.b16 %v174
    %v3008 = vunpack.c.l.b16 %v175
    %v3009 = vunpack.c.l.b16 %v176
    %v3010 = vunpack.c.l.b16 %v177
    %v3011 = vunpack.c.l.b16 %v178
    %v3012 = vunpack.c.l.b16 %v179
    %v3013 = vunpack.c.l.b16 %v180
    %v3014 = vunpack.c.l.b16 %v181
    %v3015 = vunpack.c.l.b16 %v182
    %v3016 = vunpack.c.l.b16 %v183
    %v3017 = vunpack.c.l.b16 %v184
    %v3018 = vunpack.c.l.b16 %v185
    %v3019 = vunpack.c.l.b16 %v186
    %v3020 = vunpack.c.l.b16 %v187
    %v3021 = vunpack.c.l.b16 %v188
    %v3022 = vunpack.c.l.b16 %v189
    %v3023 = vunpack.c.l.b16 %v190
    %v3024 = vunpack.c.l.b16 %v191
    %v3025 = vunpack.c.l.b16 %v192
    %v3026 = vunpack.c.l.b16 %v193
    %v3027 = vunpack.c.l.b16 %v194
    %v3028 = vunpack.c.l.b16 %v195
    %v3029 = vunpack.c.l.b16 %v196
    %v3030 = vunpack.c.l.b16 %v197
    %v3031 = vunpack.c.l.b16 %v198
    %v3032 = vunpack.c.l.b16 %v199
    %v3033 = vunpack.c.l.b16 %v200
    %v3034 = vunpack.c.l.b16 %v201
    %v3035 = vunpack.c.l.b16 %v202
    %v3036 = vunpack.c.l.b16 %v203
    %v3037 = vunpack.c.l.b16 %v204
    %v3038 = vunpack.c.l.b16 %v205
    %v3039 = vunpack.c.l.b16 %v206
    %v3040 = vunpack.c.l.b16 %v207
    %v3041 = vunpack.c.l.b16 %v208
    %v3042 = vunpack.c.l.b16 %v209
    %v3043 = vunpack.c.l.b16 %v210
    %v3044 = vunpack.c.l.b16 %v211
    %v3045 = vunpack.c.l.b16 %v212
    %v3046 = vunpack.c.l.b16 %v213
    %v3047 = vunpack.c.l.b16 %v214
    %v3048 = vunpack.c.l.b16 %v215
    %v3049 = vunpack.c.l.b16 %v216
    %v3050 = vunpack.c.l.b16 %v217
    %v3051 = vunpack.c.l.b16 %v218
    %v3052 = vunpack.c.l.b16 %v219
    %v3053 = vunpack.c.l.b16 %v220
    %v3054 = vunpack.c.l.b16 %v221
    %v3055 = vunpack.c.l.b16 %v222
    %v3056 = vunpack.c.l.b16 %v223
    %v3057 = vunpack.c.l.b16 %v224
    %v3058 = vunpack.c.l.b16 %v225
    %v3059 = vunpack.c.l.b16 %v226
    %v3060 = vunpack.c.l.b16 %v227
    %v3061 = vunpack.c.l.b16 %v228
    %v3062 = vunpack.c.l.b16 %v229
    %v3063 = vunpack.c.l.b16 %v230
    %v3064 = vunpack.c.l.b16 %v231
    %v3065 = vunpack.c.l.b16 %v232
    %v3066 = vunpack.c.l.b16 %v233
    %v3067 = vunpack.c.l.b16 %v234
    %v3068 = vunpack.c.l.b16 %v235
    %v3069 = vunpack.c.l.b16 %v236
    %v3070 = vunpack.c.l.b16 %v237
    %v3071 = vunpack.c.l.b16 %v238
    %v3072 = vunpack.c.l.b16 %v239
    %v3073 = vunpack.c.l.b16 %v240
    %v3074 = vunpack.c.l.b16 %v241
    %v3075 = vunpack.c.l.b16 %v242
    %v3076 = vunpack.c.l.b16 %v243
    %v3077 = vunpack.c.l.b16 %v244
    %v3078 = vunpack.c.l.b16 %v245
    %v3079 = vunpack.c.l.b16 %v246
    %v3080 = vunpack.c.l.b16 %v247
    %v3081 = vunpack.c.l.b16 %v248
    %v3082 = vunpack.c.l.b16 %v249
    %v3083 = vunpack.c.l.b16 %v250
    %v3084 = vunpack.c.l.b16 %v251
    %v3085 = vunpack.c.l.b16 %v252
    %v3086 = vunpack.c.l.b16 %v253
    %v3087 = vunpack.c.l.b16 %v254
    %v3088 = vunpack.c.l.b16 %v255
    %v3089 = vunpack.c.l.b16 %v256
    %v3090 = vunpack.c.l.b16 %v257
    %v3091 = vunpack.c.l.b16 %v258
    %v3092 = vunpack.c.l.b16 %v259
    %v3093 = vunpack.c.l.b16 %v260
    %v3094 = vunpack.c.l.b16 %v261
    %v3095 = vunpack.c.l.b16 %v262
    %v3096 = vunpack.c.l.b16 %v263
    %v3097 = vunpack.c.l.b16 %v264
    %v3098 = vunpack.c.l.b16 %v265
    %v3099 = vunpack.c.l.b16 %v266
    %v3100 = vunpack.c.l.b16 %v267
    %v3101 = vunpack.c.l.b16 %v268
    %v3102 = vunpack.c.l.b16 %v269
    %v3103 = vunpack.c.l.b16 %v270
    %v3104 = vunpack.c.l.b16 %v271
    %v3105 = vunpack.c.l.b16 %v272
    %v3106 = vunpack.c.l.b16 %v273
    %v3107 = vunpack.c.l.b16 %v274
    %v3108 = vunpack.c.l.b16 %v275
    %v3109 = vunpack.c.l.b16 %v276
    %v3110 = vunpack.c.l.b16 %v277
    %v3111 = vunpack.c.l.b16 %v278
    %v3112 = vunpack.c.l.b16 %v279
    %v3113 = vunpack.c.l.b16 %v280
    %v3114 = vunpack.c.l.b16 %v281
    %v3115 = vunpack.c.l.b16 %v282
    %v3116 = vunpack.c.l.b16 %v283
    %v3117 = vunpack.c.l.b16 %v284
    %v3118 = vunpack.c.l.b16 %v285
    %v3119 = vunpack.c.l.b16 %v286
    %v3120 = vunpack.c.l.b16 %v287
    %v3121 = vunpack.c.l.b16 %v288
    %v3122 = vunpack.c.l.b16 %v289
    %v3123 = vunpack.c.l.b16 %v290
    %v3124 = vunpack.c.l.b16 %v291
    %v3125 = vunpack.c.l.b16 %v292
    %v3126 = vunpack.c.l.b16 %v293
    %v3127 = vunpack.c.l.b16 %v294
    %v3128 = vunpack.c.l.b16 %v295
    %v3129 = vunpack.c.l.b16 %v296
    %v3130 = vunpack.c.l.b16 %v297
    %v3131 = vunpack.c.l.b16 %v298
    %v3132 = vunpack.c.l.b16 %v299
    %v3133 = vunpack.c.l.b16 %v300
    %v3134 = vunpack.c.l.b16 %v301
    %v3135 = vunpack.c.l.b16 %v302
    %v3136 = vunpack.c.l.b16 %v303
    %v3137 = vunpack.c.l.b16 %v304
    %v3138 = vunpack.c.l.b16 %v305
    %v3139 = vunpack.c.l.b16 %v306
    %v3140 = vunpack.c.l.b16 %v307
    %v3141 = vunpack.c.l.b16 %v308
    %v3142 = vunpack.c.l.b16 %v309
    %v3143 = vunpack.c.l.b16 %v310
    %v3144 = vunpack.c.l.b16 %v311
    %v3145 = vunpack.c.l.b16 %v312
    %v3146 = vunpack.c.l.b16 %v313
    %v3147 = vunpack.c.l.b16 %v314
    %v3148 = vunpack.c.l.b16 %v315
    %v3149 = vunpack.c.l.b16 %v316
    %v3150 = vunpack.c.l.b16 %v317
    %v3151 = vunpack.c.l.b16 %v318
    %v3152 = vunpack.c.l.b16 %v319
    %v3153 = vunpack.c.l.b16 %v320
    %v3154 = vunpack.c.l.b16 %v321
    %v3155 = vunpack.c.l.b16 %v322
    %v3156 = vunpack.c.l.b16 %v323
    %v3157 = vunpack.c.l.b16 %v324
    %v3158 = vunpack.c.l.b16 %v325
    %v3159 = vunpack.c.l.b16 %v326
    %v3160 = vunpack.c.l.b16 %v327
    %v3161 = vunpack.c.l.b16 %v328
    %v3162 = vunpack.c.l.b16 %v329
    %v3163 = vunpack.c.l.b16 %v330
    %v3164 = vunpack.c.l.b16 %v331
    %v3165 = vunpack.c.l.b16 %v332
    %v3166 = vunpack.c.l.b16 %v333
    %v3167 = vunpack.c.l.b16 %v334
    %v3168 = vunpack.c.l.b16 %v335
    %v3169 = vunpack.c.l.b16 %v336
    %v3170 = vunpack.c.l.b16 %v337
    %v3171 = vunpack.c.l.b16 %v338
    %v3172 = vunpack.c.l.b16 %v339
    %v3173 = vunpack.c.l.b16 %v340
    %v3174 = vunpack.c.l.b16 %v341
    %v3175 = vunpack.c.l.b16 %v342
    %v3176 = vunpack.c.l.b16 %v343
    %v3177 = vunpack.c.l.b16 %v344
    %v3178 = vunpack.c.l.b16 %v345
    %v3179 = vunpack.c.l.b16 %v346
    %v3180 = vunpack.c.l.b16 %v347
    %v3181 = vunpack.c.l.b16 %v348
    %v3182 = vunpack.c.l.b16 %v349
    %v3183 = vunpack.c.l.b16 %v350
    %v3184 = vunpack.c.l.b16 %v351
    %v3185 = vunpack.c.l.b16 %v352
    %v3186 = vunpack.c.l.b16 %v353
    %v3187 = vunpack.c.l.b16 %v354
    %v3188 = vunpack.c.l.b16 %v355
    %v3189 = vunpack.c.l.b16 %v356
    %v3190 = vunpack.c.l.b16 %v357
    %v3191 = vunpack.c.l.b16 %v358
    %v3192 = vunpack.c.l.b16 %v359
    %v3193 = vunpack.c.l.b16 %v360
    %v3194 = vunpack.c.l.b16 %v361
    %v3195 = vunpack.c.l.b16 %v362
    %v3196 = vunpack.c.l.b16 %v363
    %v3197 = vunpack.c.l.b16 %v364
    %v3198 = vunpack.c.l.b16 %v365
    %v3199 = vunpack.c.l.b16 %v366
    %v3200 = vunpack.c.l.b16 %v367
    %v3201 = vunpack.c.l.b16 %v368
    %v3202 = vunpack.c.l.b16 %v369
    %v3203 = vunpack.c.l.b16 %v370
    %v3204 = vunpack.c.l.b16 %v371
    %v3205 = vunpack.c.l.b16 %v372
    %v3206 = vunpack.c.l.b16 %v373
    %v3207 = vunpack.c.l.b16 %v374
    %v3208 = vunpack.c.l.b16 %v375
    %v3209 = vunpack.c.l.b16 %v376
    %v3210 = vunpack.c.l.b16 %v377
    %v3211 = vunpack.c.l.b16 %v378
    %v3212 = vunpack.c.l.b16 %v379
    %v3213 = vunpack.c.l.b16 %v380
    %v3214 = vunpack.c.l.b16 %v381
    %v3215 = vunpack.c.l.b16 %v382
    %v3216 = vunpack.c.l.b16 %v383
    %v3217 = vunpack.c.l.b16 %v384
    %v3218 = vunpack.c.l.b16 %v385
    %v3219 = vunpack.c.l.b16 %v386
    %v3220 = vunpack.c.l.b16 %v387
    %v3221 = vunpack.c.l.b16 %v388
    %v3222 = vunpack.c.l.b16 %v389
    %v3223 = vunpack.c.l.b16 %v390
    %v3224 = vunpack.c.l.b16 %v391
    %v3225 = vunpack.c.l.b16 %v392
    %v3226 = vunpack.c.l.b16 %v393
    %v3227 = vunpack.c.l.b16 %v394
    %v3228 = vunpack.c.l.b16 %v395
    %v3229 = vunpack.c.l.b16 %v396
    %v3230 = vunpack.c.l.b16 %v397
    %v3231 = vunpack.c.l.b16 %v398
    %v3232 = vunpack.c.l.b16 %v399
    %v3233 = vunpack.c.l.b16 %v400
    %v3234 = vunpack.c.l.b16 %v401
    %v3235 = vunpack.c.l.b16 %v402
    %v3236 = vunpack.c.l.b16 %v403
    %v3237 = vunpack.c.l.b16 %v404
    %v3238 = vunpack.c.l.b16 %v405
    %v3239 = vunpack.c.l.b16 %v406
    %v3240 = vunpack.c.l.b16 %v407
    %v3241 = vunpack.c.l.b16 %v408
    %v3242 = vunpack.c.l.b16 %v409
    %v3243 = vunpack.c.l.b16 %v410
    %v3244 = vunpack.c.l.b16 %v411
    %v3245 = vunpack.c.l.b16 %v412
    %v3246 = vunpack.c.l.b16 %v413
    %v3247 = vunpack.c.l.b16 %v414
    %v3248 = vunpack.c.l.b16 %v415
    %v3249 = vunpack.c.l.b16 %v416
    %v3250 = vunpack.c.l.b16 %v417
    %v3251 = vunpack.c.l.b16 %v418
    %v3252 = vunpack.c.l.b16 %v419
    %v3253 = vunpack.c.l.b16 %v420
    %v3254 = vunpack.c.l.b16 %v421
    %v3255 = vunpack.c.l.b16 %v422
    %v3256 = vunpack.c.l.b16 %v423
    %v3257 = vunpack.c.l.b16 %v424
    %v3258 = vunpack.c.l.b16 %v425
    %v3259 = vunpack.c.l.b16 %v426
    %v3260 = vunpack.c.l.b16 %v427
    %v3261 = vunpack.c.l.b16 %v428
    %v3262 = vunpack.c.l.b16 %v429
    %v3263 = vunpack.c.l.b16 %v430
    %v3264 = vunpack.c.l.b16 %v431
    %v3265 = vunpack.c.l.b16 %v432
    %v3266 = vunpack.c.l.b16 %v433
    %v3267 = vunpack.c.l.b16 %v434
    %v3268 = vunpack.c.l.b16 %v435
    %v3269 = vunpack.c.l.b16 %v436
    %v3270 = vunpack.c.l.b16 %v437
    %v3271 = vunpack.c.l.b16 %v438
    %v3272 = vunpack.c.l.b16 %v439
    %v3273 = vunpack.c.l.b16 %v440
    %v3274 = vunpack.c.l.b16 %v441
    %v3275 = vunpack.c.l.b16 %v442
    %v3276 = vunpack.c.l.b16 %v443
    %v3277 = vunpack.c.l.b16 %v444
    %v3278 = vunpack.c.l.b16 %v445
    %v3279 = vunpack.c.l.b16 %v446
    %v3280 = vunpack.c.l.b16 %v447
    %v3281 = vunpack.c.l.b16 %v448
    %v3282 = vunpack.c.l.b16 %v449
    %v3283 = vunpack.c.l.b16 %v450
    %v3284 = vunpack.c.l.b16 %v451
    %v3285 = vunpack.c.l.b16 %v452
    %v3286 = vunpack.c.l.b16 %v453
    %v3287 = vunpack.c.l.b16 %v454
    %v3288 = vunpack.c.l.b16 %v455
    %v3289 = vunpack.c.l.b16 %v456
    %v3290 = vunpack.c.l.b16 %v457
    %v3291 = vunpack.c.l.b16 %v458
    %v3292 = vunpack.c.l.b16 %v459
    %v3293 = vunpack.c.l.b16 %v460
    %v3294 = vunpack.c.l.b16 %v461
    %v3295 = vunpack.c.l.b16 %v462
    %v3296 = vunpack.c.l.b16 %v463
    %v3297 = vunpack.c.l.b16 %v464
    %v3298 = vunpack.c.l.b16 %v465
    %v3299 = vunpack.c.l.b16 %v466
    %v3300 = vunpack.c.l.b16 %v467
    %v3301 = vunpack.c.l.b16 %v468
    %v3302 = vunpack.c.l.b16 %v469
    %v3303 = vunpack.c.l.b16 %v470
    %v3304 = vunpack.c.l.b16 %v471
    %v3305 = vunpack.c.l.b16 %v472
    %v3306 = vunpack.c.l.b16 %v473
    %v3307 = vunpack.c.l.b16 %v474
    %v3308 = vunpack.c.l.b16 %v475
    %v3309 = vunpack.c.l.b16 %v476
    %v3310 = vunpack.c.l.b16 %v477
    %v3311 = vunpack.c.l.b16 %v478
    %v3312 = vunpack.c.l.b16 %v479
    %v3313 = vunpack.c.l.b16 %v480
    %v3314 = vunpack.c.l.b16 %v481
    %v3315 = vunpack.c.l.b16 %v482
    %v3316 = vunpack.c.l.b16 %v483
    %v3317 = vunpack.c.l.b16 %v484
    %v3318 = vunpack.c.l.b16 %v485
    %v3319 = vunpack.c.l.b16 %v486
    %v3320 = vunpack.c.l.b16 %v487
    %v3321 = vunpack.c.l.b16 %v488
    %v3322 = vunpack.c.l.b16 %v489
    %v3323 = vunpack.c.l.b16 %v490
    %v3324 = vunpack.c.l.b16 %v491
    %v3325 = vunpack.c.l.b16 %v492
    %v3326 = vunpack.c.l.b16 %v493
    %v3327 = vunpack.c.l.b16 %v494
    %v3328 = vunpack.c.l.b16 %v495
    %v3329 = vunpack.c.l.b16 %v496
    %v3330 = vunpack.c.l.b16 %v497
    %v3331 = vunpack.c.l.b16 %v498
    %v3332 = vunpack.c.l.b16 %v499
    %v3333 = vunpack.c.l.b16 %v500
    %v3334 = vunpack.c.l.b16 %v501
    %v3335 = vunpack.c.l.b16 %v502
    %v3336 = vunpack.c.l.b16 %v503
    %v3337 = vunpack.c.l.b16 %v504
    %v3338 = vunpack.c.l.b16 %v505
    %v3339 = vunpack.c.l.b16 %v506
    %v3340 = vunpack.c.l.b16 %v507
    %v3341 = vunpack.c.l.b16 %v508
    %v3342 = vunpack.c.l.b16 %v509
    %v3343 = vunpack.c.l.b16 %v510
    %v3344 = vunpack.c.l.b16 %v511
    %v3345 = vunpack.c.l.b16 %v512
    %v3346 = vunpack.c.l.b16 %v513
    %v3347 = vunpack.c.l.b16 %v514
    %v3348 = vunpack.c.l.b16 %v515
    %v3349 = vunpack.c.l.b16 %v516
    %v3350 = vunpack.c.l.b16 %v517
    %v3351 = vunpack.c.l.b16 %v518
    %v3352 = vunpack.c.l.b16 %v519
    %v3353 = vunpack.c.l.b16 %v520
    %v3354 = vunpack.c.l.b16 %v521
    %v3355 = vunpack.c.l.b16 %v522
    %v3356 = vunpack.c.l.b16 %v523
    %v3357 = vunpack.c.l.b16 %v524
    %v3358 = vunpack.c.l.b16 %v525
    %v3359 = vunpack.c.l.b16 %v526
    %v3360 = vunpack.c.l.b16 %v527
    %v3361 = vunpack.c.l.b16 %v528
    %v3362 = vunpack.c.l.b16 %v529
    %v3363 = vunpack.c.l.b16 %v530
    %v3364 = vunpack.c.l.b16 %v531
    %v3365 = vunpack.c.l.b16 %v532
    %v3366 = vunpack.c.l.b16 %v533
    %v3367 = vunpack.c.l.b16 %v534
    %v3368 = vunpack.c.l.b16 %v535
    %v3369 = vunpack.c.l.b16 %v536
    %v3370 = vunpack.c.l.b16 %v537
    %v3371 = vunpack.c.l.b16 %v538
    %v3372 = vunpack.c.l.b16 %v539
    %v3373 = vunpack.c.l.b16 %v540
    %v3374 = vunpack.c.l.b16 %v541
    %v3375 = vunpack.c.l.b16 %v542
    %v3376 = vunpack.c.l.b16 %v543
    %v3377 = vunpack.c.l.b16 %v544
    %v3378 = vunpack.c.l.b16 %v545
    %v3379 = vunpack.c.l.b16 %v546
    %v3380 = vunpack.c.l.b16 %v547
    %v3381 = vunpack.c.l.b16 %v548
    %v3382 = vunpack.c.l.b16 %v549
    %v3383 = vunpack.c.l.b16 %v550
    %v3384 = vunpack.c.l.b16 %v551
    %v3385 = vunpack.c.l.b16 %v552
    %v3386 = vunpack.c.l.b16 %v553
    %v3387 = vunpack.c.l.b16 %v554
    %v3388 = vunpack.c.l.b16 %v555
    %v3389 = vunpack.c.l.b16 %v556
    %v3390 = vunpack.c.l.b16 %v557
    %v3391 = vunpack.c.l.b16 %v558
    %v3392 = vunpack.c.l.b16 %v559
    %v3393 = vunpack.c.l.b16 %v560
    %v3394 = vunpack.c.l.b16 %v561
    %v3395 = vunpack.c.l.b16 %v562
    %v3396 = vunpack.c.l.b16 %v563
    %v3397 = vunpack.c.l.b16 %v564
    %v3398 = vunpack.c.l.b16 %v565
    %v3399 = vunpack.c.l.b16 %v566
    %v3400 = vunpack.c.l.b16 %v567
    %v3401 = vunpack.c.l.b16 %v568
    %v3402 = vunpack.c.l.b16 %v569
    %v3403 = vunpack.c.l.b16 %v570
    %v3404 = vunpack.c.l.b16 %v571
    %v3405 = vunpack.c.l.b16 %v572
    %v3406 = vunpack.c.l.b16 %v573
    %v3407 = vunpack.c.l.b16 %v574
    %v3408 = vunpack.c.l.b16 %v575
    %v3409 = vunpack.c.l.b16 %v576
    %v3410 = vunpack.c.l.b16 %v577
    %v3411 = vunpack.c.l.b16 %v578
    %v3412 = vunpack.c.l.b16 %v579
    %v3413 = vunpack.c.l.b16 %v580
    %v3414 = vunpack.c.l.b16 %v581
    %v3415 = vunpack.c.l.b16 %v582
    %v3416 = vunpack.c.l.b16 %v583
    %v3417 = vunpack.c.l.b16 %v584
    %v3418 = vunpack.c.l.b16 %v585
    %v3419 = vunpack.c.l.b16 %v586
    %v3420 = vunpack.c.l.b16 %v587
    %v3421 = vunpack.c.l.b16 %v588
    %v3422 = vunpack.c.l.b16 %v589
    %v3423 = vunpack.c.l.b16 %v590
    %v3424 = vunpack.c.l.b16 %v591
    %v3425 = vunpack.c.l.b16 %v592
    %v3426 = vunpack.c.l.b16 %v593
    %v3427 = vunpack.c.l.b16 %v594
    %v3428 = vunpack.c.l.b16 %v595
    %v3429 = vunpack.c.l.b16 %v596
    %v3430 = vunpack.c.l.b16 %v597
    %v3431 = vunpack.c.l.b16 %v598
    %v3432 = vunpack.c.l.b16 %v599
    %v3433 = vunpack.c.l.b16 %v600
    %v3434 = vunpack.c.l.b16 %v601
    %v3435 = vunpack.c.l.b16 %v602
    %v3436 = vunpack.c.l.b16 %v603
    %v3437 = vunpack.c.l.b16 %v604
    %v3438 = vunpack.c.l.b16 %v605
    %v3439 = vunpack.c.l.b16 %v606
    %v3440 = vunpack.c.l.b16 %v607
    %v3441 = vunpack.c.l.b16 %v608
    %v3442 = vunpack.c.l.b16 %v609
    %v3443 = vunpack.c.l.b16 %v610
    %v3444 = vunpack.c.l.b16 %v611
    %v3445 = vunpack.c.l.b16 %v612
    %v3446 = vunpack.c.l.b16 %v613
    %v3447 = vunpack.c.l.b16 %v614
    %v3448 = vunpack.c.l.b16 %v615
    %v3449 = vunpack.c.l.b16 %v616
    %v3450 = vunpack.c.l.b16 %v617
    %v3451 = vunpack.c.l.b16 %v618
    %v3452 = vunpack.c.l.b16 %v619
    %v3453 = vunpack.c.l.b16 %v620
    %v3454 = vunpack.c.l.b16 %v621
    %v3455 = vunpack.c.l.b16 %v622
    %v3456 = vunpack.c.l.b16 %v623
    %v3457 = vunpack.c.l.b16 %v624
    %v3458 = vunpack.c.l.b16 %v625
    %v3459 = vunpack.c.l.b16 %v626
    %v3460 = vunpack.c.l.b16 %v627
    %v3461 = vunpack.c.l.b16 %v628
    %v3462 = vunpack.c.l.b16 %v629
    %v3463 = vunpack.c.l.b16 %v630
    %v3464 = vunpack.c.l.b16 %v631
    %v3465 = vunpack.c.l.b16 %v632
    %v3466 = vunpack.c.l.b16 %v633
    %v3467 = vunpack.c.l.b16 %v634
    %v3468 = vunpack.c.l.b16 %v635
    %v3469 = vunpack.c.l.b16 %v636
    %v3470 = vunpack.c.l.b16 %v637
    %v3471 = vunpack.c.l.b16 %v638
    %v3472 = vunpack.c.l.b16 %v639
    %v3473 = vunpack.c.l.b16 %v640
    %v3474 = vunpack.c.l.b16 %v641
    %v3475 = vunpack.c.l.b16 %v642
    %v3476 = vunpack.c.l.b16 %v643
    %v3477 = vunpack.c.l.b16 %v644
    %v3478 = vunpack.c.l.b16 %v645
    %v3479 = vunpack.c.l.b16 %v646
    %v3480 = vunpack.c.l.b16 %v647
    %v3481 = vunpack.c.l.b16 %v648
    %v3482 = vunpack.c.l.b16 %v649
    %v3483 = vunpack.c.l.b16 %v650
    %v3484 = vunpack.c.l.b16 %v651
    %v3485 = vunpack.c.l.b16 %v652
    %v3486 = vunpack.c.l.b16 %v653
    %v3487 = vunpack.c.l.b16 %v654
    %v3488 = vunpack.c.l.b16 %v655
    %v3489 = vunpack.c.l.b16 %v656
    %v3490 = vunpack.c.l.b16 %v657
    %v3491 = vunpack.c.l.b16 %v658
    %v3492 = vunpack.c.l.b16 %v659
    %v3493 = vunpack.c.l.b16 %v660
    %v3494 = vunpack.c.l.b16 %v661
    %v3495 = vunpack.c.l.b16 %v662
    %v3496 = vunpack.c.l.b16 %v663
    %v3497 = vunpack.c.l.b16 %v664
    %v3498 = vunpack.c.l.b16 %v665
    %v3499 = vunpack.c.l.b16 %v666
    %v3500 = vunpack.c.l.b16 %v667
    %v3501 = vunpack.c.l.b16 %v668
    %v3502 = vunpack.c.l.b16 %v669
    %v3503 = vunpack.c.l.b16 %v670
    %v3504 = vunpack.c.l.b16 %v671
    %v3505 = vunpack.c.l.b16 %v672
    %v3506 = vunpack.c.l.b16 %v673
    %v3507 = vunpack.c.l.b16 %v674
    %v3508 = vunpack.c.l.b16 %v675
    %v3509 = vunpack.c.l.b16 %v676
    %v3510 = vunpack.c.l.b16 %v677
    %v3511 = vunpack.c.l.b16 %v678
    %v3512 = vunpack.c.l.b16 %v679
    %v3513 = vunpack.c.l.b16 %v680
    %v3514 = vunpack.c.l.b16 %v681
    %v3515 = vunpack.c.l.b16 %v682
    %v3516 = vunpack.c.l.b16 %v683
    %v3517 = vunpack.c.l.b16 %v684
    %v3518 = vunpack.c.l.b16 %v685
    %v3519 = vunpack.c.l.b16 %v686
    %v3520 = vunpack.c.l.b16 %v687
    %v3521 = vunpack.c.l.b16 %v688
    %v3522 = vunpack.c.l.b16 %v689
    %v3523 = vunpack.c.l.b16 %v690
    %v3524 = vunpack.c.l.b16 %v691
    %v3525 = vunpack.c.l.b16 %v692
    %v3526 = vunpack.c.l.b16 %v693
    %v3527 = vunpack.c.l.b16 %v694
    %v3528 = vunpack.c.l.b16 %v695
    %v3529 = vunpack.c.l.b16 %v696
    %v3530 = vunpack.c.l.b16 %v697
    %v3531 = vunpack.c.l.b16 %v698
    %v3532 = vunpack.c.l.b16 %v699
    %v3533 = vunpack.c.l.b16 %v700
    %v3534 = vunpack.c.l.b16 %v701
    %v3535 = vunpack.c.l.b16 %v702
    %v3536 = vunpack.c.l.b16 %v703
    %v3537 = vunpack.c.l.b16 %v704
    %v3538 = vunpack.c.l.b16 %v705
    %v3539 = vunpack.c.l.b16 %v706
    %v3540 = vunpack.c.l.b16 %v707
    %v3541 = vunpack.c.l.b16 %v708
    %v3542 = vunpack.c.l.b16 %v709
    %v3543 = vunpack.c.l.b16 %v710
    %v3544 = vunpack.c.l.b16 %v711
    %v3545 = vunpack.c.l.b16 %v712
    %v3546 = vunpack.c.l.b16 %v713
    %v3547 = vunpack.c.l.b16 %v714
    %v3548 = vunpack.c.l.b16 %v715
    %v3549 = vunpack.c.l.b16 %v716
    %v3550 = vunpack.c.l.b16 %v717
    %v3551 = vunpack.c.l.b16 %v718
    %v3552 = vunpack.c.l.b16 %v719
    %v3553 = vunpack.c.l.b16 %v720
    %v3554 = vunpack.c.l.b16 %v721
    %v3555 = vunpack.c.l.b16 %v722
    %v3556 = vunpack.c.l.b16 %v723
    %v3557 = vunpack.c.l.b16 %v724
    %v3558 = vunpack.c.l.b16 %v725
    %v3559 = vunpack.c.l.b16 %v726
    %v3560 = vunpack.c.l.b16 %v727
    %v3561 = vunpack.c.l.b16 %v728
    %v3562 = vunpack.c.l.b16 %v729
    %v3563 = vunpack.c.l.b16 %v730
    %v3564 = vunpack.c.l.b16 %v731
    %v3565 = vunpack.c.l.b16 %v732
    %v3566 = vunpack.c.l.b16 %v733
    %v3567 = vunpack.c.l.b16 %v734
    %v3568 = vunpack.c.l.b16 %v735
    %v3569 = vunpack.c.l.b16 %v736
    %v3570 = vunpack.c.l.b16 %v737
    %v3571 = vunpack.c.l.b16 %v738
    %v3572 = vunpack.c.l.b16 %v739
    %v3573 = vunpack.c.l.b16 %v740
    %v3574 = vunpack.c.l.b16 %v741
    %v3575 = vunpack.c.l.b16 %v742
    %v3576 = vunpack.c.l.b16 %v743
    %v3577 = vunpack.c.l.b16 %v744
    %v3578 = vunpack.c.l.b16 %v745
    %v3579 = vunpack.c.l.b16 %v746
    %v3580 = vunpack.c.l.b16 %v747
    %v3581 = vunpack.c.l.b16 %v748
    %v3582 = vunpack.c.l.b16 %v749
    %v3583 = vunpack.c.l.b16 %v750
    %v3584 = vunpack.c.l.b16 %v751
    %v3585 = vunpack.c.l.b16 %v752
    %v3586 = vunpack.c.l.b16 %v753
    %v3587 = vunpack.c.l.b16 %v754
    %v3588 = vunpack.c.l.b16 %v755
    %v3589 = vunpack.c.l.b16 %v756
    %v3590 = vunpack.c.l.b16 %v757
    %v3591 = vunpack.c.l.b16 %v758
    %v3592 = vunpack.c.l.b16 %v759
    %v3593 = vunpack.c.l.b16 %v760
    %v3594 = vunpack.c.l.b16 %v761
    %v3595 = vunpack.c.l.b16 %v762
    %v3596 = vunpack.c.l.b16 %v763
    %v3597 = vunpack.c.l.b16 %v764
    %v3598 = vunpack.c.l.b16 %v765
    %v3599 = vunpack.c.l.b16 %v766
    %v3600 = vunpack.c.l.b16 %v767
    %v3601 = vunpack.c.l.b16 %v768
    %v3602 = vunpack.c.l.b16 %v769
    %v3603 = vunpack.c.l.b16 %v770
    %v3604 = vunpack.c.l.b16 %v771
    %v3605 = vunpack.c.l.b16 %v772
    %v3606 = vunpack.c.l.b16 %v773
    %v3607 = vunpack.c.l.b16 %v774
    %v3608 = vunpack.c.l.b16 %v775
    %v3609 = vunpack.c.l.b16 %v776
    %v3610 = vunpack.c.l.b16 %v777
    %v3611 = vunpack.c.l.b16 %v778
    %v3612 = vunpack.c.l.b16 %v779
    %v3613 = vunpack.c.l.b16 %v780
    %v3614 = vunpack.c.l.b16 %v781
    %v3615 = vunpack.c.l.b16 %v782
    %v3616 = vunpack.c.l.b16 %v783
    %v3617 = vunpack.c.l.b16 %v784
    %v3618 = vunpack.c.l.b16 %v785
    %v3619 = vunpack.c.l.b16 %v786
    %v3620 = vunpack.c.l.b16 %v787
    %v3621 = vunpack.c.l.b16 %v788
    %v3622 = vunpack.c.l.b16 %v789
    %v3623 = vunpack.c.l.b16 %v790
    %v3624 = vunpack.c.l.b16 %v791
    %v3625 = vunpack.c.l.b16 %v792
    %v3626 = vunpack.c.l.b16 %v793
    %v3627 = vunpack.c.l.b16 %v794
    %v3628 = vunpack.c.l.b16 %v795
    %v3629 = vunpack.c.l.b16 %v796
    %v3630 = vunpack.c.l.b16 %v797
    %v3631 = vunpack.c.l.b16 %v798
    %v3632 = vunpack.c.l.b16 %v799
    %v3633 = vunpack.c.l.b16 %v800
    %v3634 = vunpack.c.l.b16 %v801
    %v3635 = vunpack.c.l.b16 %v802
    %v3636 = vunpack.c.l.b16 %v803
    %v3637 = vunpack.c.l.b16 %v804
    %v3638 = vunpack.c.l.b16 %v805
    %v3639 = vunpack.c.l.b16 %v806
    %v3640 = vunpack.c.l.b16 %v807
    %v3641 = vunpack.c.l.b16 %v808
    %v3642 = vunpack.c.l.b16 %v809
    %v3643 = vunpack.c.l.b16 %v810
    %v3644 = vunpack.c.l.b16 %v811
    %v3645 = vunpack.c.l.b16 %v812
    %v3646 = vunpack.c.l.b16 %v813
    %v3647 = vunpack.c.l.b16 %v814
    %v3648 = vunpack.c.l.b16 %v815
    %v3649 = vunpack.c.l.b16 %v816
    %v3650 = vunpack.c.l.b16 %v817
    %v3651 = vunpack.c.l.b16 %v818
    %v3652 = vunpack.c.l.b16 %v819
    %v3653 = vunpack.c.l.b16 %v820
    %v3654 = vunpack.c.l.b16 %v821
    %v3655 = vunpack.c.l.b16 %v822
    %v3656 = vunpack.c.l.b16 %v823
    %v3657 = vunpack.c.l.b16 %v824
    %v3658 = vunpack.c.l.b16 %v825
    %v3659 = vunpack.c.l.b16 %v826
    %v3660 = vunpack.c.l.b16 %v827
    %v3661 = vunpack.c.l.b16 %v828
    %v3662 = vunpack.c.l.b16 %v829
    %v3663 = vunpack.c.l.b16 %v830
    %v3664 = vunpack.c.l.b16 %v831
    %v3665 = vunpack.c.l.b16 %v832
    %v3666 = vunpack.c.l.b16 %v833
    %v3667 = vunpack.c.l.b16 %v834
    %v3668 = vunpack.c.l.b16 %v835
    %v3669 = vunpack.c.l.b16 %v836
    %v3670 = vunpack.c.l.b16 %v837
    %v3671 = vunpack.c.l.b16 %v838
    %v3672 = vunpack.c.l.b16 %v839
    %v3673 = vunpack.c.l.b16 %v840
    %v3674 = vunpack.c.l.b16 %v841
    %v3675 = vunpack.c.l.b16 %v842
    %v3676 = vunpack.c.l.b16 %v843
    %v3677 = vunpack.c.l.b16 %v844
    %v3678 = vunpack.c.l.b16 %v845
    %v3679 = vunpack.c.l.b16 %v846
    %v3680 = vunpack.c.l.b16 %v847
    %v3681 = vunpack.c.l.b16 %v848
    %v3682 = vunpack.c.l.b16 %v849
    %v3683 = vunpack.c.l.b16 %v850
    %v3684 = vunpack.c.l.b16 %v851
    %v3685 = vunpack.c.l.b16 %v852
    %v3686 = vunpack.c.l.b16 %v853
    %v3687 = vunpack.c.l.b16 %v854
    %v3688 = vunpack.c.l.b16 %v855
    %v3689 = vunpack.c.l.b16 %v856
    %v3690 = vunpack.c.l.b16 %v857
    %v3691 = vunpack.c.l.b16 %v858
    %v3692 = vunpack.c.l.b16 %v859
    %v3693 = vunpack.c.l.b16 %v860
    %v3694 = vunpack.c.l.b16 %v861
    %v3695 = vunpack.c.l.b16 %v862
    %v3696 = vunpack.c.l.b16 %v863
    %v3697 = vunpack.c.l.b16 %v864
    %v3698 = vunpack.c.l.b16 %v865
    %v3699 = vunpack.c.l.b16 %v866
    %v3700 = vunpack.c.l.b16 %v867
    %v3701 = vunpack.c.l.b16 %v868
    %v3702 = vunpack.c.l.b16 %v869
    %v3703 = vunpack.c.l.b16 %v870
    %v3704 = vunpack.c.l.b16 %v871
    %v3705 = vunpack.c.l.b16 %v872
    %v3706 = vunpack.c.l.b16 %v873
    %v3707 = vunpack.c.l.b16 %v874
    %v3708 = vunpack.c.l.b16 %v875
    %v3709 = vunpack.c.l.b16 %v876
    %v3710 = vunpack.c.l.b16 %v877
    %v3711 = vunpack.c.l.b16 %v878
    %v3712 = vunpack.c.l.b16 %v879
    %v3713 = vunpack.c.l.b16 %v880
    %v3714 = vunpack.c.l.b16 %v881
    %v3715 = vunpack.c.l.b16 %v882
    %v3716 = vunpack.c.l.b16 %v883
    %v3717 = vunpack.c.l.b16 %v884
    %v3718 = vunpack.c.l.b16 %v885
    %v3719 = vunpack.c.l.b16 %v886
    %v3720 = vunpack.c.l.b16 %v887
    %v3721 = vunpack.c.l.b16 %v888
    %v3722 = vunpack.c.l.b16 %v889
    %v3723 = vunpack.c.l.b16 %v890
    %v3724 = vunpack.c.l.b16 %v891
    %v3725 = vunpack.c.l.b16 %v892
    %v3726 = vunpack.c.l.b16 %v893
    %v3727 = vunpack.c.l.b16 %v894
    %v3728 = vunpack.c.l.b16 %v895
    %v3729 = vunpack.c.l.b16 %v896
    %v3730 = vunpack.c.l.b16 %v897
    %v3731 = vunpack.c.l.b16 %v898
    %v3732 = vunpack.c.l.b16 %v899
    %v3733 = vunpack.c.l.b16 %v900
    %v3734 = vunpack.c.l.b16 %v901
    %v3735 = vunpack.c.l.b16 %v902
    %v3736 = vunpack.c.l.b16 %v903
    %v3737 = vunpack.c.l.b16 %v904
    %v3738 = vunpack.c.l.b16 %v905
    %v3739 = vunpack.c.l.b16 %v906
    %v3740 = vunpack.c.l.b16 %v907
    %v3741 = vunpack.c.l.b16 %v908
    %v3742 = vunpack.c.l.b16 %v909
    %v3743 = vunpack.c.l.b16 %v910
    %v3744 = vunpack.c.l.b16 %v911
    %v3745 = vunpack.c.l.b16 %v912
    %v3746 = vunpack.c.l.b16 %v913
    %v3747 = vunpack.c.l.b16 %v914
    %v3748 = vunpack.c.l.b16 %v915
    %v3749 = vunpack.c.l.b16 %v916
    %v3750 = vunpack.c.l.b16 %v917
    %v3751 = vunpack.c.l.b16 %v918
    %v3752 = vunpack.c.l.b16 %v919
    %v3753 = vunpack.c.l.b16 %v920
    %v3754 = vunpack.c.l.b16 %v921
    %v3755 = vunpack.c.l.b16 %v922
    %v3756 = vunpack.c.l.b16 %v923
    %v3757 = vunpack.c.l.b16 %v924
    %v3758 = vunpack.c.l.b16 %v925
    %v3759 = vunpack.c.l.b16 %v926
    %v3760 = vunpack.c.l.b16 %v927
    %v3761 = vunpack.c.l.b16 %v928
    %v3762 = vunpack.c.l.b16 %v929
    %v3763 = vunpack.c.l.b16 %v930
    %v3764 = vunpack.c.l.b16 %v931
    %v3765 = vunpack.c.l.b16 %v932
    %v3766 = vunpack.c.l.b16 %v933
    %v3767 = vunpack.c.l.b16 %v934
    %v3768 = vunpack.c.l.b16 %v935
    %v3769 = vunpack.c.l.b16 %v936
    %v3770 = vunpack.c.l.b16 %v937
    %v3771 = vunpack.c.l.b16 %v938
    %v3772 = vunpack.c.l.b16 %v939
    %v3773 = vunpack.c.l.b16 %v940
    %v3774 = vunpack.c.l.b16 %v941
    %v3775 = vunpack.c.l.b16 %v942
    %v3776 = vunpack.c.l.b16 %v943
    %v3777 = vunpack.c.l.b16 %v944
    %v3778 = vunpack.c.l.b16 %v945
    %v3779 = vunpack.c.l.b16 %v946
    %v3780 = vunpack.c.l.b16 %v947
    %v3781 = vunpack.c.l.b16 %v948
    %v3782 = vunpack.c.l.b16 %v949
    %v3783 = vunpack.c.l.b16 %v950
    %v3784 = vunpack.c.l.b16 %v951
    %v3785 = vunpack.c.l.b16 %v952
    %v3786 = vunpack.c.l.b16 %v953
    %v3787 = vunpack.c.l.b16 %v954
    %v3788 = vunpack.c.l.b16 %v955
    %v3789 = vunpack.c.l.b16 %v956
    %v3790 = vunpack.c.l.b16 %v957
    %v3791 = vunpack.c.l.b16 %v958
    %v3792 = vunpack.c.l.b16 %v959
    %v3793 = vunpack.c.l.b16 %v960
    %v3794 = vunpack.c.l.b16 %v961
    %v3795 = vunpack.c.l.b16 %v962
    %v3796 = vunpack.c.l.b16 %v963
    %v3797 = vunpack.c.l.b16 %v964
    %v3798 = vunpack.c.l.b16 %v965
    %v3799 = vunpack.c.l.b16 %v966
    %v3800 = vunpack.c.l.b16 %v967
    %v3801 = vunpack.c.l.b16 %v968
    %v3802 = vunpack.c.l.b16 %v969
    %v3803 = vunpack.c.l.b16 %v970
    %v3804 = vunpack.c.l.b16 %v971
    %v3805 = vunpack.c.l.b16 %v972
    %v3806 = vunpack.c.l.b16 %v973
    %v3807 = vunpack.c.l.b16 %v974
    %v3808 = vunpack.c.l.b16 %v975
    %v3809 = vunpack.c.l.b16 %v976
    %v3810 = vunpack.c.l.b16 %v977
    %v3811 = vunpack.c.l.b16 %v978
    %v3812 = vunpack.c.l.b16 %v979
    %v3813 = vunpack.c.l.b16 %v980
    %v3814 = vunpack.c.l.b16 %v981
    %v3815 = vunpack.c.l.b16 %v982
    %v3816 = vunpack.c.l.b16 %v983
    %v3817 = vunpack.c.l.b16 %v984
    %v3818 = vunpack.c.l.b16 %v985
    %v3819 = vunpack.c.l.b16 %v986
    %v3820 = vunpack.c.l.b16 %v987
    %v3821 = vunpack.c.l.b16 %v988
    %v3822 = vunpack.c.l.b16 %v989
    %v3823 = vunpack.c.l.b16 %v990
    %v3824 = vunpack.c.l.b16 %v991
    %v3825 = vunpack.c.l.b16 %v992
    %v3826 = vunpack.c.l.b16 %v993
    %v3827 = vunpack.c.l.b16 %v994
    %v3828 = vunpack.c.l.b16 %v995
    %v3829 = vunpack.c.l.b16 %v996
    %v3830 = vunpack.c.l.b16 %v997
    %v3831 = vunpack.c.l.b16 %v998
    %v3832 = vunpack.c.l.b16 %v999
    %v3833 = vunpack.c.l.b16 %v1000
    %v3834 = vunpack.c.l.b16 %v1001
    %v3835 = vunpack.c.l.b16 %v1002
    %v3836 = vunpack.c.l.b16 %v1003
    %v3837 = vunpack.c.l.b16 %v1004
    %v3838 = vunpack.c.l.b16 %v1005
    %v3839 = vunpack.c.l.b16 %v1006
    %v3840 = vunpack.c.l.b16 %v1007
    %v3841 = vunpack.c.l.b16 %v1008
    %v3842 = vunpack.c.l.b16 %v1009
    %v3843 = vunpack.c.l.b16 %v1010
    %v3844 = vunpack.c.l.b16 %v1011
    %v3845 = vunpack.c.l.b16 %v1012
    %v3846 = vunpack.c.l.b16 %v1013
    %v3847 = vunpack.c.l.b16 %v1014
    %v3848 = vunpack.c.l.b16 %v1015
    %v3849 = vunpack.c.l.b16 %v1016
    %v3850 = vunpack.c.l.b16 %v1017
    %v3851 = vunpack.c.l.b16 %v1018
    %v3852 = vunpack.c.l.b16 %v1019
    %v3853 = vunpack.c.l.b16 %v1020
    %v3854 = vunpack.c.l.b16 %v1021
    %v3855 = vunpack.c.l.b16 %v1022
    %v3856 = vunpack.c.l.b16 %v1023
    %v3857 = vunpack.c.l.b16 %v1024
    %v3858 = vunpack.c.l.b16 %v1025
    %v3859 = vunpack.c.l.b16 %v1026
    %v3860 = vunpack.c.l.b16 %v1027
    %v3861 = vunpack.c.l.b16 %v1028
    %v3862 = vunpack.c.l.b16 %v1029
    %v3863 = vunpack.c.l.b16 %v1030
    %v3864 = vunpack.c.l.b16 %v1031
    %v3865 = vunpack.c.l.b16 %v1032
    %v3866 = vunpack.c.l.b16 %v1033
    %v3867 = vunpack.c.l.b16 %v1034
    %v3868 = vunpack.c.l.b16 %v1035
    %v3869 = vunpack.c.l.b16 %v1036
    %v3870 = vunpack.c.l.b16 %v1037
    %v3871 = vunpack.c.l.b16 %v1038
    %v3872 = vunpack.c.l.b16 %v1039
    %v3873 = vunpack.c.l.b16 %v1040
    %v3874 = vunpack.c.l.b16 %v1041
    %v3875 = vunpack.c.l.b16 %v1042
    %v3876 = vunpack.c.l.b16 %v1043
    %v3877 = vunpack.c.l.b16 %v1044
    %v3878 = vunpack.c.l.b16 %v1045
    %v3879 = vunpack.c.l.b16 %v1046
    %v3880 = vunpack.c.l.b16 %v1047
    %v3881 = vunpack.c.l.b16 %v1048
    %v3882 = vunpack.c.l.b16 %v1049
    %v3883 = vunpack.c.l.b16 %v1050
    %v3884 = vunpack.c.l.b16 %v1051
    %v3885 = vunpack.c.l.b16 %v1052
    %v3886 = vunpack.c.l.b16 %v1053
    %v3887 = vunpack.c.l.b16 %v1054
    %v3888 = vunpack.c.l.b16 %v1055
    %v3889 = vunpack.c.l.b16 %v1056
    %v3890 = vunpack.c.l.b16 %v1057
    %v3891 = vunpack.c.l.b16 %v1058
    %v3892 = vunpack.c.l.b16 %v1059
    %v3893 = vunpack.c.l.b16 %v1060
    %v3894 = vunpack.c.l.b16 %v1061
    %v3895 = vunpack.c.l.b16 %v1062
    %v3896 = vunpack.c.l.b16 %v1063
    %v3897 = vunpack.c.l.b16 %v1064
    %v3898 = vunpack.c.l.b16 %v1065
    %v3899 = vunpack.c.l.b16 %v1066
    %v3900 = vunpack.c.l.b16 %v1067
    %v3901 = vunpack.c.l.b16 %v1068
    %v3902 = vunpack.c.l.b16 %v1069
    %v3903 = vunpack.c.l.b16 %v1070
    %v3904 = vunpack.c.l.b16 %v1071
    %v3905 = vunpack.c.l.b16 %v1072
    %v3906 = vunpack.c.l.b16 %v1073
    %v3907 = vunpack.c.l.b16 %v1074
    %v3908 = vunpack.c.l.b16 %v1075
    %v3909 = vunpack.c.l.b16 %v1076
    %v3910 = vunpack.c.l.b16 %v1077
    %v3911 = vunpack.c.l.b16 %v1078
    %v3912 = vunpack.c.l.b16 %v1079
    %v3913 = vunpack.c.l.b16 %v1080
    %v3914 = vunpack.c.l.b16 %v1081
    %v3915 = vunpack.c.l.b16 %v1082
    %v3916 = vunpack.c.l.b16 %v1083
    %v3917 = vunpack.c.l.b16 %v1084
    %v3918 = vunpack.c.l.b16 %v1085
    %v3919 = vunpack.c.l.b16 %v1086
    %v3920 = vunpack.c.l.b16 %v1087
    %v3921 = vunpack.c.l.b16 %v1088
    %v3922 = vunpack.c.l.b16 %v1089
    %v3923 = vunpack.c.l.b16 %v1090
    %v3924 = vunpack.c.l.b16 %v1091
    %v3925 = vunpack.c.l.b16 %v1092
    %v3926 = vunpack.c.l.b16 %v1093
    %v3927 = vunpack.c.l.b16 %v1094
    %v3928 = vunpack.c.l.b16 %v1095
    %v3929 = vunpack.c.l.b16 %v1096
    %v3930 = vunpack.c.l.b16 %v1097
    %v3931 = vunpack.c.l.b16 %v1098
    %v3932 = vunpack.c.l.b16 %v1099
    %v3933 = vunpack.c.l.b16 %v1100
    %v3934 = vunpack.c.l.b16 %v1101
    %v3935 = vunpack.c.l.b16 %v1102
    %v3936 = vunpack.c.l.b16 %v1103
    %v3937 = vunpack.c.l.b16 %v1104
    %v3938 = vunpack.c.l.b16 %v1105
    %v3939 = vunpack.c.l.b16 %v1106
    %v3940 = vunpack.c.l.b16 %v1107
    %v3941 = vunpack.c.l.b16 %v1108
    %v3942 = vunpack.c.l.b16 %v1109
    %v3943 = vunpack.c.l.b16 %v1110
    %v3944 = vunpack.c.l.b16 %v1111
    %v3945 = vunpack.c.l.b16 %v1112
    %v3946 = vunpack.c.l.b16 %v1113
    %v3947 = vunpack.c.l.b16 %v1114
    %v3948 = vunpack.c.l.b16 %v1115
    %v3949 = vunpack.c.l.b16 %v1116
    %v3950 = vunpack.c.l.b16 %v1117
    %v3951 = vunpack.c.l.b16 %v1118
    %v3952 = vunpack.c.l.b16 %v1119
    %v3953 = vunpack.c.l.b16 %v1120
    %v3954 = vunpack.c.l.b16 %v1121
    %v3955 = vunpack.c.l.b16 %v1122
    %v3956 = vunpack.c.l.b16 %v1123
    %v3957 = vunpack.c.l.b16 %v1124
    %v3958 = vunpack.c.l.b16 %v1125
    %v3959 = vunpack.c.l.b16 %v1126
    %v3960 = vunpack.c.l.b16 %v1127
    %v3961 = vunpack.c.l.b16 %v1128
    %v3962 = vunpack.c.l.b16 %v1129
    %v3963 = vunpack.c.l.b16 %v1130
    %v3964 = vunpack.c.l.b16 %v1131
    %v3965 = vunpack.c.l.b16 %v1132
    %v3966 = vunpack.c.l.b16 %v1133
    %v3967 = vunpack.c.l.b16 %v1134
    %v3968 = vunpack.c.l.b16 %v1135
    %v3969 = vunpack.c.l.b16 %v1136
    %v3970 = vunpack.c.l.b16 %v1137
    %v3971 = vunpack.c.l.b16 %v1138
    %v3972 = vunpack.c.l.b16 %v1139
    %v3973 = vunpack.c.l.b16 %v1140
    %v3974 = vunpack.c.l.b16 %v1141
    %v3975 = vunpack.c.l.b16 %v1142
    %v3976 = vunpack.c.l.b16 %v1143
    %v3977 = vunpack.c.l.b16 %v1144
    %v3978 = vunpack.c.l.b16 %v1145
    %v3979 = vunpack.c.l.b16 %v1146
    %v3980 = vunpack.c.l.b16 %v1147
    %v3981 = vunpack.c.l.b16 %v1148
    %v3982 = vunpack.c.l.b16 %v1149
    %v3983 = vunpack.c.l.b16 %v1150
    %v3984 = vunpack.c.l.b16 %v1151
    %v3985 = vunpack.c.l.b16 %v1152
    %v3986 = vunpack.c.l.b16 %v1153
    %v3987 = vunpack.c.l.b16 %v1154
    %v3988 = vunpack.c.l.b16 %v1155
    %v3989 = vunpack.c.l.b16 %v1156
    %v3990 = vunpack.c.l.b16 %v1157
    %v3991 = vunpack.c.l.b16 %v1158
    %v3992 = vunpack.c.l.b16 %v1159
    %v3993 = vunpack.c.l.b16 %v1160
    %v3994 = vunpack.c.l.b16 %v1161
    %v3995 = vunpack.c.l.b16 %v1162
    %v3996 = vunpack.c.l.b16 %v1163
    %v3997 = vunpack.c.l.b16 %v1164
    %v3998 = vunpack.c.l.b16 %v1165
    %v3999 = vunpack.c.l.b16 %v1166
    %v4000 = vunpack.c.l.b16 %v1167
    %v4001 = vunpack.c.l.b16 %v1168
    %v4002 = vunpack.c.l.b16 %v1169
    %v4003 = vunpack.c.l.b16 %v1170
    %v4004 = vunpack.c.l.b16 %v1171
    %v4005 = vunpack.c.l.b16 %v1172
    %v4006 = vunpack.c.l.b16 %v1173
    %v4007 = vunpack.c.l.b16 %v1174
    %v4008 = vunpack.c.l.b16 %v1175
    %v4009 = vunpack.c.l.b16 %v1176
    %v4010 = vunpack.c.l.b16 %v1177
    %v4011 = vunpack.c.l.b16 %v1178
    %v4012 = vunpack.c.l.b16 %v1179
    %v4013 = vunpack.c.l.b16 %v1180
    %v4014 = vunpack.c.l.b16 %v1181
    %v4015 = vunpack.c.l.b16 %v1182
    %v4016 = vpack.c.b16 %v2865, %v2864
    %v4017 = vpack.c.b16 %v2867, %v2866
    %v4018 = vpack.c.b16 %v2869, %v2868
    %v4019 = vpack.c.b16 %v2871, %v2870
    %v4020 = vpack.c.b16 %v2873, %v2872
    %v4021 = vpack.c.b16 %v2875, %v2874
    %v4022 = vpack.c.b16 %v2877, %v2876
    %v4023 = vpack.c.b16 %v2879, %v2878
    %v4024 = vpack.c.b16 %v2881, %v2880
    %v4025 = vpack.c.b16 %v2883, %v2882
    %v4026 = vpack.c.b16 %v2885, %v2884
    %v4027 = vpack.c.b16 %v2887, %v2886
    %v4028 = vpack.c.b16 %v2889, %v2888
    %v4029 = vpack.c.b16 %v2891, %v2890
    %v4030 = vpack.c.b16 %v2893, %v2892
    %v4031 = vpack.c.b16 %v2895, %v2894
    %v4032 = vpack.c.b16 %v2897, %v2896
    %v4033 = vpack.c.b16 %v2899, %v2898
    %v4034 = vpack.c.b16 %v2901, %v2900
    %v4035 = vpack.c.b16 %v2903, %v2902
    %v4036 = vpack.c.b16 %v2905, %v2904
    %v4037 = vpack.c.b16 %v2907, %v2906
    %v4038 = vpack.c.b16 %v2909, %v2908
    %v4039 = vpack.c.b16 %v2911, %v2910
    %v4040 = vpack.c.b16 %v2913, %v2912
    %v4041 = vpack.c.b16 %v2915, %v2914
    %v4042 = vpack.c.b16 %v2917, %v2916
    %v4043 = vpack.c.b16 %v2919, %v2918
    %v4044 = vpack.c.b16 %v2921, %v2920
    %v4045 = vpack.c.b16 %v2923, %v2922
    %v4046 = vpack.c.b16 %v2925, %v2924
    %v4047 = vpack.c.b16 %v2927, %v2926
    %v4048 = vpack.c.b16 %v2929, %v2928
    %v4049 = vpack.c.b16 %v2931, %v2930
    %v4050 = vpack.c.b16 %v2933, %v2932
    %v4051 = vpack.c.b16 %v2935, %v2934
    %v4052 = vpack.c.b16 %v2937, %v2936
    %v4053 = vpack.c.b16 %v2939, %v2938
    %v4054 = vpack.c.b16 %v2941, %v2940
    %v4055 = vpack.c.b16 %v2943, %v2942
    %v4056 = vpack.c.b16 %v2945, %v2944
    %v4057 = vpack.c.b16 %v2947, %v2946
    %v4058 = vpack.c.b16 %v2949, %v2948
    %v4059 = vpack.c.b16 %v2951, %v2950
    %v4060 = vpack.c.b16 %v2953, %v2952
    %v4061 = vpack.c.b16 %v2955, %v2954
    %v4062 = vpack.c.b16 %v2957, %v2956
    %v4063 = vpack.c.b16 %v2959, %v2958
    %v4064 = vpack.c.b16 %v2961, %v2960
    %v4065 = vpack.c.b16 %v2963, %v2962
    %v4066 = vpack.c.b16 %v2965, %v2964
    %v4067 = vpack.c.b16 %v2967, %v2966
    %v4068 = vpack.c.b16 %v2969, %v2968
    %v4069 = vpack.c.b16 %v2971, %v2970
    %v4070 = vpack.c.b16 %v2973, %v2972
    %v4071 = vpack.c.b16 %v2975, %v2974
    %v4072 = vpack.c.b16 %v2977, %v2976
    %v4073 = vpack.c.b16 %v2979, %v2978
    %v4074 = vpack.c.b16 %v2981, %v2980
    %v4075 = vpack.c.b16 %v2983, %v2982
    %v4076 = vpack.c.b16 %v2985, %v2984
    %v4077 = vpack.c.b16 %v2987, %v2986
    %v4078 = vpack.c.b16 %v2989, %v2988
    %v4079 = vpack.c.b16 %v2991, %v2990
    %v4080 = vpack.c.b16 %v2993, %v2992
    %v4081 = vpack.c.b16 %v2995, %v2994
    %v4082 = vpack.c.b16 %v2997, %v2996
    %v4083 = vpack.c.b16 %v2999, %v2998
    %v4084 = vpack.c.b16 %v3001, %v3000
    %v4085 = vpack.c.b16 %v3003, %v3002
    %v4086 = vpack.c.b16 %v3005, %v3004
    %v4087 = vpack.c.b16 %v3007, %v3006
    %v4088 = vpack.c.b16 %v3009, %v3008
    %v4089 = vpack.c.b16 %v3011, %v3010
    %v4090 = vpack.c.b16 %v3013, %v3012
    %v4091 = vpack.c.b16 %v3015, %v3014
    %v4092 = vpack.c.b16 %v3017, %v3016
    %v4093 = vpack.c.b16 %v3019, %v3018
    %v4094 = vpack.c.b16 %v3021, %v3020
    %v4095 = vpack.c.b16 %v3023, %v3022
    %v4096 = vpack.c.b16 %v3025, %v3024
    %v4097 = vpack.c.b16 %v3027, %v3026
    %v4098 = vpack.c.b16 %v3029, %v3028
    %v4099 = vpack.c.b16 %v3031, %v3030
    %v4100 = vpack.c.b16 %v3033, %v3032
    %v4101 = vpack.c.b16 %v3035, %v3034
    %v4102 = vpack.c.b16 %v3037, %v3036
    %v4103 = vpack.c.b16 %v3039, %v3038
    %v4104 = vpack.c.b16 %v3041, %v3040
    %v4105 = vpack.c.b16 %v3043, %v3042
    %v4106 = vpack.c.b16 %v3045, %v3044
    %v4107 = vpack.c.b16 %v3047, %v3046
    %v4108 = vpack.c.b16 %v3049, %v3048
    %v4109 = vpack.c.b16 %v3051, %v3050
    %v4110 = vpack.c.b16 %v3053, %v3052
    %v4111 = vpack.c.b16 %v3055, %v3054
    %v4112 = vpack.c.b16 %v3057, %v3056
    %v4113 = vpack.c.b16 %v3059, %v3058
    %v4114 = vpack.c.b16 %v3061, %v3060
    %v4115 = vpack.c.b16 %v3063, %v3062
    %v4116 = vpack.c.b16 %v3065, %v3064
    %v4117 = vpack.c.b16 %v3067, %v3066
    %v4118 = vpack.c.b16 %v3069, %v3068
    %v4119 = vpack.c.b16 %v3071, %v3070
    %v4120 = vpack.c.b16 %v3073, %v3072
    %v4121 = vpack.c.b16 %v3075, %v3074
    %v4122 = vpack.c.b16 %v3077, %v3076
    %v4123 = vpack.c.b16 %v3079, %v3078
    %v4124 = vpack.c.b16 %v3081, %v3080
    %v4125 = vpack.c.b16 %v3083, %v3082
    %v4126 = vpack.c.b16 %v3085, %v3084
    %v4127 = vpack.c.b16 %v3087, %v3086
    %v4128 = vpack.c.b16 %v3089, %v3088
    %v4129 = vpack.c.b16 %v3091, %v3090
    %v4130 = vpack.c.b16 %v3093, %v3092
    %v4131 = vpack.c.b16 %v3095, %v3094
    %v4132 = vpack.c.b16 %v3097, %v3096
    %v4133 = vpack.c.b16 %v3099, %v3098
    %v4134 = vpack.c.b16 %v3101, %v3100
    %v4135 = vpack.c.b16 %v3103, %v3102
    %v4136 = vpack.c.b16 %v3105, %v3104
    %v4137 = vpack.c.b16 %v3107, %v3106
    %v4138 = vpack.c.b16 %v3109, %v3108
    %v4139 = vpack.c.b16 %v3111, %v3110
    %v4140 = vpack.c.b16 %v3113, %v3112
    %v4141 = vpack.c.b16 %v3115, %v3114
    %v4142 = vpack.c.b16 %v3117, %v3116
    %v4143 = vpack.c.b16 %v3119, %v3118
    %v4144 = vpack.c.b16 %v3121, %v3120
    %v4145 = vpack.c.b16 %v3123, %v3122
    %v4146 = vpack.c.b16 %v3125, %v3124
    %v4147 = vpack.c.b16 %v3127, %v3126
    %v4148 = vpack.c.b16 %v3129, %v3128
    %v4149 = vpack.c.b16 %v3131, %v3130
    %v4150 = vpack.c.b16 %v3133, %v3132
    %v4151 = vpack.c.b16 %v3135, %v3134
    %v4152 = vpack.c.b16 %v3137, %v3136
    %v4153 = vpack.c.b16 %v3139, %v3138
    %v4154 = vpack.c.b16 %v3141, %v3140
    %v4155 = vpack.c.b16 %v3143, %v3142
    %v4156 = vpack.c.b16 %v3145, %v3144
    %v4157 = vpack.c.b16 %v3147, %v3146
    %v4158 = vpack.c.b16 %v3149, %v3148
    %v4159 = vpack.c.b16 %v3151, %v3150
    %v4160 = vpack.c.b16 %v3153, %v3152
    %v4161 = vpack.c.b16 %v3155, %v3154
    %v4162 = vpack.c.b16 %v3157, %v3156
    %v4163 = vpack.c.b16 %v3159, %v3158
    %v4164 = vpack.c.b16 %v3161, %v3160
    %v4165 = vpack.c.b16 %v3163, %v3162
    %v4166 = vpack.c.b16 %v3165, %v3164
    %v4167 = vpack.c.b16 %v3167, %v3166
    %v4168 = vpack.c.b16 %v3169, %v3168
    %v4169 = vpack.c.b16 %v3171, %v3170
    %v4170 = vpack.c.b16 %v3173, %v3172
    %v4171 = vpack.c.b16 %v3175, %v3174
    %v4172 = vpack.c.b16 %v3177, %v3176
    %v4173 = vpack.c.b16 %v3179, %v3178
    %v4174 = vpack.c.b16 %v3181, %v3180
    %v4175 = vpack.c.b16 %v3183, %v3182
    %v4176 = vpack.c.b16 %v3185, %v3184
    %v4177 = vpack.c.b16 %v3187, %v3186
    %v4178 = vpack.c.b16 %v3189, %v3188
    %v4179 = vpack.c.b16 %v3191, %v3190
    %v4180 = vpack.c.b16 %v3193, %v3192
    %v4181 = vpack.c.b16 %v3195, %v3194
    %v4182 = vpack.c.b16 %v3197, %v3196
    %v4183 = vpack.c.b16 %v3199, %v3198
    %v4184 = vpack.c.b16 %v3201, %v3200
    %v4185 = vpack.c.b16 %v3203, %v3202
    %v4186 = vpack.c.b16 %v3205, %v3204
    %v4187 = vpack.c.b16 %v3207, %v3206
    %v4188 = vpack.c.b16 %v3209, %v3208
    %v4189 = vpack.c.b16 %v3211, %v3210
    %v4190 = vpack.c.b16 %v3213, %v3212
    %v4191 = vpack.c.b16 %v3215, %v3214
    %v4192 = vpack.c.b16 %v3217, %v3216
    %v4193 = vpack.c.b16 %v3219, %v3218
    %v4194 = vpack.c.b16 %v3221, %v3220
    %v4195 = vpack.c.b16 %v3223, %v3222
    %v4196 = vpack.c.b16 %v3225, %v3224
    %v4197 = vpack.c.b16 %v3227, %v3226
    %v4198 = vpack.c.b16 %v3229, %v3228
    %v4199 = vpack.c.b16 %v3231, %v3230
    %v4200 = vpack.c.b16 %v3233, %v3232
    %v4201 = vpack.c.b16 %v3235, %v3234
    %v4202 = vpack.c.b16 %v3237, %v3236
    %v4203 = vpack.c.b16 %v3239, %v3238
    %v4204 = vpack.c.b16 %v3241, %v3240
    %v4205 = vpack.c.b16 %v3243, %v3242
    %v4206 = vpack.c.b16 %v3245, %v3244
    %v4207 = vpack.c.b16 %v3247, %v3246
    %v4208 = vpack.c.b16 %v3249, %v3248
    %v4209 = vpack.c.b16 %v3251, %v3250
    %v4210 = vpack.c.b16 %v3253, %v3252
    %v4211 = vpack.c.b16 %v3255, %v3254
    %v4212 = vpack.c.b16 %v3257, %v3256
    %v4213 = vpack.c.b16 %v3259, %v3258
    %v4214 = vpack.c.b16 %v3261, %v3260
    %v4215 = vpack.c.b16 %v3263, %v3262
    %v4216 = vpack.c.b16 %v3265, %v3264
    %v4217 = vpack.c.b16 %v3267, %v3266
    %v4218 = vpack.c.b16 %v3269, %v3268
    %v4219 = vpack.c.b16 %v3271, %v3270
    %v4220 = vpack.c.b16 %v3273, %v3272
    %v4221 = vpack.c.b16 %v3275, %v3274
    %v4222 = vpack.c.b16 %v3277, %v3276
    %v4223 = vpack.c.b16 %v3279, %v3278
    %v4224 = vpack.c.b16 %v3281, %v3280
    %v4225 = vpack.c.b16 %v3283, %v3282
    %v4226 = vpack.c.b16 %v3285, %v3284
    %v4227 = vpack.c.b16 %v3287, %v3286
    %v4228 = vpack.c.b16 %v3289, %v3288
    %v4229 = vpack.c.b16 %v3291, %v3290
    %v4230 = vpack.c.b16 %v3293, %v3292
    %v4231 = vpack.c.b16 %v3295, %v3294
    %v4232 = vpack.c.b16 %v3297, %v3296
    %v4233 = vpack.c.b16 %v3299, %v3298
    %v4234 = vpack.c.b16 %v3301, %v3300
    %v4235 = vpack.c.b16 %v3303, %v3302
    %v4236 = vpack.c.b16 %v3305, %v3304
    %v4237 = vpack.c.b16 %v3307, %v3306
    %v4238 = vpack.c.b16 %v3309, %v3308
    %v4239 = vpack.c.b16 %v3311, %v3310
    %v4240 = vpack.c.b16 %v3313, %v3312
    %v4241 = vpack.c.b16 %v3315, %v3314
    %v4242 = vpack.c.b16 %v3317, %v3316
    %v4243 = vpack.c.b16 %v3319, %v3318
    %v4244 = vpack.c.b16 %v3321, %v3320
    %v4245 = vpack.c.b16 %v3323, %v3322
    %v4246 = vpack.c.b16 %v3325, %v3324
    %v4247 = vpack.c.b16 %v3327, %v3326
    %v4248 = vpack.c.b16 %v3329, %v3328
    %v4249 = vpack.c.b16 %v3331, %v3330
    %v4250 = vpack.c.b16 %v3333, %v3332
    %v4251 = vpack.c.b16 %v3335, %v3334
    %v4252 = vpack.c.b16 %v3337, %v3336
    %v4253 = vpack.c.b16 %v3339, %v3338
    %v4254 = vpack.c.b16 %v3341, %v3340
    %v4255 = vpack.c.b16 %v3343, %v3342
    %v4256 = vpack.c.b16 %v3345, %v3344
    %v4257 = vpack.c.b16 %v3347, %v3346
    %v4258 = vpack.c.b16 %v3349, %v3348
    %v4259 = vpack.c.b16 %v3351, %v3350
    %v4260 = vpack.c.b16 %v3353, %v3352
    %v4261 = vpack.c.b16 %v3355, %v3354
    %v4262 = vpack.c.b16 %v3357, %v3356
    %v4263 = vpack.c.b16 %v3359, %v3358
    %v4264 = vpack.c.b16 %v3361, %v3360
    %v4265 = vpack.c.b16 %v3363, %v3362
    %v4266 = vpack.c.b16 %v3365, %v3364
    %v4267 = vpack.c.b16 %v3367, %v3366
    %v4268 = vpack.c.b16 %v3369, %v3368
    %v4269 = vpack.c.b16 %v3371, %v3370
    %v4270 = vpack.c.b16 %v3373, %v3372
    %v4271 = vpack.c.b16 %v3375, %v3374
    %v4272 = vpack.c.b16 %v3377, %v3376
    %v4273 = vpack.c.b16 %v3379, %v3378
    %v4274 = vpack.c.b16 %v3381, %v3380
    %v4275 = vpack.c.b16 %v3383, %v3382
    %v4276 = vpack.c.b16 %v3385, %v3384
    %v4277 = vpack.c.b16 %v3387, %v3386
    %v4278 = vpack.c.b16 %v3389, %v3388
    %v4279 = vpack.c.b16 %v3391, %v3390
    %v4280 = vpack.c.b16 %v3393, %v3392
    %v4281 = vpack.c.b16 %v3395, %v3394
    %v4282 = vpack.c.b16 %v3397, %v3396
    %v4283 = vpack.c.b16 %v3399, %v3398
    %v4284 = vpack.c.b16 %v3401, %v3400
    %v4285 = vpack.c.b16 %v3403, %v3402
    %v4286 = vpack.c.b16 %v3405, %v3404
    %v4287 = vpack.c.b16 %v3407, %v3406
    %v4288 = vpack.c.b16 %v3409, %v3408
    %v4289 = vpack.c.b16 %v3411, %v3410
    %v4290 = vpack.c.b16 %v3413, %v3412
    %v4291 = vpack.c.b16 %v3415, %v3414
    %v4292 = vpack.c.b16 %v3417, %v3416
    %v4293 = vpack.c.b16 %v3419, %v3418
    %v4294 = vpack.c.b16 %v3421, %v3420
    %v4295 = vpack.c.b16 %v3423, %v3422
    %v4296 = vpack.c.b16 %v3425, %v3424
    %v4297 = vpack.c.b16 %v3427, %v3426
    %v4298 = vpack.c.b16 %v3429, %v3428
    %v4299 = vpack.c.b16 %v3431, %v3430
    %v4300 = vpack.c.b16 %v3433, %v3432
    %v4301 = vpack.c.b16 %v3435, %v3434
    %v4302 = vpack.c.b16 %v3437, %v3436
    %v4303 = vpack.c.b16 %v3439, %v3438
    %v4304 = vpack.c.b16 %v3441, %v3440
    %v4305 = vpack.c.b16 %v3443, %v3442
    %v4306 = vpack.c.b16 %v3445, %v3444
    %v4307 = vpack.c.b16 %v3447, %v3446
    %v4308 = vpack.c.b16 %v3449, %v3448
    %v4309 = vpack.c.b16 %v3451, %v3450
    %v4310 = vpack.c.b16 %v3453, %v3452
    %v4311 = vpack.c.b16 %v3455, %v3454
    %v4312 = vpack.c.b16 %v3457, %v3456
    %v4313 = vpack.c.b16 %v3459, %v3458
    %v4314 = vpack.c.b16 %v3461, %v3460
    %v4315 = vpack.c.b16 %v3463, %v3462
    %v4316 = vpack.c.b16 %v3465, %v3464
    %v4317 = vpack.c.b16 %v3467, %v3466
    %v4318 = vpack.c.b16 %v3469, %v3468
    %v4319 = vpack.c.b16 %v3471, %v3470
    %v4320 = vpack.c.b16 %v3473, %v3472
    %v4321 = vpack.c.b16 %v3475, %v3474
    %v4322 = vpack.c.b16 %v3477, %v3476
    %v4323 = vpack.c.b16 %v3479, %v3478
    %v4324 = vpack.c.b16 %v3481, %v3480
    %v4325 = vpack.c.b16 %v3483, %v3482
    %v4326 = vpack.c.b16 %v3485, %v3484
    %v4327 = vpack.c.b16 %v3487, %v3486
    %v4328 = vpack.c.b16 %v3489, %v3488
    %v4329 = vpack.c.b16 %v3491, %v3490
    %v4330 = vpack.c.b16 %v3493, %v3492
    %v4331 = vpack.c.b16 %v3495, %v3494
    %v4332 = vpack.c.b16 %v3497, %v3496
    %v4333 = vpack.c.b16 %v3499, %v3498
    %v4334 = vpack.c.b16 %v3501, %v3500
    %v4335 = vpack.c.b16 %v3503, %v3502
    %v4336 = vpack.c.b16 %v3505, %v3504
    %v4337 = vpack.c.b16 %v3507, %v3506
    %v4338 = vpack.c.b16 %v3509, %v3508
    %v4339 = vpack.c.b16 %v3511, %v3510
    %v4340 = vpack.c.b16 %v3513, %v3512
    %v4341 = vpack.c.b16 %v3515, %v3514
    %v4342 = vpack.c.b16 %v3517, %v3516
    %v4343 = vpack.c.b16 %v3519, %v3518
    %v4344 = vpack.c.b16 %v3521, %v3520
    %v4345 = vpack.c.b16 %v3523, %v3522
    %v4346 = vpack.c.b16 %v3525, %v3524
    %v4347 = vpack.c.b16 %v3527, %v3526
    %v4348 = vpack.c.b16 %v3529, %v3528
    %v4349 = vpack.c.b16 %v3531, %v3530
    %v4350 = vpack.c.b16 %v3533, %v3532
    %v4351 = vpack.c.b16 %v3535, %v3534
    %v4352 = vpack.c.b16 %v3537, %v3536
    %v4353 = vpack.c.b16 %v3539, %v3538
    %v4354 = vpack.c.b16 %v3541, %v3540
    %v4355 = vpack.c.b16 %v3543, %v3542
    %v4356 = vpack.c.b16 %v3545, %v3544
    %v4357 = vpack.c.b16 %v3547, %v3546
    %v4358 = vpack.c.b16 %v3549, %v3548
    %v4359 = vpack.c.b16 %v3551, %v3550
    %v4360 = vpack.c.b16 %v3553, %v3552
    %v4361 = vpack.c.b16 %v3555, %v3554
    %v4362 = vpack.c.b16 %v3557, %v3556
    %v4363 = vpack.c.b16 %v3559, %v3558
    %v4364 = vpack.c.b16 %v3561, %v3560
    %v4365 = vpack.c.b16 %v3563, %v3562
    %v4366 = vpack.c.b16 %v3565, %v3564
    %v4367 = vpack.c.b16 %v3567, %v3566
    %v4368 = vpack.c.b16 %v3569, %v3568
    %v4369 = vpack.c.b16 %v3571, %v3570
    %v4370 = vpack.c.b16 %v3573, %v3572
    %v4371 = vpack.c.b16 %v3575, %v3574
    %v4372 = vpack.c.b16 %v3577, %v3576
    %v4373 = vpack.c.b16 %v3579, %v3578
    %v4374 = vpack.c.b16 %v3581, %v3580
    %v4375 = vpack.c.b16 %v3583, %v3582
    %v4376 = vpack.c.b16 %v3585, %v3584
    %v4377 = vpack.c.b16 %v3587, %v3586
    %v4378 = vpack.c.b16 %v3589, %v3588
    %v4379 = vpack.c.b16 %v3591, %v3590
    %v4380 = vpack.c.b16 %v3593, %v3592
    %v4381 = vpack.c.b16 %v3595, %v3594
    %v4382 = vpack.c.b16 %v3597, %v3596
    %v4383 = vpack.c.b16 %v3599, %v3598
    %v4384 = vpack.c.b16 %v3601, %v3600
    %v4385 = vpack.c.b16 %v3603, %v3602
    %v4386 = vpack.c.b16 %v3605, %v3604
    %v4387 = vpack.c.b16 %v3607, %v3606
    %v4388 = vpack.c.b16 %v3609, %v3608
    %v4389 = vpack.c.b16 %v3611, %v3610
    %v4390 = vpack.c.b16 %v3613, %v3612
    %v4391 = vpack.c.b16 %v3615, %v3614
    %v4392 = vpack.c.b16 %v3617, %v3616
    %v4393 = vpack.c.b16 %v3619, %v3618
    %v4394 = vpack.c.b16 %v3621, %v3620
    %v4395 = vpack.c.b16 %v3623, %v3622
    %v4396 = vpack.c.b16 %v3625, %v3624
    %v4397 = vpack.c.b16 %v3627, %v3626
    %v4398 = vpack.c.b16 %v3629, %v3628
    %v4399 = vpack.c.b16 %v3631, %v3630
    %v4400 = vpack.c.b16 %v3633, %v3632
    %v4401 = vpack.c.b16 %v3635, %v3634
    %v4402 = vpack.c.b16 %v3637, %v3636
    %v4403 = vpack.c.b16 %v3639, %v3638
    %v4404 = vpack.c.b16 %v3641, %v3640
    %v4405 = vpack.c.b16 %v3643, %v3642
    %v4406 = vpack.c.b16 %v3645, %v3644
    %v4407 = vpack.c.b16 %v3647, %v3646
    %v4408 = vpack.c.b16 %v3649, %v3648
    %v4409 = vpack.c.b16 %v3651, %v3650
    %v4410 = vpack.c.b16 %v3653, %v3652
    %v4411 = vpack.c.b16 %v3655, %v3654
    %v4412 = vpack.c.b16 %v3657, %v3656
    %v4413 = vpack.c.b16 %v3659, %v3658
    %v4414 = vpack.c.b16 %v3661, %v3660
    %v4415 = vpack.c.b16 %v3663, %v3662
    %v4416 = vpack.c.b16 %v3665, %v3664
    %v4417 = vpack.c.b16 %v3667, %v3666
    %v4418 = vpack.c.b16 %v3669, %v3668
    %v4419 = vpack.c.b16 %v3671, %v3670
    %v4420 = vpack.c.b16 %v3673, %v3672
    %v4421 = vpack.c.b16 %v3675, %v3674
    %v4422 = vpack.c.b16 %v3677, %v3676
    %v4423 = vpack.c.b16 %v3679, %v3678
    %v4424 = vpack.c.b16 %v3681, %v3680
    %v4425 = vpack.c.b16 %v3683, %v3682
    %v4426 = vpack.c.b16 %v3685, %v3684
    %v4427 = vpack.c.b16 %v3687, %v3686
    %v4428 = vpack.c.b16 %v3689, %v3688
    %v4429 = vpack.c.b16 %v3691, %v3690
    %v4430 = vpack.c.b16 %v3693, %v3692
    %v4431 = vpack.c.b16 %v3695, %v3694
    %v4432 = vpack.c.b16 %v3697, %v3696
    %v4433 = vpack.c.b16 %v3699, %v3698
    %v4434 = vpack.c.b16 %v3701, %v3700
    %v4435 = vpack.c.b16 %v3703, %v3702
    %v4436 = vpack.c.b16 %v3705, %v3704
    %v4437 = vpack.c.b16 %v3707, %v3706
    %v4438 = vpack.c.b16 %v3709, %v3708
    %v4439 = vpack.c.b16 %v3711, %v3710
    %v4440 = vpack.c.b16 %v3713, %v3712
    %v4441 = vpack.c.b16 %v3715, %v3714
    %v4442 = vpack.c.b16 %v3717, %v3716
    %v4443 = vpack.c.b16 %v3719, %v3718
    %v4444 = vpack.c.b16 %v3721, %v3720
    %v4445 = vpack.c.b16 %v3723, %v3722
    %v4446 = vpack.c.b16 %v3725, %v3724
    %v4447 = vpack.c.b16 %v3727, %v3726
    %v4448 = vpack.c.b16 %v3729, %v3728
    %v4449 = vpack.c.b16 %v3731, %v3730
    %v4450 = vpack.c.b16 %v3733, %v3732
    %v4451 = vpack.c.b16 %v3735, %v3734
    %v4452 = vpack.c.b16 %v3737, %v3736
    %v4453 = vpack.c.b16 %v3739, %v3738
    %v4454 = vpack.c.b16 %v3741, %v3740
    %v4455 = vpack.c.b16 %v3743, %v3742
    %v4456 = vpack.c.b16 %v3745, %v3744
    %v4457 = vpack.c.b16 %v3747, %v3746
    %v4458 = vpack.c.b16 %v3749, %v3748
    %v4459 = vpack.c.b16 %v3751, %v3750
    %v4460 = vpack.c.b16 %v3753, %v3752
    %v4461 = vpack.c.b16 %v3755, %v3754
    %v4462 = vpack.c.b16 %v3757, %v3756
    %v4463 = vpack.c.b16 %v3759, %v3758
    %v4464 = vpack.c.b16 %v3761, %v3760
    %v4465 = vpack.c.b16 %v3763, %v3762
    %v4466 = vpack.c.b16 %v3765, %v3764
    %v4467 = vpack.c.b16 %v3767, %v3766
    %v4468 = vpack.c.b16 %v3769, %v3768
    %v4469 = vpack.c.b16 %v3771, %v3770
    %v4470 = vpack.c.b16 %v3773, %v3772
    %v4471 = vpack.c.b16 %v3775, %v3774
    %v4472 = vpack.c.b16 %v3777, %v3776
    %v4473 = vpack.c.b16 %v3779, %v3778
    %v4474 = vpack.c.b16 %v3781, %v3780
    %v4475 = vpack.c.b16 %v3783, %v3782
    %v4476 = vpack.c.b16 %v3785, %v3784
    %v4477 = vpack.c.b16 %v3787, %v3786
    %v4478 = vpack.c.b16 %v3789, %v3788
    %v4479 = vpack.c.b16 %v3791, %v3790
    %v4480 = vpack.c.b16 %v3793, %v3792
    %v4481 = vpack.c.b16 %v3795, %v3794
    %v4482 = vpack.c.b16 %v3797, %v3796
    %v4483 = vpack.c.b16 %v3799, %v3798
    %v4484 = vpack.c.b16 %v3801, %v3800
    %v4485 = vpack.c.b16 %v3803, %v3802
    %v4486 = vpack.c.b16 %v3805, %v3804
    %v4487 = vpack.c.b16 %v3807, %v3806
    %v4488 = vpack.c.b16 %v3809, %v3808
    %v4489 = vpack.c.b16 %v3811, %v3810
    %v4490 = vpack.c.b16 %v3813, %v3812
    %v4491 = vpack.c.b16 %v3815, %v3814
    %v4492 = vpack.c.b16 %v3817, %v3816
    %v4493 = vpack.c.b16 %v3819, %v3818
    %v4494 = vpack.c.b16 %v3821, %v3820
    %v4495 = vpack.c.b16 %v3823, %v3822
    %v4496 = vpack.c.b16 %v3825, %v3824
    %v4497 = vpack.c.b16 %v3827, %v3826
    %v4498 = vpack.c.b16 %v3829, %v3828
    %v4499 = vpack.c.b16 %v3831, %v3830
    %v4500 = vpack.c.b16 %v3833, %v3832
    %v4501 = vpack.c.b16 %v3835, %v3834
    %v4502 = vpack.c.b16 %v3837, %v3836
    %v4503 = vpack.c.b16 %v3839, %v3838
    %v4504 = vpack.c.b16 %v3841, %v3840
    %v4505 = vpack.c.b16 %v3843, %v3842
    %v4506 = vpack.c.b16 %v3845, %v3844
    %v4507 = vpack.c.b16 %v3847, %v3846
    %v4508 = vpack.c.b16 %v3849, %v3848
    %v4509 = vpack.c.b16 %v3851, %v3850
    %v4510 = vpack.c.b16 %v3853, %v3852
    %v4511 = vpack.c.b16 %v3855, %v3854
    %v4512 = vpack.c.b16 %v3857, %v3856
    %v4513 = vpack.c.b16 %v3859, %v3858
    %v4514 = vpack.c.b16 %v3861, %v3860
    %v4515 = vpack.c.b16 %v3863, %v3862
    %v4516 = vpack.c.b16 %v3865, %v3864
    %v4517 = vpack.c.b16 %v3867, %v3866
    %v4518 = vpack.c.b16 %v3869, %v3868
    %v4519 = vpack.c.b16 %v3871, %v3870
    %v4520 = vpack.c.b16 %v3873, %v3872
    %v4521 = vpack.c.b16 %v3875, %v3874
    %v4522 = vpack.c.b16 %v3877, %v3876
    %v4523 = vpack.c.b16 %v3879, %v3878
    %v4524 = vpack.c.b16 %v3881, %v3880
    %v4525 = vpack.c.b16 %v3883, %v3882
    %v4526 = vpack.c.b16 %v3885, %v3884
    %v4527 = vpack.c.b16 %v3887, %v3886
    %v4528 = vpack.c.b16 %v3889, %v3888
    %v4529 = vpack.c.b16 %v3891, %v3890
    %v4530 = vpack.c.b16 %v3893, %v3892
    %v4531 = vpack.c.b16 %v3895, %v3894
    %v4532 = vpack.c.b16 %v3897, %v3896
    %v4533 = vpack.c.b16 %v3899, %v3898
    %v4534 = vpack.c.b16 %v3901, %v3900
    %v4535 = vpack.c.b16 %v3903, %v3902
    %v4536 = vpack.c.b16 %v3905, %v3904
    %v4537 = vpack.c.b16 %v3907, %v3906
    %v4538 = vpack.c.b16 %v3909, %v3908
    %v4539 = vpack.c.b16 %v3911, %v3910
    %v4540 = vpack.c.b16 %v3913, %v3912
    %v4541 = vpack.c.b16 %v3915, %v3914
    %v4542 = vpack.c.b16 %v3917, %v3916
    %v4543 = vpack.c.b16 %v3919, %v3918
    %v4544 = vpack.c.b16 %v3921, %v3920
    %v4545 = vpack.c.b16 %v3923, %v3922
    %v4546 = vpack.c.b16 %v3925, %v3924
    %v4547 = vpack.c.b16 %v3927, %v3926
    %v4548 = vpack.c.b16 %v3929, %v3928
    %v4549 = vpack.c.b16 %v3931, %v3930
    %v4550 = vpack.c.b16 %v3933, %v3932
    %v4551 = vpack.c.b16 %v3935, %v3934
    %v4552 = vpack.c.b16 %v3937, %v3936
    %v4553 = vpack.c.b16 %v3939, %v3938
    %v4554 = vpack.c.b16 %v3941, %v3940
    %v4555 = vpack.c.b16 %v3943, %v3942
    %v4556 = vpack.c.b16 %v3945, %v3944
    %v4557 = vpack.c.b16 %v3947, %v3946
    %v4558 = vpack.c.b16 %v3949, %v3948
    %v4559 = vpack.c.b16 %v3951, %v3950
    %v4560 = vpack.c.b16 %v3953, %v3952
    %v4561 = vpack.c.b16 %v3955, %v3954
    %v4562 = vpack.c.b16 %v3957, %v3956
    %v4563 = vpack.c.b16 %v3959, %v3958
    %v4564 = vpack.c.b16 %v3961, %v3960
    %v4565 = vpack.c.b16 %v3963, %v3962
    %v4566 = vpack.c.b16 %v3965, %v3964
    %v4567 = vpack.c.b16 %v3967, %v3966
    %v4568 = vpack.c.b16 %v3969, %v3968
    %v4569 = vpack.c.b16 %v3971, %v3970
    %v4570 = vpack.c.b16 %v3973, %v3972
    %v4571 = vpack.c.b16 %v3975, %v3974
    %v4572 = vpack.c.b16 %v3977, %v3976
    %v4573 = vpack.c.b16 %v3979, %v3978
    %v4574 = vpack.c.b16 %v3981, %v3980
    %v4575 = vpack.c.b16 %v3983, %v3982
    %v4576 = vpack.c.b16 %v3985, %v3984
    %v4577 = vpack.c.b16 %v3987, %v3986
    %v4578 = vpack.c.b16 %v3989, %v3988
    %v4579 = vpack.c.b16 %v3991, %v3990
    %v4580 = vpack.c.b16 %v3993, %v3992
    %v4581 = vpack.c.b16 %v3995, %v3994
    %v4582 = vpack.c.b16 %v3997, %v3996
    %v4583 = vpack.c.b16 %v3999, %v3998
    %v4584 = vpack.c.b16 %v4001, %v4000
    %v4585 = vpack.c.b16 %v4003, %v4002
    %v4586 = vpack.c.b16 %v4005, %v4004
    %v4587 = vpack.c.b16 %v4007, %v4006
    %v4588 = vpack.c.b16 %v4009, %v4008
    %v4589 = vpack.c.b16 %v4011, %v4010
    %v4590 = vpack.c.b16 %v4013, %v4012
    %v4591 = vpack.c.b16 %v4015, %v4014
    %5168 = vmatprep.subr.bf16.mxu0 0
    %5169 = vmatpush1.bf16.msra.mxu0 %v4016
    %5170 = vmatprep.subr.bf16.mxu0 0
    %5171 = vmatpush1.bf16.msra.mxu0 %v4017
    %5172 = vmatprep.subr.bf16.mxu0 0
    %5173 = vmatpush1.bf16.msra.mxu0 %v4018
    %5174 = vmatprep.subr.bf16.mxu0 0
    %5175 = vmatpush1.bf16.msra.mxu0 %v4019
    %5176 = vmatprep.subr.bf16.mxu0 0
    %5177 = vmatpush1.bf16.msra.mxu0 %v4020
    %5178 = vmatprep.subr.bf16.mxu0 0
    %5179 = vmatpush1.bf16.msra.mxu0 %v4021
    %5180 = vmatprep.subr.bf16.mxu0 0
    %5181 = vmatpush1.bf16.msra.mxu0 %v4022
    %5182 = vmatprep.subr.bf16.mxu0 0
    %5183 = vmatpush1.bf16.msra.mxu0 %v4023
    %5184 = vmatprep.subr.bf16.mxu0 0
    %5185 = vmatpush1.bf16.msra.mxu0 %v4024
    %5186 = vmatprep.subr.bf16.mxu0 0
    %5187 = vmatpush1.bf16.msra.mxu0 %v4025
    %5188 = vmatprep.subr.bf16.mxu0 0
    %5189 = vmatpush1.bf16.msra.mxu0 %v4026
    %5190 = vmatprep.subr.bf16.mxu0 0
    %5191 = vmatpush1.bf16.msra.mxu0 %v4027
    %5192 = vmatprep.subr.bf16.mxu0 0
    %5193 = vmatpush1.bf16.msra.mxu0 %v4028
    %5194 = vmatprep.subr.bf16.mxu0 0
    %5195 = vmatpush1.bf16.msra.mxu0 %v4029
    %5196 = vmatprep.subr.bf16.mxu0 0
    %5197 = vmatpush1.bf16.msra.mxu0 %v4030
    %5198 = vmatprep.subr.bf16.mxu0 0
    %5199 = vmatpush1.bf16.msra.mxu0 %v4031
    %5200 = vmatprep.mubr.bf16.mxu0 %v1236
    %5201 = vmatmul.mubr.bf16.gmra.mrb[0].mxu0 %v1222
    %v5202 = vpop.f32.mrb[0].mxu0
    %v5203 = vadd.f32 %v1188, %v5202
    %v5204 = vpop.f32.mrb[0].mxu0
    %v5205 = vpop.f32.mrb[0].mxu0
    %v5206 = vpop.f32.mrb[0].mxu0
    %5207 = vdwg.mxu0
    %5208 = vmatprep.subr.bf16.mxu0 0
    %5209 = vmatpush1.bf16.msra.mxu0 %v4032
    %5210 = vmatprep.subr.bf16.mxu0 0
    %5211 = vmatpush1.bf16.msra.mxu0 %v4033
    %5212 = vmatprep.subr.bf16.mxu0 0
    %5213 = vmatpush1.bf16.msra.mxu0 %v4034
    %5214 = vmatprep.subr.bf16.mxu0 0
    %5215 = vmatpush1.bf16.msra.mxu0 %v4035
    %5216 = vmatprep.subr.bf16.mxu0 0
    %5217 = vmatpush1.bf16.msra.mxu0 %v4036
    %5218 = vmatprep.subr.bf16.mxu0 0
    %5219 = vmatpush1.bf16.msra.mxu0 %v4037
    %5220 = vmatprep.subr.bf16.mxu0 0
    %5221 = vmatpush1.bf16.msra.mxu0 %v4038
    %5222 = vmatprep.subr.bf16.mxu0 0
    %5223 = vmatpush1.bf16.msra.mxu0 %v4039
    %5224 = vmatprep.subr.bf16.mxu0 0
    %5225 = vmatpush1.bf16.msra.mxu0 %v4040
    %5226 = vmatprep.subr.bf16.mxu0 0
    %5227 = vmatpush1.bf16.msra.mxu0 %v4041
    %5228 = vmatprep.subr.bf16.mxu0 0
    %5229 = vmatpush1.bf16.msra.mxu0 %v4042
    %5230 = vmatprep.subr.bf16.mxu0 0
    %5231 = vmatpush1.bf16.msra.mxu0 %v4043
    %5232 = vmatprep.subr.bf16.mxu0 0
    %5233 = vmatpush1.bf16.msra.mxu0 %v4044
    %5234 = vmatprep.subr.bf16.mxu0 0
    %5235 = vmatpush1.bf16.msra.mxu0 %v4045
    %5236 = vmatprep.subr.bf16.mxu0 0
    %5237 = vmatpush1.bf16.msra.mxu0 %v4046
    %5238 = vmatprep.subr.bf16.mxu0 0
    %5239 = vmatpush1.bf16.msra.mxu0 %v4047
    %5240 = vmatprep.mubr.bf16.mxu0 %v1246
    %5241 = vmatmul.mubr.bf16.gmra.mrb[0].mxu0 %v1244
    %v5242 = vpop.f32.mrb[0].mxu0
    %v5243 = vadd.f32 %v5203, %v5242
    %v5244 = vpop.f32.mrb[0].mxu0
    %v5245 = vpop.f32.mrb[0].mxu0
    %v5246 = vpop.f32.mrb[0].mxu0
    %5247 = vdwg.mxu0
    %5248 = vmatprep.subr.bf16.mxu0 0
    %5249 = vmatpush1.bf16.msra.mxu0 %v4048
    %5250 = vmatprep.subr.bf16.mxu0 0
    %5251 = vmatpush1.bf16.msra.mxu0 %v4049
    %5252 = vmatprep.subr.bf16.mxu0 0
    %5253 = vmatpush1.bf16.msra.mxu0 %v4050
    %5254 = vmatprep.subr.bf16.mxu0 0
    %5255 = vmatpush1.bf16.msra.mxu0 %v4051
    %5256 = vmatprep.subr.bf16.mxu0 0
    %5257 = vmatpush1.bf16.msra.mxu0 %v4052
    %5258 = vmatprep.subr.bf16.mxu0 0
    %5259 = vmatpush1.bf16.msra.mxu0 %v4053
    %5260 = vmatprep.subr.bf16.mxu0 0
    %5261 = vmatpush1.bf16.msra.mxu0 %v4054
    %5262 = vmatprep.subr.bf16.mxu0 0
    %5263 = vmatpush1.bf16.msra.mxu0 %v4055
    %5264 = vmatprep.subr.bf16.mxu0 0
    %5265 = vmatpush1.bf16.msra.mxu0 %v4056
    %5266 = vmatprep.subr.bf16.mxu0 0
    %5267 = vmatpush1.bf16.msra.mxu0 %v4057
    %5268 = vmatprep.subr.bf16.mxu0 0
    %5269 = vmatpush1.bf16.msra.mxu0 %v4058
    %5270 = vmatprep.subr.bf16.mxu0 0
    %5271 = vmatpush1.bf16.msra.mxu0 %v4059
    %5272 = vmatprep.subr.bf16.mxu0 0
    %5273 = vmatpush1.bf16.msra.mxu0 %v4060
    %5274 = vmatprep.subr.bf16.mxu0 0
    %5275 = vmatpush1.bf16.msra.mxu0 %v4061
    %5276 = vmatprep.subr.bf16.mxu0 0
    %5277 = vmatpush1.bf16.msra.mxu0 %v4062
    %5278 = vmatprep.subr.bf16.mxu0 0
    %5279 = vmatpush1.bf16.msra.mxu0 %v4063
    %5280 = vmatprep.mubr.bf16.mxu0 %v1243
    %5281 = vmatmul.mubr.bf16.gmra.mrb[0].mxu0 %v1229
    %v5282 = vpop.f32.mrb[0].mxu0
    %v5283 = vadd.f32 %v5243, %v5282
    %v5284 = vpop.f32.mrb[0].mxu0
    %v5285 = vpop.f32.mrb[0].mxu0
    %v5286 = vpop.f32.mrb[0].mxu0
    %5287 = vdwg.mxu0
    %5288 = vmatprep.subr.bf16.mxu0 0
    %5289 = vmatpush1.bf16.msra.mxu0 %v4064
    %5290 = vmatprep.subr.bf16.mxu0 0
    %5291 = vmatpush1.bf16.msra.mxu0 %v4065
    %5292 = vmatprep.subr.bf16.mxu0 0
    %5293 = vmatpush1.bf16.msra.mxu0 %v4066
    %5294 = vmatprep.subr.bf16.mxu0 0
    %5295 = vmatpush1.bf16.msra.mxu0 %v4067
    %5296 = vmatprep.subr.bf16.mxu0 0
    %5297 = vmatpush1.bf16.msra.mxu0 %v4068
    %5298 = vmatprep.subr.bf16.mxu0 0
    %5299 = vmatpush1.bf16.msra.mxu0 %v4069
    %5300 = vmatprep.subr.bf16.mxu0 0
    %5301 = vmatpush1.bf16.msra.mxu0 %v4070
    %5302 = vmatprep.subr.bf16.mxu0 0
    %5303 = vmatpush1.bf16.msra.mxu0 %v4071
    %5304 = vmatprep.subr.bf16.mxu0 0
    %5305 = vmatpush1.bf16.msra.mxu0 %v4072
    %5306 = vmatprep.subr.bf16.mxu0 0
    %5307 = vmatpush1.bf16.msra.mxu0 %v4073
    %5308 = vmatprep.subr.bf16.mxu0 0
    %5309 = vmatpush1.bf16.msra.mxu0 %v4074
    %5310 = vmatprep.subr.bf16.mxu0 0
    %5311 = vmatpush1.bf16.msra.mxu0 %v4075
    %5312 = vmatprep.subr.bf16.mxu0 0
    %5313 = vmatpush1.bf16.msra.mxu0 %v4076
    %5314 = vmatprep.subr.bf16.mxu0 0
    %5315 = vmatpush1.bf16.msra.mxu0 %v4077
    %5316 = vmatprep.subr.bf16.mxu0 0
    %5317 = vmatpush1.bf16.msra.mxu0 %v4078
    %5318 = vmatprep.subr.bf16.mxu0 0
    %5319 = vmatpush1.bf16.msra.mxu0 %v4079
    %5320 = vmatprep.mubr.bf16.mxu0 %v1247
    %5321 = vmatmul.mubr.bf16.gmra.mrb[0].mxu0 %v1245
    %v5322 = vpop.f32.mrb[0].mxu0
    %v5323 = vadd.f32 %v5283, %v5322
    %v5324 = vpop.f32.mrb[0].mxu0
    %v5325 = vpop.f32.mrb[0].mxu0
    %v5326 = vpop.f32.mrb[0].mxu0
    %5327 = vdwg.mxu0
    %5328 = vmatprep.subr.bf16.mxu0 0
    %5329 = vmatpush1.bf16.msra.mxu0 %v4080
    %5330 = vmatprep.subr.bf16.mxu0 0
    %5331 = vmatpush1.bf16.msra.mxu0 %v4081
    %5332 = vmatprep.subr.bf16.mxu0 0
    %5333 = vmatpush1.bf16.msra.mxu0 %v4082
    %5334 = vmatprep.subr.bf16.mxu0 0
    %5335 = vmatpush1.bf16.msra.mxu0 %v4083
    %5336 = vmatprep.subr.bf16.mxu0 0
    %5337 = vmatpush1.bf16.msra.mxu0 %v4084
    %5338 = vmatprep.subr.bf16.mxu0 0
    %5339 = vmatpush1.bf16.msra.mxu0 %v4085
    %5340 = vmatprep.subr.bf16.mxu0 0
    %5341 = vmatpush1.bf16.msra.mxu0 %v4086
    %5342 = vmatprep.subr.bf16.mxu0 0
    %5343 = vmatpush1.bf16.msra.mxu0 %v4087
    %5344 = vmatprep.subr.bf16.mxu0 0
    %5345 = vmatpush1.bf16.msra.mxu0 %v4088
    %5346 = vmatprep.subr.bf16.mxu0 0
    %5347 = vmatpush1.bf16.msra.mxu0 %v4089
    %5348 = vmatprep.subr.bf16.mxu0 0
    %5349 = vmatpush1.bf16.msra.mxu0 %v4090
    %5350 = vmatprep.subr.bf16.mxu0 0
    %5351 = vmatpush1.bf16.msra.mxu0 %v4091
    %5352 = vmatprep.subr.bf16.mxu0 0
    %5353 = vmatpush1.bf16.msra.mxu0 %v4092
    %5354 = vmatprep.subr.bf16.mxu0 0
    %5355 = vmatpush1.bf16.msra.mxu0 %v4093
    %5356 = vmatprep.subr.bf16.mxu0 0
    %5357 = vmatpush1.bf16.msra.mxu0 %v4094
    %5358 = vmatprep.subr.bf16.mxu0 0
    %5359 = vmatpush1.bf16.msra.mxu0 %v4095
    %5360 = vmatprep.mubr.bf16.mxu0 %v1285
    %5361 = vmatmul.mubr.bf16.gmra.mrb[0].mxu0 %v1271
    %v5362 = vpop.f32.mrb[0].mxu0
    %v5363 = vadd.f32 %v5323, %v5362
    %v5364 = vpop.f32.mrb[0].mxu0
    %v5365 = vpop.f32.mrb[0].mxu0
    %v5366 = vpop.f32.mrb[0].mxu0
    %5367 = vdwg.mxu0
    %5368 = vmatprep.subr.bf16.mxu0 0
    %5369 = vmatpush1.bf16.msra.mxu0 %v4096
    %5370 = vmatprep.subr.bf16.mxu0 0
    %5371 = vmatpush1.bf16.msra.mxu0 %v4097
    %5372 = vmatprep.subr.bf16.mxu0 0
    %5373 = vmatpush1.bf16.msra.mxu0 %v4098
    %5374 = vmatprep.subr.bf16.mxu0 0
    %5375 = vmatpush1.bf16.msra.mxu0 %v4099
    %5376 = vmatprep.subr.bf16.mxu0 0
    %5377 = vmatpush1.bf16.msra.mxu0 %v4100
    %5378 = vmatprep.subr.bf16.mxu0 0
    %5379 = vmatpush1.bf16.msra.mxu0 %v4101
    %5380 = vmatprep.subr.bf16.mxu0 0
    %5381 = vmatpush1.bf16.msra.mxu0 %v4102
    %5382 = vmatprep.subr.bf16.mxu0 0
    %5383 = vmatpush1.bf16.msra.mxu0 %v4103
    %5384 = vmatprep.subr.bf16.mxu0 0
    %5385 = vmatpush1.bf16.msra.mxu0 %v4104
    %5386 = vmatprep.subr.bf16.mxu0 0
    %5387 = vmatpush1.bf16.msra.mxu0 %v4105
    %5388 = vmatprep.subr.bf16.mxu0 0
    %5389 = vmatpush1.bf16.msra.mxu0 %v4106
    %5390 = vmatprep.subr.bf16.mxu0 0
    %5391 = vmatpush1.bf16.msra.mxu0 %v4107
    %5392 = vmatprep.subr.bf16.mxu0 0
    %5393 = vmatpush1.bf16.msra.mxu0 %v4108
    %5394 = vmatprep.subr.bf16.mxu0 0
    %5395 = vmatpush1.bf16.msra.mxu0 %v4109
    %5396 = vmatprep.subr.bf16.mxu0 0
    %5397 = vmatpush1.bf16.msra.mxu0 %v4110
    %5398 = vmatprep.subr.bf16.mxu0 0
    %5399 = vmatpush1.bf16.msra.mxu0 %v4111
    %5400 = vmatprep.mubr.bf16.mxu0 %v1295
    %5401 = vmatmul.mubr.bf16.gmra.mrb[0].mxu0 %v1293
    %v5402 = vpop.f32.mrb[0].mxu0
    %v5403 = vadd.f32 %v5363, %v5402
    %v5404 = vpop.f32.mrb[0].mxu0
    %v5405 = vpop.f32.mrb[0].mxu0
    %v5406 = vpop.f32.mrb[0].mxu0
    %5407 = vdwg.mxu0
    %5408 = vmatprep.subr.bf16.mxu0 0
    %5409 = vmatpush1.bf16.msra.mxu0 %v4112
    %5410 = vmatprep.subr.bf16.mxu0 0
    %5411 = vmatpush1.bf16.msra.mxu0 %v4113
    %5412 = vmatprep.subr.bf16.mxu0 0
    %5413 = vmatpush1.bf16.msra.mxu0 %v4114
    %5414 = vmatprep.subr.bf16.mxu0 0
    %5415 = vmatpush1.bf16.msra.mxu0 %v4115
    %5416 = vmatprep.subr.bf16.mxu0 0
    %5417 = vmatpush1.bf16.msra.mxu0 %v4116
    %5418 = vmatprep.subr.bf16.mxu0 0
    %5419 = vmatpush1.bf16.msra.mxu0 %v4117
    %5420 = vmatprep.subr.bf16.mxu0 0
    %5421 = vmatpush1.bf16.msra.mxu0 %v4118
    %5422 = vmatprep.subr.bf16.mxu0 0
    %5423 = vmatpush1.bf16.msra.mxu0 %v4119
    %5424 = vmatprep.subr.bf16.mxu0 0
    %5425 = vmatpush1.bf16.msra.mxu0 %v4120
    %5426 = vmatprep.subr.bf16.mxu0 0
    %5427 = vmatpush1.bf16.msra.mxu0 %v4121
    %5428 = vmatprep.subr.bf16.mxu0 0
    %5429 = vmatpush1.bf16.msra.mxu0 %v4122
    %5430 = vmatprep.subr.bf16.mxu0 0
    %5431 = vmatpush1.bf16.msra.mxu0 %v4123
    %5432 = vmatprep.subr.bf16.mxu0 0
    %5433 = vmatpush1.bf16.msra.mxu0 %v4124
    %5434 = vmatprep.subr.bf16.mxu0 0
    %5435 = vmatpush1.bf16.msra.mxu0 %v4125
    %5436 = vmatprep.subr.bf16.mxu0 0
    %5437 = vmatpush1.bf16.msra.mxu0 %v4126
    %5438 = vmatprep.subr.bf16.mxu0 0
    %5439 = vmatpush1.bf16.msra.mxu0 %v4127
    %5440 = vmatprep.mubr.bf16.mxu0 %v1292
    %5441 = vmatmul.mubr.bf16.gmra.mrb[0].mxu0 %v1278
    %v5442 = vpop.f32.mrb[0].mxu0
    %v5443 = vadd.f32 %v5403, %v5442
    %v5444 = vpop.f32.mrb[0].mxu0
    %v5445 = vpop.f32.mrb[0].mxu0
    %v5446 = vpop.f32.mrb[0].mxu0
    %5447 = vdwg.mxu0
    %5448 = vmatprep.subr.bf16.mxu0 0
    %5449 = vmatpush1.bf16.msra.mxu0 %v4128
    %5450 = vmatprep.subr.bf16.mxu0 0
    %5451 = vmatpush1.bf16.msra.mxu0 %v4129
    %5452 = vmatprep.subr.bf16.mxu0 0
    %5453 = vmatpush1.bf16.msra.mxu0 %v4130
    %5454 = vmatprep.subr.bf16.mxu0 0
    %5455 = vmatpush1.bf16.msra.mxu0 %v4131
    %5456 = vmatprep.subr.bf16.mxu0 0
    %5457 = vmatpush1.bf16.msra.mxu0 %v4132
    %5458 = vmatprep.subr.bf16.mxu0 0
    %5459 = vmatpush1.bf16.msra.mxu0 %v4133
    %5460 = vmatprep.subr.bf16.mxu0 0
    %5461 = vmatpush1.bf16.msra.mxu0 %v4134
    %5462 = vmatprep.subr.bf16.mxu0 0
    %5463 = vmatpush1.bf16.msra.mxu0 %v4135
    %5464 = vmatprep.subr.bf16.mxu0 0
    %5465 = vmatpush1.bf16.msra.mxu0 %v4136
    %5466 = vmatprep.subr.bf16.mxu0 0
    %5467 = vmatpush1.bf16.msra.mxu0 %v4137
    %5468 = vmatprep.subr.bf16.mxu0 0
    %5469 = vmatpush1.bf16.msra.mxu0 %v4138
    %5470 = vmatprep.subr.bf16.mxu0 0
    %5471 = vmatpush1.bf16.msra.mxu0 %v4139
    %5472 = vmatprep.subr.bf16.mxu0 0
    %5473 = vmatpush1.bf16.msra.mxu0 %v4140
    %5474 = vmatprep.subr.bf16.mxu0 0
    %5475 = vmatpush1.bf16.msra.mxu0 %v4141
    %5476 = vmatprep.subr.bf16.mxu0 0
    %5477 = vmatpush1.bf16.msra.mxu0 %v4142
    %5478 = vmatprep.subr.bf16.mxu0 0
    %5479 = vmatpush1.bf16.msra.mxu0 %v4143
    %5480 = vmatprep.mubr.bf16.mxu0 %v1296
    %5481 = vmatmul.mubr.bf16.gmra.mrb[0].mxu0 %v1294
    %v5482 = vpop.f32.mrb[0].mxu0
    %v5483 = vadd.f32 %v5443, %v5482
    %v5484 = vpop.f32.mrb[0].mxu0
    %v5485 = vpop.f32.mrb[0].mxu0
    %v5486 = vpop.f32.mrb[0].mxu0
    %5487 = vdwg.mxu0
    %5488 = vmatprep.subr.bf16.mxu0 0
    %5489 = vmatpush1.bf16.msra.mxu0 %v4144
    %5490 = vmatprep.subr.bf16.mxu0 0
    %5491 = vmatpush1.bf16.msra.mxu0 %v4145
    %5492 = vmatprep.subr.bf16.mxu0 0
    %5493 = vmatpush1.bf16.msra.mxu0 %v4146
    %5494 = vmatprep.subr.bf16.mxu0 0
    %5495 = vmatpush1.bf16.msra.mxu0 %v4147
    %5496 = vmatprep.subr.bf16.mxu0 0
    %5497 = vmatpush1.bf16.msra.mxu0 %v4148
    %5498 = vmatprep.subr.bf16.mxu0 0
    %5499 = vmatpush1.bf16.msra.mxu0 %v4149
    %5500 = vmatprep.subr.bf16.mxu0 0
    %5501 = vmatpush1.bf16.msra.mxu0 %v4150
    %5502 = vmatprep.subr.bf16.mxu0 0
    %5503 = vmatpush1.bf16.msra.mxu0 %v4151
    %5504 = vmatprep.subr.bf16.mxu0 0
    %5505 = vmatpush1.bf16.msra.mxu0 %v4152
    %5506 = vmatprep.subr.bf16.mxu0 0
    %5507 = vmatpush1.bf16.msra.mxu0 %v4153
    %5508 = vmatprep.subr.bf16.mxu0 0
    %5509 = vmatpush1.bf16.msra.mxu0 %v4154
    %5510 = vmatprep.subr.bf16.mxu0 0
    %5511 = vmatpush1.bf16.msra.mxu0 %v4155
    %5512 = vmatprep.subr.bf16.mxu0 0
    %5513 = vmatpush1.bf16.msra.mxu0 %v4156
    %5514 = vmatprep.subr.bf16.mxu0 0
    %5515 = vmatpush1.bf16.msra.mxu0 %v4157
    %5516 = vmatprep.subr.bf16.mxu0 0
    %5517 = vmatpush1.bf16.msra.mxu0 %v4158
    %5518 = vmatprep.subr.bf16.mxu0 0
    %5519 = vmatpush1.bf16.msra.mxu0 %v4159
    %5520 = vmatprep.mubr.bf16.mxu0 %v1334
    %5521 = vmatmul.mubr.bf16.gmra.mrb[0].mxu0 %v1320
    %v5522 = vpop.f32.mrb[0].mxu0
    %v5523 = vadd.f32 %v5483, %v5522
    %v5524 = vpop.f32.mrb[0].mxu0
    %v5525 = vpop.f32.mrb[0].mxu0
    %v5526 = vpop.f32.mrb[0].mxu0
    %5527 = vdwg.mxu0
    %5528 = vmatprep.subr.bf16.mxu0 0
    %5529 = vmatpush1.bf16.msra.mxu0 %v4160
    %5530 = vmatprep.subr.bf16.mxu0 0
    %5531 = vmatpush1.bf16.msra.mxu0 %v4161
    %5532 = vmatprep.subr.bf16.mxu0 0
    %5533 = vmatpush1.bf16.msra.mxu0 %v4162
    %5534 = vmatprep.subr.bf16.mxu0 0
    %5535 = vmatpush1.bf16.msra.mxu0 %v4163
    %5536 = vmatprep.subr.bf16.mxu0 0
    %5537 = vmatpush1.bf16.msra.mxu0 %v4164
    %5538 = vmatprep.subr.bf16.mxu0 0
    %5539 = vmatpush1.bf16.msra.mxu0 %v4165
    %5540 = vmatprep.subr.bf16.mxu0 0
    %5541 = vmatpush1.bf16.msra.mxu0 %v4166
    %5542 = vmatprep.subr.bf16.mxu0 0
    %5543 = vmatpush1.bf16.msra.mxu0 %v4167
    %5544 = vmatprep.subr.bf16.mxu0 0
    %5545 = vmatpush1.bf16.msra.mxu0 %v4168
    %5546 = vmatprep.subr.bf16.mxu0 0
    %5547 = vmatpush1.bf16.msra.mxu0 %v4169
    %5548 = vmatprep.subr.bf16.mxu0 0
    %5549 = vmatpush1.bf16.msra.mxu0 %v4170
    %5550 = vmatprep.subr.bf16.mxu0 0
    %5551 = vmatpush1.bf16.msra.mxu0 %v4171
    %5552 = vmatprep.subr.bf16.mxu0 0
    %5553 = vmatpush1.bf16.msra.mxu0 %v4172
    %5554 = vmatprep.subr.bf16.mxu0 0
    %5555 = vmatpush1.bf16.msra.mxu0 %v4173
    %5556 = vmatprep.subr.bf16.mxu0 0
    %5557 = vmatpush1.bf16.msra.mxu0 %v4174
    %5558 = vmatprep.subr.bf16.mxu0 0
    %5559 = vmatpush1.bf16.msra.mxu0 %v4175
    %5560 = vmatprep.mubr.bf16.mxu0 %v1344
    %5561 = vmatmul.mubr.bf16.gmra.mrb[0].mxu0 %v1342
    %v5562 = vpop.f32.mrb[0].mxu0
    %v5563 = vadd.f32 %v5523, %v5562
    %v5564 = vpop.f32.mrb[0].mxu0
    %v5565 = vpop.f32.mrb[0].mxu0
    %v5566 = vpop.f32.mrb[0].mxu0
    %5567 = vdwg.mxu0
    %5568 = vmatprep.subr.bf16.mxu0 0
    %5569 = vmatpush1.bf16.msra.mxu0 %v4176
    %5570 = vmatprep.subr.bf16.mxu0 0
    %5571 = vmatpush1.bf16.msra.mxu0 %v4177
    %5572 = vmatprep.subr.bf16.mxu0 0
    %5573 = vmatpush1.bf16.msra.mxu0 %v4178
    %5574 = vmatprep.subr.bf16.mxu0 0
    %5575 = vmatpush1.bf16.msra.mxu0 %v4179
    %5576 = vmatprep.subr.bf16.mxu0 0
    %5577 = vmatpush1.bf16.msra.mxu0 %v4180
    %5578 = vmatprep.subr.bf16.mxu0 0
    %5579 = vmatpush1.bf16.msra.mxu0 %v4181
    %5580 = vmatprep.subr.bf16.mxu0 0
    %5581 = vmatpush1.bf16.msra.mxu0 %v4182
    %5582 = vmatprep.subr.bf16.mxu0 0
    %5583 = vmatpush1.bf16.msra.mxu0 %v4183
    %5584 = vmatprep.subr.bf16.mxu0 0
    %5585 = vmatpush1.bf16.msra.mxu0 %v4184
    %5586 = vmatprep.subr.bf16.mxu0 0
    %5587 = vmatpush1.bf16.msra.mxu0 %v4185
    %5588 = vmatprep.subr.bf16.mxu0 0
    %5589 = vmatpush1.bf16.msra.mxu0 %v4186
    %5590 = vmatprep.subr.bf16.mxu0 0
    %5591 = vmatpush1.bf16.msra.mxu0 %v4187
    %5592 = vmatprep.subr.bf16.mxu0 0
    %5593 = vmatpush1.bf16.msra.mxu0 %v4188
    %5594 = vmatprep.subr.bf16.mxu0 0
    %5595 = vmatpush1.bf16.msra.mxu0 %v4189
    %5596 = vmatprep.subr.bf16.mxu0 0
    %5597 = vmatpush1.bf16.msra.mxu0 %v4190
    %5598 = vmatprep.subr.bf16.mxu0 0
    %5599 = vmatpush1.bf16.msra.mxu0 %v4191
    %5600 = vmatprep.mubr.bf16.mxu0 %v1341
    %5601 = vmatmul.mubr.bf16.gmra.mrb[0].mxu0 %v1327
    %v5602 = vpop.f32.mrb[0].mxu0
    %v5603 = vadd.f32 %v5563, %v5602
    %v5604 = vpop.f32.mrb[0].mxu0
    %v5605 = vpop.f32.mrb[0].mxu0
    %v5606 = vpop.f32.mrb[0].mxu0
    %5607 = vdwg.mxu0
    %5608 = vmatprep.subr.bf16.mxu0 0
    %5609 = vmatpush1.bf16.msra.mxu0 %v4192
    %5610 = vmatprep.subr.bf16.mxu0 0
    %5611 = vmatpush1.bf16.msra.mxu0 %v4193
    %5612 = vmatprep.subr.bf16.mxu0 0
    %5613 = vmatpush1.bf16.msra.mxu0 %v4194
    %5614 = vmatprep.subr.bf16.mxu0 0
    %5615 = vmatpush1.bf16.msra.mxu0 %v4195
    %5616 = vmatprep.subr.bf16.mxu0 0
    %5617 = vmatpush1.bf16.msra.mxu0 %v4196
    %5618 = vmatprep.subr.bf16.mxu0 0
    %5619 = vmatpush1.bf16.msra.mxu0 %v4197
    %5620 = vmatprep.subr.bf16.mxu0 0
    %5621 = vmatpush1.bf16.msra.mxu0 %v4198
    %5622 = vmatprep.subr.bf16.mxu0 0
    %5623 = vmatpush1.bf16.msra.mxu0 %v4199
    %5624 = vmatprep.subr.bf16.mxu0 0
    %5625 = vmatpush1.bf16.msra.mxu0 %v4200
    %5626 = vmatprep.subr.bf16.mxu0 0
    %5627 = vmatpush1.bf16.msra.mxu0 %v4201
    %5628 = vmatprep.subr.bf16.mxu0 0
    %5629 = vmatpush1.bf16.msra.mxu0 %v4202
    %5630 = vmatprep.subr.bf16.mxu0 0
    %5631 = vmatpush1.bf16.msra.mxu0 %v4203
    %5632 = vmatprep.subr.bf16.mxu0 0
    %5633 = vmatpush1.bf16.msra.mxu0 %v4204
    %5634 = vmatprep.subr.bf16.mxu0 0
    %5635 = vmatpush1.bf16.msra.mxu0 %v4205
    %5636 = vmatprep.subr.bf16.mxu0 0
    %5637 = vmatpush1.bf16.msra.mxu0 %v4206
    %5638 = vmatprep.subr.bf16.mxu0 0
    %5639 = vmatpush1.bf16.msra.mxu0 %v4207
    %5640 = vmatprep.mubr.bf16.mxu0 %v1345
    %5641 = vmatmul.mubr.bf16.gmra.mrb[0].mxu0 %v1343
    %v5642 = vpop.f32.mrb[0].mxu0
    %v5643 = vadd.f32 %v5603, %v5642
    %v5644 = vpop.f32.mrb[0].mxu0
    %v5645 = vpop.f32.mrb[0].mxu0
    %v5646 = vpop.f32.mrb[0].mxu0
    %5647 = vdwg.mxu0
    %5648 = vmatprep.subr.bf16.mxu0 0
    %5649 = vmatpush1.bf16.msra.mxu0 %v4208
    %5650 = vmatprep.subr.bf16.mxu0 0
    %5651 = vmatpush1.bf16.msra.mxu0 %v4209
    %5652 = vmatprep.subr.bf16.mxu0 0
    %5653 = vmatpush1.bf16.msra.mxu0 %v4210
    %5654 = vmatprep.subr.bf16.mxu0 0
    %5655 = vmatpush1.bf16.msra.mxu0 %v4211
    %5656 = vmatprep.subr.bf16.mxu0 0
    %5657 = vmatpush1.bf16.msra.mxu0 %v4212
    %5658 = vmatprep.subr.bf16.mxu0 0
    %5659 = vmatpush1.bf16.msra.mxu0 %v4213
    %5660 = vmatprep.subr.bf16.mxu0 0
    %5661 = vmatpush1.bf16.msra.mxu0 %v4214
    %5662 = vmatprep.subr.bf16.mxu0 0
    %5663 = vmatpush1.bf16.msra.mxu0 %v4215
    %5664 = vmatprep.subr.bf16.mxu0 0
    %5665 = vmatpush1.bf16.msra.mxu0 %v4216
    %5666 = vmatprep.subr.bf16.mxu0 0
    %5667 = vmatpush1.bf16.msra.mxu0 %v4217
    %5668 = vmatprep.subr.bf16.mxu0 0
    %5669 = vmatpush1.bf16.msra.mxu0 %v4218
    %5670 = vmatprep.subr.bf16.mxu0 0
    %5671 = vmatpush1.bf16.msra.mxu0 %v4219
    %5672 = vmatprep.subr.bf16.mxu0 0
    %5673 = vmatpush1.bf16.msra.mxu0 %v4220
    %5674 = vmatprep.subr.bf16.mxu0 0
    %5675 = vmatpush1.bf16.msra.mxu0 %v4221
    %5676 = vmatprep.subr.bf16.mxu0 0
    %5677 = vmatpush1.bf16.msra.mxu0 %v4222
    %5678 = vmatprep.subr.bf16.mxu0 0
    %5679 = vmatpush1.bf16.msra.mxu0 %v4223
    %5680 = vmatprep.mubr.bf16.mxu0 %v1383
    %5681 = vmatmul.mubr.bf16.gmra.mrb[0].mxu0 %v1369
    %v5682 = vpop.f32.mrb[0].mxu0
    %v5683 = vadd.f32 %v5643, %v5682
    %v5684 = vpop.f32.mrb[0].mxu0
    %v5685 = vpop.f32.mrb[0].mxu0
    %v5686 = vpop.f32.mrb[0].mxu0
    %5687 = vdwg.mxu0
    %5688 = vmatprep.subr.bf16.mxu0 0
    %5689 = vmatpush1.bf16.msra.mxu0 %v4224
    %5690 = vmatprep.subr.bf16.mxu0 0
    %5691 = vmatpush1.bf16.msra.mxu0 %v4225
    %5692 = vmatprep.subr.bf16.mxu0 0
    %5693 = vmatpush1.bf16.msra.mxu0 %v4226
    %5694 = vmatprep.subr.bf16.mxu0 0
    %5695 = vmatpush1.bf16.msra.mxu0 %v4227
    %5696 = vmatprep.subr.bf16.mxu0 0
    %5697 = vmatpush1.bf16.msra.mxu0 %v4228
    %5698 = vmatprep.subr.bf16.mxu0 0
    %5699 = vmatpush1.bf16.msra.mxu0 %v4229
    %5700 = vmatprep.subr.bf16.mxu0 0
    %5701 = vmatpush1.bf16.msra.mxu0 %v4230
    %5702 = vmatprep.subr.bf16.mxu0 0
    %5703 = vmatpush1.bf16.msra.mxu0 %v4231
    %5704 = vmatprep.subr.bf16.mxu0 0
    %5705 = vmatpush1.bf16.msra.mxu0 %v4232
    %5706 = vmatprep.subr.bf16.mxu0 0
    %5707 = vmatpush1.bf16.msra.mxu0 %v4233
    %5708 = vmatprep.subr.bf16.mxu0 0
    %5709 = vmatpush1.bf16.msra.mxu0 %v4234
    %5710 = vmatprep.subr.bf16.mxu0 0
    %5711 = vmatpush1.bf16.msra.mxu0 %v4235
    %5712 = vmatprep.subr.bf16.mxu0 0
    %5713 = vmatpush1.bf16.msra.mxu0 %v4236
    %5714 = vmatprep.subr.bf16.mxu0 0
    %5715 = vmatpush1.bf16.msra.mxu0 %v4237
    %5716 = vmatprep.subr.bf16.mxu0 0
    %5717 = vmatpush1.bf16.msra.mxu0 %v4238
    %5718 = vmatprep.subr.bf16.mxu0 0
    %5719 = vmatpush1.bf16.msra.mxu0 %v4239
    %5720 = vmatprep.mubr.bf16.mxu0 %v1393
    %5721 = vmatmul.mubr.bf16.gmra.mrb[0].mxu0 %v1391
    %v5722 = vpop.f32.mrb[0].mxu0
    %v5723 = vadd.f32 %v5683, %v5722
    %v5724 = vpop.f32.mrb[0].mxu0
    %v5725 = vpop.f32.mrb[0].mxu0
    %v5726 = vpop.f32.mrb[0].mxu0
    %5727 = vdwg.mxu0
    %5728 = vmatprep.subr.bf16.mxu0 0
    %5729 = vmatpush1.bf16.msra.mxu0 %v4240
    %5730 = vmatprep.subr.bf16.mxu0 0
    %5731 = vmatpush1.bf16.msra.mxu0 %v4241
    %5732 = vmatprep.subr.bf16.mxu0 0
    %5733 = vmatpush1.bf16.msra.mxu0 %v4242
    %5734 = vmatprep.subr.bf16.mxu0 0
    %5735 = vmatpush1.bf16.msra.mxu0 %v4243
    %5736 = vmatprep.subr.bf16.mxu0 0
    %5737 = vmatpush1.bf16.msra.mxu0 %v4244
    %5738 = vmatprep.subr.bf16.mxu0 0
    %5739 = vmatpush1.bf16.msra.mxu0 %v4245
    %5740 = vmatprep.subr.bf16.mxu0 0
    %5741 = vmatpush1.bf16.msra.mxu0 %v4246
    %5742 = vmatprep.subr.bf16.mxu0 0
    %5743 = vmatpush1.bf16.msra.mxu0 %v4247
    %5744 = vmatprep.subr.bf16.mxu0 0
    %5745 = vmatpush1.bf16.msra.mxu0 %v4248
    %5746 = vmatprep.subr.bf16.mxu0 0
    %5747 = vmatpush1.bf16.msra.mxu0 %v4249
    %5748 = vmatprep.subr.bf16.mxu0 0
    %5749 = vmatpush1.bf16.msra.mxu0 %v4250
    %5750 = vmatprep.subr.bf16.mxu0 0
    %5751 = vmatpush1.bf16.msra.mxu0 %v4251
    %5752 = vmatprep.subr.bf16.mxu0 0
    %5753 = vmatpush1.bf16.msra.mxu0 %v4252
    %5754 = vmatprep.subr.bf16.mxu0 0
    %5755 = vmatpush1.bf16.msra.mxu0 %v4253
    %5756 = vmatprep.subr.bf16.mxu0 0
    %5757 = vmatpush1.bf16.msra.mxu0 %v4254
    %5758 = vmatprep.subr.bf16.mxu0 0
    %5759 = vmatpush1.bf16.msra.mxu0 %v4255
    %5760 = vmatprep.mubr.bf16.mxu0 %v1390
    %5761 = vmatmul.mubr.bf16.gmra.mrb[0].mxu0 %v1376
    %v5762 = vpop.f32.mrb[0].mxu0
    %v5763 = vadd.f32 %v5723, %v5762
    %v5764 = vpop.f32.mrb[0].mxu0
    %v5765 = vpop.f32.mrb[0].mxu0
    %v5766 = vpop.f32.mrb[0].mxu0
    %5767 = vdwg.mxu0
    %5768 = vmatprep.subr.bf16.mxu0 0
    %5769 = vmatpush1.bf16.msra.mxu0 %v4256
    %5770 = vmatprep.subr.bf16.mxu0 0
    %5771 = vmatpush1.bf16.msra.mxu0 %v4257
    %5772 = vmatprep.subr.bf16.mxu0 0
    %5773 = vmatpush1.bf16.msra.mxu0 %v4258
    %5774 = vmatprep.subr.bf16.mxu0 0
    %5775 = vmatpush1.bf16.msra.mxu0 %v4259
    %5776 = vmatprep.subr.bf16.mxu0 0
    %5777 = vmatpush1.bf16.msra.mxu0 %v4260
    %5778 = vmatprep.subr.bf16.mxu0 0
    %5779 = vmatpush1.bf16.msra.mxu0 %v4261
    %5780 = vmatprep.subr.bf16.mxu0 0
    %5781 = vmatpush1.bf16.msra.mxu0 %v4262
    %5782 = vmatprep.subr.bf16.mxu0 0
    %5783 = vmatpush1.bf16.msra.mxu0 %v4263
    %5784 = vmatprep.subr.bf16.mxu0 0
    %5785 = vmatpush1.bf16.msra.mxu0 %v4264
    %5786 = vmatprep.subr.bf16.mxu0 0
    %5787 = vmatpush1.bf16.msra.mxu0 %v4265
    %5788 = vmatprep.subr.bf16.mxu0 0
    %5789 = vmatpush1.bf16.msra.mxu0 %v4266
    %5790 = vmatprep.subr.bf16.mxu0 0
    %5791 = vmatpush1.bf16.msra.mxu0 %v4267
    %5792 = vmatprep.subr.bf16.mxu0 0
    %5793 = vmatpush1.bf16.msra.mxu0 %v4268
    %5794 = vmatprep.subr.bf16.mxu0 0
    %5795 = vmatpush1.bf16.msra.mxu0 %v4269
    %5796 = vmatprep.subr.bf16.mxu0 0
    %5797 = vmatpush1.bf16.msra.mxu0 %v4270
    %5798 = vmatprep.subr.bf16.mxu0 0
    %5799 = vmatpush1.bf16.msra.mxu0 %v4271
    %5800 = vmatprep.mubr.bf16.mxu0 %v1394
    %5801 = vmatmul.mubr.bf16.gmra.mrb[0].mxu0 %v1392
    %v5802 = vpop.f32.mrb[0].mxu0
    %v5803 = vadd.f32 %v5763, %v5802
    %v5804 = vpop.f32.mrb[0].mxu0
    %v5805 = vpop.f32.mrb[0].mxu0
    %v5806 = vpop.f32.mrb[0].mxu0
    %5807 = vdwg.mxu0
    %5808 = vmatprep.subr.bf16.mxu0 0
    %5809 = vmatpush1.bf16.msra.mxu0 %v4272
    %5810 = vmatprep.subr.bf16.mxu0 0
    %5811 = vmatpush1.bf16.msra.mxu0 %v4273
    %5812 = vmatprep.subr.bf16.mxu0 0
    %5813 = vmatpush1.bf16.msra.mxu0 %v4274
    %5814 = vmatprep.subr.bf16.mxu0 0
    %5815 = vmatpush1.bf16.msra.mxu0 %v4275
    %5816 = vmatprep.subr.bf16.mxu0 0
    %5817 = vmatpush1.bf16.msra.mxu0 %v4276
    %5818 = vmatprep.subr.bf16.mxu0 0
    %5819 = vmatpush1.bf16.msra.mxu0 %v4277
    %5820 = vmatprep.subr.bf16.mxu0 0
    %5821 = vmatpush1.bf16.msra.mxu0 %v4278
    %5822 = vmatprep.subr.bf16.mxu0 0
    %5823 = vmatpush1.bf16.msra.mxu0 %v4279
    %5824 = vmatprep.subr.bf16.mxu0 0
    %5825 = vmatpush1.bf16.msra.mxu0 %v4280
    %5826 = vmatprep.subr.bf16.mxu0 0
    %5827 = vmatpush1.bf16.msra.mxu0 %v4281
    %5828 = vmatprep.subr.bf16.mxu0 0
    %5829 = vmatpush1.bf16.msra.mxu0 %v4282
    %5830 = vmatprep.subr.bf16.mxu0 0
    %5831 = vmatpush1.bf16.msra.mxu0 %v4283
    %5832 = vmatprep.subr.bf16.mxu0 0
    %5833 = vmatpush1.bf16.msra.mxu0 %v4284
    %5834 = vmatprep.subr.bf16.mxu0 0
    %5835 = vmatpush1.bf16.msra.mxu0 %v4285
    %5836 = vmatprep.subr.bf16.mxu0 0
    %5837 = vmatpush1.bf16.msra.mxu0 %v4286
    %5838 = vmatprep.subr.bf16.mxu0 0
    %5839 = vmatpush1.bf16.msra.mxu0 %v4287
    %5840 = vmatprep.mubr.bf16.mxu0 %v1432
    %5841 = vmatmul.mubr.bf16.gmra.mrb[0].mxu0 %v1418
    %v5842 = vpop.f32.mrb[0].mxu0
    %v5843 = vadd.f32 %v5803, %v5842
    %v5844 = vpop.f32.mrb[0].mxu0
    %v5845 = vpop.f32.mrb[0].mxu0
    %v5846 = vpop.f32.mrb[0].mxu0
    %5847 = vdwg.mxu0
    %5848 = vmatprep.subr.bf16.mxu0 0
    %5849 = vmatpush1.bf16.msra.mxu0 %v4288
    %5850 = vmatprep.subr.bf16.mxu0 0
    %5851 = vmatpush1.bf16.msra.mxu0 %v4289
    %5852 = vmatprep.subr.bf16.mxu0 0
    %5853 = vmatpush1.bf16.msra.mxu0 %v4290
    %5854 = vmatprep.subr.bf16.mxu0 0
    %5855 = vmatpush1.bf16.msra.mxu0 %v4291
    %5856 = vmatprep.subr.bf16.mxu0 0
    %5857 = vmatpush1.bf16.msra.mxu0 %v4292
    %5858 = vmatprep.subr.bf16.mxu0 0
    %5859 = vmatpush1.bf16.msra.mxu0 %v4293
    %5860 = vmatprep.subr.bf16.mxu0 0
    %5861 = vmatpush1.bf16.msra.mxu0 %v4294
    %5862 = vmatprep.subr.bf16.mxu0 0
    %5863 = vmatpush1.bf16.msra.mxu0 %v4295
    %5864 = vmatprep.subr.bf16.mxu0 0
    %5865 = vmatpush1.bf16.msra.mxu0 %v4296
    %5866 = vmatprep.subr.bf16.mxu0 0
    %5867 = vmatpush1.bf16.msra.mxu0 %v4297
    %5868 = vmatprep.subr.bf16.mxu0 0
    %5869 = vmatpush1.bf16.msra.mxu0 %v4298
    %5870 = vmatprep.subr.bf16.mxu0 0
    %5871 = vmatpush1.bf16.msra.mxu0 %v4299
    %5872 = vmatprep.subr.bf16.mxu0 0
    %5873 = vmatpush1.bf16.msra.mxu0 %v4300
    %5874 = vmatprep.subr.bf16.mxu0 0
    %5875 = vmatpush1.bf16.msra.mxu0 %v4301
    %5876 = vmatprep.subr.bf16.mxu0 0
    %5877 = vmatpush1.bf16.msra.mxu0 %v4302
    %5878 = vmatprep.subr.bf16.mxu0 0
    %5879 = vmatpush1.bf16.msra.mxu0 %v4303
    %5880 = vmatprep.mubr.bf16.mxu0 %v1442
    %5881 = vmatmul.mubr.bf16.gmra.mrb[0].mxu0 %v1440
    %v5882 = vpop.f32.mrb[0].mxu0
    %v5883 = vadd.f32 %v5843, %v5882
    %v5884 = vpop.f32.mrb[0].mxu0
    %v5885 = vpop.f32.mrb[0].mxu0
    %v5886 = vpop.f32.mrb[0].mxu0
    %5887 = vdwg.mxu0
    %5888 = vmatprep.subr.bf16.mxu0 0
    %5889 = vmatpush1.bf16.msra.mxu0 %v4304
    %5890 = vmatprep.subr.bf16.mxu0 0
    %5891 = vmatpush1.bf16.msra.mxu0 %v4305
    %5892 = vmatprep.subr.bf16.mxu0 0
    %5893 = vmatpush1.bf16.msra.mxu0 %v4306
    %5894 = vmatprep.subr.bf16.mxu0 0
    %5895 = vmatpush1.bf16.msra.mxu0 %v4307
    %5896 = vmatprep.subr.bf16.mxu0 0
    %5897 = vmatpush1.bf16.msra.mxu0 %v4308
    %5898 = vmatprep.subr.bf16.mxu0 0
    %5899 = vmatpush1.bf16.msra.mxu0 %v4309
    %5900 = vmatprep.subr.bf16.mxu0 0
    %5901 = vmatpush1.bf16.msra.mxu0 %v4310
    %5902 = vmatprep.subr.bf16.mxu0 0
    %5903 = vmatpush1.bf16.msra.mxu0 %v4311
    %5904 = vmatprep.subr.bf16.mxu0 0
    %5905 = vmatpush1.bf16.msra.mxu0 %v4312
    %5906 = vmatprep.subr.bf16.mxu0 0
    %5907 = vmatpush1.bf16.msra.mxu0 %v4313
    %5908 = vmatprep.subr.bf16.mxu0 0
    %5909 = vmatpush1.bf16.msra.mxu0 %v4314
    %5910 = vmatprep.subr.bf16.mxu0 0
    %5911 = vmatpush1.bf16.msra.mxu0 %v4315
    %5912 = vmatprep.subr.bf16.mxu0 0
    %5913 = vmatpush1.bf16.msra.mxu0 %v4316
    %5914 = vmatprep.subr.bf16.mxu0 0
    %5915 = vmatpush1.bf16.msra.mxu0 %v4317
    %5916 = vmatprep.subr.bf16.mxu0 0
    %5917 = vmatpush1.bf16.msra.mxu0 %v4318
    %5918 = vmatprep.subr.bf16.mxu0 0
    %5919 = vmatpush1.bf16.msra.mxu0 %v4319
    %5920 = vmatprep.mubr.bf16.mxu0 %v1439
    %5921 = vmatmul.mubr.bf16.gmra.mrb[0].mxu0 %v1425
    %v5922 = vpop.f32.mrb[0].mxu0
    %v5923 = vadd.f32 %v5883, %v5922
    %v5924 = vpop.f32.mrb[0].mxu0
    %v5925 = vpop.f32.mrb[0].mxu0
    %v5926 = vpop.f32.mrb[0].mxu0
    %5927 = vdwg.mxu0
    %5928 = vmatprep.subr.bf16.mxu0 0
    %5929 = vmatpush1.bf16.msra.mxu0 %v4320
    %5930 = vmatprep.subr.bf16.mxu0 0
    %5931 = vmatpush1.bf16.msra.mxu0 %v4321
    %5932 = vmatprep.subr.bf16.mxu0 0
    %5933 = vmatpush1.bf16.msra.mxu0 %v4322
    %5934 = vmatprep.subr.bf16.mxu0 0
    %5935 = vmatpush1.bf16.msra.mxu0 %v4323
    %5936 = vmatprep.subr.bf16.mxu0 0
    %5937 = vmatpush1.bf16.msra.mxu0 %v4324
    %5938 = vmatprep.subr.bf16.mxu0 0
    %5939 = vmatpush1.bf16.msra.mxu0 %v4325
    %5940 = vmatprep.subr.bf16.mxu0 0
    %5941 = vmatpush1.bf16.msra.mxu0 %v4326
    %5942 = vmatprep.subr.bf16.mxu0 0
    %5943 = vmatpush1.bf16.msra.mxu0 %v4327
    %5944 = vmatprep.subr.bf16.mxu0 0
    %5945 = vmatpush1.bf16.msra.mxu0 %v4328
    %5946 = vmatprep.subr.bf16.mxu0 0
    %5947 = vmatpush1.bf16.msra.mxu0 %v4329
    %5948 = vmatprep.subr.bf16.mxu0 0
    %5949 = vmatpush1.bf16.msra.mxu0 %v4330
    %5950 = vmatprep.subr.bf16.mxu0 0
    %5951 = vmatpush1.bf16.msra.mxu0 %v4331
    %5952 = vmatprep.subr.bf16.mxu0 0
    %5953 = vmatpush1.bf16.msra.mxu0 %v4332
    %5954 = vmatprep.subr.bf16.mxu0 0
    %5955 = vmatpush1.bf16.msra.mxu0 %v4333
    %5956 = vmatprep.subr.bf16.mxu0 0
    %5957 = vmatpush1.bf16.msra.mxu0 %v4334
    %5958 = vmatprep.subr.bf16.mxu0 0
    %5959 = vmatpush1.bf16.msra.mxu0 %v4335
    %5960 = vmatprep.mubr.bf16.mxu0 %v1443
    %5961 = vmatmul.mubr.bf16.gmra.mrb[0].mxu0 %v1441
    %v5962 = vpop.f32.mrb[0].mxu0
    %v5963 = vadd.f32 %v5923, %v5962
    %v5964 = vpop.f32.mrb[0].mxu0
    %v5965 = vpop.f32.mrb[0].mxu0
    %v5966 = vpop.f32.mrb[0].mxu0
    %5967 = vdwg.mxu0
    %5968 = vmatprep.subr.bf16.mxu0 0
    %5969 = vmatpush1.bf16.msra.mxu0 %v4336
    %5970 = vmatprep.subr.bf16.mxu0 0
    %5971 = vmatpush1.bf16.msra.mxu0 %v4337
    %5972 = vmatprep.subr.bf16.mxu0 0
    %5973 = vmatpush1.bf16.msra.mxu0 %v4338
    %5974 = vmatprep.subr.bf16.mxu0 0
    %5975 = vmatpush1.bf16.msra.mxu0 %v4339
    %5976 = vmatprep.subr.bf16.mxu0 0
    %5977 = vmatpush1.bf16.msra.mxu0 %v4340
    %5978 = vmatprep.subr.bf16.mxu0 0
    %5979 = vmatpush1.bf16.msra.mxu0 %v4341
    %5980 = vmatprep.subr.bf16.mxu0 0
    %5981 = vmatpush1.bf16.msra.mxu0 %v4342
    %5982 = vmatprep.subr.bf16.mxu0 0
    %5983 = vmatpush1.bf16.msra.mxu0 %v4343
    %5984 = vmatprep.subr.bf16.mxu0 0
    %5985 = vmatpush1.bf16.msra.mxu0 %v4344
    %5986 = vmatprep.subr.bf16.mxu0 0
    %5987 = vmatpush1.bf16.msra.mxu0 %v4345
    %5988 = vmatprep.subr.bf16.mxu0 0
    %5989 = vmatpush1.bf16.msra.mxu0 %v4346
    %5990 = vmatprep.subr.bf16.mxu0 0
    %5991 = vmatpush1.bf16.msra.mxu0 %v4347
    %5992 = vmatprep.subr.bf16.mxu0 0
    %5993 = vmatpush1.bf16.msra.mxu0 %v4348
    %5994 = vmatprep.subr.bf16.mxu0 0
    %5995 = vmatpush1.bf16.msra.mxu0 %v4349
    %5996 = vmatprep.subr.bf16.mxu0 0
    %5997 = vmatpush1.bf16.msra.mxu0 %v4350
    %5998 = vmatprep.subr.bf16.mxu0 0
    %5999 = vmatpush1.bf16.msra.mxu0 %v4351
    %6000 = vmatprep.mubr.bf16.mxu0 %v1481
    %6001 = vmatmul.mubr.bf16.gmra.mrb[0].mxu0 %v1467
    %v6002 = vpop.f32.mrb[0].mxu0
    %v6003 = vadd.f32 %v5963, %v6002
    %v6004 = vpop.f32.mrb[0].mxu0
    %v6005 = vpop.f32.mrb[0].mxu0
    %v6006 = vpop.f32.mrb[0].mxu0
    %6007 = vdwg.mxu0
    %6008 = vmatprep.subr.bf16.mxu0 0
    %6009 = vmatpush1.bf16.msra.mxu0 %v4352
    %6010 = vmatprep.subr.bf16.mxu0 0
    %6011 = vmatpush1.bf16.msra.mxu0 %v4353
    %6012 = vmatprep.subr.bf16.mxu0 0
    %6013 = vmatpush1.bf16.msra.mxu0 %v4354
    %6014 = vmatprep.subr.bf16.mxu0 0
    %6015 = vmatpush1.bf16.msra.mxu0 %v4355
    %6016 = vmatprep.subr.bf16.mxu0 0
    %6017 = vmatpush1.bf16.msra.mxu0 %v4356
    %6018 = vmatprep.subr.bf16.mxu0 0
    %6019 = vmatpush1.bf16.msra.mxu0 %v4357
    %6020 = vmatprep.subr.bf16.mxu0 0
    %6021 = vmatpush1.bf16.msra.mxu0 %v4358
    %6022 = vmatprep.subr.bf16.mxu0 0
    %6023 = vmatpush1.bf16.msra.mxu0 %v4359
    %6024 = vmatprep.subr.bf16.mxu0 0
    %6025 = vmatpush1.bf16.msra.mxu0 %v4360
    %6026 = vmatprep.subr.bf16.mxu0 0
    %6027 = vmatpush1.bf16.msra.mxu0 %v4361
    %6028 = vmatprep.subr.bf16.mxu0 0
    %6029 = vmatpush1.bf16.msra.mxu0 %v4362
    %6030 = vmatprep.subr.bf16.mxu0 0
    %6031 = vmatpush1.bf16.msra.mxu0 %v4363
    %6032 = vmatprep.subr.bf16.mxu0 0
    %6033 = vmatpush1.bf16.msra.mxu0 %v4364
    %6034 = vmatprep.subr.bf16.mxu0 0
    %6035 = vmatpush1.bf16.msra.mxu0 %v4365
    %6036 = vmatprep.subr.bf16.mxu0 0
    %6037 = vmatpush1.bf16.msra.mxu0 %v4366
    %6038 = vmatprep.subr.bf16.mxu0 0
    %6039 = vmatpush1.bf16.msra.mxu0 %v4367
    %6040 = vmatprep.mubr.bf16.mxu0 %v1491
    %6041 = vmatmul.mubr.bf16.gmra.mrb[0].mxu0 %v1489
    %v6042 = vpop.f32.mrb[0].mxu0
    %v6043 = vadd.f32 %v6003, %v6042
    %v6044 = vpop.f32.mrb[0].mxu0
    %v6045 = vpop.f32.mrb[0].mxu0
    %v6046 = vpop.f32.mrb[0].mxu0
    %6047 = vdwg.mxu0
    %6048 = vmatprep.subr.bf16.mxu0 0
    %6049 = vmatpush1.bf16.msra.mxu0 %v4368
    %6050 = vmatprep.subr.bf16.mxu0 0
    %6051 = vmatpush1.bf16.msra.mxu0 %v4369
    %6052 = vmatprep.subr.bf16.mxu0 0
    %6053 = vmatpush1.bf16.msra.mxu0 %v4370
    %6054 = vmatprep.subr.bf16.mxu0 0
    %6055 = vmatpush1.bf16.msra.mxu0 %v4371
    %6056 = vmatprep.subr.bf16.mxu0 0
    %6057 = vmatpush1.bf16.msra.mxu0 %v4372
    %6058 = vmatprep.subr.bf16.mxu0 0
    %6059 = vmatpush1.bf16.msra.mxu0 %v4373
    %6060 = vmatprep.subr.bf16.mxu0 0
    %6061 = vmatpush1.bf16.msra.mxu0 %v4374
    %6062 = vmatprep.subr.bf16.mxu0 0
    %6063 = vmatpush1.bf16.msra.mxu0 %v4375
    %6064 = vmatprep.subr.bf16.mxu0 0
    %6065 = vmatpush1.bf16.msra.mxu0 %v4376
    %6066 = vmatprep.subr.bf16.mxu0 0
    %6067 = vmatpush1.bf16.msra.mxu0 %v4377
    %6068 = vmatprep.subr.bf16.mxu0 0
    %6069 = vmatpush1.bf16.msra.mxu0 %v4378
    %6070 = vmatprep.subr.bf16.mxu0 0
    %6071 = vmatpush1.bf16.msra.mxu0 %v4379
    %6072 = vmatprep.subr.bf16.mxu0 0
    %6073 = vmatpush1.bf16.msra.mxu0 %v4380
    %6074 = vmatprep.subr.bf16.mxu0 0
    %6075 = vmatpush1.bf16.msra.mxu0 %v4381
    %6076 = vmatprep.subr.bf16.mxu0 0
    %6077 = vmatpush1.bf16.msra.mxu0 %v4382
    %6078 = vmatprep.subr.bf16.mxu0 0
    %6079 = vmatpush1.bf16.msra.mxu0 %v4383
    %6080 = vmatprep.mubr.bf16.mxu0 %v1488
    %6081 = vmatmul.mubr.bf16.gmra.mrb[0].mxu0 %v1474
    %v6082 = vpop.f32.mrb[0].mxu0
    %v6083 = vadd.f32 %v6043, %v6082
    %v6084 = vpop.f32.mrb[0].mxu0
    %v6085 = vpop.f32.mrb[0].mxu0
    %v6086 = vpop.f32.mrb[0].mxu0
    %6087 = vdwg.mxu0
    %6088 = vmatprep.subr.bf16.mxu0 0
    %6089 = vmatpush1.bf16.msra.mxu0 %v4384
    %6090 = vmatprep.subr.bf16.mxu0 0
    %6091 = vmatpush1.bf16.msra.mxu0 %v4385
    %6092 = vmatprep.subr.bf16.mxu0 0
    %6093 = vmatpush1.bf16.msra.mxu0 %v4386
    %6094 = vmatprep.subr.bf16.mxu0 0
    %6095 = vmatpush1.bf16.msra.mxu0 %v4387
    %6096 = vmatprep.subr.bf16.mxu0 0
    %6097 = vmatpush1.bf16.msra.mxu0 %v4388
    %6098 = vmatprep.subr.bf16.mxu0 0
    %6099 = vmatpush1.bf16.msra.mxu0 %v4389
    %6100 = vmatprep.subr.bf16.mxu0 0
    %6101 = vmatpush1.bf16.msra.mxu0 %v4390
    %6102 = vmatprep.subr.bf16.mxu0 0
    %6103 = vmatpush1.bf16.msra.mxu0 %v4391
    %6104 = vmatprep.subr.bf16.mxu0 0
    %6105 = vmatpush1.bf16.msra.mxu0 %v4392
    %6106 = vmatprep.subr.bf16.mxu0 0
    %6107 = vmatpush1.bf16.msra.mxu0 %v4393
    %6108 = vmatprep.subr.bf16.mxu0 0
    %6109 = vmatpush1.bf16.msra.mxu0 %v4394
    %6110 = vmatprep.subr.bf16.mxu0 0
    %6111 = vmatpush1.bf16.msra.mxu0 %v4395
    %6112 = vmatprep.subr.bf16.mxu0 0
    %6113 = vmatpush1.bf16.msra.mxu0 %v4396
    %6114 = vmatprep.subr.bf16.mxu0 0
    %6115 = vmatpush1.bf16.msra.mxu0 %v4397
    %6116 = vmatprep.subr.bf16.mxu0 0
    %6117 = vmatpush1.bf16.msra.mxu0 %v4398
    %6118 = vmatprep.subr.bf16.mxu0 0
    %6119 = vmatpush1.bf16.msra.mxu0 %v4399
    %6120 = vmatprep.mubr.bf16.mxu0 %v1492
    %6121 = vmatmul.mubr.bf16.gmra.mrb[0].mxu0 %v1490
    %v6122 = vpop.f32.mrb[0].mxu0
    %v6123 = vadd.f32 %v6083, %v6122
    %v6124 = vpop.f32.mrb[0].mxu0
    %v6125 = vpop.f32.mrb[0].mxu0
    %v6126 = vpop.f32.mrb[0].mxu0
    %6127 = vdwg.mxu0
    %6128 = vmatprep.subr.bf16.mxu0 0
    %6129 = vmatpush1.bf16.msra.mxu0 %v4400
    %6130 = vmatprep.subr.bf16.mxu0 0
    %6131 = vmatpush1.bf16.msra.mxu0 %v4401
    %6132 = vmatprep.subr.bf16.mxu0 0
    %6133 = vmatpush1.bf16.msra.mxu0 %v4402
    %6134 = vmatprep.subr.bf16.mxu0 0
    %6135 = vmatpush1.bf16.msra.mxu0 %v4403
    %6136 = vmatprep.subr.bf16.mxu0 0
    %6137 = vmatpush1.bf16.msra.mxu0 %v4404
    %6138 = vmatprep.subr.bf16.mxu0 0
    %6139 = vmatpush1.bf16.msra.mxu0 %v4405
    %6140 = vmatprep.subr.bf16.mxu0 0
    %6141 = vmatpush1.bf16.msra.mxu0 %v4406
    %6142 = vmatprep.subr.bf16.mxu0 0
    %6143 = vmatpush1.bf16.msra.mxu0 %v4407
    %6144 = vmatprep.subr.bf16.mxu0 0
    %6145 = vmatpush1.bf16.msra.mxu0 %v4408
    %6146 = vmatprep.subr.bf16.mxu0 0
    %6147 = vmatpush1.bf16.msra.mxu0 %v4409
    %6148 = vmatprep.subr.bf16.mxu0 0
    %6149 = vmatpush1.bf16.msra.mxu0 %v4410
    %6150 = vmatprep.subr.bf16.mxu0 0
    %6151 = vmatpush1.bf16.msra.mxu0 %v4411
    %6152 = vmatprep.subr.bf16.mxu0 0
    %6153 = vmatpush1.bf16.msra.mxu0 %v4412
    %6154 = vmatprep.subr.bf16.mxu0 0
    %6155 = vmatpush1.bf16.msra.mxu0 %v4413
    %6156 = vmatprep.subr.bf16.mxu0 0
    %6157 = vmatpush1.bf16.msra.mxu0 %v4414
    %6158 = vmatprep.subr.bf16.mxu0 0
    %6159 = vmatpush1.bf16.msra.mxu0 %v4415
    %6160 = vmatprep.mubr.bf16.mxu0 %v1530
    %6161 = vmatmul.mubr.bf16.gmra.mrb[0].mxu0 %v1516
    %v6162 = vpop.f32.mrb[0].mxu0
    %v6163 = vadd.f32 %v6123, %v6162
    %v6164 = vpop.f32.mrb[0].mxu0
    %v6165 = vpop.f32.mrb[0].mxu0
    %v6166 = vpop.f32.mrb[0].mxu0
    %6167 = vdwg.mxu0
    %6168 = vmatprep.subr.bf16.mxu0 0
    %6169 = vmatpush1.bf16.msra.mxu0 %v4416
    %6170 = vmatprep.subr.bf16.mxu0 0
    %6171 = vmatpush1.bf16.msra.mxu0 %v4417
    %6172 = vmatprep.subr.bf16.mxu0 0
    %6173 = vmatpush1.bf16.msra.mxu0 %v4418
    %6174 = vmatprep.subr.bf16.mxu0 0
    %6175 = vmatpush1.bf16.msra.mxu0 %v4419
    %6176 = vmatprep.subr.bf16.mxu0 0
    %6177 = vmatpush1.bf16.msra.mxu0 %v4420
    %6178 = vmatprep.subr.bf16.mxu0 0
    %6179 = vmatpush1.bf16.msra.mxu0 %v4421
    %6180 = vmatprep.subr.bf16.mxu0 0
    %6181 = vmatpush1.bf16.msra.mxu0 %v4422
    %6182 = vmatprep.subr.bf16.mxu0 0
    %6183 = vmatpush1.bf16.msra.mxu0 %v4423
    %6184 = vmatprep.subr.bf16.mxu0 0
    %6185 = vmatpush1.bf16.msra.mxu0 %v4424
    %6186 = vmatprep.subr.bf16.mxu0 0
    %6187 = vmatpush1.bf16.msra.mxu0 %v4425
    %6188 = vmatprep.subr.bf16.mxu0 0
    %6189 = vmatpush1.bf16.msra.mxu0 %v4426
    %6190 = vmatprep.subr.bf16.mxu0 0
    %6191 = vmatpush1.bf16.msra.mxu0 %v4427
    %6192 = vmatprep.subr.bf16.mxu0 0
    %6193 = vmatpush1.bf16.msra.mxu0 %v4428
    %6194 = vmatprep.subr.bf16.mxu0 0
    %6195 = vmatpush1.bf16.msra.mxu0 %v4429
    %6196 = vmatprep.subr.bf16.mxu0 0
    %6197 = vmatpush1.bf16.msra.mxu0 %v4430
    %6198 = vmatprep.subr.bf16.mxu0 0
    %6199 = vmatpush1.bf16.msra.mxu0 %v4431
    %6200 = vmatprep.mubr.bf16.mxu0 %v1540
    %6201 = vmatmul.mubr.bf16.gmra.mrb[0].mxu0 %v1538
    %v6202 = vpop.f32.mrb[0].mxu0
    %v6203 = vadd.f32 %v6163, %v6202
    %v6204 = vpop.f32.mrb[0].mxu0
    %v6205 = vpop.f32.mrb[0].mxu0
    %v6206 = vpop.f32.mrb[0].mxu0
    %6207 = vdwg.mxu0
    %6208 = vmatprep.subr.bf16.mxu0 0
    %6209 = vmatpush1.bf16.msra.mxu0 %v4432
    %6210 = vmatprep.subr.bf16.mxu0 0
    %6211 = vmatpush1.bf16.msra.mxu0 %v4433
    %6212 = vmatprep.subr.bf16.mxu0 0
    %6213 = vmatpush1.bf16.msra.mxu0 %v4434
    %6214 = vmatprep.subr.bf16.mxu0 0
    %6215 = vmatpush1.bf16.msra.mxu0 %v4435
    %6216 = vmatprep.subr.bf16.mxu0 0
    %6217 = vmatpush1.bf16.msra.mxu0 %v4436
    %6218 = vmatprep.subr.bf16.mxu0 0
    %6219 = vmatpush1.bf16.msra.mxu0 %v4437
    %6220 = vmatprep.subr.bf16.mxu0 0
    %6221 = vmatpush1.bf16.msra.mxu0 %v4438
    %6222 = vmatprep.subr.bf16.mxu0 0
    %6223 = vmatpush1.bf16.msra.mxu0 %v4439
    %6224 = vmatprep.subr.bf16.mxu0 0
    %6225 = vmatpush1.bf16.msra.mxu0 %v4440
    %6226 = vmatprep.subr.bf16.mxu0 0
    %6227 = vmatpush1.bf16.msra.mxu0 %v4441
    %6228 = vmatprep.subr.bf16.mxu0 0
    %6229 = vmatpush1.bf16.msra.mxu0 %v4442
    %6230 = vmatprep.subr.bf16.mxu0 0
    %6231 = vmatpush1.bf16.msra.mxu0 %v4443
    %6232 = vmatprep.subr.bf16.mxu0 0
    %6233 = vmatpush1.bf16.msra.mxu0 %v4444
    %6234 = vmatprep.subr.bf16.mxu0 0
    %6235 = vmatpush1.bf16.msra.mxu0 %v4445
    %6236 = vmatprep.subr.bf16.mxu0 0
    %6237 = vmatpush1.bf16.msra.mxu0 %v4446
    %6238 = vmatprep.subr.bf16.mxu0 0
    %6239 = vmatpush1.bf16.msra.mxu0 %v4447
    %6240 = vmatprep.mubr.bf16.mxu0 %v1537
    %6241 = vmatmul.mubr.bf16.gmra.mrb[0].mxu0 %v1523
    %v6242 = vpop.f32.mrb[0].mxu0
    %v6243 = vadd.f32 %v6203, %v6242
    %v6244 = vpop.f32.mrb[0].mxu0
    %v6245 = vpop.f32.mrb[0].mxu0
    %v6246 = vpop.f32.mrb[0].mxu0
    %6247 = vdwg.mxu0
    %6248 = vmatprep.subr.bf16.mxu0 0
    %6249 = vmatpush1.bf16.msra.mxu0 %v4448
    %6250 = vmatprep.subr.bf16.mxu0 0
    %6251 = vmatpush1.bf16.msra.mxu0 %v4449
    %6252 = vmatprep.subr.bf16.mxu0 0
    %6253 = vmatpush1.bf16.msra.mxu0 %v4450
    %6254 = vmatprep.subr.bf16.mxu0 0
    %6255 = vmatpush1.bf16.msra.mxu0 %v4451
    %6256 = vmatprep.subr.bf16.mxu0 0
    %6257 = vmatpush1.bf16.msra.mxu0 %v4452
    %6258 = vmatprep.subr.bf16.mxu0 0
    %6259 = vmatpush1.bf16.msra.mxu0 %v4453
    %6260 = vmatprep.subr.bf16.mxu0 0
    %6261 = vmatpush1.bf16.msra.mxu0 %v4454
    %6262 = vmatprep.subr.bf16.mxu0 0
    %6263 = vmatpush1.bf16.msra.mxu0 %v4455
    %6264 = vmatprep.subr.bf16.mxu0 0
    %6265 = vmatpush1.bf16.msra.mxu0 %v4456
    %6266 = vmatprep.subr.bf16.mxu0 0
    %6267 = vmatpush1.bf16.msra.mxu0 %v4457
    %6268 = vmatprep.subr.bf16.mxu0 0
    %6269 = vmatpush1.bf16.msra.mxu0 %v4458
    %6270 = vmatprep.subr.bf16.mxu0 0
    %6271 = vmatpush1.bf16.msra.mxu0 %v4459
    %6272 = vmatprep.subr.bf16.mxu0 0
    %6273 = vmatpush1.bf16.msra.mxu0 %v4460
    %6274 = vmatprep.subr.bf16.mxu0 0
    %6275 = vmatpush1.bf16.msra.mxu0 %v4461
    %6276 = vmatprep.subr.bf16.mxu0 0
    %6277 = vmatpush1.bf16.msra.mxu0 %v4462
    %6278 = vmatprep.subr.bf16.mxu0 0
    %6279 = vmatpush1.bf16.msra.mxu0 %v4463
    %6280 = vmatprep.mubr.bf16.mxu0 %v1541
    %6281 = vmatmul.mubr.bf16.gmra.mrb[0].mxu0 %v1539
    %v6282 = vpop.f32.mrb[0].mxu0
    %v6283 = vadd.f32 %v6243, %v6282
    %v6284 = vpop.f32.mrb[0].mxu0
    %v6285 = vpop.f32.mrb[0].mxu0
    %v6286 = vpop.f32.mrb[0].mxu0
    %6287 = vdwg.mxu0
    %6288 = vmatprep.subr.bf16.mxu0 0
    %6289 = vmatpush1.bf16.msra.mxu0 %v4464
    %6290 = vmatprep.subr.bf16.mxu0 0
    %6291 = vmatpush1.bf16.msra.mxu0 %v4465
    %6292 = vmatprep.subr.bf16.mxu0 0
    %6293 = vmatpush1.bf16.msra.mxu0 %v4466
    %6294 = vmatprep.subr.bf16.mxu0 0
    %6295 = vmatpush1.bf16.msra.mxu0 %v4467
    %6296 = vmatprep.subr.bf16.mxu0 0
    %6297 = vmatpush1.bf16.msra.mxu0 %v4468
    %6298 = vmatprep.subr.bf16.mxu0 0
    %6299 = vmatpush1.bf16.msra.mxu0 %v4469
    %6300 = vmatprep.subr.bf16.mxu0 0
    %6301 = vmatpush1.bf16.msra.mxu0 %v4470
    %6302 = vmatprep.subr.bf16.mxu0 0
    %6303 = vmatpush1.bf16.msra.mxu0 %v4471
    %6304 = vmatprep.subr.bf16.mxu0 0
    %6305 = vmatpush1.bf16.msra.mxu0 %v4472
    %6306 = vmatprep.subr.bf16.mxu0 0
    %6307 = vmatpush1.bf16.msra.mxu0 %v4473
    %6308 = vmatprep.subr.bf16.mxu0 0
    %6309 = vmatpush1.bf16.msra.mxu0 %v4474
    %6310 = vmatprep.subr.bf16.mxu0 0
    %6311 = vmatpush1.bf16.msra.mxu0 %v4475
    %6312 = vmatprep.subr.bf16.mxu0 0
    %6313 = vmatpush1.bf16.msra.mxu0 %v4476
    %6314 = vmatprep.subr.bf16.mxu0 0
    %6315 = vmatpush1.bf16.msra.mxu0 %v4477
    %6316 = vmatprep.subr.bf16.mxu0 0
    %6317 = vmatpush1.bf16.msra.mxu0 %v4478
    %6318 = vmatprep.subr.bf16.mxu0 0
    %6319 = vmatpush1.bf16.msra.mxu0 %v4479
    %6320 = vmatprep.mubr.bf16.mxu0 %v1579
    %6321 = vmatmul.mubr.bf16.gmra.mrb[0].mxu0 %v1565
    %v6322 = vpop.f32.mrb[0].mxu0
    %v6323 = vadd.f32 %v6283, %v6322
    %v6324 = vpop.f32.mrb[0].mxu0
    %v6325 = vpop.f32.mrb[0].mxu0
    %v6326 = vpop.f32.mrb[0].mxu0
    %6327 = vdwg.mxu0
    %6328 = vmatprep.subr.bf16.mxu0 0
    %6329 = vmatpush1.bf16.msra.mxu0 %v4480
    %6330 = vmatprep.subr.bf16.mxu0 0
    %6331 = vmatpush1.bf16.msra.mxu0 %v4481
    %6332 = vmatprep.subr.bf16.mxu0 0
    %6333 = vmatpush1.bf16.msra.mxu0 %v4482
    %6334 = vmatprep.subr.bf16.mxu0 0
    %6335 = vmatpush1.bf16.msra.mxu0 %v4483
    %6336 = vmatprep.subr.bf16.mxu0 0
    %6337 = vmatpush1.bf16.msra.mxu0 %v4484
    %6338 = vmatprep.subr.bf16.mxu0 0
    %6339 = vmatpush1.bf16.msra.mxu0 %v4485
    %6340 = vmatprep.subr.bf16.mxu0 0
    %6341 = vmatpush1.bf16.msra.mxu0 %v4486
    %6342 = vmatprep.subr.bf16.mxu0 0
    %6343 = vmatpush1.bf16.msra.mxu0 %v4487
    %6344 = vmatprep.subr.bf16.mxu0 0
    %6345 = vmatpush1.bf16.msra.mxu0 %v4488
    %6346 = vmatprep.subr.bf16.mxu0 0
    %6347 = vmatpush1.bf16.msra.mxu0 %v4489
    %6348 = vmatprep.subr.bf16.mxu0 0
    %6349 = vmatpush1.bf16.msra.mxu0 %v4490
    %6350 = vmatprep.subr.bf16.mxu0 0
    %6351 = vmatpush1.bf16.msra.mxu0 %v4491
    %6352 = vmatprep.subr.bf16.mxu0 0
    %6353 = vmatpush1.bf16.msra.mxu0 %v4492
    %6354 = vmatprep.subr.bf16.mxu0 0
    %6355 = vmatpush1.bf16.msra.mxu0 %v4493
    %6356 = vmatprep.subr.bf16.mxu0 0
    %6357 = vmatpush1.bf16.msra.mxu0 %v4494
    %6358 = vmatprep.subr.bf16.mxu0 0
    %6359 = vmatpush1.bf16.msra.mxu0 %v4495
    %6360 = vmatprep.mubr.bf16.mxu0 %v1589
    %6361 = vmatmul.mubr.bf16.gmra.mrb[0].mxu0 %v1587
    %v6362 = vpop.f32.mrb[0].mxu0
    %v6363 = vadd.f32 %v6323, %v6362
    %v6364 = vpop.f32.mrb[0].mxu0
    %v6365 = vpop.f32.mrb[0].mxu0
    %v6366 = vpop.f32.mrb[0].mxu0
    %6367 = vdwg.mxu0
    %6368 = vmatprep.subr.bf16.mxu0 0
    %6369 = vmatpush1.bf16.msra.mxu0 %v4496
    %6370 = vmatprep.subr.bf16.mxu0 0
    %6371 = vmatpush1.bf16.msra.mxu0 %v4497
    %6372 = vmatprep.subr.bf16.mxu0 0
    %6373 = vmatpush1.bf16.msra.mxu0 %v4498
    %6374 = vmatprep.subr.bf16.mxu0 0
    %6375 = vmatpush1.bf16.msra.mxu0 %v4499
    %6376 = vmatprep.subr.bf16.mxu0 0
    %6377 = vmatpush1.bf16.msra.mxu0 %v4500
    %6378 = vmatprep.subr.bf16.mxu0 0
    %6379 = vmatpush1.bf16.msra.mxu0 %v4501
    %6380 = vmatprep.subr.bf16.mxu0 0
    %6381 = vmatpush1.bf16.msra.mxu0 %v4502
    %6382 = vmatprep.subr.bf16.mxu0 0
    %6383 = vmatpush1.bf16.msra.mxu0 %v4503
    %6384 = vmatprep.subr.bf16.mxu0 0
    %6385 = vmatpush1.bf16.msra.mxu0 %v4504
    %6386 = vmatprep.subr.bf16.mxu0 0
    %6387 = vmatpush1.bf16.msra.mxu0 %v4505
    %6388 = vmatprep.subr.bf16.mxu0 0
    %6389 = vmatpush1.bf16.msra.mxu0 %v4506
    %6390 = vmatprep.subr.bf16.mxu0 0
    %6391 = vmatpush1.bf16.msra.mxu0 %v4507
    %6392 = vmatprep.subr.bf16.mxu0 0
    %6393 = vmatpush1.bf16.msra.mxu0 %v4508
    %6394 = vmatprep.subr.bf16.mxu0 0
    %6395 = vmatpush1.bf16.msra.mxu0 %v4509
    %6396 = vmatprep.subr.bf16.mxu0 0
    %6397 = vmatpush1.bf16.msra.mxu0 %v4510
    %6398 = vmatprep.subr.bf16.mxu0 0
    %6399 = vmatpush1.bf16.msra.mxu0 %v4511
    %6400 = vmatprep.mubr.bf16.mxu0 %v1586
    %6401 = vmatmul.mubr.bf16.gmra.mrb[0].mxu0 %v1572
    %v6402 = vpop.f32.mrb[0].mxu0
    %v6403 = vadd.f32 %v6363, %v6402
    %v6404 = vpop.f32.mrb[0].mxu0
    %v6405 = vpop.f32.mrb[0].mxu0
    %v6406 = vpop.f32.mrb[0].mxu0
    %6407 = vdwg.mxu0
    %6408 = vmatprep.subr.bf16.mxu0 0
    %6409 = vmatpush1.bf16.msra.mxu0 %v4512
    %6410 = vmatprep.subr.bf16.mxu0 0
    %6411 = vmatpush1.bf16.msra.mxu0 %v4513
    %6412 = vmatprep.subr.bf16.mxu0 0
    %6413 = vmatpush1.bf16.msra.mxu0 %v4514
    %6414 = vmatprep.subr.bf16.mxu0 0
    %6415 = vmatpush1.bf16.msra.mxu0 %v4515
    %6416 = vmatprep.subr.bf16.mxu0 0
    %6417 = vmatpush1.bf16.msra.mxu0 %v4516
    %6418 = vmatprep.subr.bf16.mxu0 0
    %6419 = vmatpush1.bf16.msra.mxu0 %v4517
    %6420 = vmatprep.subr.bf16.mxu0 0
    %6421 = vmatpush1.bf16.msra.mxu0 %v4518
    %6422 = vmatprep.subr.bf16.mxu0 0
    %6423 = vmatpush1.bf16.msra.mxu0 %v4519
    %6424 = vmatprep.subr.bf16.mxu0 0
    %6425 = vmatpush1.bf16.msra.mxu0 %v4520
    %6426 = vmatprep.subr.bf16.mxu0 0
    %6427 = vmatpush1.bf16.msra.mxu0 %v4521
    %6428 = vmatprep.subr.bf16.mxu0 0
    %6429 = vmatpush1.bf16.msra.mxu0 %v4522
    %6430 = vmatprep.subr.bf16.mxu0 0
    %6431 = vmatpush1.bf16.msra.mxu0 %v4523
    %6432 = vmatprep.subr.bf16.mxu0 0
    %6433 = vmatpush1.bf16.msra.mxu0 %v4524
    %6434 = vmatprep.subr.bf16.mxu0 0
    %6435 = vmatpush1.bf16.msra.mxu0 %v4525
    %6436 = vmatprep.subr.bf16.mxu0 0
    %6437 = vmatpush1.bf16.msra.mxu0 %v4526
    %6438 = vmatprep.subr.bf16.mxu0 0
    %6439 = vmatpush1.bf16.msra.mxu0 %v4527
    %6440 = vmatprep.mubr.bf16.mxu0 %v1590
    %6441 = vmatmul.mubr.bf16.gmra.mrb[0].mxu0 %v1588
    %v6442 = vpop.f32.mrb[0].mxu0
    %v6443 = vadd.f32 %v6403, %v6442
    %v6444 = vpop.f32.mrb[0].mxu0
    %v6445 = vpop.f32.mrb[0].mxu0
    %v6446 = vpop.f32.mrb[0].mxu0
    %6447 = vdwg.mxu0
    %6448 = vmatprep.subr.bf16.mxu0 0
    %6449 = vmatpush1.bf16.msra.mxu0 %v4528
    %6450 = vmatprep.subr.bf16.mxu0 0
    %6451 = vmatpush1.bf16.msra.mxu0 %v4529
    %6452 = vmatprep.subr.bf16.mxu0 0
    %6453 = vmatpush1.bf16.msra.mxu0 %v4530
    %6454 = vmatprep.subr.bf16.mxu0 0
    %6455 = vmatpush1.bf16.msra.mxu0 %v4531
    %6456 = vmatprep.subr.bf16.mxu0 0
    %6457 = vmatpush1.bf16.msra.mxu0 %v4532
    %6458 = vmatprep.subr.bf16.mxu0 0
    %6459 = vmatpush1.bf16.msra.mxu0 %v4533
    %6460 = vmatprep.subr.bf16.mxu0 0
    %6461 = vmatpush1.bf16.msra.mxu0 %v4534
    %6462 = vmatprep.subr.bf16.mxu0 0
    %6463 = vmatpush1.bf16.msra.mxu0 %v4535
    %6464 = vmatprep.subr.bf16.mxu0 0
    %6465 = vmatpush1.bf16.msra.mxu0 %v4536
    %6466 = vmatprep.subr.bf16.mxu0 0
    %6467 = vmatpush1.bf16.msra.mxu0 %v4537
    %6468 = vmatprep.subr.bf16.mxu0 0
    %6469 = vmatpush1.bf16.msra.mxu0 %v4538
    %6470 = vmatprep.subr.bf16.mxu0 0
    %6471 = vmatpush1.bf16.msra.mxu0 %v4539
    %6472 = vmatprep.subr.bf16.mxu0 0
    %6473 = vmatpush1.bf16.msra.mxu0 %v4540
    %6474 = vmatprep.subr.bf16.mxu0 0
    %6475 = vmatpush1.bf16.msra.mxu0 %v4541
    %6476 = vmatprep.subr.bf16.mxu0 0
    %6477 = vmatpush1.bf16.msra.mxu0 %v4542
    %6478 = vmatprep.subr.bf16.mxu0 0
    %6479 = vmatpush1.bf16.msra.mxu0 %v4543
    %6480 = vmatprep.mubr.bf16.mxu0 %v1628
    %6481 = vmatmul.mubr.bf16.gmra.mrb[0].mxu0 %v1614
    %v6482 = vpop.f32.mrb[0].mxu0
    %v6483 = vadd.f32 %v6443, %v6482
    %v6484 = vpop.f32.mrb[0].mxu0
    %v6485 = vpop.f32.mrb[0].mxu0
    %v6486 = vpop.f32.mrb[0].mxu0
    %6487 = vdwg.mxu0
    %6488 = vmatprep.subr.bf16.mxu0 0
    %6489 = vmatpush1.bf16.msra.mxu0 %v4544
    %6490 = vmatprep.subr.bf16.mxu0 0
    %6491 = vmatpush1.bf16.msra.mxu0 %v4545
    %6492 = vmatprep.subr.bf16.mxu0 0
    %6493 = vmatpush1.bf16.msra.mxu0 %v4546
    %6494 = vmatprep.subr.bf16.mxu0 0
    %6495 = vmatpush1.bf16.msra.mxu0 %v4547
    %6496 = vmatprep.subr.bf16.mxu0 0
    %6497 = vmatpush1.bf16.msra.mxu0 %v4548
    %6498 = vmatprep.subr.bf16.mxu0 0
    %6499 = vmatpush1.bf16.msra.mxu0 %v4549
    %6500 = vmatprep.subr.bf16.mxu0 0
    %6501 = vmatpush1.bf16.msra.mxu0 %v4550
    %6502 = vmatprep.subr.bf16.mxu0 0
    %6503 = vmatpush1.bf16.msra.mxu0 %v4551
    %6504 = vmatprep.subr.bf16.mxu0 0
    %6505 = vmatpush1.bf16.msra.mxu0 %v4552
    %6506 = vmatprep.subr.bf16.mxu0 0
    %6507 = vmatpush1.bf16.msra.mxu0 %v4553
    %6508 = vmatprep.subr.bf16.mxu0 0
    %6509 = vmatpush1.bf16.msra.mxu0 %v4554
    %6510 = vmatprep.subr.bf16.mxu0 0
    %6511 = vmatpush1.bf16.msra.mxu0 %v4555
    %6512 = vmatprep.subr.bf16.mxu0 0
    %6513 = vmatpush1.bf16.msra.mxu0 %v4556
    %6514 = vmatprep.subr.bf16.mxu0 0
    %6515 = vmatpush1.bf16.msra.mxu0 %v4557
    %6516 = vmatprep.subr.bf16.mxu0 0
    %6517 = vmatpush1.bf16.msra.mxu0 %v4558
    %6518 = vmatprep.subr.bf16.mxu0 0
    %6519 = vmatpush1.bf16.msra.mxu0 %v4559
    %6520 = vmatprep.mubr.bf16.mxu0 %v1638
    %6521 = vmatmul.mubr.bf16.gmra.mrb[0].mxu0 %v1636
    %v6522 = vpop.f32.mrb[0].mxu0
    %v6523 = vadd.f32 %v6483, %v6522
    %v6524 = vpop.f32.mrb[0].mxu0
    %v6525 = vpop.f32.mrb[0].mxu0
    %v6526 = vpop.f32.mrb[0].mxu0
    %6527 = vdwg.mxu0
    %6528 = vmatprep.subr.bf16.mxu0 0
    %6529 = vmatpush1.bf16.msra.mxu0 %v4560
    %6530 = vmatprep.subr.bf16.mxu0 0
    %6531 = vmatpush1.bf16.msra.mxu0 %v4561
    %6532 = vmatprep.subr.bf16.mxu0 0
    %6533 = vmatpush1.bf16.msra.mxu0 %v4562
    %6534 = vmatprep.subr.bf16.mxu0 0
    %6535 = vmatpush1.bf16.msra.mxu0 %v4563
    %6536 = vmatprep.subr.bf16.mxu0 0
    %6537 = vmatpush1.bf16.msra.mxu0 %v4564
    %6538 = vmatprep.subr.bf16.mxu0 0
    %6539 = vmatpush1.bf16.msra.mxu0 %v4565
    %6540 = vmatprep.subr.bf16.mxu0 0
    %6541 = vmatpush1.bf16.msra.mxu0 %v4566
    %6542 = vmatprep.subr.bf16.mxu0 0
    %6543 = vmatpush1.bf16.msra.mxu0 %v4567
    %6544 = vmatprep.subr.bf16.mxu0 0
    %6545 = vmatpush1.bf16.msra.mxu0 %v4568
    %6546 = vmatprep.subr.bf16.mxu0 0
    %6547 = vmatpush1.bf16.msra.mxu0 %v4569
    %6548 = vmatprep.subr.bf16.mxu0 0
    %6549 = vmatpush1.bf16.msra.mxu0 %v4570
    %6550 = vmatprep.subr.bf16.mxu0 0
    %6551 = vmatpush1.bf16.msra.mxu0 %v4571
    %6552 = vmatprep.subr.bf16.mxu0 0
    %6553 = vmatpush1.bf16.msra.mxu0 %v4572
    %6554 = vmatprep.subr.bf16.mxu0 0
    %6555 = vmatpush1.bf16.msra.mxu0 %v4573
    %6556 = vmatprep.subr.bf16.mxu0 0
    %6557 = vmatpush1.bf16.msra.mxu0 %v4574
    %6558 = vmatprep.subr.bf16.mxu0 0
    %6559 = vmatpush1.bf16.msra.mxu0 %v4575
    %6560 = vmatprep.mubr.bf16.mxu0 %v1635
    %6561 = vmatmul.mubr.bf16.gmra.mrb[0].mxu0 %v1621
    %v6562 = vpop.f32.mrb[0].mxu0
    %v6563 = vadd.f32 %v6523, %v6562
    %v6564 = vpop.f32.mrb[0].mxu0
    %v6565 = vpop.f32.mrb[0].mxu0
    %v6566 = vpop.f32.mrb[0].mxu0
    %6567 = vdwg.mxu0
    %6568 = vmatprep.subr.bf16.mxu0 0
    %6569 = vmatpush1.bf16.msra.mxu0 %v4576
    %6570 = vmatprep.subr.bf16.mxu0 0
    %6571 = vmatpush1.bf16.msra.mxu0 %v4577
    %6572 = vmatprep.subr.bf16.mxu0 0
    %6573 = vmatpush1.bf16.msra.mxu0 %v4578
    %6574 = vmatprep.subr.bf16.mxu0 0
    %6575 = vmatpush1.bf16.msra.mxu0 %v4579
    %6576 = vmatprep.subr.bf16.mxu0 0
    %6577 = vmatpush1.bf16.msra.mxu0 %v4580
    %6578 = vmatprep.subr.bf16.mxu0 0
    %6579 = vmatpush1.bf16.msra.mxu0 %v4581
    %6580 = vmatprep.subr.bf16.mxu0 0
    %6581 = vmatpush1.bf16.msra.mxu0 %v4582
    %6582 = vmatprep.subr.bf16.mxu0 0
    %6583 = vmatpush1.bf16.msra.mxu0 %v4583
    %6584 = vmatprep.subr.bf16.mxu0 0
    %6585 = vmatpush1.bf16.msra.mxu0 %v4584
    %6586 = vmatprep.subr.bf16.mxu0 0
    %6587 = vmatpush1.bf16.msra.mxu0 %v4585
    %6588 = vmatprep.subr.bf16.mxu0 0
    %6589 = vmatpush1.bf16.msra.mxu0 %v4586
    %6590 = vmatprep.subr.bf16.mxu0 0
    %6591 = vmatpush1.bf16.msra.mxu0 %v4587
    %6592 = vmatprep.subr.bf16.mxu0 0
    %6593 = vmatpush1.bf16.msra.mxu0 %v4588
    %6594 = vmatprep.subr.bf16.mxu0 0
    %6595 = vmatpush1.bf16.msra.mxu0 %v4589
    %6596 = vmatprep.subr.bf16.mxu0 0
    %6597 = vmatpush1.bf16.msra.mxu0 %v4590
    %6598 = vmatprep.subr.bf16.mxu0 0
    %6599 = vmatpush1.bf16.msra.mxu0 %v4591
    %6600 = vmatprep.mubr.bf16.mxu0 %v1639
    %6601 = vmatmul.mubr.bf16.gmra.mrb[0].mxu0 %v1637
    %v6602 = vpop.f32.mrb[0].mxu0
    %v6603 = vadd.f32 %v6563, %v6602
    %v6604 = vpop.f32.mrb[0].mxu0
    %v6605 = vpop.f32.mrb[0].mxu0
    %v6606 = vpop.f32.mrb[0].mxu0
    %6607 = vdwg.mxu0
    %v6608 = vmax.f32 %v6603, 0.0
    %v6609 = vpack.c.bf16 %v6608, %v6608
    %v6610 = vld [vmem:[%s3] sm:$0xf]
    %v6611 = vld [vmem:[%s3 + $0x4] sm:$0xf]
    %v6612 = vld [vmem:[%s3 + $0x8] sm:$0xf]
    %v6613 = vld [vmem:[%s3 + $0xc] sm:$0xf]
    %v6614 = vld [vmem:[%s3 + $0x10] sm:$0xf]
    %v6615 = vld [vmem:[%s3 + $0x14] sm:$0xf]
    %v6616 = vld [vmem:[%s3 + $0x18] sm:$0xf]
    %v6617 = vld [vmem:[%s3 + $0x1c] sm:$0xf]
    %v6618 = vld [vmem:[%s3 + $0x20] sm:$0xf]
    %v6619 = vld [vmem:[%s3 + $0x24] sm:$0xf]
    %v6620 = vld [vmem:[%s3 + $0x28] sm:$0xf]
    %v6621 = vld [vmem:[%s3 + $0x2c] sm:$0xf]
    %v6622 = vld [vmem:[%s3 + $0x30] sm:$0xf]
    %v6623 = vld [vmem:[%s3 + $0x34] sm:$0xf]
    %v6624 = vld [vmem:[%s3 + $0x38] sm:$0xf]
    %v6625 = vld [vmem:[%s3 + $0x3c] sm:$0xf]
    %v6626 = vld [vmem:[%s4] sm:$0x1]
    %v6628 = vlaneseq
    %v6629 = vshrl.u32 %v6628, 7
    %v6630 = vsub.s32 0, %v6629
    %v6631 = vrot.slane %v6626, %v6630
    %v6649 = vunpack.c.l.b16 %v6610
    %v6650 = vunpack.c.l.b16 %v6611
    %v6651 = vunpack.c.l.b16 %v6612
    %v6652 = vunpack.c.l.b16 %v6613
    %v6653 = vunpack.c.l.b16 %v6614
    %v6654 = vunpack.c.l.b16 %v6615
    %v6655 = vunpack.c.l.b16 %v6616
    %v6656 = vunpack.c.l.b16 %v6617
    %v6657 = vunpack.c.l.b16 %v6618
    %v6658 = vunpack.c.l.b16 %v6619
    %v6659 = vunpack.c.l.b16 %v6620
    %v6660 = vunpack.c.l.b16 %v6621
    %v6661 = vunpack.c.l.b16 %v6622
    %v6662 = vunpack.c.l.b16 %v6623
    %v6663 = vunpack.c.l.b16 %v6624
    %v6664 = vunpack.c.l.b16 %v6625
    %v6665 = vpack.c.b16 %v6650, %v6649
    %v6666 = vpack.c.b16 %v6652, %v6651
    %v6667 = vpack.c.b16 %v6654, %v6653
    %v6668 = vpack.c.b16 %v6656, %v6655
    %v6669 = vpack.c.b16 %v6658, %v6657
    %v6670 = vpack.c.b16 %v6660, %v6659
    %v6671 = vpack.c.b16 %v6662, %v6661
    %v6672 = vpack.c.b16 %v6664, %v6663
    %6681 = vmatprep.subr.bf16.mxu0 0
    %6682 = vmatpush1.bf16.msra.mxu0 %v6665
    %6683 = vmatprep.subr.bf16.mxu0 0
    %6684 = vmatpush1.bf16.msra.mxu0 %v6666
    %6685 = vmatprep.subr.bf16.mxu0 0
    %6686 = vmatpush1.bf16.msra.mxu0 %v6667
    %6687 = vmatprep.subr.bf16.mxu0 0
    %6688 = vmatpush1.bf16.msra.mxu0 %v6668
    %6689 = vmatprep.subr.bf16.mxu0 0
    %6690 = vmatpush1.bf16.msra.mxu0 %v6669
    %6691 = vmatprep.subr.bf16.mxu0 0
    %6692 = vmatpush1.bf16.msra.mxu0 %v6670
    %6693 = vmatprep.subr.bf16.mxu0 0
    %6694 = vmatpush1.bf16.msra.mxu0 %v6671
    %6695 = vmatprep.subr.bf16.mxu0 0
    %6696 = vmatpush1.bf16.msra.mxu0 %v6672
    %6697 = vmatprep.subr.bf16.mxu0 0
    %6698 = vmatpush1.bf16.msra.mxu0 0
    %6699 = vmatprep.subr.bf16.mxu0 0
    %6700 = vmatpush1.bf16.msra.mxu0 0
    %6701 = vmatprep.subr.bf16.mxu0 0
    %6702 = vmatpush1.bf16.msra.mxu0 0
    %6703 = vmatprep.subr.bf16.mxu0 0
    %6704 = vmatpush1.bf16.msra.mxu0 0
    %6705 = vmatprep.subr.bf16.mxu0 0
    %6706 = vmatpush1.bf16.msra.mxu0 0
    %6707 = vmatprep.subr.bf16.mxu0 0
    %6708 = vmatpush1.bf16.msra.mxu0 0
    %6709 = vmatprep.subr.bf16.mxu0 0
    %6710 = vmatpush1.bf16.msra.mxu0 0
    %6711 = vmatprep.subr.bf16.mxu0 0
    %6712 = vmatpush1.bf16.msra.mxu0 0
    %6713 = vmatprep.mubr.bf16.mxu0 0
    %6714 = vmatmul.mubr.bf16.gmra.mrb[0].mxu0 %v6609
    %v6715 = vpop.f32.mrb[0].mxu0
    %v6716 = vadd.f32 %v6631, %v6715
    %v6717 = vpop.f32.mrb[0].mxu0
    %v6718 = vpop.f32.mrb[0].mxu0
    %v6719 = vpop.f32.mrb[0].mxu0
    %6720 = vdwg.mxu0
    %vm6721 = vcmask 1041408
    %v6722 = vsel %vm6721, %v6716, -inf
    %6723 = vmax.xlane.f32.xlu0 %v6722
    %v6724 = vpop.xlane.xlu0 %6723
    %v6725 = vsub.f32 %v6716, %v6724
    %v6726 = vmul.f32 %v6725, 1.442695
    %v6727 = vpow.pop %v6726
    %v6728 = vsel %vm6721, %v6727, 0.0
    %6729 = vadd.xlane.f32.xlu0 %v6728
    %v6730 = vpop.xlane.xlu0 %6729
    %v6731 = vlog2.pop %v6730
    %v6732 = vmul.f32 %v6731, 0.6931472
    %v6733 = vadd.f32 %v6732, %v6724
    %v6734 = vsub.f32 %v6716, %v6733
    %6735 = vst [vmem:[#allocation2] sm:$0x3] %v6734
    // Predicated region
    $region22: #{basic_net_forward.3} parent=1 // pred_check
      _
    $region23: #{basic_net_forward.3} parent=1 // pred_check_branch
      %6737 = sbr.rel (0) target = $region25
    $region24: #{basic_net_forward.3} parent=1 // pred_region
      %s6739 = ssub.s32 32, 32
      %6740 = vsyncadd [#allocation3], %s6739
      %s6742 = sshll.u32 [#allocation2], 4
      %s6743 = int_to_ptr.vmem [resolvable:$true] %s6742
      %6745 = dma.vmem_to_hbm [thread:$0]  %s6743, 32, %s5, [#allocation3]
    $region25: #{basic_net_forward.3} parent=1 // pred_fallthru
      _
    // Predicated region
    $region26: #{basic_net_forward.3} parent=1 // pred_check
      _
    $region27: #{basic_net_forward.3} parent=1 // pred_check_branch
      %6747 = sbr.rel (0) target = $region29
    $region28: #{basic_net_forward.3} parent=1 // pred_region
      %6748 = dma.done [#allocation3], 32
    $region29: #{basic_net_forward.3} parent=1 // pred_fallthru
      _
    %6749 = vsyncpa [#allocation3], 1

</llo_original>
